<compile_context>
chip_gen: v6e
topology: v6e:2x2x1
jax: 0.10.0
libtpu: 0.0.40
codegen_flags: <defaults>
</compile_context>

<pallas_src>
import functools

import jax
import jax.numpy as jnp
from jax.experimental import pallas as pl
from jax.experimental.pallas import tpu as pltpu


# ---------------------------------------------------------------------------
# helpers
# ---------------------------------------------------------------------------
def _layernorm(x, eps=1e-6):
    # elementwise_affine=False LayerNorm over last dim (f32)
    mean = jnp.mean(x, axis=-1, keepdims=True)
    var = jnp.mean((x - mean) ** 2, axis=-1, keepdims=True)
    return (x - mean) * jax.lax.rsqrt(var + eps)


def _gelu_tanh(x):
    # GELU(approximate='tanh')
    c = 0.7978845608028654  # sqrt(2/pi)
    return 0.5 * x * (1.0 + jnp.tanh(c * (x + 0.044715 * x * x * x)))


def _silu(x):
    return x * jax.nn.sigmoid(x)


# ---------------------------------------------------------------------------
# Pallas kernel: Block forward for ONE batch element
# ---------------------------------------------------------------------------
def block_kernel(
    x_ref,       # (1, N, C)  f32
    ada_ref,     # (1, 6, C)  f32  [shift_msa, scale_msa, gate_msa, shift_mlp, scale_mlp, gate_mlp]
    w_qkv_ref,   # (C, 3C)    bf16
    b_qkv_ref,   # (1, 3C)    f32
    w_proj_ref,  # (C, C)     bf16
    b_proj_ref,  # (1, C)     f32
    w1_ref,      # (C, Hm)    bf16
    b1_ref,      # (1, Hm)    f32
    w2_ref,      # (Hm, C)    bf16
    b2_ref,      # (1, C)     f32
    o_ref,       # (1, N, C)  f32
    *,
    num_heads: int,
):
    f32 = jnp.float32
    bf16 = jnp.bfloat16

    x = x_ref[0]                              # (N, C) f32
    N, C = x.shape
    H = num_heads
    hd = C // H
    scale = 1.0 / (hd ** 0.5)

    ada = ada_ref[0]                          # (6, C) f32
    shift_msa, scale_msa, gate_msa = ada[0:1], ada[1:2], ada[2:3]
    shift_mlp, scale_mlp, gate_mlp = ada[3:4], ada[4:5], ada[5:6]

    # ---- attention branch ---------------------------------------------------
    h1 = _layernorm(x) * (1.0 + scale_msa) + shift_msa          # modulate, (N, C) f32

    # fused QKV projection: one lane-dense (N, C) x (C, 3C) MXU matmul (f32 accumulate)
    qkv = jnp.dot(h1.astype(bf16), w_qkv_ref[...],
                  preferred_element_type=f32) + b_qkv_ref[...]  # (N, 3C) f32

    # fold 1/sqrt(hd) into q once on the (N, C) slice, then cast matmul operands to bf16
    q = (qkv[:, 0:C] * scale).astype(bf16)
    k = qkv[:, C:2 * C].astype(bf16)
    v = qkv[:, 2 * C:3 * C].astype(bf16)

    # per-head attention on 2-D lane-aligned slices (no (H, N, C) / 3-D relayouts).
    # scores: (N, hd) x (hd, N) -> (N, N)   (lane-dense output)
    # AV    : (N, N)  x (N, hd) -> (N, hd)
    av_heads = []
    for h in range(H):
        lo = h * hd
        q_h = q[:, lo:lo + hd]
        k_h = k[:, lo:lo + hd]
        v_h = v[:, lo:lo + hd]
        # s = q_h @ k_h^T : contract head_dim on both sides, no materialized transpose
        s = jax.lax.dot_general(q_h, k_h, (((1,), (1,)), ((), ())),
                                preferred_element_type=f32)      # (N, N) f32
        s = s - jnp.max(s, axis=-1, keepdims=True)
        p = jnp.exp(s)
        # deferred softmax normalization: normalize the (N, hd) AV result instead of the
        # (N, N) probabilities; reciprocal runs on the EUP
        inv_l = pl.reciprocal(jnp.sum(p, axis=-1, keepdims=True), approx=True)  # (N, 1)
        av = jnp.dot(p.astype(bf16), v_h, preferred_element_type=f32)           # (N, hd)
        av_heads.append(av * inv_l)
    av = jnp.concatenate(av_heads, axis=-1)                      # (N, C) f32

    # fused output projection: single (N, C) x (C, C) matmul (head accumulation in MXU)
    attn = jnp.dot(av.astype(bf16), w_proj_ref[...],
                   preferred_element_type=f32) + b_proj_ref[...]

    x = x + gate_msa * attn                                      # residual 1 (f32)

    # ---- MLP branch ----------------------------------------------------------
    h2 = _layernorm(x) * (1.0 + scale_mlp) + shift_mlp
    m = jnp.dot(h2.astype(bf16), w1_ref[...],
                preferred_element_type=f32) + b1_ref[...]        # (N, Hm) f32
    m = _gelu_tanh(m)                                            # f32 (portable to v5e)
    m = jnp.dot(m.astype(bf16), w2_ref[...],
                preferred_element_type=f32) + b2_ref[...]        # (N, C) f32

    o_ref[0] = x + gate_mlp * m                                  # residual 2


# ---------------------------------------------------------------------------
# one-time parameter preparation (hoisted out of the per-call forward)
# ---------------------------------------------------------------------------
def prepare_block_params(params):
    bf16 = jnp.bfloat16
    return {
        # adaLN weights stay f32 — used in the wrapper (tiny M=1 matmul)
        "w_ada": params["w_ada"],
        "b_ada": params["b_ada"],
        # matmul weights cast to bf16 ONCE; biases stay f32
        "w_qkv": params["w_qkv"].astype(bf16),
        "b_qkv": params["b_qkv"],
        "w_proj": params["w_proj"].astype(bf16),
        "b_proj": params["b_proj"],
        "w1": params["w1"].astype(bf16),
        "b1": params["b1"],
        "w2": params["w2"].astype(bf16),
        "b2": params["b2"],
    }


# ---------------------------------------------------------------------------
# Python wrapper
# ---------------------------------------------------------------------------
def block_forward(x, c, prep, num_heads):
    B, N, C = x.shape
    Hm = prep["w1"].shape[1]

    # adaLN modulation hoisted out of the kernel; packed as (B, 6, C) for ONE DMA/block
    ada = _silu(c) @ prep["w_ada"] + prep["b_ada"]               # (B, 6C) f32
    ada = ada.reshape(B, 6, C)

    # weights are grid-invariant: constant index_map + single buffer (no 2x VMEM copy)
    def weight_spec(shape):
        return pl.BlockSpec(shape, lambda b: (0, 0), pipeline_mode=pl.Buffered(1))

    kernel = functools.partial(block_kernel, num_heads=num_heads)

    return pl.pallas_call(
        kernel,
        out_shape=jax.ShapeDtypeStruct((B, N, C), jnp.float32),
        grid_spec=pltpu.PrefetchScalarGridSpec(
            num_scalar_prefetch=0,
            grid=(B,),
            in_specs=[
                pl.BlockSpec((1, N, C), lambda b: (b, 0, 0)),    # x
                pl.BlockSpec((1, 6, C), lambda b: (b, 0, 0)),    # packed conditioning
                weight_spec((C, 3 * C)), weight_spec((1, 3 * C)),  # w_qkv, b_qkv
                weight_spec((C, C)),     weight_spec((1, C)),      # w_proj, b_proj
                weight_spec((C, Hm)),    weight_spec((1, Hm)),     # w1, b1
                weight_spec((Hm, C)),    weight_spec((1, C)),      # w2, b2
            ],
            out_specs=pl.BlockSpec((1, N, C), lambda b: (b, 0, 0)),
        ),
        compiler_params=pltpu.CompilerParams(
            dimension_semantics=("parallel",),
            # fits v7x's 64 MiB physical VMEM with headroom; raise toward ~100 MiB only on
            # v5e/v6e when scaling N / C.
            vmem_limit_bytes=48 * 1024 * 1024,
        ),
    )(
        x, ada,
        prep["w_qkv"], prep["b_qkv"],
        prep["w_proj"], prep["b_proj"],
        prep["w1"], prep["b1"],
        prep["w2"], prep["b2"],
    )


# ---------------------------------------------------------------------------
# pure-JAX reference (same math, matching bf16 matmul inputs / f32 accumulation)
# ---------------------------------------------------------------------------
def block_reference(x, c, p, num_heads):
    B, N, C = x.shape
    H = num_heads
    hd = C // H
    scale = hd ** -0.5
    bf16 = jnp.bfloat16
    f32 = jnp.float32

    ada = _silu(c) @ p["w_ada"] + p["b_ada"]                     # (B, 6C) f32
    sm, scm, gm, smlp, scmlp, gmlp = jnp.split(ada, 6, axis=1)

    h1 = _layernorm(x) * (1.0 + scm[:, None, :]) + sm[:, None, :]
    qkv = jnp.einsum("bnc,ck->bnk", h1.astype(bf16), p["w_qkv"].astype(bf16),
                     preferred_element_type=f32) + p["b_qkv"]
    q, k, v = jnp.split(qkv, 3, axis=-1)
    q = q.reshape(B, N, H, hd).transpose(0, 2, 1, 3)
    k = k.reshape(B, N, H, hd).transpose(0, 2, 1, 3)
    v = v.reshape(B, N, H, hd).transpose(0, 2, 1, 3)
    s = jnp.einsum("bhqd,bhkd->bhqk", q.astype(bf16), k.astype(bf16),
                   preferred_element_type=f32) * scale
    pr = jax.nn.softmax(s, axis=-1)
    a = jnp.einsum("bhqk,bhkd->bhqd", pr.astype(bf16), v.astype(bf16),
                   preferred_element_type=f32)
    a = a.transpose(0, 2, 1, 3).reshape(B, N, C)
    a = jnp.einsum("bnc,ck->bnk", a.astype(bf16), p["w_proj"].astype(bf16),
                   preferred_element_type=f32) + p["b_proj"]
    x = x + gm[:, None, :] * a

    h2 = _layernorm(x) * (1.0 + scmlp[:, None, :]) + smlp[:, None, :]
    m = jnp.einsum("bnc,ch->bnh", h2.astype(bf16), p["w1"].astype(bf16),
                   preferred_element_type=f32) + p["b1"]
    m = _gelu_tanh(m)
    m = jnp.einsum("bnh,hc->bnc", m.astype(bf16), p["w2"].astype(bf16),
                   preferred_element_type=f32) + p["b2"]
    return x + gmlp[:, None, :] * m


# ---------------------------------------------------------------------------
if __name__ == "__main__":
    # lane-dense toy shapes: C and head_dim are multiples of 128, B even (v7x: 2 TCs)
    B, N, C = 2, 128, 256        # batch, seq, hidden_size
    num_heads = 2                # head_dim = 128
    mlp_ratio = 4.0
    Hm = int(C * mlp_ratio)      # 1024

    key = jax.random.PRNGKey(0)
    ks = jax.random.split(key, 12)

    def init(k, shape, fan_in):
        return (jax.random.normal(k, shape, jnp.float32) / jnp.sqrt(fan_in)).astype(jnp.float32)

    params = {
        # adaLN_modulation[1]: Linear(C, 6C, bias=True)
        "w_ada": init(ks[0], (C, 6 * C), C),
        "b_ada": init(ks[1], (1, 6 * C), C) * 0.1,
        # attn.qkv: Linear(C, 3C, bias=True)
        "w_qkv": init(ks[2], (C, 3 * C), C),
        "b_qkv": init(ks[3], (1, 3 * C), C) * 0.1,
        # attn.proj: Linear(C, C, bias=True)
        "w_proj": init(ks[4], (C, C), C),
        "b_proj": init(ks[5], (1, C), C) * 0.1,
        # mlp.fc1: Linear(C, Hm), mlp.fc2: Linear(Hm, C)
        "w1": init(ks[6], (C, Hm), C),
        "b1": init(ks[7], (1, Hm), C) * 0.1,
        "w2": init(ks[8], (Hm, C), Hm),
        "b2": init(ks[9], (1, C), Hm) * 0.1,
    }

    x = jax.random.normal(ks[10], (B, N, C), jnp.float32)
    c = jax.random.normal(ks[11], (B, C), jnp.float32)

    # one-time weight preparation (bf16 casts), then the jitted forward
    prep = prepare_block_params(params)
    fwd = jax.jit(functools.partial(block_forward, num_heads=num_heads))

    out = fwd(x, c, prep)
    out = jax.block_until_ready(out)

    ref = block_reference(x, c, params, num_heads)
    assert out.shape == (B, N, C)
    err = float(jnp.max(jnp.abs(out - ref) / (1.0 + jnp.abs(ref))))
    assert err < 3e-2, f"mismatch vs reference: {err}"

    print("KERNEL_OK")
</pallas_src>

<mosaic_0001>
module attributes {stable_mosaic.version = 11 : i64} {
  func.func @block_kernel(%arg0: i32, %arg1: memref<1x128x256xf32, #tpu.memory_space<vmem>>, %arg2: memref<1x6x256xf32, #tpu.memory_space<vmem>>, %arg3: memref<256x768xbf16, #tpu.memory_space<vmem>>, %arg4: memref<1x768xf32, #tpu.memory_space<vmem>>, %arg5: memref<256x256xbf16, #tpu.memory_space<vmem>>, %arg6: memref<1x256xf32, #tpu.memory_space<vmem>>, %arg7: memref<256x1024xbf16, #tpu.memory_space<vmem>>, %arg8: memref<1x1024xf32, #tpu.memory_space<vmem>>, %arg9: memref<1024x256xbf16, #tpu.memory_space<vmem>>, %arg10: memref<1x256xf32, #tpu.memory_space<vmem>>, %arg11: memref<1x128x256xf32, #tpu.memory_space<vmem>>) attributes {dimension_semantics = [#tpu.dimension_semantics<parallel>], iteration_bounds = array<i64: 2>, scalar_prefetch = 0 : i64, scratch_operands = 0 : i64, tpu.core_type = #tpu.core_type<tc>, window_params = [{transform_indices = @transform_0, window_bounds = array<i64: 1, 128, 256>}, {transform_indices = @transform_1, window_bounds = array<i64: 1, 6, 256>}, {pipeline_mode = #tpu.pipeline_mode<synchronous>, transform_indices = @transform_2, window_bounds = array<i64: 256, 768>}, {pipeline_mode = #tpu.pipeline_mode<synchronous>, transform_indices = @transform_3, window_bounds = array<i64: 1, 768>}, {pipeline_mode = #tpu.pipeline_mode<synchronous>, transform_indices = @transform_4, window_bounds = array<i64: 256, 256>}, {pipeline_mode = #tpu.pipeline_mode<synchronous>, transform_indices = @transform_5, window_bounds = array<i64: 1, 256>}, {pipeline_mode = #tpu.pipeline_mode<synchronous>, transform_indices = @transform_6, window_bounds = array<i64: 256, 1024>}, {pipeline_mode = #tpu.pipeline_mode<synchronous>, transform_indices = @transform_7, window_bounds = array<i64: 1, 1024>}, {pipeline_mode = #tpu.pipeline_mode<synchronous>, transform_indices = @transform_8, window_bounds = array<i64: 1024, 256>}, {pipeline_mode = #tpu.pipeline_mode<synchronous>, transform_indices = @transform_9, window_bounds = array<i64: 1, 256>}, {transform_indices = @transform_10, window_bounds = array<i64: 1, 128, 256>}]} {
    %c0 = arith.constant 0 : index
    %c0_0 = arith.constant 0 : index
    %c0_1 = arith.constant 0 : index
    %0 = vector.load %arg1[%c0, %c0_0, %c0_1] : memref<1x128x256xf32, #tpu.memory_space<vmem>>, vector<1x128x256xf32>
    %1 = vector.shape_cast %0 : vector<1x128x256xf32> to vector<128x256xf32>
    %c0_2 = arith.constant 0 : index
    %c0_3 = arith.constant 0 : index
    %c0_4 = arith.constant 0 : index
    %2 = vector.load %arg2[%c0_2, %c0_3, %c0_4] : memref<1x6x256xf32, #tpu.memory_space<vmem>>, vector<1x6x256xf32>
    %3 = vector.shape_cast %2 : vector<1x6x256xf32> to vector<6x256xf32>
    %4 = vector.extract_strided_slice %3 {offsets = [0, 0], sizes = [1, 256], strides = [1, 1]} : vector<6x256xf32> to vector<1x256xf32>
    %5 = vector.extract_strided_slice %3 {offsets = [1, 0], sizes = [1, 256], strides = [1, 1]} : vector<6x256xf32> to vector<1x256xf32>
    %6 = vector.extract_strided_slice %3 {offsets = [2, 0], sizes = [1, 256], strides = [1, 1]} : vector<6x256xf32> to vector<1x256xf32>
    %7 = vector.extract_strided_slice %3 {offsets = [3, 0], sizes = [1, 256], strides = [1, 1]} : vector<6x256xf32> to vector<1x256xf32>
    %8 = vector.extract_strided_slice %3 {offsets = [4, 0], sizes = [1, 256], strides = [1, 1]} : vector<6x256xf32> to vector<1x256xf32>
    %9 = vector.extract_strided_slice %3 {offsets = [5, 0], sizes = [1, 256], strides = [1, 1]} : vector<6x256xf32> to vector<1x256xf32>
    %cst = arith.constant dense<0.000000e+00> : vector<128xf32>
    %10 = vector.multi_reduction <add>, %1, %cst [1] : vector<128x256xf32> to vector<128xf32>
    %11 = vector.shape_cast %10 : vector<128xf32> to vector<128x1xf32>
    %cst_5 = arith.constant 2.560000e+02 : f32
    %12 = vector.broadcast %cst_5 : f32 to vector<128x1xf32>
    %13 = arith.divf %11, %12 : vector<128x1xf32>
    %14 = vector.broadcast %13 : vector<128x1xf32> to vector<128x256xf32>
    %15 = arith.subf %1, %14 : vector<128x256xf32>
    %16 = arith.mulf %15, %15 : vector<128x256xf32>
    %cst_6 = arith.constant dense<0.000000e+00> : vector<128xf32>
    %17 = vector.multi_reduction <add>, %16, %cst_6 [1] : vector<128x256xf32> to vector<128xf32>
    %18 = vector.shape_cast %17 : vector<128xf32> to vector<128x1xf32>
    %cst_7 = arith.constant 2.560000e+02 : f32
    %19 = vector.broadcast %cst_7 : f32 to vector<128x1xf32>
    %20 = arith.divf %18, %19 : vector<128x1xf32>
    %21 = vector.broadcast %13 : vector<128x1xf32> to vector<128x256xf32>
    %22 = arith.subf %1, %21 : vector<128x256xf32>
    %cst_8 = arith.constant 9.99999997E-7 : f32
    %23 = vector.broadcast %cst_8 : f32 to vector<128x1xf32>
    %24 = arith.addf %20, %23 : vector<128x1xf32>
    %25 = math.rsqrt %24 : vector<128x1xf32>
    %26 = vector.broadcast %25 : vector<128x1xf32> to vector<128x256xf32>
    %27 = arith.mulf %22, %26 : vector<128x256xf32>
    %cst_9 = arith.constant 1.000000e+00 : f32
    %28 = vector.broadcast %cst_9 : f32 to vector<1x256xf32>
    %29 = arith.addf %28, %5 : vector<1x256xf32>
    %30 = vector.broadcast %29 : vector<1x256xf32> to vector<128x256xf32>
    %31 = arith.mulf %27, %30 : vector<128x256xf32>
    %32 = vector.broadcast %4 : vector<1x256xf32> to vector<128x256xf32>
    %33 = arith.addf %31, %32 : vector<128x256xf32>
    %34 = arith.truncf %33 : vector<128x256xf32> to vector<128x256xbf16>
    %c0_10 = arith.constant 0 : index
    %c0_11 = arith.constant 0 : index
    %35 = vector.load %arg3[%c0_10, %c0_11] : memref<256x768xbf16, #tpu.memory_space<vmem>>, vector<256x768xbf16>
    %cst_12 = arith.constant dense<0.000000e+00> : vector<128x768xf32>
    %36 = tpu.matmul %34, %35, %cst_12 {dimension_numbers = #tpu.dot_dimension_numbers<[1], [0], [0], [1], [0, 0, 1, 1], [], []>} : vector<128x256xbf16>, vector<256x768xbf16>, vector<128x768xf32> -> vector<128x768xf32>
    %c0_13 = arith.constant 0 : index
    %c0_14 = arith.constant 0 : index
    %37 = vector.load %arg4[%c0_13, %c0_14] : memref<1x768xf32, #tpu.memory_space<vmem>>, vector<1x768xf32>
    %38 = vector.broadcast %37 : vector<1x768xf32> to vector<128x768xf32>
    %39 = arith.addf %36, %38 : vector<128x768xf32>
    %40 = vector.extract_strided_slice %39 {offsets = [0, 0], sizes = [128, 256], strides = [1, 1]} : vector<128x768xf32> to vector<128x256xf32>
    %cst_15 = arith.constant 0.0883883461 : f32
    %41 = vector.broadcast %cst_15 : f32 to vector<128x256xf32>
    %42 = arith.mulf %40, %41 : vector<128x256xf32>
    %43 = arith.truncf %42 : vector<128x256xf32> to vector<128x256xbf16>
    %44 = vector.extract_strided_slice %39 {offsets = [0, 256], sizes = [128, 256], strides = [1, 1]} : vector<128x768xf32> to vector<128x256xf32>
    %45 = arith.truncf %44 : vector<128x256xf32> to vector<128x256xbf16>
    %46 = vector.extract_strided_slice %39 {offsets = [0, 512], sizes = [128, 256], strides = [1, 1]} : vector<128x768xf32> to vector<128x256xf32>
    %47 = arith.truncf %46 : vector<128x256xf32> to vector<128x256xbf16>
    %48 = vector.extract_strided_slice %43 {offsets = [0, 0], sizes = [128, 128], strides = [1, 1]} : vector<128x256xbf16> to vector<128x128xbf16>
    %49 = vector.extract_strided_slice %45 {offsets = [0, 0], sizes = [128, 128], strides = [1, 1]} : vector<128x256xbf16> to vector<128x128xbf16>
    %50 = vector.extract_strided_slice %47 {offsets = [0, 0], sizes = [128, 128], strides = [1, 1]} : vector<128x256xbf16> to vector<128x128xbf16>
    %cst_16 = arith.constant dense<0.000000e+00> : vector<128x128xf32>
    %51 = tpu.matmul %48, %49, %cst_16 {dimension_numbers = #tpu.dot_dimension_numbers<[1], [1], [0], [0], [0, 0, 1, 0], [], []>} : vector<128x128xbf16>, vector<128x128xbf16>, vector<128x128xf32> -> vector<128x128xf32>
    %cst_17 = arith.constant dense<0xFF800000> : vector<128xf32>
    %52 = vector.multi_reduction <maximumf>, %51, %cst_17 [1] : vector<128x128xf32> to vector<128xf32>
    %53 = vector.shape_cast %52 : vector<128xf32> to vector<128x1xf32>
    %54 = vector.broadcast %53 : vector<128x1xf32> to vector<128x128xf32>
    %55 = arith.subf %51, %54 : vector<128x128xf32>
    %56 = math.exp %55 : vector<128x128xf32>
    %cst_18 = arith.constant dense<0.000000e+00> : vector<128xf32>
    %57 = vector.multi_reduction <add>, %56, %cst_18 [1] : vector<128x128xf32> to vector<128xf32>
    %58 = vector.shape_cast %57 : vector<128xf32> to vector<128x1xf32>
    %59 = tpu.reciprocal %58 {approx = true} : vector<128x1xf32> -> vector<128x1xf32>
    %60 = arith.truncf %56 : vector<128x128xf32> to vector<128x128xbf16>
    %cst_19 = arith.constant dense<0.000000e+00> : vector<128x128xf32>
    %61 = tpu.matmul %60, %50, %cst_19 {dimension_numbers = #tpu.dot_dimension_numbers<[1], [0], [0], [1], [0, 0, 1, 1], [], []>} : vector<128x128xbf16>, vector<128x128xbf16>, vector<128x128xf32> -> vector<128x128xf32>
    %62 = vector.broadcast %59 : vector<128x1xf32> to vector<128x128xf32>
    %63 = arith.mulf %61, %62 : vector<128x128xf32>
    %64 = vector.extract_strided_slice %43 {offsets = [0, 128], sizes = [128, 128], strides = [1, 1]} : vector<128x256xbf16> to vector<128x128xbf16>
    %65 = vector.extract_strided_slice %45 {offsets = [0, 128], sizes = [128, 128], strides = [1, 1]} : vector<128x256xbf16> to vector<128x128xbf16>
    %66 = vector.extract_strided_slice %47 {offsets = [0, 128], sizes = [128, 128], strides = [1, 1]} : vector<128x256xbf16> to vector<128x128xbf16>
    %cst_20 = arith.constant dense<0.000000e+00> : vector<128x128xf32>
    %67 = tpu.matmul %64, %65, %cst_20 {dimension_numbers = #tpu.dot_dimension_numbers<[1], [1], [0], [0], [0, 0, 1, 0], [], []>} : vector<128x128xbf16>, vector<128x128xbf16>, vector<128x128xf32> -> vector<128x128xf32>
    %cst_21 = arith.constant dense<0xFF800000> : vector<128xf32>
    %68 = vector.multi_reduction <maximumf>, %67, %cst_21 [1] : vector<128x128xf32> to vector<128xf32>
    %69 = vector.shape_cast %68 : vector<128xf32> to vector<128x1xf32>
    %70 = vector.broadcast %69 : vector<128x1xf32> to vector<128x128xf32>
    %71 = arith.subf %67, %70 : vector<128x128xf32>
    %72 = math.exp %71 : vector<128x128xf32>
    %cst_22 = arith.constant dense<0.000000e+00> : vector<128xf32>
    %73 = vector.multi_reduction <add>, %72, %cst_22 [1] : vector<128x128xf32> to vector<128xf32>
    %74 = vector.shape_cast %73 : vector<128xf32> to vector<128x1xf32>
    %75 = tpu.reciprocal %74 {approx = true} : vector<128x1xf32> -> vector<128x1xf32>
    %76 = arith.truncf %72 : vector<128x128xf32> to vector<128x128xbf16>
    %cst_23 = arith.constant dense<0.000000e+00> : vector<128x128xf32>
    %77 = tpu.matmul %76, %66, %cst_23 {dimension_numbers = #tpu.dot_dimension_numbers<[1], [0], [0], [1], [0, 0, 1, 1], [], []>} : vector<128x128xbf16>, vector<128x128xbf16>, vector<128x128xf32> -> vector<128x128xf32>
    %78 = vector.broadcast %75 : vector<128x1xf32> to vector<128x128xf32>
    %79 = arith.mulf %77, %78 : vector<128x128xf32>
    %80 = tpu.concatenate %63, %79 in 1 : vector<128x128xf32>, vector<128x128xf32> -> vector<128x256xf32>
    %81 = arith.truncf %80 : vector<128x256xf32> to vector<128x256xbf16>
    %c0_24 = arith.constant 0 : index
    %c0_25 = arith.constant 0 : index
    %82 = vector.load %arg5[%c0_24, %c0_25] : memref<256x256xbf16, #tpu.memory_space<vmem>>, vector<256x256xbf16>
    %cst_26 = arith.constant dense<0.000000e+00> : vector<128x256xf32>
    %83 = tpu.matmul %81, %82, %cst_26 {dimension_numbers = #tpu.dot_dimension_numbers<[1], [0], [0], [1], [0, 0, 1, 1], [], []>} : vector<128x256xbf16>, vector<256x256xbf16>, vector<128x256xf32> -> vector<128x256xf32>
    %c0_27 = arith.constant 0 : index
    %c0_28 = arith.constant 0 : index
    %84 = vector.load %arg6[%c0_27, %c0_28] : memref<1x256xf32, #tpu.memory_space<vmem>>, vector<1x256xf32>
    %85 = vector.broadcast %84 : vector<1x256xf32> to vector<128x256xf32>
    %86 = arith.addf %83, %85 : vector<128x256xf32>
    %87 = vector.broadcast %6 : vector<1x256xf32> to vector<128x256xf32>
    %88 = arith.mulf %87, %86 : vector<128x256xf32>
    %89 = arith.addf %1, %88 : vector<128x256xf32>
    %cst_29 = arith.constant dense<0.000000e+00> : vector<128xf32>
    %90 = vector.multi_reduction <add>, %89, %cst_29 [1] : vector<128x256xf32> to vector<128xf32>
    %91 = vector.shape_cast %90 : vector<128xf32> to vector<128x1xf32>
    %cst_30 = arith.constant 2.560000e+02 : f32
    %92 = vector.broadcast %cst_30 : f32 to vector<128x1xf32>
    %93 = arith.divf %91, %92 : vector<128x1xf32>
    %94 = vector.broadcast %93 : vector<128x1xf32> to vector<128x256xf32>
    %95 = arith.subf %89, %94 : vector<128x256xf32>
    %96 = arith.mulf %95, %95 : vector<128x256xf32>
    %cst_31 = arith.constant dense<0.000000e+00> : vector<128xf32>
    %97 = vector.multi_reduction <add>, %96, %cst_31 [1] : vector<128x256xf32> to vector<128xf32>
    %98 = vector.shape_cast %97 : vector<128xf32> to vector<128x1xf32>
    %cst_32 = arith.constant 2.560000e+02 : f32
    %99 = vector.broadcast %cst_32 : f32 to vector<128x1xf32>
    %100 = arith.divf %98, %99 : vector<128x1xf32>
    %101 = vector.broadcast %93 : vector<128x1xf32> to vector<128x256xf32>
    %102 = arith.subf %89, %101 : vector<128x256xf32>
    %cst_33 = arith.constant 9.99999997E-7 : f32
    %103 = vector.broadcast %cst_33 : f32 to vector<128x1xf32>
    %104 = arith.addf %100, %103 : vector<128x1xf32>
    %105 = math.rsqrt %104 : vector<128x1xf32>
    %106 = vector.broadcast %105 : vector<128x1xf32> to vector<128x256xf32>
    %107 = arith.mulf %102, %106 : vector<128x256xf32>
    %cst_34 = arith.constant 1.000000e+00 : f32
    %108 = vector.broadcast %cst_34 : f32 to vector<1x256xf32>
    %109 = arith.addf %108, %8 : vector<1x256xf32>
    %110 = vector.broadcast %109 : vector<1x256xf32> to vector<128x256xf32>
    %111 = arith.mulf %107, %110 : vector<128x256xf32>
    %112 = vector.broadcast %7 : vector<1x256xf32> to vector<128x256xf32>
    %113 = arith.addf %111, %112 : vector<128x256xf32>
    %114 = arith.truncf %113 : vector<128x256xf32> to vector<128x256xbf16>
    %c0_35 = arith.constant 0 : index
    %c0_36 = arith.constant 0 : index
    %115 = vector.load %arg7[%c0_35, %c0_36] : memref<256x1024xbf16, #tpu.memory_space<vmem>>, vector<256x1024xbf16>
    %cst_37 = arith.constant dense<0.000000e+00> : vector<128x1024xf32>
    %116 = tpu.matmul %114, %115, %cst_37 {dimension_numbers = #tpu.dot_dimension_numbers<[1], [0], [0], [1], [0, 0, 1, 1], [], []>} : vector<128x256xbf16>, vector<256x1024xbf16>, vector<128x1024xf32> -> vector<128x1024xf32>
    %c0_38 = arith.constant 0 : index
    %c0_39 = arith.constant 0 : index
    %117 = vector.load %arg8[%c0_38, %c0_39] : memref<1x1024xf32, #tpu.memory_space<vmem>>, vector<1x1024xf32>
    %118 = vector.broadcast %117 : vector<1x1024xf32> to vector<128x1024xf32>
    %119 = arith.addf %116, %118 : vector<128x1024xf32>
    %cst_40 = arith.constant 5.000000e-01 : f32
    %120 = vector.broadcast %cst_40 : f32 to vector<128x1024xf32>
    %121 = arith.mulf %120, %119 : vector<128x1024xf32>
    %cst_41 = arith.constant 4.471500e-02 : f32
    %122 = vector.broadcast %cst_41 : f32 to vector<128x1024xf32>
    %123 = arith.mulf %122, %119 : vector<128x1024xf32>
    %124 = arith.mulf %123, %119 : vector<128x1024xf32>
    %125 = arith.mulf %124, %119 : vector<128x1024xf32>
    %126 = arith.addf %119, %125 : vector<128x1024xf32>
    %cst_42 = arith.constant 0.797884583 : f32
    %127 = vector.broadcast %cst_42 : f32 to vector<128x1024xf32>
    %128 = arith.mulf %127, %126 : vector<128x1024xf32>
    %129 = math.tanh %128 : vector<128x1024xf32>
    %cst_43 = arith.constant 1.000000e+00 : f32
    %130 = vector.broadcast %cst_43 : f32 to vector<128x1024xf32>
    %131 = arith.addf %130, %129 : vector<128x1024xf32>
    %132 = arith.mulf %121, %131 : vector<128x1024xf32>
    %133 = arith.truncf %132 : vector<128x1024xf32> to vector<128x1024xbf16>
    %c0_44 = arith.constant 0 : index
    %c0_45 = arith.constant 0 : index
    %134 = vector.load %arg9[%c0_44, %c0_45] : memref<1024x256xbf16, #tpu.memory_space<vmem>>, vector<1024x256xbf16>
    %cst_46 = arith.constant dense<0.000000e+00> : vector<128x256xf32>
    %135 = tpu.matmul %133, %134, %cst_46 {dimension_numbers = #tpu.dot_dimension_numbers<[1], [0], [0], [1], [0, 0, 1, 1], [], []>} : vector<128x1024xbf16>, vector<1024x256xbf16>, vector<128x256xf32> -> vector<128x256xf32>
    %c0_47 = arith.constant 0 : index
    %c0_48 = arith.constant 0 : index
    %136 = vector.load %arg10[%c0_47, %c0_48] : memref<1x256xf32, #tpu.memory_space<vmem>>, vector<1x256xf32>
    %137 = vector.broadcast %136 : vector<1x256xf32> to vector<128x256xf32>
    %138 = arith.addf %135, %137 : vector<128x256xf32>
    %139 = vector.broadcast %9 : vector<1x256xf32> to vector<128x256xf32>
    %140 = arith.mulf %139, %138 : vector<128x256xf32>
    %141 = arith.addf %89, %140 : vector<128x256xf32>
    %c0_49 = arith.constant 0 : index
    %c0_50 = arith.constant 0 : index
    %c0_51 = arith.constant 0 : index
    %142 = vector.load %arg11[%c0_49, %c0_50, %c0_51] : memref<1x128x256xf32, #tpu.memory_space<vmem>>, vector<1x128x256xf32>
    %143 = vector.shape_cast %142 : vector<1x128x256xf32> to vector<128x256xf32>
    %144 = vector.shape_cast %141 : vector<128x256xf32> to vector<1x128x256xf32>
    tpu.vector_store %arg11[%c0_49, %c0_50, %c0_51], %144 {strides = array<i32>} : memref<1x128x256xf32, #tpu.memory_space<vmem>>, vector<1x128x256xf32>,
    return
  }
  func.func @transform_0(%arg0: i32) -> (i32, i32, i32) {
    %c0_i32 = arith.constant 0 : i32
    %c0_i32_0 = arith.constant 0 : i32
    %c0_i32_1 = arith.constant 0 : i32
    return %arg0, %c0_i32, %c0_i32_0 : i32, i32, i32
  }
  func.func @transform_1(%arg0: i32) -> (i32, i32, i32) {
    %c0_i32 = arith.constant 0 : i32
    %c0_i32_0 = arith.constant 0 : i32
    %c0_i32_1 = arith.constant 0 : i32
    return %arg0, %c0_i32, %c0_i32_0 : i32, i32, i32
  }
  func.func @transform_2(%arg0: i32) -> (i32, i32) {
    %c0_i32 = arith.constant 0 : i32
    %c0_i32_0 = arith.constant 0 : i32
    %c0_i32_1 = arith.constant 0 : i32
    return %c0_i32, %c0_i32_0 : i32, i32
  }
  func.func @transform_3(%arg0: i32) -> (i32, i32) {
    %c0_i32 = arith.constant 0 : i32
    %c0_i32_0 = arith.constant 0 : i32
    %c0_i32_1 = arith.constant 0 : i32
    return %c0_i32, %c0_i32_0 : i32, i32
  }
  func.func @transform_4(%arg0: i32) -> (i32, i32) {
    %c0_i32 = arith.constant 0 : i32
    %c0_i32_0 = arith.constant 0 : i32
    %c0_i32_1 = arith.constant 0 : i32
    return %c0_i32, %c0_i32_0 : i32, i32
  }
  func.func @transform_5(%arg0: i32) -> (i32, i32) {
    %c0_i32 = arith.constant 0 : i32
    %c0_i32_0 = arith.constant 0 : i32
    %c0_i32_1 = arith.constant 0 : i32
    return %c0_i32, %c0_i32_0 : i32, i32
  }
  func.func @transform_6(%arg0: i32) -> (i32, i32) {
    %c0_i32 = arith.constant 0 : i32
    %c0_i32_0 = arith.constant 0 : i32
    %c0_i32_1 = arith.constant 0 : i32
    return %c0_i32, %c0_i32_0 : i32, i32
  }
  func.func @transform_7(%arg0: i32) -> (i32, i32) {
    %c0_i32 = arith.constant 0 : i32
    %c0_i32_0 = arith.constant 0 : i32
    %c0_i32_1 = arith.constant 0 : i32
    return %c0_i32, %c0_i32_0 : i32, i32
  }
  func.func @transform_8(%arg0: i32) -> (i32, i32) {
    %c0_i32 = arith.constant 0 : i32
    %c0_i32_0 = arith.constant 0 : i32
    %c0_i32_1 = arith.constant 0 : i32
    return %c0_i32, %c0_i32_0 : i32, i32
  }
  func.func @transform_9(%arg0: i32) -> (i32, i32) {
    %c0_i32 = arith.constant 0 : i32
    %c0_i32_0 = arith.constant 0 : i32
    %c0_i32_1 = arith.constant 0 : i32
    return %c0_i32, %c0_i32_0 : i32, i32
  }
  func.func @transform_10(%arg0: i32) -> (i32, i32, i32) {
    %c0_i32 = arith.constant 0 : i32
    %c0_i32_0 = arith.constant 0 : i32
    %c0_i32_1 = arith.constant 0 : i32
    return %arg0, %c0_i32, %c0_i32_0 : i32, i32, i32
  }
}

</mosaic_0001>

<llo_original>
// kernel: block_forward.1
$region0: #{block_forward.1}
  #allocation0 [shape = 'u32[]', space=smem, size = 0x4, offset = 0x4, fixed_abs, tag = 'smem constant byte address 0x4 - core index']
  #allocation1 [shape = 'u32[144,128]{1,0:T(1,128)}', space=vmem, size = 0x12000, scoped, tag = 'internal scratch']
  %s0 = inlined_call_operand.hbm [shape: f32[2,128,256], index: 0, kind: input, shape index: {}]
  %s1 = inlined_call_operand.vmem [shape: f32[2,6,256], index: 1, kind: input, shape index: {}]
  %s2 = inlined_call_operand.vmem [shape: bf16[256,768], index: 2, kind: input, shape index: {}]
  %s3 = inlined_call_operand.vmem [shape: f32[1,768], index: 3, kind: input, shape index: {}]
  %s4 = inlined_call_operand.vmem [shape: bf16[256,256], index: 4, kind: input, shape index: {}]
  %s5 = inlined_call_operand.vmem [shape: f32[1,256], index: 5, kind: input, shape index: {}]
  %s6 = inlined_call_operand.vmem [shape: bf16[256,1024], index: 6, kind: input, shape index: {}]
  %s7 = inlined_call_operand.vmem [shape: f32[1,1024], index: 7, kind: input, shape index: {}]
  %s8 = inlined_call_operand.vmem [shape: bf16[1024,256], index: 8, kind: input, shape index: {}]
  %s9 = inlined_call_operand.vmem [shape: f32[1,256], index: 9, kind: input, shape index: {}]
  %s10 = inlined_call_operand.hbm [shape: f32[2,128,256], index: 10, kind: output, shape index: {}]
  %s11 = sld [smem:[#allocation0]]
  $region77: #{block_forward.1} parent=0
    _
  %s13 = ssub.s32 1, %s11
  %s14 = scalar_select 0, %s13, %s11
  $region1: #{block_forward.1} parent=0
    #allocation2 [shape = 'u8[262144]{0}', space=vmem, size = 0x40000, scoped, tag = 'input window, operand 0']
    #allocation3 [shape = 's32[2]{0}', space=sflag, size = 0x8, scoped, tag = 'scoped memory for block_forward.1']
    #allocation4 [shape = 's32[2]{0}', space=sflag, size = 0x8, scoped, tag = 'scoped memory for block_forward.1']
    #allocation5 [shape = 'u8[262144]{0}', space=vmem, size = 0x40000, scoped, tag = 'output window, operand 0']
    %15 = vsyncpa [#allocation3], 0
    %s16 = scalar_lea.sflag [#allocation3], 1
    %17 = vsyncpa %s16, 0
    %18 = vsyncpa [#allocation4], 0
    %s19 = scalar_lea.sflag [#allocation4], 1
    %20 = vsyncpa %s19, 0
    loop: start=0, step=1, limit=4
    $region2: #{block_forward.1} parent=1 // loop_pre_header
      _
    $region3: #{block_forward.1} parent=1 // loop_header
      %s22 = sphi 0, %s26
      %p23 = scmp.ge.s32.totalorder %s22, 4
      %s32 = sphi 0, %s34
      %s35 = sphi 0, %s32
      %s36 = sphi 0, %s35
      %s52 = sphi 0, %s36
      %s58 = sphi 0, %s60
      %s61 = sphi 0, %s58
      %s62 = sphi 0, %s61
      %s78 = sphi 0, %s62
      %s82 = sphi 0, %s82
      %s84 = sphi 0, %s82
      %s85 = sphi 0, %s84
      %s99 = sphi 0, %s85
      %s103 = sphi 0, %s103
      %s105 = sphi 0, %s103
      %s106 = sphi 0, %s105
      %s120 = sphi 0, %s106
      %s124 = sphi 0, %s124
      %s126 = sphi 0, %s124
      %s127 = sphi 0, %s126
      %s141 = sphi 0, %s127
      %s145 = sphi 0, %s145
      %s147 = sphi 0, %s145
      %s148 = sphi 0, %s147
      %s162 = sphi 0, %s148
      %s166 = sphi 0, %s166
      %s168 = sphi 0, %s166
      %s169 = sphi 0, %s168
      %s183 = sphi 0, %s169
      %s187 = sphi 0, %s187
      %s189 = sphi 0, %s187
      %s190 = sphi 0, %s189
      %s204 = sphi 0, %s190
      %s208 = sphi 0, %s208
      %s210 = sphi 0, %s208
      %s211 = sphi 0, %s210
      %s225 = sphi 0, %s211
      %s229 = sphi 0, %s229
      %s231 = sphi 0, %s229
      %s232 = sphi 0, %s231
      %s246 = sphi 0, %s232
      %s252 = sphi 0, %s254
      %s255 = sphi 0, %s252
      %s256 = sphi 0, %s255
      %s272 = sphi 0, %s256
    $region4: #{block_forward.1} parent=1 // loop_header_branch
      %25 = sbr.rel (%p23) target = $region8
    $region5: #{block_forward.1} parent=1 // loop_body
      %s27 = ssub.s32 %s22, 1
      %s28 = ssub.s32 %s22, 2
      %s29 = sadd.s32 %s22, 1
      %s30 = ssub.s32 %s22, %s29
      %p31 = scmp.eq.s32.totalorder %s30, 0
      %s33 = sadd.s32 %s32, 1
      %s34 = scalar_select %p31, %s32, %s33
      %p37 = pneg %p31
      %p38 = scmp.eq.s32.totalorder %s22, 1
      %p39 = por %p37, %p38
      %p40 = scmp.ne.s32.totalorder %s32, %s35
      %p41 = scmp.eq.s32.totalorder %s22, 0
      %p42 = por %p40, %p41
      %p43 = scmp.ne.s32.totalorder %s32, %s35
      %p44 = scmp.eq.s32.totalorder %s27, 1
      %p45 = por %p43, %p44
      %p46 = scmp.ne.s32.totalorder %s35, %s36
      %p47 = scmp.eq.s32.totalorder %s27, 0
      %p48 = por %p46, %p47
      %p49 = scmp.ne.s32.totalorder %s35, %s36
      %p50 = scmp.eq.s32.totalorder %s28, 1
      %p51 = por %p49, %p50
      %p53 = scmp.ne.s32.totalorder %s36, %s52
      %p54 = scmp.eq.s32.totalorder %s28, 0
      %p55 = por %p53, %p54
      %s56 = ssub.s32 %s22, %s29
      %p57 = scmp.eq.s32.totalorder %s56, 0
      %s59 = sadd.s32 %s58, 1
      %s60 = scalar_select %p57, %s58, %s59
      %p63 = pneg %p57
      %p64 = scmp.eq.s32.totalorder %s22, 1
      %p65 = por %p63, %p64
      %p66 = scmp.ne.s32.totalorder %s58, %s61
      %p67 = scmp.eq.s32.totalorder %s22, 0
      %p68 = por %p66, %p67
      %p69 = scmp.ne.s32.totalorder %s58, %s61
      %p70 = scmp.eq.s32.totalorder %s27, 1
      %p71 = por %p69, %p70
      %p72 = scmp.ne.s32.totalorder %s61, %s62
      %p73 = scmp.eq.s32.totalorder %s27, 0
      %p74 = por %p72, %p73
      %p75 = scmp.ne.s32.totalorder %s61, %s62
      %p76 = scmp.eq.s32.totalorder %s28, 1
      %p77 = por %p75, %p76
      %p79 = scmp.ne.s32.totalorder %s62, %s78
      %p80 = scmp.eq.s32.totalorder %s28, 0
      %p81 = por %p79, %p80
      %s83 = sadd.s32 %s82, 1
      %p86 = scmp.eq.s32.totalorder %s22, 1
      %p87 = scmp.ne.s32.totalorder %s82, %s84
      %p88 = scmp.eq.s32.totalorder %s22, 0
      %p89 = por %p87, %p88
      %p90 = scmp.ne.s32.totalorder %s82, %s84
      %p91 = scmp.eq.s32.totalorder %s27, 1
      %p92 = por %p90, %p91
      %p93 = scmp.ne.s32.totalorder %s84, %s85
      %p94 = scmp.eq.s32.totalorder %s27, 0
      %p95 = por %p93, %p94
      %p96 = scmp.ne.s32.totalorder %s84, %s85
      %p97 = scmp.eq.s32.totalorder %s28, 1
      %p98 = por %p96, %p97
      %p100 = scmp.ne.s32.totalorder %s85, %s99
      %p101 = scmp.eq.s32.totalorder %s28, 0
      %p102 = por %p100, %p101
      %s104 = sadd.s32 %s103, 1
      %p107 = scmp.eq.s32.totalorder %s22, 1
      %p108 = scmp.ne.s32.totalorder %s103, %s105
      %p109 = scmp.eq.s32.totalorder %s22, 0
      %p110 = por %p108, %p109
      %p111 = scmp.ne.s32.totalorder %s103, %s105
      %p112 = scmp.eq.s32.totalorder %s27, 1
      %p113 = por %p111, %p112
      %p114 = scmp.ne.s32.totalorder %s105, %s106
      %p115 = scmp.eq.s32.totalorder %s27, 0
      %p116 = por %p114, %p115
      %p117 = scmp.ne.s32.totalorder %s105, %s106
      %p118 = scmp.eq.s32.totalorder %s28, 1
      %p119 = por %p117, %p118
      %p121 = scmp.ne.s32.totalorder %s106, %s120
      %p122 = scmp.eq.s32.totalorder %s28, 0
      %p123 = por %p121, %p122
      %s125 = sadd.s32 %s124, 1
      %p128 = scmp.eq.s32.totalorder %s22, 1
      %p129 = scmp.ne.s32.totalorder %s124, %s126
      %p130 = scmp.eq.s32.totalorder %s22, 0
      %p131 = por %p129, %p130
      %p132 = scmp.ne.s32.totalorder %s124, %s126
      %p133 = scmp.eq.s32.totalorder %s27, 1
      %p134 = por %p132, %p133
      %p135 = scmp.ne.s32.totalorder %s126, %s127
      %p136 = scmp.eq.s32.totalorder %s27, 0
      %p137 = por %p135, %p136
      %p138 = scmp.ne.s32.totalorder %s126, %s127
      %p139 = scmp.eq.s32.totalorder %s28, 1
      %p140 = por %p138, %p139
      %p142 = scmp.ne.s32.totalorder %s127, %s141
      %p143 = scmp.eq.s32.totalorder %s28, 0
      %p144 = por %p142, %p143
      %s146 = sadd.s32 %s145, 1
      %p149 = scmp.eq.s32.totalorder %s22, 1
      %p150 = scmp.ne.s32.totalorder %s145, %s147
      %p151 = scmp.eq.s32.totalorder %s22, 0
      %p152 = por %p150, %p151
      %p153 = scmp.ne.s32.totalorder %s145, %s147
      %p154 = scmp.eq.s32.totalorder %s27, 1
      %p155 = por %p153, %p154
      %p156 = scmp.ne.s32.totalorder %s147, %s148
      %p157 = scmp.eq.s32.totalorder %s27, 0
      %p158 = por %p156, %p157
      %p159 = scmp.ne.s32.totalorder %s147, %s148
      %p160 = scmp.eq.s32.totalorder %s28, 1
      %p161 = por %p159, %p160
      %p163 = scmp.ne.s32.totalorder %s148, %s162
      %p164 = scmp.eq.s32.totalorder %s28, 0
      %p165 = por %p163, %p164
      %s167 = sadd.s32 %s166, 1
      %p170 = scmp.eq.s32.totalorder %s22, 1
      %p171 = scmp.ne.s32.totalorder %s166, %s168
      %p172 = scmp.eq.s32.totalorder %s22, 0
      %p173 = por %p171, %p172
      %p174 = scmp.ne.s32.totalorder %s166, %s168
      %p175 = scmp.eq.s32.totalorder %s27, 1
      %p176 = por %p174, %p175
      %p177 = scmp.ne.s32.totalorder %s168, %s169
      %p178 = scmp.eq.s32.totalorder %s27, 0
      %p179 = por %p177, %p178
      %p180 = scmp.ne.s32.totalorder %s168, %s169
      %p181 = scmp.eq.s32.totalorder %s28, 1
      %p182 = por %p180, %p181
      %p184 = scmp.ne.s32.totalorder %s169, %s183
      %p185 = scmp.eq.s32.totalorder %s28, 0
      %p186 = por %p184, %p185
      %s188 = sadd.s32 %s187, 1
      %p191 = scmp.eq.s32.totalorder %s22, 1
      %p192 = scmp.ne.s32.totalorder %s187, %s189
      %p193 = scmp.eq.s32.totalorder %s22, 0
      %p194 = por %p192, %p193
      %p195 = scmp.ne.s32.totalorder %s187, %s189
      %p196 = scmp.eq.s32.totalorder %s27, 1
      %p197 = por %p195, %p196
      %p198 = scmp.ne.s32.totalorder %s189, %s190
      %p199 = scmp.eq.s32.totalorder %s27, 0
      %p200 = por %p198, %p199
      %p201 = scmp.ne.s32.totalorder %s189, %s190
      %p202 = scmp.eq.s32.totalorder %s28, 1
      %p203 = por %p201, %p202
      %p205 = scmp.ne.s32.totalorder %s190, %s204
      %p206 = scmp.eq.s32.totalorder %s28, 0
      %p207 = por %p205, %p206
      %s209 = sadd.s32 %s208, 1
      %p212 = scmp.eq.s32.totalorder %s22, 1
      %p213 = scmp.ne.s32.totalorder %s208, %s210
      %p214 = scmp.eq.s32.totalorder %s22, 0
      %p215 = por %p213, %p214
      %p216 = scmp.ne.s32.totalorder %s208, %s210
      %p217 = scmp.eq.s32.totalorder %s27, 1
      %p218 = por %p216, %p217
      %p219 = scmp.ne.s32.totalorder %s210, %s211
      %p220 = scmp.eq.s32.totalorder %s27, 0
      %p221 = por %p219, %p220
      %p222 = scmp.ne.s32.totalorder %s210, %s211
      %p223 = scmp.eq.s32.totalorder %s28, 1
      %p224 = por %p222, %p223
      %p226 = scmp.ne.s32.totalorder %s211, %s225
      %p227 = scmp.eq.s32.totalorder %s28, 0
      %p228 = por %p226, %p227
      %s230 = sadd.s32 %s229, 1
      %p233 = scmp.eq.s32.totalorder %s22, 1
      %p234 = scmp.ne.s32.totalorder %s229, %s231
      %p235 = scmp.eq.s32.totalorder %s22, 0
      %p236 = por %p234, %p235
      %p237 = scmp.ne.s32.totalorder %s229, %s231
      %p238 = scmp.eq.s32.totalorder %s27, 1
      %p239 = por %p237, %p238
      %p240 = scmp.ne.s32.totalorder %s231, %s232
      %p241 = scmp.eq.s32.totalorder %s27, 0
      %p242 = por %p240, %p241
      %p243 = scmp.ne.s32.totalorder %s231, %s232
      %p244 = scmp.eq.s32.totalorder %s28, 1
      %p245 = por %p243, %p244
      %p247 = scmp.ne.s32.totalorder %s232, %s246
      %p248 = scmp.eq.s32.totalorder %s28, 0
      %p249 = por %p247, %p248
      %s250 = ssub.s32 %s22, %s29
      %p251 = scmp.eq.s32.totalorder %s250, 0
      %s253 = sadd.s32 %s252, 1
      %s254 = scalar_select %p251, %s252, %s253
      %p257 = pneg %p251
      %p258 = scmp.eq.s32.totalorder %s22, 1
      %p259 = por %p257, %p258
      %p260 = scmp.ne.s32.totalorder %s252, %s255
      %p261 = scmp.eq.s32.totalorder %s22, 0
      %p262 = por %p260, %p261
      %p263 = scmp.ne.s32.totalorder %s252, %s255
      %p264 = scmp.eq.s32.totalorder %s27, 1
      %p265 = por %p263, %p264
      %p266 = scmp.ne.s32.totalorder %s255, %s256
      %p267 = scmp.eq.s32.totalorder %s27, 0
      %p268 = por %p266, %p267
      %p269 = scmp.ne.s32.totalorder %s255, %s256
      %p270 = scmp.eq.s32.totalorder %s28, 1
      %p271 = por %p269, %p270
      %p273 = scmp.ne.s32.totalorder %s256, %s272
      %p274 = scmp.eq.s32.totalorder %s28, 0
      %p275 = por %p273, %p274
      %p276 = scmp.le.s32.totalorder 1, %s22
      %p277 = scmp.lt.s32.totalorder %s22, 3
      %p278 = pnand %p276, %p277
      %p279 = pneg %p278
      // Predicated region
      $region9: #{block_forward.1} parent=5 // pred_check
        _
      $region10: #{block_forward.1} parent=5 // pred_check_branch
        %281 = sbr.rel (%p278) target = $region12
      $region11: #{block_forward.1} parent=5 // pred_region
        %s282 = ssub.s32 %s22, 1
        // Predicated region
        $region13: #{block_forward.1} parent=11 // pred_check
          %p283 = pneg %p95
        $region14: #{block_forward.1} parent=11 // pred_check_branch
          %285 = sbr.rel (%p283) target = $region16
        $region15: #{block_forward.1} parent=11 // pred_region
          _
        $region16: #{block_forward.1} parent=11 // pred_fallthru
          _
        // Predicated region
        $region17: #{block_forward.1} parent=11 // pred_check
          %p286 = pneg %p116
        $region18: #{block_forward.1} parent=11 // pred_check_branch
          %288 = sbr.rel (%p286) target = $region20
        $region19: #{block_forward.1} parent=11 // pred_region
          _
        $region20: #{block_forward.1} parent=11 // pred_fallthru
          _
        // Predicated region
        $region21: #{block_forward.1} parent=11 // pred_check
          %p289 = pneg %p137
        $region22: #{block_forward.1} parent=11 // pred_check_branch
          %291 = sbr.rel (%p289) target = $region24
        $region23: #{block_forward.1} parent=11 // pred_region
          _
        $region24: #{block_forward.1} parent=11 // pred_fallthru
          _
        // Predicated region
        $region25: #{block_forward.1} parent=11 // pred_check
          %p292 = pneg %p158
        $region26: #{block_forward.1} parent=11 // pred_check_branch
          %294 = sbr.rel (%p292) target = $region28
        $region27: #{block_forward.1} parent=11 // pred_region
          _
        $region28: #{block_forward.1} parent=11 // pred_fallthru
          _
        // Predicated region
        $region29: #{block_forward.1} parent=11 // pred_check
          %p295 = pneg %p179
        $region30: #{block_forward.1} parent=11 // pred_check_branch
          %297 = sbr.rel (%p295) target = $region32
        $region31: #{block_forward.1} parent=11 // pred_region
          _
        $region32: #{block_forward.1} parent=11 // pred_fallthru
          _
        // Predicated region
        $region33: #{block_forward.1} parent=11 // pred_check
          %p298 = pneg %p200
        $region34: #{block_forward.1} parent=11 // pred_check_branch
          %300 = sbr.rel (%p298) target = $region36
        $region35: #{block_forward.1} parent=11 // pred_region
          _
        $region36: #{block_forward.1} parent=11 // pred_fallthru
          _
        // Predicated region
        $region37: #{block_forward.1} parent=11 // pred_check
          %p301 = pneg %p221
        $region38: #{block_forward.1} parent=11 // pred_check_branch
          %303 = sbr.rel (%p301) target = $region40
        $region39: #{block_forward.1} parent=11 // pred_region
          _
        $region40: #{block_forward.1} parent=11 // pred_fallthru
          _
        // Predicated region
        $region41: #{block_forward.1} parent=11 // pred_check
          %p304 = pneg %p242
        $region42: #{block_forward.1} parent=11 // pred_check_branch
          %306 = sbr.rel (%p304) target = $region44
        $region43: #{block_forward.1} parent=11 // pred_region
          _
        $region44: #{block_forward.1} parent=11 // pred_fallthru
          _
      $region12: #{block_forward.1} parent=5 // pred_fallthru
        _
      %p307 = scmp.lt.s32.totalorder %s22, 2
      // Predicated region
      $region45: #{block_forward.1} parent=5 // pred_check
        %p308 = pneg %p307
      $region46: #{block_forward.1} parent=5 // pred_check_branch
        %310 = sbr.rel (%p308) target = $region48
      $region47: #{block_forward.1} parent=5 // pred_region
        // Predicated region
        $region49: #{block_forward.1} parent=47 // pred_check
          %p311 = pneg %p42
        $region50: #{block_forward.1} parent=47 // pred_check_branch
          %313 = sbr.rel (%p311) target = $region52
        $region51: #{block_forward.1} parent=47 // pred_region
          %s314 = sand.u32 %s32, 1
          %s315 = scalar_lea.sflag [#allocation3], %s314
          %s316 = sand.u32 %s32, 1
          %s317 = smul.addr %s316, 256
          %s318 = scalar_lea.vmem [#allocation2], %s317
          %s320 = ssub.s32 4096, 4096
          %321 = vsyncadd %s315, %s320
          %s322 = smul.addr %s22, 32
          %s323 = smul.addr %s322, 128
          %s324 = scalar_lea.hbm %s0, %s323
          %s325 = sshll.u32 %s318, 4
          %s326 = int_to_ptr.vmem [resolvable:$true] %s325
          %331 = dma.hbm_to_vmem [thread:$0]  %s324, 4096, %s326, %s315, 256, 256, 16
        $region52: #{block_forward.1} parent=47 // pred_fallthru
          _
        // Predicated region
        $region53: #{block_forward.1} parent=47 // pred_check
          %p332 = pneg %p68
        $region54: #{block_forward.1} parent=47 // pred_check_branch
          %334 = sbr.rel (%p332) target = $region56
        $region55: #{block_forward.1} parent=47 // pred_region
          %p335 = scmp.lt.s32.totalorder %s22, 1
          %s336 = scalar_select %p335, %s22, 1
          %s337 = smul.addr %s336, 2
          %s338 = smul.addr %s337, 8
          %s339 = scalar_lea.vmem %s1, %s338
        $region56: #{block_forward.1} parent=47 // pred_fallthru
          _
      $region48: #{block_forward.1} parent=5 // pred_fallthru
        _
      %p340 = scmp.le.s32.totalorder 1, %s22
      %p341 = scmp.lt.s32.totalorder %s22, 3
      %p342 = pnand %p340, %p341
      %p343 = pneg %p342
      // Predicated region
      $region57: #{block_forward.1} parent=5 // pred_check
        _
      $region58: #{block_forward.1} parent=5 // pred_check_branch
        %345 = sbr.rel (%p342) target = $region60
      $region59: #{block_forward.1} parent=5 // pred_region
        %s346 = ssub.s32 %s22, 1
        %s347 = sand.u32 %s35, 1
        %s348 = scalar_lea.sflag [#allocation3], %s347
        %s349 = sand.u32 %s35, 1
        %s350 = smul.addr %s349, 256
        %s351 = scalar_lea.vmem [#allocation2], %s350
        // Predicated region
        $region61: #{block_forward.1} parent=59 // pred_check
          %p352 = pneg %p48
        $region62: #{block_forward.1} parent=59 // pred_check_branch
          %354 = sbr.rel (%p352) target = $region64
        $region63: #{block_forward.1} parent=59 // pred_region
          %355 = dma.done %s348, 4096
        $region64: #{block_forward.1} parent=59 // pred_fallthru
          _
        %s356 = sand.u32 %s35, 1
        %s357 = scalar_lea.sflag [#allocation3], %s356
        %s358 = sand.u32 %s35, 1
        %s359 = smul.addr %s358, 256
        %s360 = scalar_lea.vmem [#allocation2], %s359
        %p361 = pneg %p48
        %p362 = pneg %p45
        %p363 = scmp.lt.s32.totalorder %s27, 1
        %s364 = scalar_select %p363, %s27, 1
        %s365 = smul.addr %s364, 2
        %s366 = smul.addr %s365, 8
        %s367 = scalar_lea.vmem %s1, %s366
        %p368 = pneg %p74
        %p369 = pneg %p71
        %p370 = pneg %p95
        %p371 = pneg %p92
        %p372 = pneg %p116
        %p373 = pneg %p113
        %p374 = pneg %p137
        %p375 = pneg %p134
        %p376 = pneg %p158
        %p377 = pneg %p155
        %p378 = pneg %p179
        %p379 = pneg %p176
        %p380 = pneg %p200
        %p381 = pneg %p197
        %p382 = pneg %p221
        %p383 = pneg %p218
        %p384 = pneg %p242
        %p385 = pneg %p239
        %p386 = pneg %p268
        %p387 = pneg %p265
        %s388 = sand.u32 %s255, 1
        %s389 = scalar_lea.sflag [#allocation4], %s388
        %s390 = sand.u32 %s255, 1
        %s391 = smul.addr %s390, 256
        %s392 = scalar_lea.vmem [#allocation5], %s391
        %p393 = scmp.lt.s32.totalorder %s27, 1
        %s394 = scalar_select %p393, %s27, 1
        %s395 = smul.addr %s394, 2
        %s396 = smul.addr %s395, 8
        %s397 = scalar_lea.vmem %s1, %s396
        %v399 = vld [vmem:[%s351] sm:$0xff]
        %v400 = vld [vmem:[%s351 + $0x8] sm:$0xff]
        %v401 = vld [vmem:[%s351 + $0x10] sm:$0xff]
        %v402 = vld [vmem:[%s351 + $0x18] sm:$0xff]
        %v403 = vld [vmem:[%s351 + $0x20] sm:$0xff]
        %v404 = vld [vmem:[%s351 + $0x28] sm:$0xff]
        %v405 = vld [vmem:[%s351 + $0x30] sm:$0xff]
        %v406 = vld [vmem:[%s351 + $0x38] sm:$0xff]
        %v407 = vld [vmem:[%s351 + $0x40] sm:$0xff]
        %v408 = vld [vmem:[%s351 + $0x48] sm:$0xff]
        %v409 = vld [vmem:[%s351 + $0x50] sm:$0xff]
        %v410 = vld [vmem:[%s351 + $0x58] sm:$0xff]
        %v411 = vld [vmem:[%s351 + $0x60] sm:$0xff]
        %v412 = vld [vmem:[%s351 + $0x68] sm:$0xff]
        %v413 = vld [vmem:[%s351 + $0x70] sm:$0xff]
        %v414 = vld [vmem:[%s351 + $0x78] sm:$0xff]
        %v415 = vld [vmem:[%s351 + $0x80] sm:$0xff]
        %v416 = vld [vmem:[%s351 + $0x88] sm:$0xff]
        %v417 = vld [vmem:[%s351 + $0x90] sm:$0xff]
        %v418 = vld [vmem:[%s351 + $0x98] sm:$0xff]
        %v419 = vld [vmem:[%s351 + $0xa0] sm:$0xff]
        %v420 = vld [vmem:[%s351 + $0xa8] sm:$0xff]
        %v421 = vld [vmem:[%s351 + $0xb0] sm:$0xff]
        %v422 = vld [vmem:[%s351 + $0xb8] sm:$0xff]
        %v423 = vld [vmem:[%s351 + $0xc0] sm:$0xff]
        %v424 = vld [vmem:[%s351 + $0xc8] sm:$0xff]
        %v425 = vld [vmem:[%s351 + $0xd0] sm:$0xff]
        %v426 = vld [vmem:[%s351 + $0xd8] sm:$0xff]
        %v427 = vld [vmem:[%s351 + $0xe0] sm:$0xff]
        %v428 = vld [vmem:[%s351 + $0xe8] sm:$0xff]
        %v429 = vld [vmem:[%s351 + $0xf0] sm:$0xff]
        %v430 = vld [vmem:[%s351 + $0xf8] sm:$0xff]
        %v431 = vld [vmem:[%s397] sm:$0x3f]
        %v432 = vld [vmem:[%s397 + $0x8] sm:$0x3f]
        %v433 = vadd.f32 %v399, %v400
        %434 = vadd.xlane.f32.xlu0 %v433
        %v435 = vpop.xlane.xlu0 %434
        %v436 = vadd.f32 %v401, %v402
        %437 = vadd.xlane.f32.xlu0 %v436
        %v438 = vpop.xlane.xlu0 %437
        %v439 = vadd.f32 %v403, %v404
        %440 = vadd.xlane.f32.xlu0 %v439
        %v441 = vpop.xlane.xlu0 %440
        %v442 = vadd.f32 %v405, %v406
        %443 = vadd.xlane.f32.xlu0 %v442
        %v444 = vpop.xlane.xlu0 %443
        %v445 = vadd.f32 %v407, %v408
        %446 = vadd.xlane.f32.xlu0 %v445
        %v447 = vpop.xlane.xlu0 %446
        %v448 = vadd.f32 %v409, %v410
        %449 = vadd.xlane.f32.xlu0 %v448
        %v450 = vpop.xlane.xlu0 %449
        %v451 = vadd.f32 %v411, %v412
        %452 = vadd.xlane.f32.xlu0 %v451
        %v453 = vpop.xlane.xlu0 %452
        %v454 = vadd.f32 %v413, %v414
        %455 = vadd.xlane.f32.xlu0 %v454
        %v456 = vpop.xlane.xlu0 %455
        %v457 = vadd.f32 %v415, %v416
        %458 = vadd.xlane.f32.xlu0 %v457
        %v459 = vpop.xlane.xlu0 %458
        %v460 = vadd.f32 %v417, %v418
        %461 = vadd.xlane.f32.xlu0 %v460
        %v462 = vpop.xlane.xlu0 %461
        %v463 = vadd.f32 %v419, %v420
        %464 = vadd.xlane.f32.xlu0 %v463
        %v465 = vpop.xlane.xlu0 %464
        %v466 = vadd.f32 %v421, %v422
        %467 = vadd.xlane.f32.xlu0 %v466
        %v468 = vpop.xlane.xlu0 %467
        %v469 = vadd.f32 %v423, %v424
        %470 = vadd.xlane.f32.xlu0 %v469
        %v471 = vpop.xlane.xlu0 %470
        %v472 = vadd.f32 %v425, %v426
        %473 = vadd.xlane.f32.xlu0 %v472
        %v474 = vpop.xlane.xlu0 %473
        %v475 = vadd.f32 %v427, %v428
        %476 = vadd.xlane.f32.xlu0 %v475
        %v477 = vpop.xlane.xlu0 %476
        %v478 = vadd.f32 %v429, %v430
        %479 = vadd.xlane.f32.xlu0 %v478
        %v480 = vpop.xlane.xlu0 %479
        %v481 = vrcp.pop 256.0
        %v482 = vmul.f32 %v435, %v481
        %v483 = vmul.f32 %v438, %v481
        %v484 = vmul.f32 %v441, %v481
        %v485 = vmul.f32 %v444, %v481
        %v486 = vmul.f32 %v447, %v481
        %v487 = vmul.f32 %v450, %v481
        %v488 = vmul.f32 %v453, %v481
        %v489 = vmul.f32 %v456, %v481
        %v490 = vmul.f32 %v459, %v481
        %v491 = vmul.f32 %v462, %v481
        %v492 = vmul.f32 %v465, %v481
        %v493 = vmul.f32 %v468, %v481
        %v494 = vmul.f32 %v471, %v481
        %v495 = vmul.f32 %v474, %v481
        %v496 = vmul.f32 %v477, %v481
        %v497 = vmul.f32 %v480, %v481
        %v498 = vsub.f32 %v399, %v482
        %v499 = vsub.f32 %v400, %v482
        %v500 = vsub.f32 %v401, %v483
        %v501 = vsub.f32 %v402, %v483
        %v502 = vsub.f32 %v403, %v484
        %v503 = vsub.f32 %v404, %v484
        %v504 = vsub.f32 %v405, %v485
        %v505 = vsub.f32 %v406, %v485
        %v506 = vsub.f32 %v407, %v486
        %v507 = vsub.f32 %v408, %v486
        %v508 = vsub.f32 %v409, %v487
        %v509 = vsub.f32 %v410, %v487
        %v510 = vsub.f32 %v411, %v488
        %v511 = vsub.f32 %v412, %v488
        %v512 = vsub.f32 %v413, %v489
        %v513 = vsub.f32 %v414, %v489
        %v514 = vsub.f32 %v415, %v490
        %v515 = vsub.f32 %v416, %v490
        %v516 = vsub.f32 %v417, %v491
        %v517 = vsub.f32 %v418, %v491
        %v518 = vsub.f32 %v419, %v492
        %v519 = vsub.f32 %v420, %v492
        %v520 = vsub.f32 %v421, %v493
        %v521 = vsub.f32 %v422, %v493
        %v522 = vsub.f32 %v423, %v494
        %v523 = vsub.f32 %v424, %v494
        %v524 = vsub.f32 %v425, %v495
        %v525 = vsub.f32 %v426, %v495
        %v526 = vsub.f32 %v427, %v496
        %v527 = vsub.f32 %v428, %v496
        %v528 = vsub.f32 %v429, %v497
        %v529 = vsub.f32 %v430, %v497
        %v530 = vmul.f32 %v498, %v498
        %v531 = vmul.f32 %v499, %v499
        %v532 = vmul.f32 %v500, %v500
        %v533 = vmul.f32 %v501, %v501
        %v534 = vmul.f32 %v502, %v502
        %v535 = vmul.f32 %v503, %v503
        %v536 = vmul.f32 %v504, %v504
        %v537 = vmul.f32 %v505, %v505
        %v538 = vmul.f32 %v506, %v506
        %v539 = vmul.f32 %v507, %v507
        %v540 = vmul.f32 %v508, %v508
        %v541 = vmul.f32 %v509, %v509
        %v542 = vmul.f32 %v510, %v510
        %v543 = vmul.f32 %v511, %v511
        %v544 = vmul.f32 %v512, %v512
        %v545 = vmul.f32 %v513, %v513
        %v546 = vmul.f32 %v514, %v514
        %v547 = vmul.f32 %v515, %v515
        %v548 = vmul.f32 %v516, %v516
        %v549 = vmul.f32 %v517, %v517
        %v550 = vmul.f32 %v518, %v518
        %v551 = vmul.f32 %v519, %v519
        %v552 = vmul.f32 %v520, %v520
        %v553 = vmul.f32 %v521, %v521
        %v554 = vmul.f32 %v522, %v522
        %v555 = vmul.f32 %v523, %v523
        %v556 = vmul.f32 %v524, %v524
        %v557 = vmul.f32 %v525, %v525
        %v558 = vmul.f32 %v526, %v526
        %v559 = vmul.f32 %v527, %v527
        %v560 = vmul.f32 %v528, %v528
        %v561 = vmul.f32 %v529, %v529
        %v562 = vadd.f32 %v530, %v531
        %563 = vadd.xlane.f32.xlu0 %v562
        %v564 = vpop.xlane.xlu0 %563
        %v565 = vadd.f32 %v532, %v533
        %566 = vadd.xlane.f32.xlu0 %v565
        %v567 = vpop.xlane.xlu0 %566
        %v568 = vadd.f32 %v534, %v535
        %569 = vadd.xlane.f32.xlu0 %v568
        %v570 = vpop.xlane.xlu0 %569
        %v571 = vadd.f32 %v536, %v537
        %572 = vadd.xlane.f32.xlu0 %v571
        %v573 = vpop.xlane.xlu0 %572
        %v574 = vadd.f32 %v538, %v539
        %575 = vadd.xlane.f32.xlu0 %v574
        %v576 = vpop.xlane.xlu0 %575
        %v577 = vadd.f32 %v540, %v541
        %578 = vadd.xlane.f32.xlu0 %v577
        %v579 = vpop.xlane.xlu0 %578
        %v580 = vadd.f32 %v542, %v543
        %581 = vadd.xlane.f32.xlu0 %v580
        %v582 = vpop.xlane.xlu0 %581
        %v583 = vadd.f32 %v544, %v545
        %584 = vadd.xlane.f32.xlu0 %v583
        %v585 = vpop.xlane.xlu0 %584
        %v586 = vadd.f32 %v546, %v547
        %587 = vadd.xlane.f32.xlu0 %v586
        %v588 = vpop.xlane.xlu0 %587
        %v589 = vadd.f32 %v548, %v549
        %590 = vadd.xlane.f32.xlu0 %v589
        %v591 = vpop.xlane.xlu0 %590
        %v592 = vadd.f32 %v550, %v551
        %593 = vadd.xlane.f32.xlu0 %v592
        %v594 = vpop.xlane.xlu0 %593
        %v595 = vadd.f32 %v552, %v553
        %596 = vadd.xlane.f32.xlu0 %v595
        %v597 = vpop.xlane.xlu0 %596
        %v598 = vadd.f32 %v554, %v555
        %599 = vadd.xlane.f32.xlu0 %v598
        %v600 = vpop.xlane.xlu0 %599
        %v601 = vadd.f32 %v556, %v557
        %602 = vadd.xlane.f32.xlu0 %v601
        %v603 = vpop.xlane.xlu0 %602
        %v604 = vadd.f32 %v558, %v559
        %605 = vadd.xlane.f32.xlu0 %v604
        %v606 = vpop.xlane.xlu0 %605
        %v607 = vadd.f32 %v560, %v561
        %608 = vadd.xlane.f32.xlu0 %v607
        %v609 = vpop.xlane.xlu0 %608
        %v610 = vmul.f32 %v564, %v481
        %v611 = vmul.f32 %v567, %v481
        %v612 = vmul.f32 %v570, %v481
        %v613 = vmul.f32 %v573, %v481
        %v614 = vmul.f32 %v576, %v481
        %v615 = vmul.f32 %v579, %v481
        %v616 = vmul.f32 %v582, %v481
        %v617 = vmul.f32 %v585, %v481
        %v618 = vmul.f32 %v588, %v481
        %v619 = vmul.f32 %v591, %v481
        %v620 = vmul.f32 %v594, %v481
        %v621 = vmul.f32 %v597, %v481
        %v622 = vmul.f32 %v600, %v481
        %v623 = vmul.f32 %v603, %v481
        %v624 = vmul.f32 %v606, %v481
        %v625 = vmul.f32 %v609, %v481
        %v626 = vadd.f32 %v610, 1e-06
        %v627 = vadd.f32 %v611, 1e-06
        %v628 = vadd.f32 %v612, 1e-06
        %v629 = vadd.f32 %v613, 1e-06
        %v630 = vadd.f32 %v614, 1e-06
        %v631 = vadd.f32 %v615, 1e-06
        %v632 = vadd.f32 %v616, 1e-06
        %v633 = vadd.f32 %v617, 1e-06
        %v634 = vadd.f32 %v618, 1e-06
        %v635 = vadd.f32 %v619, 1e-06
        %v636 = vadd.f32 %v620, 1e-06
        %v637 = vadd.f32 %v621, 1e-06
        %v638 = vadd.f32 %v622, 1e-06
        %v639 = vadd.f32 %v623, 1e-06
        %v640 = vadd.f32 %v624, 1e-06
        %v641 = vadd.f32 %v625, 1e-06
        %v642 = vrsqrt.pop %v626
        %v643 = vrsqrt.pop %v627
        %v644 = vrsqrt.pop %v628
        %v645 = vrsqrt.pop %v629
        %v646 = vrsqrt.pop %v630
        %v647 = vrsqrt.pop %v631
        %v648 = vrsqrt.pop %v632
        %v649 = vrsqrt.pop %v633
        %v650 = vrsqrt.pop %v634
        %v651 = vrsqrt.pop %v635
        %v652 = vrsqrt.pop %v636
        %v653 = vrsqrt.pop %v637
        %v654 = vrsqrt.pop %v638
        %v655 = vrsqrt.pop %v639
        %v656 = vrsqrt.pop %v640
        %v657 = vrsqrt.pop %v641
        %v658 = vmul.f32 %v498, %v642
        %v659 = vmul.f32 %v499, %v642
        %v660 = vmul.f32 %v500, %v643
        %v661 = vmul.f32 %v501, %v643
        %v662 = vmul.f32 %v502, %v644
        %v663 = vmul.f32 %v503, %v644
        %v664 = vmul.f32 %v504, %v645
        %v665 = vmul.f32 %v505, %v645
        %v666 = vmul.f32 %v506, %v646
        %v667 = vmul.f32 %v507, %v646
        %v668 = vmul.f32 %v508, %v647
        %v669 = vmul.f32 %v509, %v647
        %v670 = vmul.f32 %v510, %v648
        %v671 = vmul.f32 %v511, %v648
        %v672 = vmul.f32 %v512, %v649
        %v673 = vmul.f32 %v513, %v649
        %v674 = vmul.f32 %v514, %v650
        %v675 = vmul.f32 %v515, %v650
        %v676 = vmul.f32 %v516, %v651
        %v677 = vmul.f32 %v517, %v651
        %v678 = vmul.f32 %v518, %v652
        %v679 = vmul.f32 %v519, %v652
        %v680 = vmul.f32 %v520, %v653
        %v681 = vmul.f32 %v521, %v653
        %v682 = vmul.f32 %v522, %v654
        %v683 = vmul.f32 %v523, %v654
        %v684 = vmul.f32 %v524, %v655
        %v685 = vmul.f32 %v525, %v655
        %v686 = vmul.f32 %v526, %v656
        %v687 = vmul.f32 %v527, %v656
        %v688 = vmul.f32 %v528, %v657
        %v689 = vmul.f32 %v529, %v657
        %v690 = vadd.f32 %v431, 1.0
        %v691 = vadd.f32 %v432, 1.0
        %v692 = vlaneseq
        %v693 = vshrl.u32 %v692, 7
        %v694 = vsub.s32 1, %v693
        %v695 = vrot.slane %v690, %v694
        %v696 = vlaneseq
        %v697 = vshrl.u32 %v696, 7
        %v698 = vsub.s32 1, %v697
        %v699 = vrot.slane %v691, %v698
        %v700 = vmul.f32 %v658, %v695
        %v701 = vmul.f32 %v659, %v699
        %v702 = vmul.f32 %v660, %v695
        %v703 = vmul.f32 %v661, %v699
        %v704 = vmul.f32 %v662, %v695
        %v705 = vmul.f32 %v663, %v699
        %v706 = vmul.f32 %v664, %v695
        %v707 = vmul.f32 %v665, %v699
        %v708 = vmul.f32 %v666, %v695
        %v709 = vmul.f32 %v667, %v699
        %v710 = vmul.f32 %v668, %v695
        %v711 = vmul.f32 %v669, %v699
        %v712 = vmul.f32 %v670, %v695
        %v713 = vmul.f32 %v671, %v699
        %v714 = vmul.f32 %v672, %v695
        %v715 = vmul.f32 %v673, %v699
        %v716 = vmul.f32 %v674, %v695
        %v717 = vmul.f32 %v675, %v699
        %v718 = vmul.f32 %v676, %v695
        %v719 = vmul.f32 %v677, %v699
        %v720 = vmul.f32 %v678, %v695
        %v721 = vmul.f32 %v679, %v699
        %v722 = vmul.f32 %v680, %v695
        %v723 = vmul.f32 %v681, %v699
        %v724 = vmul.f32 %v682, %v695
        %v725 = vmul.f32 %v683, %v699
        %v726 = vmul.f32 %v684, %v695
        %v727 = vmul.f32 %v685, %v699
        %v728 = vmul.f32 %v686, %v695
        %v729 = vmul.f32 %v687, %v699
        %v730 = vmul.f32 %v688, %v695
        %v731 = vmul.f32 %v689, %v699
        %v732 = vlaneseq
        %v733 = vshrl.u32 %v732, 7
        %v734 = vsub.s32 0, %v733
        %v735 = vrot.slane %v431, %v734
        %v736 = vlaneseq
        %v737 = vshrl.u32 %v736, 7
        %v738 = vsub.s32 0, %v737
        %v739 = vrot.slane %v432, %v738
        %v740 = vadd.f32 %v700, %v735
        %v741 = vadd.f32 %v701, %v739
        %v742 = vadd.f32 %v702, %v735
        %v743 = vadd.f32 %v703, %v739
        %v744 = vadd.f32 %v704, %v735
        %v745 = vadd.f32 %v705, %v739
        %v746 = vadd.f32 %v706, %v735
        %v747 = vadd.f32 %v707, %v739
        %v748 = vadd.f32 %v708, %v735
        %v749 = vadd.f32 %v709, %v739
        %v750 = vadd.f32 %v710, %v735
        %v751 = vadd.f32 %v711, %v739
        %v752 = vadd.f32 %v712, %v735
        %v753 = vadd.f32 %v713, %v739
        %v754 = vadd.f32 %v714, %v735
        %v755 = vadd.f32 %v715, %v739
        %v756 = vadd.f32 %v716, %v735
        %v757 = vadd.f32 %v717, %v739
        %v758 = vadd.f32 %v718, %v735
        %v759 = vadd.f32 %v719, %v739
        %v760 = vadd.f32 %v720, %v735
        %v761 = vadd.f32 %v721, %v739
        %v762 = vadd.f32 %v722, %v735
        %v763 = vadd.f32 %v723, %v739
        %v764 = vadd.f32 %v724, %v735
        %v765 = vadd.f32 %v725, %v739
        %v766 = vadd.f32 %v726, %v735
        %v767 = vadd.f32 %v727, %v739
        %v768 = vadd.f32 %v728, %v735
        %v769 = vadd.f32 %v729, %v739
        %v770 = vadd.f32 %v730, %v735
        %v771 = vadd.f32 %v731, %v739
        %v772 = vpack.c.bf16 %v742, %v740
        %v773 = vpack.c.bf16 %v743, %v741
        %v774 = vpack.c.bf16 %v746, %v744
        %v775 = vpack.c.bf16 %v747, %v745
        %v776 = vpack.c.bf16 %v750, %v748
        %v777 = vpack.c.bf16 %v751, %v749
        %v778 = vpack.c.bf16 %v754, %v752
        %v779 = vpack.c.bf16 %v755, %v753
        %v780 = vpack.c.bf16 %v758, %v756
        %v781 = vpack.c.bf16 %v759, %v757
        %v782 = vpack.c.bf16 %v762, %v760
        %v783 = vpack.c.bf16 %v763, %v761
        %v784 = vpack.c.bf16 %v766, %v764
        %v785 = vpack.c.bf16 %v767, %v765
        %v786 = vpack.c.bf16 %v770, %v768
        %v787 = vpack.c.bf16 %v771, %v769
        %v788 = vld [vmem:[%s2] sm:$0xff]
        %v789 = vld [vmem:[%s2 + $0x8] sm:$0xff]
        %v790 = vld [vmem:[%s2 + $0x10] sm:$0xff]
        %v791 = vld [vmem:[%s2 + $0x18] sm:$0xff]
        %v792 = vld [vmem:[%s2 + $0x20] sm:$0xff]
        %v793 = vld [vmem:[%s2 + $0x28] sm:$0xff]
        %v794 = vld [vmem:[%s2 + $0x30] sm:$0xff]
        %v795 = vld [vmem:[%s2 + $0x38] sm:$0xff]
        %v796 = vld [vmem:[%s2 + $0x40] sm:$0xff]
        %v797 = vld [vmem:[%s2 + $0x48] sm:$0xff]
        %v798 = vld [vmem:[%s2 + $0x50] sm:$0xff]
        %v799 = vld [vmem:[%s2 + $0x58] sm:$0xff]
        %v800 = vld [vmem:[%s2 + $0x60] sm:$0xff]
        %v801 = vld [vmem:[%s2 + $0x68] sm:$0xff]
        %v802 = vld [vmem:[%s2 + $0x70] sm:$0xff]
        %v803 = vld [vmem:[%s2 + $0x78] sm:$0xff]
        %v804 = vld [vmem:[%s2 + $0x80] sm:$0xff]
        %v805 = vld [vmem:[%s2 + $0x88] sm:$0xff]
        %v806 = vld [vmem:[%s2 + $0x90] sm:$0xff]
        %v807 = vld [vmem:[%s2 + $0x98] sm:$0xff]
        %v808 = vld [vmem:[%s2 + $0xa0] sm:$0xff]
        %v809 = vld [vmem:[%s2 + $0xa8] sm:$0xff]
        %v810 = vld [vmem:[%s2 + $0xb0] sm:$0xff]
        %v811 = vld [vmem:[%s2 + $0xb8] sm:$0xff]
        %v812 = vld [vmem:[%s2 + $0xc0] sm:$0xff]
        %v813 = vld [vmem:[%s2 + $0xc8] sm:$0xff]
        %v814 = vld [vmem:[%s2 + $0xd0] sm:$0xff]
        %v815 = vld [vmem:[%s2 + $0xd8] sm:$0xff]
        %v816 = vld [vmem:[%s2 + $0xe0] sm:$0xff]
        %v817 = vld [vmem:[%s2 + $0xe8] sm:$0xff]
        %v818 = vld [vmem:[%s2 + $0xf0] sm:$0xff]
        %v819 = vld [vmem:[%s2 + $0xf8] sm:$0xff]
        %v820 = vld [vmem:[%s2 + $0x100] sm:$0xff]
        %v821 = vld [vmem:[%s2 + $0x108] sm:$0xff]
        %v822 = vld [vmem:[%s2 + $0x110] sm:$0xff]
        %v823 = vld [vmem:[%s2 + $0x118] sm:$0xff]
        %v824 = vld [vmem:[%s2 + $0x120] sm:$0xff]
        %v825 = vld [vmem:[%s2 + $0x128] sm:$0xff]
        %v826 = vld [vmem:[%s2 + $0x130] sm:$0xff]
        %v827 = vld [vmem:[%s2 + $0x138] sm:$0xff]
        %v828 = vld [vmem:[%s2 + $0x140] sm:$0xff]
        %v829 = vld [vmem:[%s2 + $0x148] sm:$0xff]
        %v830 = vld [vmem:[%s2 + $0x150] sm:$0xff]
        %v831 = vld [vmem:[%s2 + $0x158] sm:$0xff]
        %v832 = vld [vmem:[%s2 + $0x160] sm:$0xff]
        %v833 = vld [vmem:[%s2 + $0x168] sm:$0xff]
        %v834 = vld [vmem:[%s2 + $0x170] sm:$0xff]
        %v835 = vld [vmem:[%s2 + $0x178] sm:$0xff]
        %v836 = vld [vmem:[%s2 + $0x180] sm:$0xff]
        %v837 = vld [vmem:[%s2 + $0x188] sm:$0xff]
        %v838 = vld [vmem:[%s2 + $0x190] sm:$0xff]
        %v839 = vld [vmem:[%s2 + $0x198] sm:$0xff]
        %v840 = vld [vmem:[%s2 + $0x1a0] sm:$0xff]
        %v841 = vld [vmem:[%s2 + $0x1a8] sm:$0xff]
        %v842 = vld [vmem:[%s2 + $0x1b0] sm:$0xff]
        %v843 = vld [vmem:[%s2 + $0x1b8] sm:$0xff]
        %v844 = vld [vmem:[%s2 + $0x1c0] sm:$0xff]
        %v845 = vld [vmem:[%s2 + $0x1c8] sm:$0xff]
        %v846 = vld [vmem:[%s2 + $0x1d0] sm:$0xff]
        %v847 = vld [vmem:[%s2 + $0x1d8] sm:$0xff]
        %v848 = vld [vmem:[%s2 + $0x1e0] sm:$0xff]
        %v849 = vld [vmem:[%s2 + $0x1e8] sm:$0xff]
        %v850 = vld [vmem:[%s2 + $0x1f0] sm:$0xff]
        %v851 = vld [vmem:[%s2 + $0x1f8] sm:$0xff]
        %v852 = vld [vmem:[%s2 + $0x200] sm:$0xff]
        %v853 = vld [vmem:[%s2 + $0x208] sm:$0xff]
        %v854 = vld [vmem:[%s2 + $0x210] sm:$0xff]
        %v855 = vld [vmem:[%s2 + $0x218] sm:$0xff]
        %v856 = vld [vmem:[%s2 + $0x220] sm:$0xff]
        %v857 = vld [vmem:[%s2 + $0x228] sm:$0xff]
        %v858 = vld [vmem:[%s2 + $0x230] sm:$0xff]
        %v859 = vld [vmem:[%s2 + $0x238] sm:$0xff]
        %v860 = vld [vmem:[%s2 + $0x240] sm:$0xff]
        %v861 = vld [vmem:[%s2 + $0x248] sm:$0xff]
        %v862 = vld [vmem:[%s2 + $0x250] sm:$0xff]
        %v863 = vld [vmem:[%s2 + $0x258] sm:$0xff]
        %v864 = vld [vmem:[%s2 + $0x260] sm:$0xff]
        %v865 = vld [vmem:[%s2 + $0x268] sm:$0xff]
        %v866 = vld [vmem:[%s2 + $0x270] sm:$0xff]
        %v867 = vld [vmem:[%s2 + $0x278] sm:$0xff]
        %v868 = vld [vmem:[%s2 + $0x280] sm:$0xff]
        %v869 = vld [vmem:[%s2 + $0x288] sm:$0xff]
        %v870 = vld [vmem:[%s2 + $0x290] sm:$0xff]
        %v871 = vld [vmem:[%s2 + $0x298] sm:$0xff]
        %v872 = vld [vmem:[%s2 + $0x2a0] sm:$0xff]
        %v873 = vld [vmem:[%s2 + $0x2a8] sm:$0xff]
        %v874 = vld [vmem:[%s2 + $0x2b0] sm:$0xff]
        %v875 = vld [vmem:[%s2 + $0x2b8] sm:$0xff]
        %v876 = vld [vmem:[%s2 + $0x2c0] sm:$0xff]
        %v877 = vld [vmem:[%s2 + $0x2c8] sm:$0xff]
        %v878 = vld [vmem:[%s2 + $0x2d0] sm:$0xff]
        %v879 = vld [vmem:[%s2 + $0x2d8] sm:$0xff]
        %v880 = vld [vmem:[%s2 + $0x2e0] sm:$0xff]
        %v881 = vld [vmem:[%s2 + $0x2e8] sm:$0xff]
        %v882 = vld [vmem:[%s2 + $0x2f0] sm:$0xff]
        %v883 = vld [vmem:[%s2 + $0x2f8] sm:$0xff]
        %v884 = vld [vmem:[%s3] sm:$0x3f]
        %v886 = vlaneseq
        %v887 = vshrl.u32 %v886, 7
        %v888 = vsub.s32 0, %v887
        %v889 = vrot.slane %v884, %v888
        %v890 = vlaneseq
        %v891 = vshrl.u32 %v890, 7
        %v892 = vsub.s32 1, %v891
        %v893 = vrot.slane %v884, %v892
        %v894 = vlaneseq
        %v895 = vshrl.u32 %v894, 7
        %v896 = vsub.s32 2, %v895
        %v897 = vrot.slane %v884, %v896
        %v898 = vlaneseq
        %v899 = vshrl.u32 %v898, 7
        %v900 = vsub.s32 3, %v899
        %v901 = vrot.slane %v884, %v900
        %v902 = vlaneseq
        %v903 = vshrl.u32 %v902, 7
        %v904 = vsub.s32 4, %v903
        %v905 = vrot.slane %v884, %v904
        %v906 = vlaneseq
        %v907 = vshrl.u32 %v906, 7
        %v908 = vsub.s32 5, %v907
        %v909 = vrot.slane %v884, %v908
        %v1012 = vunpack.c.l.b16 %v788
        %v1013 = vunpack.c.h.b16 %v788
        %v1014 = vunpack.c.l.b16 %v789
        %v1015 = vunpack.c.h.b16 %v789
        %v1016 = vunpack.c.l.b16 %v790
        %v1017 = vunpack.c.h.b16 %v790
        %v1018 = vunpack.c.l.b16 %v791
        %v1019 = vunpack.c.h.b16 %v791
        %v1020 = vunpack.c.l.b16 %v792
        %v1021 = vunpack.c.h.b16 %v792
        %v1022 = vunpack.c.l.b16 %v793
        %v1023 = vunpack.c.h.b16 %v793
        %v1024 = vunpack.c.l.b16 %v794
        %v1025 = vunpack.c.h.b16 %v794
        %v1026 = vunpack.c.l.b16 %v795
        %v1027 = vunpack.c.h.b16 %v795
        %v1028 = vunpack.c.l.b16 %v796
        %v1029 = vunpack.c.h.b16 %v796
        %v1030 = vunpack.c.l.b16 %v797
        %v1031 = vunpack.c.h.b16 %v797
        %v1032 = vunpack.c.l.b16 %v798
        %v1033 = vunpack.c.h.b16 %v798
        %v1034 = vunpack.c.l.b16 %v799
        %v1035 = vunpack.c.h.b16 %v799
        %v1036 = vunpack.c.l.b16 %v800
        %v1037 = vunpack.c.h.b16 %v800
        %v1038 = vunpack.c.l.b16 %v801
        %v1039 = vunpack.c.h.b16 %v801
        %v1040 = vunpack.c.l.b16 %v802
        %v1041 = vunpack.c.h.b16 %v802
        %v1042 = vunpack.c.l.b16 %v803
        %v1043 = vunpack.c.h.b16 %v803
        %v1044 = vunpack.c.l.b16 %v804
        %v1045 = vunpack.c.h.b16 %v804
        %v1046 = vunpack.c.l.b16 %v805
        %v1047 = vunpack.c.h.b16 %v805
        %v1048 = vunpack.c.l.b16 %v806
        %v1049 = vunpack.c.h.b16 %v806
        %v1050 = vunpack.c.l.b16 %v807
        %v1051 = vunpack.c.h.b16 %v807
        %v1052 = vunpack.c.l.b16 %v808
        %v1053 = vunpack.c.h.b16 %v808
        %v1054 = vunpack.c.l.b16 %v809
        %v1055 = vunpack.c.h.b16 %v809
        %v1056 = vunpack.c.l.b16 %v810
        %v1057 = vunpack.c.h.b16 %v810
        %v1058 = vunpack.c.l.b16 %v811
        %v1059 = vunpack.c.h.b16 %v811
        %v1060 = vunpack.c.l.b16 %v812
        %v1061 = vunpack.c.h.b16 %v812
        %v1062 = vunpack.c.l.b16 %v813
        %v1063 = vunpack.c.h.b16 %v813
        %v1064 = vunpack.c.l.b16 %v814
        %v1065 = vunpack.c.h.b16 %v814
        %v1066 = vunpack.c.l.b16 %v815
        %v1067 = vunpack.c.h.b16 %v815
        %v1068 = vunpack.c.l.b16 %v816
        %v1069 = vunpack.c.h.b16 %v816
        %v1070 = vunpack.c.l.b16 %v817
        %v1071 = vunpack.c.h.b16 %v817
        %v1072 = vunpack.c.l.b16 %v818
        %v1073 = vunpack.c.h.b16 %v818
        %v1074 = vunpack.c.l.b16 %v819
        %v1075 = vunpack.c.h.b16 %v819
        %v1076 = vunpack.c.l.b16 %v820
        %v1077 = vunpack.c.h.b16 %v820
        %v1078 = vunpack.c.l.b16 %v821
        %v1079 = vunpack.c.h.b16 %v821
        %v1080 = vunpack.c.l.b16 %v822
        %v1081 = vunpack.c.h.b16 %v822
        %v1082 = vunpack.c.l.b16 %v823
        %v1083 = vunpack.c.h.b16 %v823
        %v1084 = vunpack.c.l.b16 %v824
        %v1085 = vunpack.c.h.b16 %v824
        %v1086 = vunpack.c.l.b16 %v825
        %v1087 = vunpack.c.h.b16 %v825
        %v1088 = vunpack.c.l.b16 %v826
        %v1089 = vunpack.c.h.b16 %v826
        %v1090 = vunpack.c.l.b16 %v827
        %v1091 = vunpack.c.h.b16 %v827
        %v1092 = vunpack.c.l.b16 %v828
        %v1093 = vunpack.c.h.b16 %v828
        %v1094 = vunpack.c.l.b16 %v829
        %v1095 = vunpack.c.h.b16 %v829
        %v1096 = vunpack.c.l.b16 %v830
        %v1097 = vunpack.c.h.b16 %v830
        %v1098 = vunpack.c.l.b16 %v831
        %v1099 = vunpack.c.h.b16 %v831
        %v1100 = vunpack.c.l.b16 %v832
        %v1101 = vunpack.c.h.b16 %v832
        %v1102 = vunpack.c.l.b16 %v833
        %v1103 = vunpack.c.h.b16 %v833
        %v1104 = vunpack.c.l.b16 %v834
        %v1105 = vunpack.c.h.b16 %v834
        %v1106 = vunpack.c.l.b16 %v835
        %v1107 = vunpack.c.h.b16 %v835
        %v1108 = vunpack.c.l.b16 %v836
        %v1109 = vunpack.c.h.b16 %v836
        %v1110 = vunpack.c.l.b16 %v837
        %v1111 = vunpack.c.h.b16 %v837
        %v1112 = vunpack.c.l.b16 %v838
        %v1113 = vunpack.c.h.b16 %v838
        %v1114 = vunpack.c.l.b16 %v839
        %v1115 = vunpack.c.h.b16 %v839
        %v1116 = vunpack.c.l.b16 %v840
        %v1117 = vunpack.c.h.b16 %v840
        %v1118 = vunpack.c.l.b16 %v841
        %v1119 = vunpack.c.h.b16 %v841
        %v1120 = vunpack.c.l.b16 %v842
        %v1121 = vunpack.c.h.b16 %v842
        %v1122 = vunpack.c.l.b16 %v843
        %v1123 = vunpack.c.h.b16 %v843
        %v1124 = vunpack.c.l.b16 %v844
        %v1125 = vunpack.c.h.b16 %v844
        %v1126 = vunpack.c.l.b16 %v845
        %v1127 = vunpack.c.h.b16 %v845
        %v1128 = vunpack.c.l.b16 %v846
        %v1129 = vunpack.c.h.b16 %v846
        %v1130 = vunpack.c.l.b16 %v847
        %v1131 = vunpack.c.h.b16 %v847
        %v1132 = vunpack.c.l.b16 %v848
        %v1133 = vunpack.c.h.b16 %v848
        %v1134 = vunpack.c.l.b16 %v849
        %v1135 = vunpack.c.h.b16 %v849
        %v1136 = vunpack.c.l.b16 %v850
        %v1137 = vunpack.c.h.b16 %v850
        %v1138 = vunpack.c.l.b16 %v851
        %v1139 = vunpack.c.h.b16 %v851
        %v1140 = vunpack.c.l.b16 %v852
        %v1141 = vunpack.c.h.b16 %v852
        %v1142 = vunpack.c.l.b16 %v853
        %v1143 = vunpack.c.h.b16 %v853
        %v1144 = vunpack.c.l.b16 %v854
        %v1145 = vunpack.c.h.b16 %v854
        %v1146 = vunpack.c.l.b16 %v855
        %v1147 = vunpack.c.h.b16 %v855
        %v1148 = vunpack.c.l.b16 %v856
        %v1149 = vunpack.c.h.b16 %v856
        %v1150 = vunpack.c.l.b16 %v857
        %v1151 = vunpack.c.h.b16 %v857
        %v1152 = vunpack.c.l.b16 %v858
        %v1153 = vunpack.c.h.b16 %v858
        %v1154 = vunpack.c.l.b16 %v859
        %v1155 = vunpack.c.h.b16 %v859
        %v1156 = vunpack.c.l.b16 %v860
        %v1157 = vunpack.c.h.b16 %v860
        %v1158 = vunpack.c.l.b16 %v861
        %v1159 = vunpack.c.h.b16 %v861
        %v1160 = vunpack.c.l.b16 %v862
        %v1161 = vunpack.c.h.b16 %v862
        %v1162 = vunpack.c.l.b16 %v863
        %v1163 = vunpack.c.h.b16 %v863
        %v1164 = vunpack.c.l.b16 %v864
        %v1165 = vunpack.c.h.b16 %v864
        %v1166 = vunpack.c.l.b16 %v865
        %v1167 = vunpack.c.h.b16 %v865
        %v1168 = vunpack.c.l.b16 %v866
        %v1169 = vunpack.c.h.b16 %v866
        %v1170 = vunpack.c.l.b16 %v867
        %v1171 = vunpack.c.h.b16 %v867
        %v1172 = vunpack.c.l.b16 %v868
        %v1173 = vunpack.c.h.b16 %v868
        %v1174 = vunpack.c.l.b16 %v869
        %v1175 = vunpack.c.h.b16 %v869
        %v1176 = vunpack.c.l.b16 %v870
        %v1177 = vunpack.c.h.b16 %v870
        %v1178 = vunpack.c.l.b16 %v871
        %v1179 = vunpack.c.h.b16 %v871
        %v1180 = vunpack.c.l.b16 %v872
        %v1181 = vunpack.c.h.b16 %v872
        %v1182 = vunpack.c.l.b16 %v873
        %v1183 = vunpack.c.h.b16 %v873
        %v1184 = vunpack.c.l.b16 %v874
        %v1185 = vunpack.c.h.b16 %v874
        %v1186 = vunpack.c.l.b16 %v875
        %v1187 = vunpack.c.h.b16 %v875
        %v1188 = vunpack.c.l.b16 %v876
        %v1189 = vunpack.c.h.b16 %v876
        %v1190 = vunpack.c.l.b16 %v877
        %v1191 = vunpack.c.h.b16 %v877
        %v1192 = vunpack.c.l.b16 %v878
        %v1193 = vunpack.c.h.b16 %v878
        %v1194 = vunpack.c.l.b16 %v879
        %v1195 = vunpack.c.h.b16 %v879
        %v1196 = vunpack.c.l.b16 %v880
        %v1197 = vunpack.c.h.b16 %v880
        %v1198 = vunpack.c.l.b16 %v881
        %v1199 = vunpack.c.h.b16 %v881
        %v1200 = vunpack.c.l.b16 %v882
        %v1201 = vunpack.c.h.b16 %v882
        %v1202 = vunpack.c.l.b16 %v883
        %v1203 = vunpack.c.h.b16 %v883
        %v1204 = vpack.c.b16 %v1018, %v1012
        %v1205 = vpack.c.b16 %v1019, %v1013
        %v1206 = vpack.c.b16 %v1020, %v1014
        %v1207 = vpack.c.b16 %v1021, %v1015
        %v1208 = vpack.c.b16 %v1022, %v1016
        %v1209 = vpack.c.b16 %v1023, %v1017
        %v1210 = vpack.c.b16 %v1030, %v1024
        %v1211 = vpack.c.b16 %v1031, %v1025
        %v1212 = vpack.c.b16 %v1032, %v1026
        %v1213 = vpack.c.b16 %v1033, %v1027
        %v1214 = vpack.c.b16 %v1034, %v1028
        %v1215 = vpack.c.b16 %v1035, %v1029
        %v1216 = vpack.c.b16 %v1042, %v1036
        %v1217 = vpack.c.b16 %v1043, %v1037
        %v1218 = vpack.c.b16 %v1044, %v1038
        %v1219 = vpack.c.b16 %v1045, %v1039
        %v1220 = vpack.c.b16 %v1046, %v1040
        %v1221 = vpack.c.b16 %v1047, %v1041
        %v1222 = vpack.c.b16 %v1054, %v1048
        %v1223 = vpack.c.b16 %v1055, %v1049
        %v1224 = vpack.c.b16 %v1056, %v1050
        %v1225 = vpack.c.b16 %v1057, %v1051
        %v1226 = vpack.c.b16 %v1058, %v1052
        %v1227 = vpack.c.b16 %v1059, %v1053
        %v1228 = vpack.c.b16 %v1066, %v1060
        %v1229 = vpack.c.b16 %v1067, %v1061
        %v1230 = vpack.c.b16 %v1068, %v1062
        %v1231 = vpack.c.b16 %v1069, %v1063
        %v1232 = vpack.c.b16 %v1070, %v1064
        %v1233 = vpack.c.b16 %v1071, %v1065
        %v1234 = vpack.c.b16 %v1078, %v1072
        %v1235 = vpack.c.b16 %v1079, %v1073
        %v1236 = vpack.c.b16 %v1080, %v1074
        %v1237 = vpack.c.b16 %v1081, %v1075
        %v1238 = vpack.c.b16 %v1082, %v1076
        %v1239 = vpack.c.b16 %v1083, %v1077
        %v1240 = vpack.c.b16 %v1090, %v1084
        %v1241 = vpack.c.b16 %v1091, %v1085
        %v1242 = vpack.c.b16 %v1092, %v1086
        %v1243 = vpack.c.b16 %v1093, %v1087
        %v1244 = vpack.c.b16 %v1094, %v1088
        %v1245 = vpack.c.b16 %v1095, %v1089
        %v1246 = vpack.c.b16 %v1102, %v1096
        %v1247 = vpack.c.b16 %v1103, %v1097
        %v1248 = vpack.c.b16 %v1104, %v1098
        %v1249 = vpack.c.b16 %v1105, %v1099
        %v1250 = vpack.c.b16 %v1106, %v1100
        %v1251 = vpack.c.b16 %v1107, %v1101
        %v1252 = vpack.c.b16 %v1114, %v1108
        %v1253 = vpack.c.b16 %v1115, %v1109
        %v1254 = vpack.c.b16 %v1116, %v1110
        %v1255 = vpack.c.b16 %v1117, %v1111
        %v1256 = vpack.c.b16 %v1118, %v1112
        %v1257 = vpack.c.b16 %v1119, %v1113
        %v1258 = vpack.c.b16 %v1126, %v1120
        %v1259 = vpack.c.b16 %v1127, %v1121
        %v1260 = vpack.c.b16 %v1128, %v1122
        %v1261 = vpack.c.b16 %v1129, %v1123
        %v1262 = vpack.c.b16 %v1130, %v1124
        %v1263 = vpack.c.b16 %v1131, %v1125
        %v1264 = vpack.c.b16 %v1138, %v1132
        %v1265 = vpack.c.b16 %v1139, %v1133
        %v1266 = vpack.c.b16 %v1140, %v1134
        %v1267 = vpack.c.b16 %v1141, %v1135
        %v1268 = vpack.c.b16 %v1142, %v1136
        %v1269 = vpack.c.b16 %v1143, %v1137
        %v1270 = vpack.c.b16 %v1150, %v1144
        %v1271 = vpack.c.b16 %v1151, %v1145
        %v1272 = vpack.c.b16 %v1152, %v1146
        %v1273 = vpack.c.b16 %v1153, %v1147
        %v1274 = vpack.c.b16 %v1154, %v1148
        %v1275 = vpack.c.b16 %v1155, %v1149
        %v1276 = vpack.c.b16 %v1162, %v1156
        %v1277 = vpack.c.b16 %v1163, %v1157
        %v1278 = vpack.c.b16 %v1164, %v1158
        %v1279 = vpack.c.b16 %v1165, %v1159
        %v1280 = vpack.c.b16 %v1166, %v1160
        %v1281 = vpack.c.b16 %v1167, %v1161
        %v1282 = vpack.c.b16 %v1174, %v1168
        %v1283 = vpack.c.b16 %v1175, %v1169
        %v1284 = vpack.c.b16 %v1176, %v1170
        %v1285 = vpack.c.b16 %v1177, %v1171
        %v1286 = vpack.c.b16 %v1178, %v1172
        %v1287 = vpack.c.b16 %v1179, %v1173
        %v1288 = vpack.c.b16 %v1186, %v1180
        %v1289 = vpack.c.b16 %v1187, %v1181
        %v1290 = vpack.c.b16 %v1188, %v1182
        %v1291 = vpack.c.b16 %v1189, %v1183
        %v1292 = vpack.c.b16 %v1190, %v1184
        %v1293 = vpack.c.b16 %v1191, %v1185
        %v1294 = vpack.c.b16 %v1198, %v1192
        %v1295 = vpack.c.b16 %v1199, %v1193
        %v1296 = vpack.c.b16 %v1200, %v1194
        %v1297 = vpack.c.b16 %v1201, %v1195
        %v1298 = vpack.c.b16 %v1202, %v1196
        %v1299 = vpack.c.b16 %v1203, %v1197
        %1396 = vmatprep.subr.bf16.mxu0 %v1247
        %1397 = vmatpush1.bf16.msra.mxu0 %v1246
        %1398 = vmatprep.subr.bf16.mxu0 %v1241
        %1399 = vmatpush1.bf16.msra.mxu0 %v1240
        %1400 = vmatprep.subr.bf16.mxu0 %v1235
        %1401 = vmatpush1.bf16.msra.mxu0 %v1234
        %1402 = vmatprep.subr.bf16.mxu0 %v1229
        %1403 = vmatpush1.bf16.msra.mxu0 %v1228
        %1404 = vmatprep.subr.bf16.mxu0 %v1223
        %1405 = vmatpush1.bf16.msra.mxu0 %v1222
        %1406 = vmatprep.subr.bf16.mxu0 %v1217
        %1407 = vmatpush1.bf16.msra.mxu0 %v1216
        %1408 = vmatprep.subr.bf16.mxu0 %v1211
        %1409 = vmatpush1.bf16.msra.mxu0 %v1210
        %1410 = vmatprep.subr.bf16.mxu0 %v1205
        %1411 = vmatpush1.bf16.msra.mxu0 %v1204
        %1412 = vmatprep.subr.bf16.mxu0 %v1295
        %1413 = vmatpush2.bf16.msra.mxu0 %v1294
        %1414 = vmatprep.subr.bf16.mxu0 %v1289
        %1415 = vmatpush2.bf16.msra.mxu0 %v1288
        %1416 = vmatprep.subr.bf16.mxu0 %v1283
        %1417 = vmatpush2.bf16.msra.mxu0 %v1282
        %1418 = vmatprep.subr.bf16.mxu0 %v1277
        %1419 = vmatpush2.bf16.msra.mxu0 %v1276
        %1420 = vmatprep.subr.bf16.mxu0 %v1271
        %1421 = vmatpush2.bf16.msra.mxu0 %v1270
        %1422 = vmatprep.subr.bf16.mxu0 %v1265
        %1423 = vmatpush2.bf16.msra.mxu0 %v1264
        %1424 = vmatprep.subr.bf16.mxu0 %v1259
        %1425 = vmatpush2.bf16.msra.mxu0 %v1258
        %1426 = vmatprep.subr.bf16.mxu0 %v1253
        %1427 = vmatpush2.bf16.msra.mxu0 %v1252
        %1428 = vmatprep.mubr.bf16.mxu0 %v773
        %1429 = vmatmul.mubr.bf16.gmra.mxu0 %v772
        %v1430 = vpop.f32.mrf.mxu0
        %v1431 = vadd.f32 %v889, %v1430
        %v1432 = vpop.f32.mrf.mxu0
        %v1433 = vadd.f32 %v893, %v1432
        %v1434 = vpop.f32.mrf.mxu0
        %v1435 = vadd.f32 %v889, %v1434
        %v1436 = vpop.f32.mrf.mxu0
        %v1437 = vadd.f32 %v893, %v1436
        %1438 = vmatprep.mubr.bf16.mxu0 %v775
        %1439 = vmatmul.mubr.bf16.gmra.mxu0 %v774
        %v1440 = vpop.f32.mrf.mxu0
        %v1441 = vadd.f32 %v889, %v1440
        %v1442 = vpop.f32.mrf.mxu0
        %v1443 = vadd.f32 %v893, %v1442
        %v1444 = vpop.f32.mrf.mxu0
        %v1445 = vadd.f32 %v889, %v1444
        %v1446 = vpop.f32.mrf.mxu0
        %v1447 = vadd.f32 %v893, %v1446
        %1448 = vmatprep.mubr.bf16.mxu0 %v777
        %1449 = vmatmul.mubr.bf16.gmra.mxu0 %v776
        %v1450 = vpop.f32.mrf.mxu0
        %v1451 = vadd.f32 %v889, %v1450
        %v1452 = vpop.f32.mrf.mxu0
        %v1453 = vadd.f32 %v893, %v1452
        %v1454 = vpop.f32.mrf.mxu0
        %v1455 = vadd.f32 %v889, %v1454
        %v1456 = vpop.f32.mrf.mxu0
        %v1457 = vadd.f32 %v893, %v1456
        %1458 = vmatprep.mubr.bf16.mxu0 %v779
        %1459 = vmatmul.mubr.bf16.gmra.mxu0 %v778
        %v1460 = vpop.f32.mrf.mxu0
        %v1461 = vadd.f32 %v889, %v1460
        %v1462 = vpop.f32.mrf.mxu0
        %v1463 = vadd.f32 %v893, %v1462
        %v1464 = vpop.f32.mrf.mxu0
        %v1465 = vadd.f32 %v889, %v1464
        %v1466 = vpop.f32.mrf.mxu0
        %v1467 = vadd.f32 %v893, %v1466
        %1468 = vmatprep.mubr.bf16.mxu0 %v781
        %1469 = vmatmul.mubr.bf16.gmra.mxu0 %v780
        %v1470 = vpop.f32.mrf.mxu0
        %v1471 = vadd.f32 %v889, %v1470
        %v1472 = vpop.f32.mrf.mxu0
        %v1473 = vadd.f32 %v893, %v1472
        %v1474 = vpop.f32.mrf.mxu0
        %v1475 = vadd.f32 %v889, %v1474
        %v1476 = vpop.f32.mrf.mxu0
        %v1477 = vadd.f32 %v893, %v1476
        %1478 = vmatprep.mubr.bf16.mxu0 %v783
        %1479 = vmatmul.mubr.bf16.gmra.mxu0 %v782
        %v1480 = vpop.f32.mrf.mxu0
        %v1481 = vadd.f32 %v889, %v1480
        %v1482 = vpop.f32.mrf.mxu0
        %v1483 = vadd.f32 %v893, %v1482
        %v1484 = vpop.f32.mrf.mxu0
        %v1485 = vadd.f32 %v889, %v1484
        %v1486 = vpop.f32.mrf.mxu0
        %v1487 = vadd.f32 %v893, %v1486
        %1488 = vmatprep.mubr.bf16.mxu0 %v785
        %1489 = vmatmul.mubr.bf16.gmra.mxu0 %v784
        %v1490 = vpop.f32.mrf.mxu0
        %v1491 = vadd.f32 %v889, %v1490
        %v1492 = vpop.f32.mrf.mxu0
        %v1493 = vadd.f32 %v893, %v1492
        %v1494 = vpop.f32.mrf.mxu0
        %v1495 = vadd.f32 %v889, %v1494
        %v1496 = vpop.f32.mrf.mxu0
        %v1497 = vadd.f32 %v893, %v1496
        %1498 = vmatprep.mubr.bf16.mxu0 %v787
        %1499 = vmatmul.mubr.bf16.gmra.mxu0 %v786
        %v1500 = vpop.f32.mrf.mxu0
        %v1501 = vadd.f32 %v889, %v1500
        %v1502 = vpop.f32.mrf.mxu0
        %v1503 = vadd.f32 %v893, %v1502
        %v1504 = vpop.f32.mrf.mxu0
        %v1505 = vadd.f32 %v889, %v1504
        %v1506 = vpop.f32.mrf.mxu0
        %v1507 = vadd.f32 %v893, %v1506
        %1508 = vdwg.mxu0
        %1509 = vmatprep.subr.bf16.mxu0 %v1249
        %1510 = vmatpush1.bf16.msra.mxu0 %v1248
        %1511 = vmatprep.subr.bf16.mxu0 %v1243
        %1512 = vmatpush1.bf16.msra.mxu0 %v1242
        %1513 = vmatprep.subr.bf16.mxu0 %v1237
        %1514 = vmatpush1.bf16.msra.mxu0 %v1236
        %1515 = vmatprep.subr.bf16.mxu0 %v1231
        %1516 = vmatpush1.bf16.msra.mxu0 %v1230
        %1517 = vmatprep.subr.bf16.mxu0 %v1225
        %1518 = vmatpush1.bf16.msra.mxu0 %v1224
        %1519 = vmatprep.subr.bf16.mxu0 %v1219
        %1520 = vmatpush1.bf16.msra.mxu0 %v1218
        %1521 = vmatprep.subr.bf16.mxu0 %v1213
        %1522 = vmatpush1.bf16.msra.mxu0 %v1212
        %1523 = vmatprep.subr.bf16.mxu0 %v1207
        %1524 = vmatpush1.bf16.msra.mxu0 %v1206
        %1525 = vmatprep.subr.bf16.mxu0 %v1297
        %1526 = vmatpush2.bf16.msra.mxu0 %v1296
        %1527 = vmatprep.subr.bf16.mxu0 %v1291
        %1528 = vmatpush2.bf16.msra.mxu0 %v1290
        %1529 = vmatprep.subr.bf16.mxu0 %v1285
        %1530 = vmatpush2.bf16.msra.mxu0 %v1284
        %1531 = vmatprep.subr.bf16.mxu0 %v1279
        %1532 = vmatpush2.bf16.msra.mxu0 %v1278
        %1533 = vmatprep.subr.bf16.mxu0 %v1273
        %1534 = vmatpush2.bf16.msra.mxu0 %v1272
        %1535 = vmatprep.subr.bf16.mxu0 %v1267
        %1536 = vmatpush2.bf16.msra.mxu0 %v1266
        %1537 = vmatprep.subr.bf16.mxu0 %v1261
        %1538 = vmatpush2.bf16.msra.mxu0 %v1260
        %1539 = vmatprep.subr.bf16.mxu0 %v1255
        %1540 = vmatpush2.bf16.msra.mxu0 %v1254
        %1541 = vmatprep.mubr.bf16.mxu0 %v773
        %1542 = vmatmul.mubr.bf16.gmra.mxu0 %v772
        %v1543 = vpop.f32.mrf.mxu0
        %v1544 = vadd.f32 %v897, %v1543
        %v1545 = vpop.f32.mrf.mxu0
        %v1546 = vadd.f32 %v901, %v1545
        %v1547 = vpop.f32.mrf.mxu0
        %v1548 = vadd.f32 %v897, %v1547
        %v1549 = vpop.f32.mrf.mxu0
        %v1550 = vadd.f32 %v901, %v1549
        %1551 = vmatprep.mubr.bf16.mxu0 %v775
        %1552 = vmatmul.mubr.bf16.gmra.mxu0 %v774
        %v1553 = vpop.f32.mrf.mxu0
        %v1554 = vadd.f32 %v897, %v1553
        %v1555 = vpop.f32.mrf.mxu0
        %v1556 = vadd.f32 %v901, %v1555
        %v1557 = vpop.f32.mrf.mxu0
        %v1558 = vadd.f32 %v897, %v1557
        %v1559 = vpop.f32.mrf.mxu0
        %v1560 = vadd.f32 %v901, %v1559
        %1561 = vmatprep.mubr.bf16.mxu0 %v777
        %1562 = vmatmul.mubr.bf16.gmra.mxu0 %v776
        %v1563 = vpop.f32.mrf.mxu0
        %v1564 = vadd.f32 %v897, %v1563
        %v1565 = vpop.f32.mrf.mxu0
        %v1566 = vadd.f32 %v901, %v1565
        %v1567 = vpop.f32.mrf.mxu0
        %v1568 = vadd.f32 %v897, %v1567
        %v1569 = vpop.f32.mrf.mxu0
        %v1570 = vadd.f32 %v901, %v1569
        %1571 = vmatprep.mubr.bf16.mxu0 %v779
        %1572 = vmatmul.mubr.bf16.gmra.mxu0 %v778
        %v1573 = vpop.f32.mrf.mxu0
        %v1574 = vadd.f32 %v897, %v1573
        %v1575 = vpop.f32.mrf.mxu0
        %v1576 = vadd.f32 %v901, %v1575
        %v1577 = vpop.f32.mrf.mxu0
        %v1578 = vadd.f32 %v897, %v1577
        %v1579 = vpop.f32.mrf.mxu0
        %v1580 = vadd.f32 %v901, %v1579
        %1581 = vmatprep.mubr.bf16.mxu0 %v781
        %1582 = vmatmul.mubr.bf16.gmra.mxu0 %v780
        %v1583 = vpop.f32.mrf.mxu0
        %v1584 = vadd.f32 %v897, %v1583
        %v1585 = vpop.f32.mrf.mxu0
        %v1586 = vadd.f32 %v901, %v1585
        %v1587 = vpop.f32.mrf.mxu0
        %v1588 = vadd.f32 %v897, %v1587
        %v1589 = vpop.f32.mrf.mxu0
        %v1590 = vadd.f32 %v901, %v1589
        %1591 = vmatprep.mubr.bf16.mxu0 %v783
        %1592 = vmatmul.mubr.bf16.gmra.mxu0 %v782
        %v1593 = vpop.f32.mrf.mxu0
        %v1594 = vadd.f32 %v897, %v1593
        %v1595 = vpop.f32.mrf.mxu0
        %v1596 = vadd.f32 %v901, %v1595
        %v1597 = vpop.f32.mrf.mxu0
        %v1598 = vadd.f32 %v897, %v1597
        %v1599 = vpop.f32.mrf.mxu0
        %v1600 = vadd.f32 %v901, %v1599
        %1601 = vmatprep.mubr.bf16.mxu0 %v785
        %1602 = vmatmul.mubr.bf16.gmra.mxu0 %v784
        %v1603 = vpop.f32.mrf.mxu0
        %v1604 = vadd.f32 %v897, %v1603
        %v1605 = vpop.f32.mrf.mxu0
        %v1606 = vadd.f32 %v901, %v1605
        %v1607 = vpop.f32.mrf.mxu0
        %v1608 = vadd.f32 %v897, %v1607
        %v1609 = vpop.f32.mrf.mxu0
        %v1610 = vadd.f32 %v901, %v1609
        %1611 = vmatprep.mubr.bf16.mxu0 %v787
        %1612 = vmatmul.mubr.bf16.gmra.mxu0 %v786
        %v1613 = vpop.f32.mrf.mxu0
        %v1614 = vadd.f32 %v897, %v1613
        %v1615 = vpop.f32.mrf.mxu0
        %v1616 = vadd.f32 %v901, %v1615
        %v1617 = vpop.f32.mrf.mxu0
        %v1618 = vadd.f32 %v897, %v1617
        %v1619 = vpop.f32.mrf.mxu0
        %v1620 = vadd.f32 %v901, %v1619
        %1621 = vdwg.mxu0
        %1622 = vmatprep.subr.bf16.mxu0 %v1251
        %1623 = vmatpush1.bf16.msra.mxu0 %v1250
        %1624 = vmatprep.subr.bf16.mxu0 %v1245
        %1625 = vmatpush1.bf16.msra.mxu0 %v1244
        %1626 = vmatprep.subr.bf16.mxu0 %v1239
        %1627 = vmatpush1.bf16.msra.mxu0 %v1238
        %1628 = vmatprep.subr.bf16.mxu0 %v1233
        %1629 = vmatpush1.bf16.msra.mxu0 %v1232
        %1630 = vmatprep.subr.bf16.mxu0 %v1227
        %1631 = vmatpush1.bf16.msra.mxu0 %v1226
        %1632 = vmatprep.subr.bf16.mxu0 %v1221
        %1633 = vmatpush1.bf16.msra.mxu0 %v1220
        %1634 = vmatprep.subr.bf16.mxu0 %v1215
        %1635 = vmatpush1.bf16.msra.mxu0 %v1214
        %1636 = vmatprep.subr.bf16.mxu0 %v1209
        %1637 = vmatpush1.bf16.msra.mxu0 %v1208
        %1638 = vmatprep.subr.bf16.mxu0 %v1299
        %1639 = vmatpush2.bf16.msra.mxu0 %v1298
        %1640 = vmatprep.subr.bf16.mxu0 %v1293
        %1641 = vmatpush2.bf16.msra.mxu0 %v1292
        %1642 = vmatprep.subr.bf16.mxu0 %v1287
        %1643 = vmatpush2.bf16.msra.mxu0 %v1286
        %1644 = vmatprep.subr.bf16.mxu0 %v1281
        %1645 = vmatpush2.bf16.msra.mxu0 %v1280
        %1646 = vmatprep.subr.bf16.mxu0 %v1275
        %1647 = vmatpush2.bf16.msra.mxu0 %v1274
        %1648 = vmatprep.subr.bf16.mxu0 %v1269
        %1649 = vmatpush2.bf16.msra.mxu0 %v1268
        %1650 = vmatprep.subr.bf16.mxu0 %v1263
        %1651 = vmatpush2.bf16.msra.mxu0 %v1262
        %1652 = vmatprep.subr.bf16.mxu0 %v1257
        %1653 = vmatpush2.bf16.msra.mxu0 %v1256
        %1654 = vmatprep.mubr.bf16.mxu0 %v773
        %1655 = vmatmul.mubr.bf16.gmra.mxu0 %v772
        %v1656 = vpop.f32.mrf.mxu0
        %v1657 = vadd.f32 %v905, %v1656
        %v1658 = vpop.f32.mrf.mxu0
        %v1659 = vadd.f32 %v909, %v1658
        %v1660 = vpop.f32.mrf.mxu0
        %v1661 = vadd.f32 %v905, %v1660
        %v1662 = vpop.f32.mrf.mxu0
        %v1663 = vadd.f32 %v909, %v1662
        %1664 = vmatprep.mubr.bf16.mxu0 %v775
        %1665 = vmatmul.mubr.bf16.gmra.mxu0 %v774
        %v1666 = vpop.f32.mrf.mxu0
        %v1667 = vadd.f32 %v905, %v1666
        %v1668 = vpop.f32.mrf.mxu0
        %v1669 = vadd.f32 %v909, %v1668
        %v1670 = vpop.f32.mrf.mxu0
        %v1671 = vadd.f32 %v905, %v1670
        %v1672 = vpop.f32.mrf.mxu0
        %v1673 = vadd.f32 %v909, %v1672
        %1674 = vmatprep.mubr.bf16.mxu0 %v777
        %1675 = vmatmul.mubr.bf16.gmra.mxu0 %v776
        %v1676 = vpop.f32.mrf.mxu0
        %v1677 = vadd.f32 %v905, %v1676
        %v1678 = vpop.f32.mrf.mxu0
        %v1679 = vadd.f32 %v909, %v1678
        %v1680 = vpop.f32.mrf.mxu0
        %v1681 = vadd.f32 %v905, %v1680
        %v1682 = vpop.f32.mrf.mxu0
        %v1683 = vadd.f32 %v909, %v1682
        %1684 = vmatprep.mubr.bf16.mxu0 %v779
        %1685 = vmatmul.mubr.bf16.gmra.mxu0 %v778
        %v1686 = vpop.f32.mrf.mxu0
        %v1687 = vadd.f32 %v905, %v1686
        %v1688 = vpop.f32.mrf.mxu0
        %v1689 = vadd.f32 %v909, %v1688
        %v1690 = vpop.f32.mrf.mxu0
        %v1691 = vadd.f32 %v905, %v1690
        %v1692 = vpop.f32.mrf.mxu0
        %v1693 = vadd.f32 %v909, %v1692
        %1694 = vmatprep.mubr.bf16.mxu0 %v781
        %1695 = vmatmul.mubr.bf16.gmra.mxu0 %v780
        %v1696 = vpop.f32.mrf.mxu0
        %v1697 = vadd.f32 %v905, %v1696
        %v1698 = vpop.f32.mrf.mxu0
        %v1699 = vadd.f32 %v909, %v1698
        %v1700 = vpop.f32.mrf.mxu0
        %v1701 = vadd.f32 %v905, %v1700
        %v1702 = vpop.f32.mrf.mxu0
        %v1703 = vadd.f32 %v909, %v1702
        %1704 = vmatprep.mubr.bf16.mxu0 %v783
        %1705 = vmatmul.mubr.bf16.gmra.mxu0 %v782
        %v1706 = vpop.f32.mrf.mxu0
        %v1707 = vadd.f32 %v905, %v1706
        %v1708 = vpop.f32.mrf.mxu0
        %v1709 = vadd.f32 %v909, %v1708
        %v1710 = vpop.f32.mrf.mxu0
        %v1711 = vadd.f32 %v905, %v1710
        %v1712 = vpop.f32.mrf.mxu0
        %v1713 = vadd.f32 %v909, %v1712
        %1714 = vmatprep.mubr.bf16.mxu0 %v785
        %1715 = vmatmul.mubr.bf16.gmra.mxu0 %v784
        %v1716 = vpop.f32.mrf.mxu0
        %v1717 = vadd.f32 %v905, %v1716
        %v1718 = vpop.f32.mrf.mxu0
        %v1719 = vadd.f32 %v909, %v1718
        %v1720 = vpop.f32.mrf.mxu0
        %v1721 = vadd.f32 %v905, %v1720
        %v1722 = vpop.f32.mrf.mxu0
        %v1723 = vadd.f32 %v909, %v1722
        %1724 = vmatprep.mubr.bf16.mxu0 %v787
        %1725 = vmatmul.mubr.bf16.gmra.mxu0 %v786
        %v1726 = vpop.f32.mrf.mxu0
        %v1727 = vadd.f32 %v905, %v1726
        %v1728 = vpop.f32.mrf.mxu0
        %v1729 = vadd.f32 %v909, %v1728
        %v1730 = vpop.f32.mrf.mxu0
        %v1731 = vadd.f32 %v905, %v1730
        %v1732 = vpop.f32.mrf.mxu0
        %v1733 = vadd.f32 %v909, %v1732
        %1734 = vdwg.mxu0
        %v1735 = vmul.f32 %v1431, 0.088388346
        %v1736 = vmul.f32 %v1433, 0.088388346
        %v1737 = vmul.f32 %v1435, 0.088388346
        %v1738 = vmul.f32 %v1437, 0.088388346
        %v1739 = vmul.f32 %v1441, 0.088388346
        %v1740 = vmul.f32 %v1443, 0.088388346
        %v1741 = vmul.f32 %v1445, 0.088388346
        %v1742 = vmul.f32 %v1447, 0.088388346
        %v1743 = vmul.f32 %v1451, 0.088388346
        %v1744 = vmul.f32 %v1453, 0.088388346
        %v1745 = vmul.f32 %v1455, 0.088388346
        %v1746 = vmul.f32 %v1457, 0.088388346
        %v1747 = vmul.f32 %v1461, 0.088388346
        %v1748 = vmul.f32 %v1463, 0.088388346
        %v1749 = vmul.f32 %v1465, 0.088388346
        %v1750 = vmul.f32 %v1467, 0.088388346
        %v1751 = vmul.f32 %v1471, 0.088388346
        %v1752 = vmul.f32 %v1473, 0.088388346
        %v1753 = vmul.f32 %v1475, 0.088388346
        %v1754 = vmul.f32 %v1477, 0.088388346
        %v1755 = vmul.f32 %v1481, 0.088388346
        %v1756 = vmul.f32 %v1483, 0.088388346
        %v1757 = vmul.f32 %v1485, 0.088388346
        %v1758 = vmul.f32 %v1487, 0.088388346
        %v1759 = vmul.f32 %v1491, 0.088388346
        %v1760 = vmul.f32 %v1493, 0.088388346
        %v1761 = vmul.f32 %v1495, 0.088388346
        %v1762 = vmul.f32 %v1497, 0.088388346
        %v1763 = vmul.f32 %v1501, 0.088388346
        %v1764 = vmul.f32 %v1503, 0.088388346
        %v1765 = vmul.f32 %v1505, 0.088388346
        %v1766 = vmul.f32 %v1507, 0.088388346
        %v1767 = vpack.c.bf16 %v1737, %v1735
        %v1768 = vpack.c.bf16 %v1738, %v1736
        %v1769 = vpack.c.bf16 %v1741, %v1739
        %v1770 = vpack.c.bf16 %v1742, %v1740
        %v1771 = vpack.c.bf16 %v1745, %v1743
        %v1772 = vpack.c.bf16 %v1746, %v1744
        %v1773 = vpack.c.bf16 %v1749, %v1747
        %v1774 = vpack.c.bf16 %v1750, %v1748
        %v1775 = vpack.c.bf16 %v1753, %v1751
        %v1776 = vpack.c.bf16 %v1754, %v1752
        %v1777 = vpack.c.bf16 %v1757, %v1755
        %v1778 = vpack.c.bf16 %v1758, %v1756
        %v1779 = vpack.c.bf16 %v1761, %v1759
        %v1780 = vpack.c.bf16 %v1762, %v1760
        %v1781 = vpack.c.bf16 %v1765, %v1763
        %v1782 = vpack.c.bf16 %v1766, %v1764
        %v1783 = vpack.c.bf16 %v1548, %v1544
        %v1784 = vpack.c.bf16 %v1550, %v1546
        %v1785 = vpack.c.bf16 %v1558, %v1554
        %v1786 = vpack.c.bf16 %v1560, %v1556
        %v1787 = vpack.c.bf16 %v1568, %v1564
        %v1788 = vpack.c.bf16 %v1570, %v1566
        %v1789 = vpack.c.bf16 %v1578, %v1574
        %v1790 = vpack.c.bf16 %v1580, %v1576
        %v1791 = vpack.c.bf16 %v1588, %v1584
        %v1792 = vpack.c.bf16 %v1590, %v1586
        %v1793 = vpack.c.bf16 %v1598, %v1594
        %v1794 = vpack.c.bf16 %v1600, %v1596
        %v1795 = vpack.c.bf16 %v1608, %v1604
        %v1796 = vpack.c.bf16 %v1610, %v1606
        %v1797 = vpack.c.bf16 %v1618, %v1614
        %v1798 = vpack.c.bf16 %v1620, %v1616
        %v1799 = vpack.c.bf16 %v1661, %v1657
        %v1800 = vpack.c.bf16 %v1663, %v1659
        %v1801 = vpack.c.bf16 %v1671, %v1667
        %v1802 = vpack.c.bf16 %v1673, %v1669
        %v1803 = vpack.c.bf16 %v1681, %v1677
        %v1804 = vpack.c.bf16 %v1683, %v1679
        %v1805 = vpack.c.bf16 %v1691, %v1687
        %v1806 = vpack.c.bf16 %v1693, %v1689
        %v1807 = vpack.c.bf16 %v1701, %v1697
        %v1808 = vpack.c.bf16 %v1703, %v1699
        %v1809 = vpack.c.bf16 %v1711, %v1707
        %v1810 = vpack.c.bf16 %v1713, %v1709
        %v1811 = vpack.c.bf16 %v1721, %v1717
        %v1812 = vpack.c.bf16 %v1723, %v1719
        %v1813 = vpack.c.bf16 %v1731, %v1727
        %v1814 = vpack.c.bf16 %v1733, %v1729
        %1815 = vmatprep.subr.bf16.mxu0 0
        %1816 = vmatpush1.bf16.xpose.msra.mxu0 %v1797
        %1817 = vmatprep.subr.bf16.mxu0 0
        %1818 = vmatpush1.bf16.xpose.msra.mxu0 %v1795
        %1819 = vmatprep.subr.bf16.mxu0 0
        %1820 = vmatpush1.bf16.xpose.msra.mxu0 %v1793
        %1821 = vmatprep.subr.bf16.mxu0 0
        %1822 = vmatpush1.bf16.xpose.msra.mxu0 %v1791
        %1823 = vmatprep.subr.bf16.mxu0 0
        %1824 = vmatpush1.bf16.xpose.msra.mxu0 %v1789
        %1825 = vmatprep.subr.bf16.mxu0 0
        %1826 = vmatpush1.bf16.xpose.msra.mxu0 %v1787
        %1827 = vmatprep.subr.bf16.mxu0 0
        %1828 = vmatpush1.bf16.xpose.msra.mxu0 %v1785
        %1829 = vmatprep.subr.bf16.mxu0 0
        %1830 = vmatpush1.bf16.xpose.msra.mxu0 %v1783
        %1831 = vmatprep.subr.bf16.mxu0 0
        %1832 = vmatpush2.bf16.xpose.msra.mxu0 0
        %1833 = vmatprep.subr.bf16.mxu0 0
        %1834 = vmatpush2.bf16.xpose.msra.mxu0 0
        %1835 = vmatprep.subr.bf16.mxu0 0
        %1836 = vmatpush2.bf16.xpose.msra.mxu0 0
        %1837 = vmatprep.subr.bf16.mxu0 0
        %1838 = vmatpush2.bf16.xpose.msra.mxu0 0
        %1839 = vmatprep.subr.bf16.mxu0 0
        %1840 = vmatpush2.bf16.xpose.msra.mxu0 0
        %1841 = vmatprep.subr.bf16.mxu0 0
        %1842 = vmatpush2.bf16.xpose.msra.mxu0 0
        %1843 = vmatprep.subr.bf16.mxu0 0
        %1844 = vmatpush2.bf16.xpose.msra.mxu0 0
        %1845 = vmatprep.subr.bf16.mxu0 0
        %1846 = vmatpush2.bf16.xpose.msra.mxu0 0
        %1847 = vmatprep.mubr.bf16.mxu0 0
        %1848 = vmatmul.mubr.bf16.gmra.mxu0 %v1767
        %v1849 = vpop.f32.mrf.mxu0
        %v1850 = vadd.f32 0.0, %v1849
        %v1851 = vpop.f32.mrf.mxu0
        %v1852 = vpop.f32.mrf.mxu0
        %v1853 = vadd.f32 0.0, %v1852
        %v1854 = vpop.f32.mrf.mxu0
        %1855 = vmatprep.mubr.bf16.mxu0 0
        %1856 = vmatmul.mubr.bf16.gmra.mxu0 %v1769
        %v1857 = vpop.f32.mrf.mxu0
        %v1858 = vadd.f32 0.0, %v1857
        %v1859 = vpop.f32.mrf.mxu0
        %v1860 = vpop.f32.mrf.mxu0
        %v1861 = vadd.f32 0.0, %v1860
        %v1862 = vpop.f32.mrf.mxu0
        %1863 = vmatprep.mubr.bf16.mxu0 0
        %1864 = vmatmul.mubr.bf16.gmra.mxu0 %v1771
        %v1865 = vpop.f32.mrf.mxu0
        %v1866 = vadd.f32 0.0, %v1865
        %v1867 = vpop.f32.mrf.mxu0
        %v1868 = vpop.f32.mrf.mxu0
        %v1869 = vadd.f32 0.0, %v1868
        %v1870 = vpop.f32.mrf.mxu0
        %1871 = vmatprep.mubr.bf16.mxu0 0
        %1872 = vmatmul.mubr.bf16.gmra.mxu0 %v1773
        %v1873 = vpop.f32.mrf.mxu0
        %v1874 = vadd.f32 0.0, %v1873
        %v1875 = vpop.f32.mrf.mxu0
        %v1876 = vpop.f32.mrf.mxu0
        %v1877 = vadd.f32 0.0, %v1876
        %v1878 = vpop.f32.mrf.mxu0
        %1879 = vmatprep.mubr.bf16.mxu0 0
        %1880 = vmatmul.mubr.bf16.gmra.mxu0 %v1775
        %v1881 = vpop.f32.mrf.mxu0
        %v1882 = vadd.f32 0.0, %v1881
        %v1883 = vpop.f32.mrf.mxu0
        %v1884 = vpop.f32.mrf.mxu0
        %v1885 = vadd.f32 0.0, %v1884
        %v1886 = vpop.f32.mrf.mxu0
        %1887 = vmatprep.mubr.bf16.mxu0 0
        %1888 = vmatmul.mubr.bf16.gmra.mxu0 %v1777
        %v1889 = vpop.f32.mrf.mxu0
        %v1890 = vadd.f32 0.0, %v1889
        %v1891 = vpop.f32.mrf.mxu0
        %v1892 = vpop.f32.mrf.mxu0
        %v1893 = vadd.f32 0.0, %v1892
        %v1894 = vpop.f32.mrf.mxu0
        %1895 = vmatprep.mubr.bf16.mxu0 0
        %1896 = vmatmul.mubr.bf16.gmra.mxu0 %v1779
        %v1897 = vpop.f32.mrf.mxu0
        %v1898 = vadd.f32 0.0, %v1897
        %v1899 = vpop.f32.mrf.mxu0
        %v1900 = vpop.f32.mrf.mxu0
        %v1901 = vadd.f32 0.0, %v1900
        %v1902 = vpop.f32.mrf.mxu0
        %1903 = vmatprep.mubr.bf16.mxu0 0
        %1904 = vmatmul.mubr.bf16.gmra.mxu0 %v1781
        %v1905 = vpop.f32.mrf.mxu0
        %v1906 = vadd.f32 0.0, %v1905
        %v1907 = vpop.f32.mrf.mxu0
        %v1908 = vpop.f32.mrf.mxu0
        %v1909 = vadd.f32 0.0, %v1908
        %v1910 = vpop.f32.mrf.mxu0
        %1911 = vdwg.mxu0
        %1912 = vmax.xlane.f32.xlu0 %v1850
        %v1913 = vpop.xlane.xlu0 %1912
        %1914 = vmax.xlane.f32.xlu0 %v1853
        %v1915 = vpop.xlane.xlu0 %1914
        %1916 = vmax.xlane.f32.xlu0 %v1858
        %v1917 = vpop.xlane.xlu0 %1916
        %1918 = vmax.xlane.f32.xlu0 %v1861
        %v1919 = vpop.xlane.xlu0 %1918
        %1920 = vmax.xlane.f32.xlu0 %v1866
        %v1921 = vpop.xlane.xlu0 %1920
        %1922 = vmax.xlane.f32.xlu0 %v1869
        %v1923 = vpop.xlane.xlu0 %1922
        %1924 = vmax.xlane.f32.xlu0 %v1874
        %v1925 = vpop.xlane.xlu0 %1924
        %1926 = vmax.xlane.f32.xlu0 %v1877
        %v1927 = vpop.xlane.xlu0 %1926
        %1928 = vmax.xlane.f32.xlu0 %v1882
        %v1929 = vpop.xlane.xlu0 %1928
        %1930 = vmax.xlane.f32.xlu0 %v1885
        %v1931 = vpop.xlane.xlu0 %1930
        %1932 = vmax.xlane.f32.xlu0 %v1890
        %v1933 = vpop.xlane.xlu0 %1932
        %1934 = vmax.xlane.f32.xlu0 %v1893
        %v1935 = vpop.xlane.xlu0 %1934
        %1936 = vmax.xlane.f32.xlu0 %v1898
        %v1937 = vpop.xlane.xlu0 %1936
        %1938 = vmax.xlane.f32.xlu0 %v1901
        %v1939 = vpop.xlane.xlu0 %1938
        %1940 = vmax.xlane.f32.xlu0 %v1906
        %v1941 = vpop.xlane.xlu0 %1940
        %1942 = vmax.xlane.f32.xlu0 %v1909
        %v1943 = vpop.xlane.xlu0 %1942
        %v1944 = vsub.f32 %v1850, %v1913
        %v1945 = vsub.f32 %v1853, %v1915
        %v1946 = vsub.f32 %v1858, %v1917
        %v1947 = vsub.f32 %v1861, %v1919
        %v1948 = vsub.f32 %v1866, %v1921
        %v1949 = vsub.f32 %v1869, %v1923
        %v1950 = vsub.f32 %v1874, %v1925
        %v1951 = vsub.f32 %v1877, %v1927
        %v1952 = vsub.f32 %v1882, %v1929
        %v1953 = vsub.f32 %v1885, %v1931
        %v1954 = vsub.f32 %v1890, %v1933
        %v1955 = vsub.f32 %v1893, %v1935
        %v1956 = vsub.f32 %v1898, %v1937
        %v1957 = vsub.f32 %v1901, %v1939
        %v1958 = vsub.f32 %v1906, %v1941
        %v1959 = vsub.f32 %v1909, %v1943
        %v1960 = vmul.f32 %v1944, 1.442695
        %v1961 = vpow.pop %v1960
        %v1962 = vmul.f32 %v1945, 1.442695
        %v1963 = vpow.pop %v1962
        %v1964 = vmul.f32 %v1946, 1.442695
        %v1965 = vpow.pop %v1964
        %v1966 = vmul.f32 %v1947, 1.442695
        %v1967 = vpow.pop %v1966
        %v1968 = vmul.f32 %v1948, 1.442695
        %v1969 = vpow.pop %v1968
        %v1970 = vmul.f32 %v1949, 1.442695
        %v1971 = vpow.pop %v1970
        %v1972 = vmul.f32 %v1950, 1.442695
        %v1973 = vpow.pop %v1972
        %v1974 = vmul.f32 %v1951, 1.442695
        %v1975 = vpow.pop %v1974
        %v1976 = vmul.f32 %v1952, 1.442695
        %v1977 = vpow.pop %v1976
        %v1978 = vmul.f32 %v1953, 1.442695
        %v1979 = vpow.pop %v1978
        %v1980 = vmul.f32 %v1954, 1.442695
        %v1981 = vpow.pop %v1980
        %v1982 = vmul.f32 %v1955, 1.442695
        %v1983 = vpow.pop %v1982
        %v1984 = vmul.f32 %v1956, 1.442695
        %v1985 = vpow.pop %v1984
        %v1986 = vmul.f32 %v1957, 1.442695
        %v1987 = vpow.pop %v1986
        %v1988 = vmul.f32 %v1958, 1.442695
        %v1989 = vpow.pop %v1988
        %v1990 = vmul.f32 %v1959, 1.442695
        %v1991 = vpow.pop %v1990
        %1992 = vadd.xlane.f32.xlu0 %v1961
        %v1993 = vpop.xlane.xlu0 %1992
        %1994 = vadd.xlane.f32.xlu0 %v1963
        %v1995 = vpop.xlane.xlu0 %1994
        %1996 = vadd.xlane.f32.xlu0 %v1965
        %v1997 = vpop.xlane.xlu0 %1996
        %1998 = vadd.xlane.f32.xlu0 %v1967
        %v1999 = vpop.xlane.xlu0 %1998
        %2000 = vadd.xlane.f32.xlu0 %v1969
        %v2001 = vpop.xlane.xlu0 %2000
        %2002 = vadd.xlane.f32.xlu0 %v1971
        %v2003 = vpop.xlane.xlu0 %2002
        %2004 = vadd.xlane.f32.xlu0 %v1973
        %v2005 = vpop.xlane.xlu0 %2004
        %2006 = vadd.xlane.f32.xlu0 %v1975
        %v2007 = vpop.xlane.xlu0 %2006
        %2008 = vadd.xlane.f32.xlu0 %v1977
        %v2009 = vpop.xlane.xlu0 %2008
        %2010 = vadd.xlane.f32.xlu0 %v1979
        %v2011 = vpop.xlane.xlu0 %2010
        %2012 = vadd.xlane.f32.xlu0 %v1981
        %v2013 = vpop.xlane.xlu0 %2012
        %2014 = vadd.xlane.f32.xlu0 %v1983
        %v2015 = vpop.xlane.xlu0 %2014
        %2016 = vadd.xlane.f32.xlu0 %v1985
        %v2017 = vpop.xlane.xlu0 %2016
        %2018 = vadd.xlane.f32.xlu0 %v1987
        %v2019 = vpop.xlane.xlu0 %2018
        %2020 = vadd.xlane.f32.xlu0 %v1989
        %v2021 = vpop.xlane.xlu0 %2020
        %2022 = vadd.xlane.f32.xlu0 %v1991
        %v2023 = vpop.xlane.xlu0 %2022
        %v2024 = vrcp.pop %v1993
        %v2025 = vrcp.pop %v1995
        %v2026 = vrcp.pop %v1997
        %v2027 = vrcp.pop %v1999
        %v2028 = vrcp.pop %v2001
        %v2029 = vrcp.pop %v2003
        %v2030 = vrcp.pop %v2005
        %v2031 = vrcp.pop %v2007
        %v2032 = vrcp.pop %v2009
        %v2033 = vrcp.pop %v2011
        %v2034 = vrcp.pop %v2013
        %v2035 = vrcp.pop %v2015
        %v2036 = vrcp.pop %v2017
        %v2037 = vrcp.pop %v2019
        %v2038 = vrcp.pop %v2021
        %v2039 = vrcp.pop %v2023
        %v2040 = vpack.c.bf16 %v1963, %v1961
        %v2041 = vpack.c.bf16 %v1967, %v1965
        %v2042 = vpack.c.bf16 %v1971, %v1969
        %v2043 = vpack.c.bf16 %v1975, %v1973
        %v2044 = vpack.c.bf16 %v1979, %v1977
        %v2045 = vpack.c.bf16 %v1983, %v1981
        %v2046 = vpack.c.bf16 %v1987, %v1985
        %v2047 = vpack.c.bf16 %v1991, %v1989
        %2048 = vmatprep.subr.bf16.mxu0 0
        %2049 = vmatpush1.bf16.msra.mxu0 %v1813
        %2050 = vmatprep.subr.bf16.mxu0 0
        %2051 = vmatpush1.bf16.msra.mxu0 %v1811
        %2052 = vmatprep.subr.bf16.mxu0 0
        %2053 = vmatpush1.bf16.msra.mxu0 %v1809
        %2054 = vmatprep.subr.bf16.mxu0 0
        %2055 = vmatpush1.bf16.msra.mxu0 %v1807
        %2056 = vmatprep.subr.bf16.mxu0 0
        %2057 = vmatpush1.bf16.msra.mxu0 %v1805
        %2058 = vmatprep.subr.bf16.mxu0 0
        %2059 = vmatpush1.bf16.msra.mxu0 %v1803
        %2060 = vmatprep.subr.bf16.mxu0 0
        %2061 = vmatpush1.bf16.msra.mxu0 %v1801
        %2062 = vmatprep.subr.bf16.mxu0 0
        %2063 = vmatpush1.bf16.msra.mxu0 %v1799
        %2064 = vmatprep.subr.bf16.mxu0 0
        %2065 = vmatpush2.bf16.msra.mxu0 0
        %2066 = vmatprep.subr.bf16.mxu0 0
        %2067 = vmatpush2.bf16.msra.mxu0 0
        %2068 = vmatprep.subr.bf16.mxu0 0
        %2069 = vmatpush2.bf16.msra.mxu0 0
        %2070 = vmatprep.subr.bf16.mxu0 0
        %2071 = vmatpush2.bf16.msra.mxu0 0
        %2072 = vmatprep.subr.bf16.mxu0 0
        %2073 = vmatpush2.bf16.msra.mxu0 0
        %2074 = vmatprep.subr.bf16.mxu0 0
        %2075 = vmatpush2.bf16.msra.mxu0 0
        %2076 = vmatprep.subr.bf16.mxu0 0
        %2077 = vmatpush2.bf16.msra.mxu0 0
        %2078 = vmatprep.subr.bf16.mxu0 0
        %2079 = vmatpush2.bf16.msra.mxu0 0
        %2080 = vmatprep.mubr.bf16.mxu0 0
        %2081 = vmatmul.mubr.bf16.gmra.mxu0 %v2040
        %v2082 = vpop.f32.mrf.mxu0
        %v2083 = vadd.f32 0.0, %v2082
        %v2084 = vpop.f32.mrf.mxu0
        %v2085 = vpop.f32.mrf.mxu0
        %v2086 = vadd.f32 0.0, %v2085
        %v2087 = vpop.f32.mrf.mxu0
        %2088 = vmatprep.mubr.bf16.mxu0 0
        %2089 = vmatmul.mubr.bf16.gmra.mxu0 %v2041
        %v2090 = vpop.f32.mrf.mxu0
        %v2091 = vadd.f32 0.0, %v2090
        %v2092 = vpop.f32.mrf.mxu0
        %v2093 = vpop.f32.mrf.mxu0
        %v2094 = vadd.f32 0.0, %v2093
        %v2095 = vpop.f32.mrf.mxu0
        %2096 = vmatprep.mubr.bf16.mxu0 0
        %2097 = vmatmul.mubr.bf16.gmra.mxu0 %v2042
        %v2098 = vpop.f32.mrf.mxu0
        %v2099 = vadd.f32 0.0, %v2098
        %v2100 = vpop.f32.mrf.mxu0
        %v2101 = vpop.f32.mrf.mxu0
        %v2102 = vadd.f32 0.0, %v2101
        %v2103 = vpop.f32.mrf.mxu0
        %2104 = vmatprep.mubr.bf16.mxu0 0
        %2105 = vmatmul.mubr.bf16.gmra.mxu0 %v2043
        %v2106 = vpop.f32.mrf.mxu0
        %v2107 = vadd.f32 0.0, %v2106
        %v2108 = vpop.f32.mrf.mxu0
        %v2109 = vpop.f32.mrf.mxu0
        %v2110 = vadd.f32 0.0, %v2109
        %v2111 = vpop.f32.mrf.mxu0
        %2112 = vmatprep.mubr.bf16.mxu0 0
        %2113 = vmatmul.mubr.bf16.gmra.mxu0 %v2044
        %v2114 = vpop.f32.mrf.mxu0
        %v2115 = vadd.f32 0.0, %v2114
        %v2116 = vpop.f32.mrf.mxu0
        %v2117 = vpop.f32.mrf.mxu0
        %v2118 = vadd.f32 0.0, %v2117
        %v2119 = vpop.f32.mrf.mxu0
        %2120 = vmatprep.mubr.bf16.mxu0 0
        %2121 = vmatmul.mubr.bf16.gmra.mxu0 %v2045
        %v2122 = vpop.f32.mrf.mxu0
        %v2123 = vadd.f32 0.0, %v2122
        %v2124 = vpop.f32.mrf.mxu0
        %v2125 = vpop.f32.mrf.mxu0
        %v2126 = vadd.f32 0.0, %v2125
        %v2127 = vpop.f32.mrf.mxu0
        %2128 = vmatprep.mubr.bf16.mxu0 0
        %2129 = vmatmul.mubr.bf16.gmra.mxu0 %v2046
        %v2130 = vpop.f32.mrf.mxu0
        %v2131 = vadd.f32 0.0, %v2130
        %v2132 = vpop.f32.mrf.mxu0
        %v2133 = vpop.f32.mrf.mxu0
        %v2134 = vadd.f32 0.0, %v2133
        %v2135 = vpop.f32.mrf.mxu0
        %2136 = vmatprep.mubr.bf16.mxu0 0
        %2137 = vmatmul.mubr.bf16.gmra.mxu0 %v2047
        %v2138 = vpop.f32.mrf.mxu0
        %v2139 = vadd.f32 0.0, %v2138
        %v2140 = vpop.f32.mrf.mxu0
        %v2141 = vpop.f32.mrf.mxu0
        %v2142 = vadd.f32 0.0, %v2141
        %v2143 = vpop.f32.mrf.mxu0
        %2144 = vdwg.mxu0
        %v2145 = vmul.f32 %v2083, %v2024
        %v2146 = vmul.f32 %v2086, %v2025
        %v2147 = vmul.f32 %v2091, %v2026
        %v2148 = vmul.f32 %v2094, %v2027
        %v2149 = vmul.f32 %v2099, %v2028
        %v2150 = vmul.f32 %v2102, %v2029
        %v2151 = vmul.f32 %v2107, %v2030
        %v2152 = vmul.f32 %v2110, %v2031
        %v2153 = vmul.f32 %v2115, %v2032
        %v2154 = vmul.f32 %v2118, %v2033
        %v2155 = vmul.f32 %v2123, %v2034
        %v2156 = vmul.f32 %v2126, %v2035
        %v2157 = vmul.f32 %v2131, %v2036
        %v2158 = vmul.f32 %v2134, %v2037
        %v2159 = vmul.f32 %v2139, %v2038
        %v2160 = vmul.f32 %v2142, %v2039
        %2161 = vmatprep.subr.bf16.mxu0 0
        %2162 = vmatpush1.bf16.xpose.msra.mxu0 %v1798
        %2163 = vmatprep.subr.bf16.mxu0 0
        %2164 = vmatpush1.bf16.xpose.msra.mxu0 %v1796
        %2165 = vmatprep.subr.bf16.mxu0 0
        %2166 = vmatpush1.bf16.xpose.msra.mxu0 %v1794
        %2167 = vmatprep.subr.bf16.mxu0 0
        %2168 = vmatpush1.bf16.xpose.msra.mxu0 %v1792
        %2169 = vmatprep.subr.bf16.mxu0 0
        %2170 = vmatpush1.bf16.xpose.msra.mxu0 %v1790
        %2171 = vmatprep.subr.bf16.mxu0 0
        %2172 = vmatpush1.bf16.xpose.msra.mxu0 %v1788
        %2173 = vmatprep.subr.bf16.mxu0 0
        %2174 = vmatpush1.bf16.xpose.msra.mxu0 %v1786
        %2175 = vmatprep.subr.bf16.mxu0 0
        %2176 = vmatpush1.bf16.xpose.msra.mxu0 %v1784
        %2177 = vmatprep.subr.bf16.mxu0 0
        %2178 = vmatpush2.bf16.xpose.msra.mxu0 0
        %2179 = vmatprep.subr.bf16.mxu0 0
        %2180 = vmatpush2.bf16.xpose.msra.mxu0 0
        %2181 = vmatprep.subr.bf16.mxu0 0
        %2182 = vmatpush2.bf16.xpose.msra.mxu0 0
        %2183 = vmatprep.subr.bf16.mxu0 0
        %2184 = vmatpush2.bf16.xpose.msra.mxu0 0
        %2185 = vmatprep.subr.bf16.mxu0 0
        %2186 = vmatpush2.bf16.xpose.msra.mxu0 0
        %2187 = vmatprep.subr.bf16.mxu0 0
        %2188 = vmatpush2.bf16.xpose.msra.mxu0 0
        %2189 = vmatprep.subr.bf16.mxu0 0
        %2190 = vmatpush2.bf16.xpose.msra.mxu0 0
        %2191 = vmatprep.subr.bf16.mxu0 0
        %2192 = vmatpush2.bf16.xpose.msra.mxu0 0
        %2193 = vmatprep.mubr.bf16.mxu0 0
        %2194 = vmatmul.mubr.bf16.gmra.mxu0 %v1768
        %v2195 = vpop.f32.mrf.mxu0
        %v2196 = vadd.f32 0.0, %v2195
        %v2197 = vpop.f32.mrf.mxu0
        %v2198 = vpop.f32.mrf.mxu0
        %v2199 = vadd.f32 0.0, %v2198
        %v2200 = vpop.f32.mrf.mxu0
        %2201 = vmatprep.mubr.bf16.mxu0 0
        %2202 = vmatmul.mubr.bf16.gmra.mxu0 %v1770
        %v2203 = vpop.f32.mrf.mxu0
        %v2204 = vadd.f32 0.0, %v2203
        %v2205 = vpop.f32.mrf.mxu0
        %v2206 = vpop.f32.mrf.mxu0
        %v2207 = vadd.f32 0.0, %v2206
        %v2208 = vpop.f32.mrf.mxu0
        %2209 = vmatprep.mubr.bf16.mxu0 0
        %2210 = vmatmul.mubr.bf16.gmra.mxu0 %v1772
        %v2211 = vpop.f32.mrf.mxu0
        %v2212 = vadd.f32 0.0, %v2211
        %v2213 = vpop.f32.mrf.mxu0
        %v2214 = vpop.f32.mrf.mxu0
        %v2215 = vadd.f32 0.0, %v2214
        %v2216 = vpop.f32.mrf.mxu0
        %2217 = vmatprep.mubr.bf16.mxu0 0
        %2218 = vmatmul.mubr.bf16.gmra.mxu0 %v1774
        %v2219 = vpop.f32.mrf.mxu0
        %v2220 = vadd.f32 0.0, %v2219
        %v2221 = vpop.f32.mrf.mxu0
        %v2222 = vpop.f32.mrf.mxu0
        %v2223 = vadd.f32 0.0, %v2222
        %v2224 = vpop.f32.mrf.mxu0
        %2225 = vmatprep.mubr.bf16.mxu0 0
        %2226 = vmatmul.mubr.bf16.gmra.mxu0 %v1776
        %v2227 = vpop.f32.mrf.mxu0
        %v2228 = vadd.f32 0.0, %v2227
        %v2229 = vpop.f32.mrf.mxu0
        %v2230 = vpop.f32.mrf.mxu0
        %v2231 = vadd.f32 0.0, %v2230
        %v2232 = vpop.f32.mrf.mxu0
        %2233 = vmatprep.mubr.bf16.mxu0 0
        %2234 = vmatmul.mubr.bf16.gmra.mxu0 %v1778
        %v2235 = vpop.f32.mrf.mxu0
        %v2236 = vadd.f32 0.0, %v2235
        %v2237 = vpop.f32.mrf.mxu0
        %v2238 = vpop.f32.mrf.mxu0
        %v2239 = vadd.f32 0.0, %v2238
        %v2240 = vpop.f32.mrf.mxu0
        %2241 = vmatprep.mubr.bf16.mxu0 0
        %2242 = vmatmul.mubr.bf16.gmra.mxu0 %v1780
        %v2243 = vpop.f32.mrf.mxu0
        %v2244 = vadd.f32 0.0, %v2243
        %v2245 = vpop.f32.mrf.mxu0
        %v2246 = vpop.f32.mrf.mxu0
        %v2247 = vadd.f32 0.0, %v2246
        %v2248 = vpop.f32.mrf.mxu0
        %2249 = vmatprep.mubr.bf16.mxu0 0
        %2250 = vmatmul.mubr.bf16.gmra.mxu0 %v1782
        %v2251 = vpop.f32.mrf.mxu0
        %v2252 = vadd.f32 0.0, %v2251
        %v2253 = vpop.f32.mrf.mxu0
        %v2254 = vpop.f32.mrf.mxu0
        %v2255 = vadd.f32 0.0, %v2254
        %v2256 = vpop.f32.mrf.mxu0
        %2257 = vdwg.mxu0
        %2258 = vmax.xlane.f32.xlu0 %v2196
        %v2259 = vpop.xlane.xlu0 %2258
        %2260 = vmax.xlane.f32.xlu0 %v2199
        %v2261 = vpop.xlane.xlu0 %2260
        %2262 = vmax.xlane.f32.xlu0 %v2204
        %v2263 = vpop.xlane.xlu0 %2262
        %2264 = vmax.xlane.f32.xlu0 %v2207
        %v2265 = vpop.xlane.xlu0 %2264
        %2266 = vmax.xlane.f32.xlu0 %v2212
        %v2267 = vpop.xlane.xlu0 %2266
        %2268 = vmax.xlane.f32.xlu0 %v2215
        %v2269 = vpop.xlane.xlu0 %2268
        %2270 = vmax.xlane.f32.xlu0 %v2220
        %v2271 = vpop.xlane.xlu0 %2270
        %2272 = vmax.xlane.f32.xlu0 %v2223
        %v2273 = vpop.xlane.xlu0 %2272
        %2274 = vmax.xlane.f32.xlu0 %v2228
        %v2275 = vpop.xlane.xlu0 %2274
        %2276 = vmax.xlane.f32.xlu0 %v2231
        %v2277 = vpop.xlane.xlu0 %2276
        %2278 = vmax.xlane.f32.xlu0 %v2236
        %v2279 = vpop.xlane.xlu0 %2278
        %2280 = vmax.xlane.f32.xlu0 %v2239
        %v2281 = vpop.xlane.xlu0 %2280
        %2282 = vmax.xlane.f32.xlu0 %v2244
        %v2283 = vpop.xlane.xlu0 %2282
        %2284 = vmax.xlane.f32.xlu0 %v2247
        %v2285 = vpop.xlane.xlu0 %2284
        %2286 = vmax.xlane.f32.xlu0 %v2252
        %v2287 = vpop.xlane.xlu0 %2286
        %2288 = vmax.xlane.f32.xlu0 %v2255
        %v2289 = vpop.xlane.xlu0 %2288
        %v2290 = vsub.f32 %v2196, %v2259
        %v2291 = vsub.f32 %v2199, %v2261
        %v2292 = vsub.f32 %v2204, %v2263
        %v2293 = vsub.f32 %v2207, %v2265
        %v2294 = vsub.f32 %v2212, %v2267
        %v2295 = vsub.f32 %v2215, %v2269
        %v2296 = vsub.f32 %v2220, %v2271
        %v2297 = vsub.f32 %v2223, %v2273
        %v2298 = vsub.f32 %v2228, %v2275
        %v2299 = vsub.f32 %v2231, %v2277
        %v2300 = vsub.f32 %v2236, %v2279
        %v2301 = vsub.f32 %v2239, %v2281
        %v2302 = vsub.f32 %v2244, %v2283
        %v2303 = vsub.f32 %v2247, %v2285
        %v2304 = vsub.f32 %v2252, %v2287
        %v2305 = vsub.f32 %v2255, %v2289
        %v2306 = vmul.f32 %v2290, 1.442695
        %v2307 = vpow.pop %v2306
        %v2308 = vmul.f32 %v2291, 1.442695
        %v2309 = vpow.pop %v2308
        %v2310 = vmul.f32 %v2292, 1.442695
        %v2311 = vpow.pop %v2310
        %v2312 = vmul.f32 %v2293, 1.442695
        %v2313 = vpow.pop %v2312
        %v2314 = vmul.f32 %v2294, 1.442695
        %v2315 = vpow.pop %v2314
        %v2316 = vmul.f32 %v2295, 1.442695
        %v2317 = vpow.pop %v2316
        %v2318 = vmul.f32 %v2296, 1.442695
        %v2319 = vpow.pop %v2318
        %v2320 = vmul.f32 %v2297, 1.442695
        %v2321 = vpow.pop %v2320
        %v2322 = vmul.f32 %v2298, 1.442695
        %v2323 = vpow.pop %v2322
        %v2324 = vmul.f32 %v2299, 1.442695
        %v2325 = vpow.pop %v2324
        %v2326 = vmul.f32 %v2300, 1.442695
        %v2327 = vpow.pop %v2326
        %v2328 = vmul.f32 %v2301, 1.442695
        %v2329 = vpow.pop %v2328
        %v2330 = vmul.f32 %v2302, 1.442695
        %v2331 = vpow.pop %v2330
        %v2332 = vmul.f32 %v2303, 1.442695
        %v2333 = vpow.pop %v2332
        %v2334 = vmul.f32 %v2304, 1.442695
        %v2335 = vpow.pop %v2334
        %v2336 = vmul.f32 %v2305, 1.442695
        %v2337 = vpow.pop %v2336
        %2338 = vadd.xlane.f32.xlu0 %v2307
        %v2339 = vpop.xlane.xlu0 %2338
        %2340 = vadd.xlane.f32.xlu0 %v2309
        %v2341 = vpop.xlane.xlu0 %2340
        %2342 = vadd.xlane.f32.xlu0 %v2311
        %v2343 = vpop.xlane.xlu0 %2342
        %2344 = vadd.xlane.f32.xlu0 %v2313
        %v2345 = vpop.xlane.xlu0 %2344
        %2346 = vadd.xlane.f32.xlu0 %v2315
        %v2347 = vpop.xlane.xlu0 %2346
        %2348 = vadd.xlane.f32.xlu0 %v2317
        %v2349 = vpop.xlane.xlu0 %2348
        %2350 = vadd.xlane.f32.xlu0 %v2319
        %v2351 = vpop.xlane.xlu0 %2350
        %2352 = vadd.xlane.f32.xlu0 %v2321
        %v2353 = vpop.xlane.xlu0 %2352
        %2354 = vadd.xlane.f32.xlu0 %v2323
        %v2355 = vpop.xlane.xlu0 %2354
        %2356 = vadd.xlane.f32.xlu0 %v2325
        %v2357 = vpop.xlane.xlu0 %2356
        %2358 = vadd.xlane.f32.xlu0 %v2327
        %v2359 = vpop.xlane.xlu0 %2358
        %2360 = vadd.xlane.f32.xlu0 %v2329
        %v2361 = vpop.xlane.xlu0 %2360
        %2362 = vadd.xlane.f32.xlu0 %v2331
        %v2363 = vpop.xlane.xlu0 %2362
        %2364 = vadd.xlane.f32.xlu0 %v2333
        %v2365 = vpop.xlane.xlu0 %2364
        %2366 = vadd.xlane.f32.xlu0 %v2335
        %v2367 = vpop.xlane.xlu0 %2366
        %2368 = vadd.xlane.f32.xlu0 %v2337
        %v2369 = vpop.xlane.xlu0 %2368
        %v2370 = vrcp.pop %v2339
        %v2371 = vrcp.pop %v2341
        %v2372 = vrcp.pop %v2343
        %v2373 = vrcp.pop %v2345
        %v2374 = vrcp.pop %v2347
        %v2375 = vrcp.pop %v2349
        %v2376 = vrcp.pop %v2351
        %v2377 = vrcp.pop %v2353
        %v2378 = vrcp.pop %v2355
        %v2379 = vrcp.pop %v2357
        %v2380 = vrcp.pop %v2359
        %v2381 = vrcp.pop %v2361
        %v2382 = vrcp.pop %v2363
        %v2383 = vrcp.pop %v2365
        %v2384 = vrcp.pop %v2367
        %v2385 = vrcp.pop %v2369
        %v2386 = vpack.c.bf16 %v2309, %v2307
        %v2387 = vpack.c.bf16 %v2313, %v2311
        %v2388 = vpack.c.bf16 %v2317, %v2315
        %v2389 = vpack.c.bf16 %v2321, %v2319
        %v2390 = vpack.c.bf16 %v2325, %v2323
        %v2391 = vpack.c.bf16 %v2329, %v2327
        %v2392 = vpack.c.bf16 %v2333, %v2331
        %v2393 = vpack.c.bf16 %v2337, %v2335
        %2394 = vmatprep.subr.bf16.mxu0 0
        %2395 = vmatpush1.bf16.msra.mxu0 %v1814
        %2396 = vmatprep.subr.bf16.mxu0 0
        %2397 = vmatpush1.bf16.msra.mxu0 %v1812
        %2398 = vmatprep.subr.bf16.mxu0 0
        %2399 = vmatpush1.bf16.msra.mxu0 %v1810
        %2400 = vmatprep.subr.bf16.mxu0 0
        %2401 = vmatpush1.bf16.msra.mxu0 %v1808
        %2402 = vmatprep.subr.bf16.mxu0 0
        %2403 = vmatpush1.bf16.msra.mxu0 %v1806
        %2404 = vmatprep.subr.bf16.mxu0 0
        %2405 = vmatpush1.bf16.msra.mxu0 %v1804
        %2406 = vmatprep.subr.bf16.mxu0 0
        %2407 = vmatpush1.bf16.msra.mxu0 %v1802
        %2408 = vmatprep.subr.bf16.mxu0 0
        %2409 = vmatpush1.bf16.msra.mxu0 %v1800
        %2410 = vmatprep.subr.bf16.mxu0 0
        %2411 = vmatpush2.bf16.msra.mxu0 0
        %2412 = vmatprep.subr.bf16.mxu0 0
        %2413 = vmatpush2.bf16.msra.mxu0 0
        %2414 = vmatprep.subr.bf16.mxu0 0
        %2415 = vmatpush2.bf16.msra.mxu0 0
        %2416 = vmatprep.subr.bf16.mxu0 0
        %2417 = vmatpush2.bf16.msra.mxu0 0
        %2418 = vmatprep.subr.bf16.mxu0 0
        %2419 = vmatpush2.bf16.msra.mxu0 0
        %2420 = vmatprep.subr.bf16.mxu0 0
        %2421 = vmatpush2.bf16.msra.mxu0 0
        %2422 = vmatprep.subr.bf16.mxu0 0
        %2423 = vmatpush2.bf16.msra.mxu0 0
        %2424 = vmatprep.subr.bf16.mxu0 0
        %2425 = vmatpush2.bf16.msra.mxu0 0
        %2426 = vmatprep.mubr.bf16.mxu0 0
        %2427 = vmatmul.mubr.bf16.gmra.mxu0 %v2386
        %v2428 = vpop.f32.mrf.mxu0
        %v2429 = vadd.f32 0.0, %v2428
        %v2430 = vpop.f32.mrf.mxu0
        %v2431 = vpop.f32.mrf.mxu0
        %v2432 = vadd.f32 0.0, %v2431
        %v2433 = vpop.f32.mrf.mxu0
        %2434 = vmatprep.mubr.bf16.mxu0 0
        %2435 = vmatmul.mubr.bf16.gmra.mxu0 %v2387
        %v2436 = vpop.f32.mrf.mxu0
        %v2437 = vadd.f32 0.0, %v2436
        %v2438 = vpop.f32.mrf.mxu0
        %v2439 = vpop.f32.mrf.mxu0
        %v2440 = vadd.f32 0.0, %v2439
        %v2441 = vpop.f32.mrf.mxu0
        %2442 = vmatprep.mubr.bf16.mxu0 0
        %2443 = vmatmul.mubr.bf16.gmra.mxu0 %v2388
        %v2444 = vpop.f32.mrf.mxu0
        %v2445 = vadd.f32 0.0, %v2444
        %v2446 = vpop.f32.mrf.mxu0
        %v2447 = vpop.f32.mrf.mxu0
        %v2448 = vadd.f32 0.0, %v2447
        %v2449 = vpop.f32.mrf.mxu0
        %2450 = vmatprep.mubr.bf16.mxu0 0
        %2451 = vmatmul.mubr.bf16.gmra.mxu0 %v2389
        %v2452 = vpop.f32.mrf.mxu0
        %v2453 = vadd.f32 0.0, %v2452
        %v2454 = vpop.f32.mrf.mxu0
        %v2455 = vpop.f32.mrf.mxu0
        %v2456 = vadd.f32 0.0, %v2455
        %v2457 = vpop.f32.mrf.mxu0
        %2458 = vmatprep.mubr.bf16.mxu0 0
        %2459 = vmatmul.mubr.bf16.gmra.mxu0 %v2390
        %v2460 = vpop.f32.mrf.mxu0
        %v2461 = vadd.f32 0.0, %v2460
        %v2462 = vpop.f32.mrf.mxu0
        %v2463 = vpop.f32.mrf.mxu0
        %v2464 = vadd.f32 0.0, %v2463
        %v2465 = vpop.f32.mrf.mxu0
        %2466 = vmatprep.mubr.bf16.mxu0 0
        %2467 = vmatmul.mubr.bf16.gmra.mxu0 %v2391
        %v2468 = vpop.f32.mrf.mxu0
        %v2469 = vadd.f32 0.0, %v2468
        %v2470 = vpop.f32.mrf.mxu0
        %v2471 = vpop.f32.mrf.mxu0
        %v2472 = vadd.f32 0.0, %v2471
        %v2473 = vpop.f32.mrf.mxu0
        %2474 = vmatprep.mubr.bf16.mxu0 0
        %2475 = vmatmul.mubr.bf16.gmra.mxu0 %v2392
        %v2476 = vpop.f32.mrf.mxu0
        %v2477 = vadd.f32 0.0, %v2476
        %v2478 = vpop.f32.mrf.mxu0
        %v2479 = vpop.f32.mrf.mxu0
        %v2480 = vadd.f32 0.0, %v2479
        %v2481 = vpop.f32.mrf.mxu0
        %2482 = vmatprep.mubr.bf16.mxu0 0
        %2483 = vmatmul.mubr.bf16.gmra.mxu0 %v2393
        %v2484 = vpop.f32.mrf.mxu0
        %v2485 = vadd.f32 0.0, %v2484
        %v2486 = vpop.f32.mrf.mxu0
        %v2487 = vpop.f32.mrf.mxu0
        %v2488 = vadd.f32 0.0, %v2487
        %v2489 = vpop.f32.mrf.mxu0
        %2490 = vdwg.mxu0
        %v2491 = vmul.f32 %v2429, %v2370
        %v2492 = vmul.f32 %v2432, %v2371
        %v2493 = vmul.f32 %v2437, %v2372
        %v2494 = vmul.f32 %v2440, %v2373
        %v2495 = vmul.f32 %v2445, %v2374
        %v2496 = vmul.f32 %v2448, %v2375
        %v2497 = vmul.f32 %v2453, %v2376
        %v2498 = vmul.f32 %v2456, %v2377
        %v2499 = vmul.f32 %v2461, %v2378
        %v2500 = vmul.f32 %v2464, %v2379
        %v2501 = vmul.f32 %v2469, %v2380
        %v2502 = vmul.f32 %v2472, %v2381
        %v2503 = vmul.f32 %v2477, %v2382
        %v2504 = vmul.f32 %v2480, %v2383
        %v2505 = vmul.f32 %v2485, %v2384
        %v2506 = vmul.f32 %v2488, %v2385
        %v2507 = vpack.c.bf16 %v2146, %v2145
        %v2508 = vpack.c.bf16 %v2492, %v2491
        %v2509 = vpack.c.bf16 %v2148, %v2147
        %v2510 = vpack.c.bf16 %v2494, %v2493
        %v2511 = vpack.c.bf16 %v2150, %v2149
        %v2512 = vpack.c.bf16 %v2496, %v2495
        %v2513 = vpack.c.bf16 %v2152, %v2151
        %v2514 = vpack.c.bf16 %v2498, %v2497
        %v2515 = vpack.c.bf16 %v2154, %v2153
        %v2516 = vpack.c.bf16 %v2500, %v2499
        %v2517 = vpack.c.bf16 %v2156, %v2155
        %v2518 = vpack.c.bf16 %v2502, %v2501
        %v2519 = vpack.c.bf16 %v2158, %v2157
        %v2520 = vpack.c.bf16 %v2504, %v2503
        %v2521 = vpack.c.bf16 %v2160, %v2159
        %v2522 = vpack.c.bf16 %v2506, %v2505
        %v2523 = vld [vmem:[%s4] sm:$0xff]
        %v2524 = vld [vmem:[%s4 + $0x8] sm:$0xff]
        %v2525 = vld [vmem:[%s4 + $0x10] sm:$0xff]
        %v2526 = vld [vmem:[%s4 + $0x18] sm:$0xff]
        %v2527 = vld [vmem:[%s4 + $0x20] sm:$0xff]
        %v2528 = vld [vmem:[%s4 + $0x28] sm:$0xff]
        %v2529 = vld [vmem:[%s4 + $0x30] sm:$0xff]
        %v2530 = vld [vmem:[%s4 + $0x38] sm:$0xff]
        %v2531 = vld [vmem:[%s4 + $0x40] sm:$0xff]
        %v2532 = vld [vmem:[%s4 + $0x48] sm:$0xff]
        %v2533 = vld [vmem:[%s4 + $0x50] sm:$0xff]
        %v2534 = vld [vmem:[%s4 + $0x58] sm:$0xff]
        %v2535 = vld [vmem:[%s4 + $0x60] sm:$0xff]
        %v2536 = vld [vmem:[%s4 + $0x68] sm:$0xff]
        %v2537 = vld [vmem:[%s4 + $0x70] sm:$0xff]
        %v2538 = vld [vmem:[%s4 + $0x78] sm:$0xff]
        %v2539 = vld [vmem:[%s4 + $0x80] sm:$0xff]
        %v2540 = vld [vmem:[%s4 + $0x88] sm:$0xff]
        %v2541 = vld [vmem:[%s4 + $0x90] sm:$0xff]
        %v2542 = vld [vmem:[%s4 + $0x98] sm:$0xff]
        %v2543 = vld [vmem:[%s4 + $0xa0] sm:$0xff]
        %v2544 = vld [vmem:[%s4 + $0xa8] sm:$0xff]
        %v2545 = vld [vmem:[%s4 + $0xb0] sm:$0xff]
        %v2546 = vld [vmem:[%s4 + $0xb8] sm:$0xff]
        %v2547 = vld [vmem:[%s4 + $0xc0] sm:$0xff]
        %v2548 = vld [vmem:[%s4 + $0xc8] sm:$0xff]
        %v2549 = vld [vmem:[%s4 + $0xd0] sm:$0xff]
        %v2550 = vld [vmem:[%s4 + $0xd8] sm:$0xff]
        %v2551 = vld [vmem:[%s4 + $0xe0] sm:$0xff]
        %v2552 = vld [vmem:[%s4 + $0xe8] sm:$0xff]
        %v2553 = vld [vmem:[%s4 + $0xf0] sm:$0xff]
        %v2554 = vld [vmem:[%s4 + $0xf8] sm:$0xff]
        %v2555 = vld [vmem:[%s5] sm:$0x3]
        %v2557 = vlaneseq
        %v2558 = vshrl.u32 %v2557, 7
        %v2559 = vsub.s32 0, %v2558
        %v2560 = vrot.slane %v2555, %v2559
        %v2561 = vlaneseq
        %v2562 = vshrl.u32 %v2561, 7
        %v2563 = vsub.s32 1, %v2562
        %v2564 = vrot.slane %v2555, %v2563
        %v2599 = vunpack.c.l.b16 %v2523
        %v2600 = vunpack.c.h.b16 %v2523
        %v2601 = vunpack.c.l.b16 %v2524
        %v2602 = vunpack.c.h.b16 %v2524
        %v2603 = vunpack.c.l.b16 %v2525
        %v2604 = vunpack.c.h.b16 %v2525
        %v2605 = vunpack.c.l.b16 %v2526
        %v2606 = vunpack.c.h.b16 %v2526
        %v2607 = vunpack.c.l.b16 %v2527
        %v2608 = vunpack.c.h.b16 %v2527
        %v2609 = vunpack.c.l.b16 %v2528
        %v2610 = vunpack.c.h.b16 %v2528
        %v2611 = vunpack.c.l.b16 %v2529
        %v2612 = vunpack.c.h.b16 %v2529
        %v2613 = vunpack.c.l.b16 %v2530
        %v2614 = vunpack.c.h.b16 %v2530
        %v2615 = vunpack.c.l.b16 %v2531
        %v2616 = vunpack.c.h.b16 %v2531
        %v2617 = vunpack.c.l.b16 %v2532
        %v2618 = vunpack.c.h.b16 %v2532
        %v2619 = vunpack.c.l.b16 %v2533
        %v2620 = vunpack.c.h.b16 %v2533
        %v2621 = vunpack.c.l.b16 %v2534
        %v2622 = vunpack.c.h.b16 %v2534
        %v2623 = vunpack.c.l.b16 %v2535
        %v2624 = vunpack.c.h.b16 %v2535
        %v2625 = vunpack.c.l.b16 %v2536
        %v2626 = vunpack.c.h.b16 %v2536
        %v2627 = vunpack.c.l.b16 %v2537
        %v2628 = vunpack.c.h.b16 %v2537
        %v2629 = vunpack.c.l.b16 %v2538
        %v2630 = vunpack.c.h.b16 %v2538
        %v2631 = vunpack.c.l.b16 %v2539
        %v2632 = vunpack.c.h.b16 %v2539
        %v2633 = vunpack.c.l.b16 %v2540
        %v2634 = vunpack.c.h.b16 %v2540
        %v2635 = vunpack.c.l.b16 %v2541
        %v2636 = vunpack.c.h.b16 %v2541
        %v2637 = vunpack.c.l.b16 %v2542
        %v2638 = vunpack.c.h.b16 %v2542
        %v2639 = vunpack.c.l.b16 %v2543
        %v2640 = vunpack.c.h.b16 %v2543
        %v2641 = vunpack.c.l.b16 %v2544
        %v2642 = vunpack.c.h.b16 %v2544
        %v2643 = vunpack.c.l.b16 %v2545
        %v2644 = vunpack.c.h.b16 %v2545
        %v2645 = vunpack.c.l.b16 %v2546
        %v2646 = vunpack.c.h.b16 %v2546
        %v2647 = vunpack.c.l.b16 %v2547
        %v2648 = vunpack.c.h.b16 %v2547
        %v2649 = vunpack.c.l.b16 %v2548
        %v2650 = vunpack.c.h.b16 %v2548
        %v2651 = vunpack.c.l.b16 %v2549
        %v2652 = vunpack.c.h.b16 %v2549
        %v2653 = vunpack.c.l.b16 %v2550
        %v2654 = vunpack.c.h.b16 %v2550
        %v2655 = vunpack.c.l.b16 %v2551
        %v2656 = vunpack.c.h.b16 %v2551
        %v2657 = vunpack.c.l.b16 %v2552
        %v2658 = vunpack.c.h.b16 %v2552
        %v2659 = vunpack.c.l.b16 %v2553
        %v2660 = vunpack.c.h.b16 %v2553
        %v2661 = vunpack.c.l.b16 %v2554
        %v2662 = vunpack.c.h.b16 %v2554
        %v2663 = vpack.c.b16 %v2601, %v2599
        %v2664 = vpack.c.b16 %v2602, %v2600
        %v2665 = vpack.c.b16 %v2605, %v2603
        %v2666 = vpack.c.b16 %v2606, %v2604
        %v2667 = vpack.c.b16 %v2609, %v2607
        %v2668 = vpack.c.b16 %v2610, %v2608
        %v2669 = vpack.c.b16 %v2613, %v2611
        %v2670 = vpack.c.b16 %v2614, %v2612
        %v2671 = vpack.c.b16 %v2617, %v2615
        %v2672 = vpack.c.b16 %v2618, %v2616
        %v2673 = vpack.c.b16 %v2621, %v2619
        %v2674 = vpack.c.b16 %v2622, %v2620
        %v2675 = vpack.c.b16 %v2625, %v2623
        %v2676 = vpack.c.b16 %v2626, %v2624
        %v2677 = vpack.c.b16 %v2629, %v2627
        %v2678 = vpack.c.b16 %v2630, %v2628
        %v2679 = vpack.c.b16 %v2633, %v2631
        %v2680 = vpack.c.b16 %v2634, %v2632
        %v2681 = vpack.c.b16 %v2637, %v2635
        %v2682 = vpack.c.b16 %v2638, %v2636
        %v2683 = vpack.c.b16 %v2641, %v2639
        %v2684 = vpack.c.b16 %v2642, %v2640
        %v2685 = vpack.c.b16 %v2645, %v2643
        %v2686 = vpack.c.b16 %v2646, %v2644
        %v2687 = vpack.c.b16 %v2649, %v2647
        %v2688 = vpack.c.b16 %v2650, %v2648
        %v2689 = vpack.c.b16 %v2653, %v2651
        %v2690 = vpack.c.b16 %v2654, %v2652
        %v2691 = vpack.c.b16 %v2657, %v2655
        %v2692 = vpack.c.b16 %v2658, %v2656
        %v2693 = vpack.c.b16 %v2661, %v2659
        %v2694 = vpack.c.b16 %v2662, %v2660
        %2727 = vmatprep.subr.bf16.mxu0 %v2678
        %2728 = vmatpush1.bf16.msra.mxu0 %v2677
        %2729 = vmatprep.subr.bf16.mxu0 %v2676
        %2730 = vmatpush1.bf16.msra.mxu0 %v2675
        %2731 = vmatprep.subr.bf16.mxu0 %v2674
        %2732 = vmatpush1.bf16.msra.mxu0 %v2673
        %2733 = vmatprep.subr.bf16.mxu0 %v2672
        %2734 = vmatpush1.bf16.msra.mxu0 %v2671
        %2735 = vmatprep.subr.bf16.mxu0 %v2670
        %2736 = vmatpush1.bf16.msra.mxu0 %v2669
        %2737 = vmatprep.subr.bf16.mxu0 %v2668
        %2738 = vmatpush1.bf16.msra.mxu0 %v2667
        %2739 = vmatprep.subr.bf16.mxu0 %v2666
        %2740 = vmatpush1.bf16.msra.mxu0 %v2665
        %2741 = vmatprep.subr.bf16.mxu0 %v2664
        %2742 = vmatpush1.bf16.msra.mxu0 %v2663
        %2743 = vmatprep.subr.bf16.mxu0 %v2694
        %2744 = vmatpush2.bf16.msra.mxu0 %v2693
        %2745 = vmatprep.subr.bf16.mxu0 %v2692
        %2746 = vmatpush2.bf16.msra.mxu0 %v2691
        %2747 = vmatprep.subr.bf16.mxu0 %v2690
        %2748 = vmatpush2.bf16.msra.mxu0 %v2689
        %2749 = vmatprep.subr.bf16.mxu0 %v2688
        %2750 = vmatpush2.bf16.msra.mxu0 %v2687
        %2751 = vmatprep.subr.bf16.mxu0 %v2686
        %2752 = vmatpush2.bf16.msra.mxu0 %v2685
        %2753 = vmatprep.subr.bf16.mxu0 %v2684
        %2754 = vmatpush2.bf16.msra.mxu0 %v2683
        %2755 = vmatprep.subr.bf16.mxu0 %v2682
        %2756 = vmatpush2.bf16.msra.mxu0 %v2681
        %2757 = vmatprep.subr.bf16.mxu0 %v2680
        %2758 = vmatpush2.bf16.msra.mxu0 %v2679
        %2759 = vmatprep.mubr.bf16.mxu0 %v2508
        %2760 = vmatmul.mubr.bf16.gmra.mxu0 %v2507
        %v2761 = vpop.f32.mrf.mxu0
        %v2762 = vadd.f32 %v2560, %v2761
        %v2763 = vpop.f32.mrf.mxu0
        %v2764 = vadd.f32 %v2564, %v2763
        %v2765 = vpop.f32.mrf.mxu0
        %v2766 = vadd.f32 %v2560, %v2765
        %v2767 = vpop.f32.mrf.mxu0
        %v2768 = vadd.f32 %v2564, %v2767
        %2769 = vmatprep.mubr.bf16.mxu0 %v2510
        %2770 = vmatmul.mubr.bf16.gmra.mxu0 %v2509
        %v2771 = vpop.f32.mrf.mxu0
        %v2772 = vadd.f32 %v2560, %v2771
        %v2773 = vpop.f32.mrf.mxu0
        %v2774 = vadd.f32 %v2564, %v2773
        %v2775 = vpop.f32.mrf.mxu0
        %v2776 = vadd.f32 %v2560, %v2775
        %v2777 = vpop.f32.mrf.mxu0
        %v2778 = vadd.f32 %v2564, %v2777
        %2779 = vmatprep.mubr.bf16.mxu0 %v2512
        %2780 = vmatmul.mubr.bf16.gmra.mxu0 %v2511
        %v2781 = vpop.f32.mrf.mxu0
        %v2782 = vadd.f32 %v2560, %v2781
        %v2783 = vpop.f32.mrf.mxu0
        %v2784 = vadd.f32 %v2564, %v2783
        %v2785 = vpop.f32.mrf.mxu0
        %v2786 = vadd.f32 %v2560, %v2785
        %v2787 = vpop.f32.mrf.mxu0
        %v2788 = vadd.f32 %v2564, %v2787
        %2789 = vmatprep.mubr.bf16.mxu0 %v2514
        %2790 = vmatmul.mubr.bf16.gmra.mxu0 %v2513
        %v2791 = vpop.f32.mrf.mxu0
        %v2792 = vadd.f32 %v2560, %v2791
        %v2793 = vpop.f32.mrf.mxu0
        %v2794 = vadd.f32 %v2564, %v2793
        %v2795 = vpop.f32.mrf.mxu0
        %v2796 = vadd.f32 %v2560, %v2795
        %v2797 = vpop.f32.mrf.mxu0
        %v2798 = vadd.f32 %v2564, %v2797
        %2799 = vmatprep.mubr.bf16.mxu0 %v2516
        %2800 = vmatmul.mubr.bf16.gmra.mxu0 %v2515
        %v2801 = vpop.f32.mrf.mxu0
        %v2802 = vadd.f32 %v2560, %v2801
        %v2803 = vpop.f32.mrf.mxu0
        %v2804 = vadd.f32 %v2564, %v2803
        %v2805 = vpop.f32.mrf.mxu0
        %v2806 = vadd.f32 %v2560, %v2805
        %v2807 = vpop.f32.mrf.mxu0
        %v2808 = vadd.f32 %v2564, %v2807
        %2809 = vmatprep.mubr.bf16.mxu0 %v2518
        %2810 = vmatmul.mubr.bf16.gmra.mxu0 %v2517
        %v2811 = vpop.f32.mrf.mxu0
        %v2812 = vadd.f32 %v2560, %v2811
        %v2813 = vpop.f32.mrf.mxu0
        %v2814 = vadd.f32 %v2564, %v2813
        %v2815 = vpop.f32.mrf.mxu0
        %v2816 = vadd.f32 %v2560, %v2815
        %v2817 = vpop.f32.mrf.mxu0
        %v2818 = vadd.f32 %v2564, %v2817
        %2819 = vmatprep.mubr.bf16.mxu0 %v2520
        %2820 = vmatmul.mubr.bf16.gmra.mxu0 %v2519
        %v2821 = vpop.f32.mrf.mxu0
        %v2822 = vadd.f32 %v2560, %v2821
        %v2823 = vpop.f32.mrf.mxu0
        %v2824 = vadd.f32 %v2564, %v2823
        %v2825 = vpop.f32.mrf.mxu0
        %v2826 = vadd.f32 %v2560, %v2825
        %v2827 = vpop.f32.mrf.mxu0
        %v2828 = vadd.f32 %v2564, %v2827
        %2829 = vmatprep.mubr.bf16.mxu0 %v2522
        %2830 = vmatmul.mubr.bf16.gmra.mxu0 %v2521
        %v2831 = vpop.f32.mrf.mxu0
        %v2832 = vadd.f32 %v2560, %v2831
        %v2833 = vpop.f32.mrf.mxu0
        %v2834 = vadd.f32 %v2564, %v2833
        %v2835 = vpop.f32.mrf.mxu0
        %v2836 = vadd.f32 %v2560, %v2835
        %v2837 = vpop.f32.mrf.mxu0
        %v2838 = vadd.f32 %v2564, %v2837
        %2839 = vdwg.mxu0
        %v2840 = vlaneseq
        %v2841 = vshrl.u32 %v2840, 7
        %v2842 = vsub.s32 2, %v2841
        %v2843 = vrot.slane %v431, %v2842
        %v2844 = vlaneseq
        %v2845 = vshrl.u32 %v2844, 7
        %v2846 = vsub.s32 2, %v2845
        %v2847 = vrot.slane %v432, %v2846
        %v2848 = vmul.f32 %v2843, %v2762
        %v2849 = vmul.f32 %v2847, %v2764
        %v2850 = vmul.f32 %v2843, %v2766
        %v2851 = vmul.f32 %v2847, %v2768
        %v2852 = vmul.f32 %v2843, %v2772
        %v2853 = vmul.f32 %v2847, %v2774
        %v2854 = vmul.f32 %v2843, %v2776
        %v2855 = vmul.f32 %v2847, %v2778
        %v2856 = vmul.f32 %v2843, %v2782
        %v2857 = vmul.f32 %v2847, %v2784
        %v2858 = vmul.f32 %v2843, %v2786
        %v2859 = vmul.f32 %v2847, %v2788
        %v2860 = vmul.f32 %v2843, %v2792
        %v2861 = vmul.f32 %v2847, %v2794
        %v2862 = vmul.f32 %v2843, %v2796
        %v2863 = vmul.f32 %v2847, %v2798
        %v2864 = vmul.f32 %v2843, %v2802
        %v2865 = vmul.f32 %v2847, %v2804
        %v2866 = vmul.f32 %v2843, %v2806
        %v2867 = vmul.f32 %v2847, %v2808
        %v2868 = vmul.f32 %v2843, %v2812
        %v2869 = vmul.f32 %v2847, %v2814
        %v2870 = vmul.f32 %v2843, %v2816
        %v2871 = vmul.f32 %v2847, %v2818
        %v2872 = vmul.f32 %v2843, %v2822
        %v2873 = vmul.f32 %v2847, %v2824
        %v2874 = vmul.f32 %v2843, %v2826
        %v2875 = vmul.f32 %v2847, %v2828
        %v2876 = vmul.f32 %v2843, %v2832
        %v2877 = vmul.f32 %v2847, %v2834
        %v2878 = vmul.f32 %v2843, %v2836
        %v2879 = vmul.f32 %v2847, %v2838
        %v2880 = vadd.f32 %v399, %v2848
        %v2881 = vadd.f32 %v400, %v2849
        %v2882 = vadd.f32 %v401, %v2850
        %v2883 = vadd.f32 %v402, %v2851
        %v2884 = vadd.f32 %v403, %v2852
        %v2885 = vadd.f32 %v404, %v2853
        %v2886 = vadd.f32 %v405, %v2854
        %v2887 = vadd.f32 %v406, %v2855
        %v2888 = vadd.f32 %v407, %v2856
        %v2889 = vadd.f32 %v408, %v2857
        %v2890 = vadd.f32 %v409, %v2858
        %v2891 = vadd.f32 %v410, %v2859
        %v2892 = vadd.f32 %v411, %v2860
        %v2893 = vadd.f32 %v412, %v2861
        %v2894 = vadd.f32 %v413, %v2862
        %v2895 = vadd.f32 %v414, %v2863
        %v2896 = vadd.f32 %v415, %v2864
        %v2897 = vadd.f32 %v416, %v2865
        %v2898 = vadd.f32 %v417, %v2866
        %v2899 = vadd.f32 %v418, %v2867
        %v2900 = vadd.f32 %v419, %v2868
        %v2901 = vadd.f32 %v420, %v2869
        %v2902 = vadd.f32 %v421, %v2870
        %v2903 = vadd.f32 %v422, %v2871
        %v2904 = vadd.f32 %v423, %v2872
        %v2905 = vadd.f32 %v424, %v2873
        %v2906 = vadd.f32 %v425, %v2874
        %v2907 = vadd.f32 %v426, %v2875
        %v2908 = vadd.f32 %v427, %v2876
        %v2909 = vadd.f32 %v428, %v2877
        %v2910 = vadd.f32 %v429, %v2878
        %v2911 = vadd.f32 %v430, %v2879
        %v2912 = vadd.f32 %v2880, %v2881
        %2913 = vadd.xlane.f32.xlu0 %v2912
        %v2914 = vpop.xlane.xlu0 %2913
        %v2915 = vadd.f32 %v2882, %v2883
        %2916 = vadd.xlane.f32.xlu0 %v2915
        %v2917 = vpop.xlane.xlu0 %2916
        %v2918 = vadd.f32 %v2884, %v2885
        %2919 = vadd.xlane.f32.xlu0 %v2918
        %v2920 = vpop.xlane.xlu0 %2919
        %v2921 = vadd.f32 %v2886, %v2887
        %2922 = vadd.xlane.f32.xlu0 %v2921
        %v2923 = vpop.xlane.xlu0 %2922
        %v2924 = vadd.f32 %v2888, %v2889
        %2925 = vadd.xlane.f32.xlu0 %v2924
        %v2926 = vpop.xlane.xlu0 %2925
        %v2927 = vadd.f32 %v2890, %v2891
        %2928 = vadd.xlane.f32.xlu0 %v2927
        %v2929 = vpop.xlane.xlu0 %2928
        %v2930 = vadd.f32 %v2892, %v2893
        %2931 = vadd.xlane.f32.xlu0 %v2930
        %v2932 = vpop.xlane.xlu0 %2931
        %v2933 = vadd.f32 %v2894, %v2895
        %2934 = vadd.xlane.f32.xlu0 %v2933
        %v2935 = vpop.xlane.xlu0 %2934
        %v2936 = vadd.f32 %v2896, %v2897
        %2937 = vadd.xlane.f32.xlu0 %v2936
        %v2938 = vpop.xlane.xlu0 %2937
        %v2939 = vadd.f32 %v2898, %v2899
        %2940 = vadd.xlane.f32.xlu0 %v2939
        %v2941 = vpop.xlane.xlu0 %2940
        %v2942 = vadd.f32 %v2900, %v2901
        %2943 = vadd.xlane.f32.xlu0 %v2942
        %v2944 = vpop.xlane.xlu0 %2943
        %v2945 = vadd.f32 %v2902, %v2903
        %2946 = vadd.xlane.f32.xlu0 %v2945
        %v2947 = vpop.xlane.xlu0 %2946
        %v2948 = vadd.f32 %v2904, %v2905
        %2949 = vadd.xlane.f32.xlu0 %v2948
        %v2950 = vpop.xlane.xlu0 %2949
        %v2951 = vadd.f32 %v2906, %v2907
        %2952 = vadd.xlane.f32.xlu0 %v2951
        %v2953 = vpop.xlane.xlu0 %2952
        %v2954 = vadd.f32 %v2908, %v2909
        %2955 = vadd.xlane.f32.xlu0 %v2954
        %v2956 = vpop.xlane.xlu0 %2955
        %v2957 = vadd.f32 %v2910, %v2911
        %2958 = vadd.xlane.f32.xlu0 %v2957
        %v2959 = vpop.xlane.xlu0 %2958
        %v2960 = vmul.f32 %v2914, %v481
        %v2961 = vmul.f32 %v2917, %v481
        %v2962 = vmul.f32 %v2920, %v481
        %v2963 = vmul.f32 %v2923, %v481
        %v2964 = vmul.f32 %v2926, %v481
        %v2965 = vmul.f32 %v2929, %v481
        %v2966 = vmul.f32 %v2932, %v481
        %v2967 = vmul.f32 %v2935, %v481
        %v2968 = vmul.f32 %v2938, %v481
        %v2969 = vmul.f32 %v2941, %v481
        %v2970 = vmul.f32 %v2944, %v481
        %v2971 = vmul.f32 %v2947, %v481
        %v2972 = vmul.f32 %v2950, %v481
        %v2973 = vmul.f32 %v2953, %v481
        %v2974 = vmul.f32 %v2956, %v481
        %v2975 = vmul.f32 %v2959, %v481
        %v2976 = vsub.f32 %v2880, %v2960
        %v2977 = vsub.f32 %v2881, %v2960
        %v2978 = vsub.f32 %v2882, %v2961
        %v2979 = vsub.f32 %v2883, %v2961
        %v2980 = vsub.f32 %v2884, %v2962
        %v2981 = vsub.f32 %v2885, %v2962
        %v2982 = vsub.f32 %v2886, %v2963
        %v2983 = vsub.f32 %v2887, %v2963
        %v2984 = vsub.f32 %v2888, %v2964
        %v2985 = vsub.f32 %v2889, %v2964
        %v2986 = vsub.f32 %v2890, %v2965
        %v2987 = vsub.f32 %v2891, %v2965
        %v2988 = vsub.f32 %v2892, %v2966
        %v2989 = vsub.f32 %v2893, %v2966
        %v2990 = vsub.f32 %v2894, %v2967
        %v2991 = vsub.f32 %v2895, %v2967
        %v2992 = vsub.f32 %v2896, %v2968
        %v2993 = vsub.f32 %v2897, %v2968
        %v2994 = vsub.f32 %v2898, %v2969
        %v2995 = vsub.f32 %v2899, %v2969
        %v2996 = vsub.f32 %v2900, %v2970
        %v2997 = vsub.f32 %v2901, %v2970
        %v2998 = vsub.f32 %v2902, %v2971
        %v2999 = vsub.f32 %v2903, %v2971
        %v3000 = vsub.f32 %v2904, %v2972
        %v3001 = vsub.f32 %v2905, %v2972
        %v3002 = vsub.f32 %v2906, %v2973
        %v3003 = vsub.f32 %v2907, %v2973
        %v3004 = vsub.f32 %v2908, %v2974
        %v3005 = vsub.f32 %v2909, %v2974
        %v3006 = vsub.f32 %v2910, %v2975
        %v3007 = vsub.f32 %v2911, %v2975
        %v3008 = vmul.f32 %v2976, %v2976
        %v3009 = vmul.f32 %v2977, %v2977
        %v3010 = vmul.f32 %v2978, %v2978
        %v3011 = vmul.f32 %v2979, %v2979
        %v3012 = vmul.f32 %v2980, %v2980
        %v3013 = vmul.f32 %v2981, %v2981
        %v3014 = vmul.f32 %v2982, %v2982
        %v3015 = vmul.f32 %v2983, %v2983
        %v3016 = vmul.f32 %v2984, %v2984
        %v3017 = vmul.f32 %v2985, %v2985
        %v3018 = vmul.f32 %v2986, %v2986
        %v3019 = vmul.f32 %v2987, %v2987
        %v3020 = vmul.f32 %v2988, %v2988
        %v3021 = vmul.f32 %v2989, %v2989
        %v3022 = vmul.f32 %v2990, %v2990
        %v3023 = vmul.f32 %v2991, %v2991
        %v3024 = vmul.f32 %v2992, %v2992
        %v3025 = vmul.f32 %v2993, %v2993
        %v3026 = vmul.f32 %v2994, %v2994
        %v3027 = vmul.f32 %v2995, %v2995
        %v3028 = vmul.f32 %v2996, %v2996
        %v3029 = vmul.f32 %v2997, %v2997
        %v3030 = vmul.f32 %v2998, %v2998
        %v3031 = vmul.f32 %v2999, %v2999
        %v3032 = vmul.f32 %v3000, %v3000
        %v3033 = vmul.f32 %v3001, %v3001
        %v3034 = vmul.f32 %v3002, %v3002
        %v3035 = vmul.f32 %v3003, %v3003
        %v3036 = vmul.f32 %v3004, %v3004
        %v3037 = vmul.f32 %v3005, %v3005
        %v3038 = vmul.f32 %v3006, %v3006
        %v3039 = vmul.f32 %v3007, %v3007
        %v3040 = vadd.f32 %v3008, %v3009
        %3041 = vadd.xlane.f32.xlu0 %v3040
        %v3042 = vpop.xlane.xlu0 %3041
        %v3043 = vadd.f32 %v3010, %v3011
        %3044 = vadd.xlane.f32.xlu0 %v3043
        %v3045 = vpop.xlane.xlu0 %3044
        %v3046 = vadd.f32 %v3012, %v3013
        %3047 = vadd.xlane.f32.xlu0 %v3046
        %v3048 = vpop.xlane.xlu0 %3047
        %v3049 = vadd.f32 %v3014, %v3015
        %3050 = vadd.xlane.f32.xlu0 %v3049
        %v3051 = vpop.xlane.xlu0 %3050
        %v3052 = vadd.f32 %v3016, %v3017
        %3053 = vadd.xlane.f32.xlu0 %v3052
        %v3054 = vpop.xlane.xlu0 %3053
        %v3055 = vadd.f32 %v3018, %v3019
        %3056 = vadd.xlane.f32.xlu0 %v3055
        %v3057 = vpop.xlane.xlu0 %3056
        %v3058 = vadd.f32 %v3020, %v3021
        %3059 = vadd.xlane.f32.xlu0 %v3058
        %v3060 = vpop.xlane.xlu0 %3059
        %v3061 = vadd.f32 %v3022, %v3023
        %3062 = vadd.xlane.f32.xlu0 %v3061
        %v3063 = vpop.xlane.xlu0 %3062
        %v3064 = vadd.f32 %v3024, %v3025
        %3065 = vadd.xlane.f32.xlu0 %v3064
        %v3066 = vpop.xlane.xlu0 %3065
        %v3067 = vadd.f32 %v3026, %v3027
        %3068 = vadd.xlane.f32.xlu0 %v3067
        %v3069 = vpop.xlane.xlu0 %3068
        %v3070 = vadd.f32 %v3028, %v3029
        %3071 = vadd.xlane.f32.xlu0 %v3070
        %v3072 = vpop.xlane.xlu0 %3071
        %v3073 = vadd.f32 %v3030, %v3031
        %3074 = vadd.xlane.f32.xlu0 %v3073
        %v3075 = vpop.xlane.xlu0 %3074
        %v3076 = vadd.f32 %v3032, %v3033
        %3077 = vadd.xlane.f32.xlu0 %v3076
        %v3078 = vpop.xlane.xlu0 %3077
        %v3079 = vadd.f32 %v3034, %v3035
        %3080 = vadd.xlane.f32.xlu0 %v3079
        %v3081 = vpop.xlane.xlu0 %3080
        %v3082 = vadd.f32 %v3036, %v3037
        %3083 = vadd.xlane.f32.xlu0 %v3082
        %v3084 = vpop.xlane.xlu0 %3083
        %v3085 = vadd.f32 %v3038, %v3039
        %3086 = vadd.xlane.f32.xlu0 %v3085
        %v3087 = vpop.xlane.xlu0 %3086
        %v3088 = vmul.f32 %v3042, %v481
        %v3089 = vmul.f32 %v3045, %v481
        %v3090 = vmul.f32 %v3048, %v481
        %v3091 = vmul.f32 %v3051, %v481
        %v3092 = vmul.f32 %v3054, %v481
        %v3093 = vmul.f32 %v3057, %v481
        %v3094 = vmul.f32 %v3060, %v481
        %v3095 = vmul.f32 %v3063, %v481
        %v3096 = vmul.f32 %v3066, %v481
        %v3097 = vmul.f32 %v3069, %v481
        %v3098 = vmul.f32 %v3072, %v481
        %v3099 = vmul.f32 %v3075, %v481
        %v3100 = vmul.f32 %v3078, %v481
        %v3101 = vmul.f32 %v3081, %v481
        %v3102 = vmul.f32 %v3084, %v481
        %v3103 = vmul.f32 %v3087, %v481
        %v3104 = vadd.f32 %v3088, 1e-06
        %v3105 = vadd.f32 %v3089, 1e-06
        %v3106 = vadd.f32 %v3090, 1e-06
        %v3107 = vadd.f32 %v3091, 1e-06
        %v3108 = vadd.f32 %v3092, 1e-06
        %v3109 = vadd.f32 %v3093, 1e-06
        %v3110 = vadd.f32 %v3094, 1e-06
        %v3111 = vadd.f32 %v3095, 1e-06
        %v3112 = vadd.f32 %v3096, 1e-06
        %v3113 = vadd.f32 %v3097, 1e-06
        %v3114 = vadd.f32 %v3098, 1e-06
        %v3115 = vadd.f32 %v3099, 1e-06
        %v3116 = vadd.f32 %v3100, 1e-06
        %v3117 = vadd.f32 %v3101, 1e-06
        %v3118 = vadd.f32 %v3102, 1e-06
        %v3119 = vadd.f32 %v3103, 1e-06
        %v3120 = vrsqrt.pop %v3104
        %v3121 = vrsqrt.pop %v3105
        %v3122 = vrsqrt.pop %v3106
        %v3123 = vrsqrt.pop %v3107
        %v3124 = vrsqrt.pop %v3108
        %v3125 = vrsqrt.pop %v3109
        %v3126 = vrsqrt.pop %v3110
        %v3127 = vrsqrt.pop %v3111
        %v3128 = vrsqrt.pop %v3112
        %v3129 = vrsqrt.pop %v3113
        %v3130 = vrsqrt.pop %v3114
        %v3131 = vrsqrt.pop %v3115
        %v3132 = vrsqrt.pop %v3116
        %v3133 = vrsqrt.pop %v3117
        %v3134 = vrsqrt.pop %v3118
        %v3135 = vrsqrt.pop %v3119
        %v3136 = vmul.f32 %v2976, %v3120
        %v3137 = vmul.f32 %v2977, %v3120
        %v3138 = vmul.f32 %v2978, %v3121
        %v3139 = vmul.f32 %v2979, %v3121
        %v3140 = vmul.f32 %v2980, %v3122
        %v3141 = vmul.f32 %v2981, %v3122
        %v3142 = vmul.f32 %v2982, %v3123
        %v3143 = vmul.f32 %v2983, %v3123
        %v3144 = vmul.f32 %v2984, %v3124
        %v3145 = vmul.f32 %v2985, %v3124
        %v3146 = vmul.f32 %v2986, %v3125
        %v3147 = vmul.f32 %v2987, %v3125
        %v3148 = vmul.f32 %v2988, %v3126
        %v3149 = vmul.f32 %v2989, %v3126
        %v3150 = vmul.f32 %v2990, %v3127
        %v3151 = vmul.f32 %v2991, %v3127
        %v3152 = vmul.f32 %v2992, %v3128
        %v3153 = vmul.f32 %v2993, %v3128
        %v3154 = vmul.f32 %v2994, %v3129
        %v3155 = vmul.f32 %v2995, %v3129
        %v3156 = vmul.f32 %v2996, %v3130
        %v3157 = vmul.f32 %v2997, %v3130
        %v3158 = vmul.f32 %v2998, %v3131
        %v3159 = vmul.f32 %v2999, %v3131
        %v3160 = vmul.f32 %v3000, %v3132
        %v3161 = vmul.f32 %v3001, %v3132
        %v3162 = vmul.f32 %v3002, %v3133
        %v3163 = vmul.f32 %v3003, %v3133
        %v3164 = vmul.f32 %v3004, %v3134
        %v3165 = vmul.f32 %v3005, %v3134
        %v3166 = vmul.f32 %v3006, %v3135
        %v3167 = vmul.f32 %v3007, %v3135
        %v3168 = vlaneseq
        %v3169 = vshrl.u32 %v3168, 7
        %v3170 = vsub.s32 4, %v3169
        %v3171 = vrot.slane %v690, %v3170
        %v3172 = vlaneseq
        %v3173 = vshrl.u32 %v3172, 7
        %v3174 = vsub.s32 4, %v3173
        %v3175 = vrot.slane %v691, %v3174
        %v3176 = vmul.f32 %v3136, %v3171
        %v3177 = vmul.f32 %v3137, %v3175
        %v3178 = vmul.f32 %v3138, %v3171
        %v3179 = vmul.f32 %v3139, %v3175
        %v3180 = vmul.f32 %v3140, %v3171
        %v3181 = vmul.f32 %v3141, %v3175
        %v3182 = vmul.f32 %v3142, %v3171
        %v3183 = vmul.f32 %v3143, %v3175
        %v3184 = vmul.f32 %v3144, %v3171
        %v3185 = vmul.f32 %v3145, %v3175
        %v3186 = vmul.f32 %v3146, %v3171
        %v3187 = vmul.f32 %v3147, %v3175
        %v3188 = vmul.f32 %v3148, %v3171
        %v3189 = vmul.f32 %v3149, %v3175
        %v3190 = vmul.f32 %v3150, %v3171
        %v3191 = vmul.f32 %v3151, %v3175
        %v3192 = vmul.f32 %v3152, %v3171
        %v3193 = vmul.f32 %v3153, %v3175
        %v3194 = vmul.f32 %v3154, %v3171
        %v3195 = vmul.f32 %v3155, %v3175
        %v3196 = vmul.f32 %v3156, %v3171
        %v3197 = vmul.f32 %v3157, %v3175
        %v3198 = vmul.f32 %v3158, %v3171
        %v3199 = vmul.f32 %v3159, %v3175
        %v3200 = vmul.f32 %v3160, %v3171
        %v3201 = vmul.f32 %v3161, %v3175
        %v3202 = vmul.f32 %v3162, %v3171
        %v3203 = vmul.f32 %v3163, %v3175
        %v3204 = vmul.f32 %v3164, %v3171
        %v3205 = vmul.f32 %v3165, %v3175
        %v3206 = vmul.f32 %v3166, %v3171
        %v3207 = vmul.f32 %v3167, %v3175
        %v3208 = vlaneseq
        %v3209 = vshrl.u32 %v3208, 7
        %v3210 = vsub.s32 3, %v3209
        %v3211 = vrot.slane %v431, %v3210
        %v3212 = vlaneseq
        %v3213 = vshrl.u32 %v3212, 7
        %v3214 = vsub.s32 3, %v3213
        %v3215 = vrot.slane %v432, %v3214
        %v3216 = vadd.f32 %v3176, %v3211
        %v3217 = vadd.f32 %v3177, %v3215
        %v3218 = vadd.f32 %v3178, %v3211
        %v3219 = vadd.f32 %v3179, %v3215
        %v3220 = vadd.f32 %v3180, %v3211
        %v3221 = vadd.f32 %v3181, %v3215
        %v3222 = vadd.f32 %v3182, %v3211
        %v3223 = vadd.f32 %v3183, %v3215
        %v3224 = vadd.f32 %v3184, %v3211
        %v3225 = vadd.f32 %v3185, %v3215
        %v3226 = vadd.f32 %v3186, %v3211
        %v3227 = vadd.f32 %v3187, %v3215
        %v3228 = vadd.f32 %v3188, %v3211
        %v3229 = vadd.f32 %v3189, %v3215
        %v3230 = vadd.f32 %v3190, %v3211
        %v3231 = vadd.f32 %v3191, %v3215
        %v3232 = vadd.f32 %v3192, %v3211
        %v3233 = vadd.f32 %v3193, %v3215
        %v3234 = vadd.f32 %v3194, %v3211
        %v3235 = vadd.f32 %v3195, %v3215
        %v3236 = vadd.f32 %v3196, %v3211
        %v3237 = vadd.f32 %v3197, %v3215
        %v3238 = vadd.f32 %v3198, %v3211
        %v3239 = vadd.f32 %v3199, %v3215
        %v3240 = vadd.f32 %v3200, %v3211
        %v3241 = vadd.f32 %v3201, %v3215
        %v3242 = vadd.f32 %v3202, %v3211
        %v3243 = vadd.f32 %v3203, %v3215
        %v3244 = vadd.f32 %v3204, %v3211
        %v3245 = vadd.f32 %v3205, %v3215
        %v3246 = vadd.f32 %v3206, %v3211
        %v3247 = vadd.f32 %v3207, %v3215
        %v3248 = vpack.c.bf16 %v3218, %v3216
        %v3249 = vpack.c.bf16 %v3219, %v3217
        %v3250 = vpack.c.bf16 %v3222, %v3220
        %v3251 = vpack.c.bf16 %v3223, %v3221
        %v3252 = vpack.c.bf16 %v3226, %v3224
        %v3253 = vpack.c.bf16 %v3227, %v3225
        %v3254 = vpack.c.bf16 %v3230, %v3228
        %v3255 = vpack.c.bf16 %v3231, %v3229
        %v3256 = vpack.c.bf16 %v3234, %v3232
        %v3257 = vpack.c.bf16 %v3235, %v3233
        %v3258 = vpack.c.bf16 %v3238, %v3236
        %v3259 = vpack.c.bf16 %v3239, %v3237
        %v3260 = vpack.c.bf16 %v3242, %v3240
        %v3261 = vpack.c.bf16 %v3243, %v3241
        %v3262 = vpack.c.bf16 %v3246, %v3244
        %v3263 = vpack.c.bf16 %v3247, %v3245
        %v3264 = vld [vmem:[%s6] sm:$0xff]
        %v3265 = vld [vmem:[%s6 + $0x8] sm:$0xff]
        %v3266 = vld [vmem:[%s6 + $0x10] sm:$0xff]
        %v3267 = vld [vmem:[%s6 + $0x18] sm:$0xff]
        %v3268 = vld [vmem:[%s6 + $0x20] sm:$0xff]
        %v3269 = vld [vmem:[%s6 + $0x28] sm:$0xff]
        %v3270 = vld [vmem:[%s6 + $0x30] sm:$0xff]
        %v3271 = vld [vmem:[%s6 + $0x38] sm:$0xff]
        %v3272 = vld [vmem:[%s6 + $0x40] sm:$0xff]
        %v3273 = vld [vmem:[%s6 + $0x48] sm:$0xff]
        %v3274 = vld [vmem:[%s6 + $0x50] sm:$0xff]
        %v3275 = vld [vmem:[%s6 + $0x58] sm:$0xff]
        %v3276 = vld [vmem:[%s6 + $0x60] sm:$0xff]
        %v3277 = vld [vmem:[%s6 + $0x68] sm:$0xff]
        %v3278 = vld [vmem:[%s6 + $0x70] sm:$0xff]
        %v3279 = vld [vmem:[%s6 + $0x78] sm:$0xff]
        %v3280 = vld [vmem:[%s6 + $0x80] sm:$0xff]
        %v3281 = vld [vmem:[%s6 + $0x88] sm:$0xff]
        %v3282 = vld [vmem:[%s6 + $0x90] sm:$0xff]
        %v3283 = vld [vmem:[%s6 + $0x98] sm:$0xff]
        %v3284 = vld [vmem:[%s6 + $0xa0] sm:$0xff]
        %v3285 = vld [vmem:[%s6 + $0xa8] sm:$0xff]
        %v3286 = vld [vmem:[%s6 + $0xb0] sm:$0xff]
        %v3287 = vld [vmem:[%s6 + $0xb8] sm:$0xff]
        %v3288 = vld [vmem:[%s6 + $0xc0] sm:$0xff]
        %v3289 = vld [vmem:[%s6 + $0xc8] sm:$0xff]
        %v3290 = vld [vmem:[%s6 + $0xd0] sm:$0xff]
        %v3291 = vld [vmem:[%s6 + $0xd8] sm:$0xff]
        %v3292 = vld [vmem:[%s6 + $0xe0] sm:$0xff]
        %v3293 = vld [vmem:[%s6 + $0xe8] sm:$0xff]
        %v3294 = vld [vmem:[%s6 + $0xf0] sm:$0xff]
        %v3295 = vld [vmem:[%s6 + $0xf8] sm:$0xff]
        %v3296 = vld [vmem:[%s6 + $0x100] sm:$0xff]
        %v3297 = vld [vmem:[%s6 + $0x108] sm:$0xff]
        %v3298 = vld [vmem:[%s6 + $0x110] sm:$0xff]
        %v3299 = vld [vmem:[%s6 + $0x118] sm:$0xff]
        %v3300 = vld [vmem:[%s6 + $0x120] sm:$0xff]
        %v3301 = vld [vmem:[%s6 + $0x128] sm:$0xff]
        %v3302 = vld [vmem:[%s6 + $0x130] sm:$0xff]
        %v3303 = vld [vmem:[%s6 + $0x138] sm:$0xff]
        %v3304 = vld [vmem:[%s6 + $0x140] sm:$0xff]
        %v3305 = vld [vmem:[%s6 + $0x148] sm:$0xff]
        %v3306 = vld [vmem:[%s6 + $0x150] sm:$0xff]
        %v3307 = vld [vmem:[%s6 + $0x158] sm:$0xff]
        %v3308 = vld [vmem:[%s6 + $0x160] sm:$0xff]
        %v3309 = vld [vmem:[%s6 + $0x168] sm:$0xff]
        %v3310 = vld [vmem:[%s6 + $0x170] sm:$0xff]
        %v3311 = vld [vmem:[%s6 + $0x178] sm:$0xff]
        %v3312 = vld [vmem:[%s6 + $0x180] sm:$0xff]
        %v3313 = vld [vmem:[%s6 + $0x188] sm:$0xff]
        %v3314 = vld [vmem:[%s6 + $0x190] sm:$0xff]
        %v3315 = vld [vmem:[%s6 + $0x198] sm:$0xff]
        %v3316 = vld [vmem:[%s6 + $0x1a0] sm:$0xff]
        %v3317 = vld [vmem:[%s6 + $0x1a8] sm:$0xff]
        %v3318 = vld [vmem:[%s6 + $0x1b0] sm:$0xff]
        %v3319 = vld [vmem:[%s6 + $0x1b8] sm:$0xff]
        %v3320 = vld [vmem:[%s6 + $0x1c0] sm:$0xff]
        %v3321 = vld [vmem:[%s6 + $0x1c8] sm:$0xff]
        %v3322 = vld [vmem:[%s6 + $0x1d0] sm:$0xff]
        %v3323 = vld [vmem:[%s6 + $0x1d8] sm:$0xff]
        %v3324 = vld [vmem:[%s6 + $0x1e0] sm:$0xff]
        %v3325 = vld [vmem:[%s6 + $0x1e8] sm:$0xff]
        %v3326 = vld [vmem:[%s6 + $0x1f0] sm:$0xff]
        %v3327 = vld [vmem:[%s6 + $0x1f8] sm:$0xff]
        %v3328 = vld [vmem:[%s6 + $0x200] sm:$0xff]
        %v3329 = vld [vmem:[%s6 + $0x208] sm:$0xff]
        %v3330 = vld [vmem:[%s6 + $0x210] sm:$0xff]
        %v3331 = vld [vmem:[%s6 + $0x218] sm:$0xff]
        %v3332 = vld [vmem:[%s6 + $0x220] sm:$0xff]
        %v3333 = vld [vmem:[%s6 + $0x228] sm:$0xff]
        %v3334 = vld [vmem:[%s6 + $0x230] sm:$0xff]
        %v3335 = vld [vmem:[%s6 + $0x238] sm:$0xff]
        %v3336 = vld [vmem:[%s6 + $0x240] sm:$0xff]
        %v3337 = vld [vmem:[%s6 + $0x248] sm:$0xff]
        %v3338 = vld [vmem:[%s6 + $0x250] sm:$0xff]
        %v3339 = vld [vmem:[%s6 + $0x258] sm:$0xff]
        %v3340 = vld [vmem:[%s6 + $0x260] sm:$0xff]
        %v3341 = vld [vmem:[%s6 + $0x268] sm:$0xff]
        %v3342 = vld [vmem:[%s6 + $0x270] sm:$0xff]
        %v3343 = vld [vmem:[%s6 + $0x278] sm:$0xff]
        %v3344 = vld [vmem:[%s6 + $0x280] sm:$0xff]
        %v3345 = vld [vmem:[%s6 + $0x288] sm:$0xff]
        %v3346 = vld [vmem:[%s6 + $0x290] sm:$0xff]
        %v3347 = vld [vmem:[%s6 + $0x298] sm:$0xff]
        %v3348 = vld [vmem:[%s6 + $0x2a0] sm:$0xff]
        %v3349 = vld [vmem:[%s6 + $0x2a8] sm:$0xff]
        %v3350 = vld [vmem:[%s6 + $0x2b0] sm:$0xff]
        %v3351 = vld [vmem:[%s6 + $0x2b8] sm:$0xff]
        %v3352 = vld [vmem:[%s6 + $0x2c0] sm:$0xff]
        %v3353 = vld [vmem:[%s6 + $0x2c8] sm:$0xff]
        %v3354 = vld [vmem:[%s6 + $0x2d0] sm:$0xff]
        %v3355 = vld [vmem:[%s6 + $0x2d8] sm:$0xff]
        %v3356 = vld [vmem:[%s6 + $0x2e0] sm:$0xff]
        %v3357 = vld [vmem:[%s6 + $0x2e8] sm:$0xff]
        %v3358 = vld [vmem:[%s6 + $0x2f0] sm:$0xff]
        %v3359 = vld [vmem:[%s6 + $0x2f8] sm:$0xff]
        %v3360 = vld [vmem:[%s6 + $0x300] sm:$0xff]
        %v3361 = vld [vmem:[%s6 + $0x308] sm:$0xff]
        %v3362 = vld [vmem:[%s6 + $0x310] sm:$0xff]
        %v3363 = vld [vmem:[%s6 + $0x318] sm:$0xff]
        %v3364 = vld [vmem:[%s6 + $0x320] sm:$0xff]
        %v3365 = vld [vmem:[%s6 + $0x328] sm:$0xff]
        %v3366 = vld [vmem:[%s6 + $0x330] sm:$0xff]
        %v3367 = vld [vmem:[%s6 + $0x338] sm:$0xff]
        %v3368 = vld [vmem:[%s6 + $0x340] sm:$0xff]
        %v3369 = vld [vmem:[%s6 + $0x348] sm:$0xff]
        %v3370 = vld [vmem:[%s6 + $0x350] sm:$0xff]
        %v3371 = vld [vmem:[%s6 + $0x358] sm:$0xff]
        %v3372 = vld [vmem:[%s6 + $0x360] sm:$0xff]
        %v3373 = vld [vmem:[%s6 + $0x368] sm:$0xff]
        %v3374 = vld [vmem:[%s6 + $0x370] sm:$0xff]
        %v3375 = vld [vmem:[%s6 + $0x378] sm:$0xff]
        %v3376 = vld [vmem:[%s6 + $0x380] sm:$0xff]
        %v3377 = vld [vmem:[%s6 + $0x388] sm:$0xff]
        %v3378 = vld [vmem:[%s6 + $0x390] sm:$0xff]
        %v3379 = vld [vmem:[%s6 + $0x398] sm:$0xff]
        %v3380 = vld [vmem:[%s6 + $0x3a0] sm:$0xff]
        %v3381 = vld [vmem:[%s6 + $0x3a8] sm:$0xff]
        %v3382 = vld [vmem:[%s6 + $0x3b0] sm:$0xff]
        %v3383 = vld [vmem:[%s6 + $0x3b8] sm:$0xff]
        %v3384 = vld [vmem:[%s6 + $0x3c0] sm:$0xff]
        %v3385 = vld [vmem:[%s6 + $0x3c8] sm:$0xff]
        %v3386 = vld [vmem:[%s6 + $0x3d0] sm:$0xff]
        %v3387 = vld [vmem:[%s6 + $0x3d8] sm:$0xff]
        %v3388 = vld [vmem:[%s6 + $0x3e0] sm:$0xff]
        %v3389 = vld [vmem:[%s6 + $0x3e8] sm:$0xff]
        %v3390 = vld [vmem:[%s6 + $0x3f0] sm:$0xff]
        %v3391 = vld [vmem:[%s6 + $0x3f8] sm:$0xff]
        %v3392 = vld [vmem:[%s7] sm:$0xff]
        %v3394 = vlaneseq
        %v3395 = vshrl.u32 %v3394, 7
        %v3396 = vsub.s32 0, %v3395
        %v3397 = vrot.slane %v3392, %v3396
        %v3398 = vlaneseq
        %v3399 = vshrl.u32 %v3398, 7
        %v3400 = vsub.s32 1, %v3399
        %v3401 = vrot.slane %v3392, %v3400
        %v3402 = vlaneseq
        %v3403 = vshrl.u32 %v3402, 7
        %v3404 = vsub.s32 2, %v3403
        %v3405 = vrot.slane %v3392, %v3404
        %v3406 = vlaneseq
        %v3407 = vshrl.u32 %v3406, 7
        %v3408 = vsub.s32 3, %v3407
        %v3409 = vrot.slane %v3392, %v3408
        %v3410 = vlaneseq
        %v3411 = vshrl.u32 %v3410, 7
        %v3412 = vsub.s32 4, %v3411
        %v3413 = vrot.slane %v3392, %v3412
        %v3414 = vlaneseq
        %v3415 = vshrl.u32 %v3414, 7
        %v3416 = vsub.s32 5, %v3415
        %v3417 = vrot.slane %v3392, %v3416
        %v3418 = vlaneseq
        %v3419 = vshrl.u32 %v3418, 7
        %v3420 = vsub.s32 6, %v3419
        %v3421 = vrot.slane %v3392, %v3420
        %v3422 = vlaneseq
        %v3423 = vshrl.u32 %v3422, 7
        %v3424 = vsub.s32 7, %v3423
        %v3425 = vrot.slane %v3392, %v3424
        %v3562 = vunpack.c.l.b16 %v3264
        %v3563 = vunpack.c.h.b16 %v3264
        %v3564 = vunpack.c.l.b16 %v3265
        %v3565 = vunpack.c.h.b16 %v3265
        %v3566 = vunpack.c.l.b16 %v3266
        %v3567 = vunpack.c.h.b16 %v3266
        %v3568 = vunpack.c.l.b16 %v3267
        %v3569 = vunpack.c.h.b16 %v3267
        %v3570 = vunpack.c.l.b16 %v3268
        %v3571 = vunpack.c.h.b16 %v3268
        %v3572 = vunpack.c.l.b16 %v3269
        %v3573 = vunpack.c.h.b16 %v3269
        %v3574 = vunpack.c.l.b16 %v3270
        %v3575 = vunpack.c.h.b16 %v3270
        %v3576 = vunpack.c.l.b16 %v3271
        %v3577 = vunpack.c.h.b16 %v3271
        %v3578 = vunpack.c.l.b16 %v3272
        %v3579 = vunpack.c.h.b16 %v3272
        %v3580 = vunpack.c.l.b16 %v3273
        %v3581 = vunpack.c.h.b16 %v3273
        %v3582 = vunpack.c.l.b16 %v3274
        %v3583 = vunpack.c.h.b16 %v3274
        %v3584 = vunpack.c.l.b16 %v3275
        %v3585 = vunpack.c.h.b16 %v3275
        %v3586 = vunpack.c.l.b16 %v3276
        %v3587 = vunpack.c.h.b16 %v3276
        %v3588 = vunpack.c.l.b16 %v3277
        %v3589 = vunpack.c.h.b16 %v3277
        %v3590 = vunpack.c.l.b16 %v3278
        %v3591 = vunpack.c.h.b16 %v3278
        %v3592 = vunpack.c.l.b16 %v3279
        %v3593 = vunpack.c.h.b16 %v3279
        %v3594 = vunpack.c.l.b16 %v3280
        %v3595 = vunpack.c.h.b16 %v3280
        %v3596 = vunpack.c.l.b16 %v3281
        %v3597 = vunpack.c.h.b16 %v3281
        %v3598 = vunpack.c.l.b16 %v3282
        %v3599 = vunpack.c.h.b16 %v3282
        %v3600 = vunpack.c.l.b16 %v3283
        %v3601 = vunpack.c.h.b16 %v3283
        %v3602 = vunpack.c.l.b16 %v3284
        %v3603 = vunpack.c.h.b16 %v3284
        %v3604 = vunpack.c.l.b16 %v3285
        %v3605 = vunpack.c.h.b16 %v3285
        %v3606 = vunpack.c.l.b16 %v3286
        %v3607 = vunpack.c.h.b16 %v3286
        %v3608 = vunpack.c.l.b16 %v3287
        %v3609 = vunpack.c.h.b16 %v3287
        %v3610 = vunpack.c.l.b16 %v3288
        %v3611 = vunpack.c.h.b16 %v3288
        %v3612 = vunpack.c.l.b16 %v3289
        %v3613 = vunpack.c.h.b16 %v3289
        %v3614 = vunpack.c.l.b16 %v3290
        %v3615 = vunpack.c.h.b16 %v3290
        %v3616 = vunpack.c.l.b16 %v3291
        %v3617 = vunpack.c.h.b16 %v3291
        %v3618 = vunpack.c.l.b16 %v3292
        %v3619 = vunpack.c.h.b16 %v3292
        %v3620 = vunpack.c.l.b16 %v3293
        %v3621 = vunpack.c.h.b16 %v3293
        %v3622 = vunpack.c.l.b16 %v3294
        %v3623 = vunpack.c.h.b16 %v3294
        %v3624 = vunpack.c.l.b16 %v3295
        %v3625 = vunpack.c.h.b16 %v3295
        %v3626 = vunpack.c.l.b16 %v3296
        %v3627 = vunpack.c.h.b16 %v3296
        %v3628 = vunpack.c.l.b16 %v3297
        %v3629 = vunpack.c.h.b16 %v3297
        %v3630 = vunpack.c.l.b16 %v3298
        %v3631 = vunpack.c.h.b16 %v3298
        %v3632 = vunpack.c.l.b16 %v3299
        %v3633 = vunpack.c.h.b16 %v3299
        %v3634 = vunpack.c.l.b16 %v3300
        %v3635 = vunpack.c.h.b16 %v3300
        %v3636 = vunpack.c.l.b16 %v3301
        %v3637 = vunpack.c.h.b16 %v3301
        %v3638 = vunpack.c.l.b16 %v3302
        %v3639 = vunpack.c.h.b16 %v3302
        %v3640 = vunpack.c.l.b16 %v3303
        %v3641 = vunpack.c.h.b16 %v3303
        %v3642 = vunpack.c.l.b16 %v3304
        %v3643 = vunpack.c.h.b16 %v3304
        %v3644 = vunpack.c.l.b16 %v3305
        %v3645 = vunpack.c.h.b16 %v3305
        %v3646 = vunpack.c.l.b16 %v3306
        %v3647 = vunpack.c.h.b16 %v3306
        %v3648 = vunpack.c.l.b16 %v3307
        %v3649 = vunpack.c.h.b16 %v3307
        %v3650 = vunpack.c.l.b16 %v3308
        %v3651 = vunpack.c.h.b16 %v3308
        %v3652 = vunpack.c.l.b16 %v3309
        %v3653 = vunpack.c.h.b16 %v3309
        %v3654 = vunpack.c.l.b16 %v3310
        %v3655 = vunpack.c.h.b16 %v3310
        %v3656 = vunpack.c.l.b16 %v3311
        %v3657 = vunpack.c.h.b16 %v3311
        %v3658 = vunpack.c.l.b16 %v3312
        %v3659 = vunpack.c.h.b16 %v3312
        %v3660 = vunpack.c.l.b16 %v3313
        %v3661 = vunpack.c.h.b16 %v3313
        %v3662 = vunpack.c.l.b16 %v3314
        %v3663 = vunpack.c.h.b16 %v3314
        %v3664 = vunpack.c.l.b16 %v3315
        %v3665 = vunpack.c.h.b16 %v3315
        %v3666 = vunpack.c.l.b16 %v3316
        %v3667 = vunpack.c.h.b16 %v3316
        %v3668 = vunpack.c.l.b16 %v3317
        %v3669 = vunpack.c.h.b16 %v3317
        %v3670 = vunpack.c.l.b16 %v3318
        %v3671 = vunpack.c.h.b16 %v3318
        %v3672 = vunpack.c.l.b16 %v3319
        %v3673 = vunpack.c.h.b16 %v3319
        %v3674 = vunpack.c.l.b16 %v3320
        %v3675 = vunpack.c.h.b16 %v3320
        %v3676 = vunpack.c.l.b16 %v3321
        %v3677 = vunpack.c.h.b16 %v3321
        %v3678 = vunpack.c.l.b16 %v3322
        %v3679 = vunpack.c.h.b16 %v3322
        %v3680 = vunpack.c.l.b16 %v3323
        %v3681 = vunpack.c.h.b16 %v3323
        %v3682 = vunpack.c.l.b16 %v3324
        %v3683 = vunpack.c.h.b16 %v3324
        %v3684 = vunpack.c.l.b16 %v3325
        %v3685 = vunpack.c.h.b16 %v3325
        %v3686 = vunpack.c.l.b16 %v3326
        %v3687 = vunpack.c.h.b16 %v3326
        %v3688 = vunpack.c.l.b16 %v3327
        %v3689 = vunpack.c.h.b16 %v3327
        %v3690 = vunpack.c.l.b16 %v3328
        %v3691 = vunpack.c.h.b16 %v3328
        %v3692 = vunpack.c.l.b16 %v3329
        %v3693 = vunpack.c.h.b16 %v3329
        %v3694 = vunpack.c.l.b16 %v3330
        %v3695 = vunpack.c.h.b16 %v3330
        %v3696 = vunpack.c.l.b16 %v3331
        %v3697 = vunpack.c.h.b16 %v3331
        %v3698 = vunpack.c.l.b16 %v3332
        %v3699 = vunpack.c.h.b16 %v3332
        %v3700 = vunpack.c.l.b16 %v3333
        %v3701 = vunpack.c.h.b16 %v3333
        %v3702 = vunpack.c.l.b16 %v3334
        %v3703 = vunpack.c.h.b16 %v3334
        %v3704 = vunpack.c.l.b16 %v3335
        %v3705 = vunpack.c.h.b16 %v3335
        %v3706 = vunpack.c.l.b16 %v3336
        %v3707 = vunpack.c.h.b16 %v3336
        %v3708 = vunpack.c.l.b16 %v3337
        %v3709 = vunpack.c.h.b16 %v3337
        %v3710 = vunpack.c.l.b16 %v3338
        %v3711 = vunpack.c.h.b16 %v3338
        %v3712 = vunpack.c.l.b16 %v3339
        %v3713 = vunpack.c.h.b16 %v3339
        %v3714 = vunpack.c.l.b16 %v3340
        %v3715 = vunpack.c.h.b16 %v3340
        %v3716 = vunpack.c.l.b16 %v3341
        %v3717 = vunpack.c.h.b16 %v3341
        %v3718 = vunpack.c.l.b16 %v3342
        %v3719 = vunpack.c.h.b16 %v3342
        %v3720 = vunpack.c.l.b16 %v3343
        %v3721 = vunpack.c.h.b16 %v3343
        %v3722 = vunpack.c.l.b16 %v3344
        %v3723 = vunpack.c.h.b16 %v3344
        %v3724 = vunpack.c.l.b16 %v3345
        %v3725 = vunpack.c.h.b16 %v3345
        %v3726 = vunpack.c.l.b16 %v3346
        %v3727 = vunpack.c.h.b16 %v3346
        %v3728 = vunpack.c.l.b16 %v3347
        %v3729 = vunpack.c.h.b16 %v3347
        %v3730 = vunpack.c.l.b16 %v3348
        %v3731 = vunpack.c.h.b16 %v3348
        %v3732 = vunpack.c.l.b16 %v3349
        %v3733 = vunpack.c.h.b16 %v3349
        %v3734 = vunpack.c.l.b16 %v3350
        %v3735 = vunpack.c.h.b16 %v3350
        %v3736 = vunpack.c.l.b16 %v3351
        %v3737 = vunpack.c.h.b16 %v3351
        %v3738 = vunpack.c.l.b16 %v3352
        %v3739 = vunpack.c.h.b16 %v3352
        %v3740 = vunpack.c.l.b16 %v3353
        %v3741 = vunpack.c.h.b16 %v3353
        %v3742 = vunpack.c.l.b16 %v3354
        %v3743 = vunpack.c.h.b16 %v3354
        %v3744 = vunpack.c.l.b16 %v3355
        %v3745 = vunpack.c.h.b16 %v3355
        %v3746 = vunpack.c.l.b16 %v3356
        %v3747 = vunpack.c.h.b16 %v3356
        %v3748 = vunpack.c.l.b16 %v3357
        %v3749 = vunpack.c.h.b16 %v3357
        %v3750 = vunpack.c.l.b16 %v3358
        %v3751 = vunpack.c.h.b16 %v3358
        %v3752 = vunpack.c.l.b16 %v3359
        %v3753 = vunpack.c.h.b16 %v3359
        %v3754 = vunpack.c.l.b16 %v3360
        %v3755 = vunpack.c.h.b16 %v3360
        %v3756 = vunpack.c.l.b16 %v3361
        %v3757 = vunpack.c.h.b16 %v3361
        %v3758 = vunpack.c.l.b16 %v3362
        %v3759 = vunpack.c.h.b16 %v3362
        %v3760 = vunpack.c.l.b16 %v3363
        %v3761 = vunpack.c.h.b16 %v3363
        %v3762 = vunpack.c.l.b16 %v3364
        %v3763 = vunpack.c.h.b16 %v3364
        %v3764 = vunpack.c.l.b16 %v3365
        %v3765 = vunpack.c.h.b16 %v3365
        %v3766 = vunpack.c.l.b16 %v3366
        %v3767 = vunpack.c.h.b16 %v3366
        %v3768 = vunpack.c.l.b16 %v3367
        %v3769 = vunpack.c.h.b16 %v3367
        %v3770 = vunpack.c.l.b16 %v3368
        %v3771 = vunpack.c.h.b16 %v3368
        %v3772 = vunpack.c.l.b16 %v3369
        %v3773 = vunpack.c.h.b16 %v3369
        %v3774 = vunpack.c.l.b16 %v3370
        %v3775 = vunpack.c.h.b16 %v3370
        %v3776 = vunpack.c.l.b16 %v3371
        %v3777 = vunpack.c.h.b16 %v3371
        %v3778 = vunpack.c.l.b16 %v3372
        %v3779 = vunpack.c.h.b16 %v3372
        %v3780 = vunpack.c.l.b16 %v3373
        %v3781 = vunpack.c.h.b16 %v3373
        %v3782 = vunpack.c.l.b16 %v3374
        %v3783 = vunpack.c.h.b16 %v3374
        %v3784 = vunpack.c.l.b16 %v3375
        %v3785 = vunpack.c.h.b16 %v3375
        %v3786 = vunpack.c.l.b16 %v3376
        %v3787 = vunpack.c.h.b16 %v3376
        %v3788 = vunpack.c.l.b16 %v3377
        %v3789 = vunpack.c.h.b16 %v3377
        %v3790 = vunpack.c.l.b16 %v3378
        %v3791 = vunpack.c.h.b16 %v3378
        %v3792 = vunpack.c.l.b16 %v3379
        %v3793 = vunpack.c.h.b16 %v3379
        %v3794 = vunpack.c.l.b16 %v3380
        %v3795 = vunpack.c.h.b16 %v3380
        %v3796 = vunpack.c.l.b16 %v3381
        %v3797 = vunpack.c.h.b16 %v3381
        %v3798 = vunpack.c.l.b16 %v3382
        %v3799 = vunpack.c.h.b16 %v3382
        %v3800 = vunpack.c.l.b16 %v3383
        %v3801 = vunpack.c.h.b16 %v3383
        %v3802 = vunpack.c.l.b16 %v3384
        %v3803 = vunpack.c.h.b16 %v3384
        %v3804 = vunpack.c.l.b16 %v3385
        %v3805 = vunpack.c.h.b16 %v3385
        %v3806 = vunpack.c.l.b16 %v3386
        %v3807 = vunpack.c.h.b16 %v3386
        %v3808 = vunpack.c.l.b16 %v3387
        %v3809 = vunpack.c.h.b16 %v3387
        %v3810 = vunpack.c.l.b16 %v3388
        %v3811 = vunpack.c.h.b16 %v3388
        %v3812 = vunpack.c.l.b16 %v3389
        %v3813 = vunpack.c.h.b16 %v3389
        %v3814 = vunpack.c.l.b16 %v3390
        %v3815 = vunpack.c.h.b16 %v3390
        %v3816 = vunpack.c.l.b16 %v3391
        %v3817 = vunpack.c.h.b16 %v3391
        %v3818 = vpack.c.b16 %v3570, %v3562
        %v3819 = vpack.c.b16 %v3571, %v3563
        %v3820 = vpack.c.b16 %v3572, %v3564
        %v3821 = vpack.c.b16 %v3573, %v3565
        %v3822 = vpack.c.b16 %v3574, %v3566
        %v3823 = vpack.c.b16 %v3575, %v3567
        %v3824 = vpack.c.b16 %v3576, %v3568
        %v3825 = vpack.c.b16 %v3577, %v3569
        %v3826 = vpack.c.b16 %v3586, %v3578
        %v3827 = vpack.c.b16 %v3587, %v3579
        %v3828 = vpack.c.b16 %v3588, %v3580
        %v3829 = vpack.c.b16 %v3589, %v3581
        %v3830 = vpack.c.b16 %v3590, %v3582
        %v3831 = vpack.c.b16 %v3591, %v3583
        %v3832 = vpack.c.b16 %v3592, %v3584
        %v3833 = vpack.c.b16 %v3593, %v3585
        %v3834 = vpack.c.b16 %v3602, %v3594
        %v3835 = vpack.c.b16 %v3603, %v3595
        %v3836 = vpack.c.b16 %v3604, %v3596
        %v3837 = vpack.c.b16 %v3605, %v3597
        %v3838 = vpack.c.b16 %v3606, %v3598
        %v3839 = vpack.c.b16 %v3607, %v3599
        %v3840 = vpack.c.b16 %v3608, %v3600
        %v3841 = vpack.c.b16 %v3609, %v3601
        %v3842 = vpack.c.b16 %v3618, %v3610
        %v3843 = vpack.c.b16 %v3619, %v3611
        %v3844 = vpack.c.b16 %v3620, %v3612
        %v3845 = vpack.c.b16 %v3621, %v3613
        %v3846 = vpack.c.b16 %v3622, %v3614
        %v3847 = vpack.c.b16 %v3623, %v3615
        %v3848 = vpack.c.b16 %v3624, %v3616
        %v3849 = vpack.c.b16 %v3625, %v3617
        %v3850 = vpack.c.b16 %v3634, %v3626
        %v3851 = vpack.c.b16 %v3635, %v3627
        %v3852 = vpack.c.b16 %v3636, %v3628
        %v3853 = vpack.c.b16 %v3637, %v3629
        %v3854 = vpack.c.b16 %v3638, %v3630
        %v3855 = vpack.c.b16 %v3639, %v3631
        %v3856 = vpack.c.b16 %v3640, %v3632
        %v3857 = vpack.c.b16 %v3641, %v3633
        %v3858 = vpack.c.b16 %v3650, %v3642
        %v3859 = vpack.c.b16 %v3651, %v3643
        %v3860 = vpack.c.b16 %v3652, %v3644
        %v3861 = vpack.c.b16 %v3653, %v3645
        %v3862 = vpack.c.b16 %v3654, %v3646
        %v3863 = vpack.c.b16 %v3655, %v3647
        %v3864 = vpack.c.b16 %v3656, %v3648
        %v3865 = vpack.c.b16 %v3657, %v3649
        %v3866 = vpack.c.b16 %v3666, %v3658
        %v3867 = vpack.c.b16 %v3667, %v3659
        %v3868 = vpack.c.b16 %v3668, %v3660
        %v3869 = vpack.c.b16 %v3669, %v3661
        %v3870 = vpack.c.b16 %v3670, %v3662
        %v3871 = vpack.c.b16 %v3671, %v3663
        %v3872 = vpack.c.b16 %v3672, %v3664
        %v3873 = vpack.c.b16 %v3673, %v3665
        %v3874 = vpack.c.b16 %v3682, %v3674
        %v3875 = vpack.c.b16 %v3683, %v3675
        %v3876 = vpack.c.b16 %v3684, %v3676
        %v3877 = vpack.c.b16 %v3685, %v3677
        %v3878 = vpack.c.b16 %v3686, %v3678
        %v3879 = vpack.c.b16 %v3687, %v3679
        %v3880 = vpack.c.b16 %v3688, %v3680
        %v3881 = vpack.c.b16 %v3689, %v3681
        %v3882 = vpack.c.b16 %v3698, %v3690
        %v3883 = vpack.c.b16 %v3699, %v3691
        %v3884 = vpack.c.b16 %v3700, %v3692
        %v3885 = vpack.c.b16 %v3701, %v3693
        %v3886 = vpack.c.b16 %v3702, %v3694
        %v3887 = vpack.c.b16 %v3703, %v3695
        %v3888 = vpack.c.b16 %v3704, %v3696
        %v3889 = vpack.c.b16 %v3705, %v3697
        %v3890 = vpack.c.b16 %v3714, %v3706
        %v3891 = vpack.c.b16 %v3715, %v3707
        %v3892 = vpack.c.b16 %v3716, %v3708
        %v3893 = vpack.c.b16 %v3717, %v3709
        %v3894 = vpack.c.b16 %v3718, %v3710
        %v3895 = vpack.c.b16 %v3719, %v3711
        %v3896 = vpack.c.b16 %v3720, %v3712
        %v3897 = vpack.c.b16 %v3721, %v3713
        %v3898 = vpack.c.b16 %v3730, %v3722
        %v3899 = vpack.c.b16 %v3731, %v3723
        %v3900 = vpack.c.b16 %v3732, %v3724
        %v3901 = vpack.c.b16 %v3733, %v3725
        %v3902 = vpack.c.b16 %v3734, %v3726
        %v3903 = vpack.c.b16 %v3735, %v3727
        %v3904 = vpack.c.b16 %v3736, %v3728
        %v3905 = vpack.c.b16 %v3737, %v3729
        %v3906 = vpack.c.b16 %v3746, %v3738
        %v3907 = vpack.c.b16 %v3747, %v3739
        %v3908 = vpack.c.b16 %v3748, %v3740
        %v3909 = vpack.c.b16 %v3749, %v3741
        %v3910 = vpack.c.b16 %v3750, %v3742
        %v3911 = vpack.c.b16 %v3751, %v3743
        %v3912 = vpack.c.b16 %v3752, %v3744
        %v3913 = vpack.c.b16 %v3753, %v3745
        %v3914 = vpack.c.b16 %v3762, %v3754
        %v3915 = vpack.c.b16 %v3763, %v3755
        %v3916 = vpack.c.b16 %v3764, %v3756
        %v3917 = vpack.c.b16 %v3765, %v3757
        %v3918 = vpack.c.b16 %v3766, %v3758
        %v3919 = vpack.c.b16 %v3767, %v3759
        %v3920 = vpack.c.b16 %v3768, %v3760
        %v3921 = vpack.c.b16 %v3769, %v3761
        %v3922 = vpack.c.b16 %v3778, %v3770
        %v3923 = vpack.c.b16 %v3779, %v3771
        %v3924 = vpack.c.b16 %v3780, %v3772
        %v3925 = vpack.c.b16 %v3781, %v3773
        %v3926 = vpack.c.b16 %v3782, %v3774
        %v3927 = vpack.c.b16 %v3783, %v3775
        %v3928 = vpack.c.b16 %v3784, %v3776
        %v3929 = vpack.c.b16 %v3785, %v3777
        %v3930 = vpack.c.b16 %v3794, %v3786
        %v3931 = vpack.c.b16 %v3795, %v3787
        %v3932 = vpack.c.b16 %v3796, %v3788
        %v3933 = vpack.c.b16 %v3797, %v3789
        %v3934 = vpack.c.b16 %v3798, %v3790
        %v3935 = vpack.c.b16 %v3799, %v3791
        %v3936 = vpack.c.b16 %v3800, %v3792
        %v3937 = vpack.c.b16 %v3801, %v3793
        %v3938 = vpack.c.b16 %v3810, %v3802
        %v3939 = vpack.c.b16 %v3811, %v3803
        %v3940 = vpack.c.b16 %v3812, %v3804
        %v3941 = vpack.c.b16 %v3813, %v3805
        %v3942 = vpack.c.b16 %v3814, %v3806
        %v3943 = vpack.c.b16 %v3815, %v3807
        %v3944 = vpack.c.b16 %v3816, %v3808
        %v3945 = vpack.c.b16 %v3817, %v3809
        %4074 = vmatprep.subr.bf16.mxu0 %v3875
        %4075 = vmatpush1.bf16.msra.mxu0 %v3874
        %4076 = vmatprep.subr.bf16.mxu0 %v3867
        %4077 = vmatpush1.bf16.msra.mxu0 %v3866
        %4078 = vmatprep.subr.bf16.mxu0 %v3859
        %4079 = vmatpush1.bf16.msra.mxu0 %v3858
        %4080 = vmatprep.subr.bf16.mxu0 %v3851
        %4081 = vmatpush1.bf16.msra.mxu0 %v3850
        %4082 = vmatprep.subr.bf16.mxu0 %v3843
        %4083 = vmatpush1.bf16.msra.mxu0 %v3842
        %4084 = vmatprep.subr.bf16.mxu0 %v3835
        %4085 = vmatpush1.bf16.msra.mxu0 %v3834
        %4086 = vmatprep.subr.bf16.mxu0 %v3827
        %4087 = vmatpush1.bf16.msra.mxu0 %v3826
        %4088 = vmatprep.subr.bf16.mxu0 %v3819
        %4089 = vmatpush1.bf16.msra.mxu0 %v3818
        %4090 = vmatprep.subr.bf16.mxu0 %v3939
        %4091 = vmatpush2.bf16.msra.mxu0 %v3938
        %4092 = vmatprep.subr.bf16.mxu0 %v3931
        %4093 = vmatpush2.bf16.msra.mxu0 %v3930
        %4094 = vmatprep.subr.bf16.mxu0 %v3923
        %4095 = vmatpush2.bf16.msra.mxu0 %v3922
        %4096 = vmatprep.subr.bf16.mxu0 %v3915
        %4097 = vmatpush2.bf16.msra.mxu0 %v3914
        %4098 = vmatprep.subr.bf16.mxu0 %v3907
        %4099 = vmatpush2.bf16.msra.mxu0 %v3906
        %4100 = vmatprep.subr.bf16.mxu0 %v3899
        %4101 = vmatpush2.bf16.msra.mxu0 %v3898
        %4102 = vmatprep.subr.bf16.mxu0 %v3891
        %4103 = vmatpush2.bf16.msra.mxu0 %v3890
        %4104 = vmatprep.subr.bf16.mxu0 %v3883
        %4105 = vmatpush2.bf16.msra.mxu0 %v3882
        %4106 = vmatprep.mubr.bf16.mxu0 %v3249
        %4107 = vmatmul.mubr.bf16.gmra.mxu0 %v3248
        %v4108 = vpop.f32.mrf.mxu0
        %v4109 = vadd.f32 %v3397, %v4108
        %v4110 = vpop.f32.mrf.mxu0
        %v4111 = vadd.f32 %v3401, %v4110
        %v4112 = vpop.f32.mrf.mxu0
        %v4113 = vadd.f32 %v3397, %v4112
        %v4114 = vpop.f32.mrf.mxu0
        %v4115 = vadd.f32 %v3401, %v4114
        %4116 = vmatprep.mubr.bf16.mxu0 %v3251
        %4117 = vmatmul.mubr.bf16.gmra.mxu0 %v3250
        %v4118 = vpop.f32.mrf.mxu0
        %v4119 = vadd.f32 %v3397, %v4118
        %v4120 = vpop.f32.mrf.mxu0
        %v4121 = vadd.f32 %v3401, %v4120
        %v4122 = vpop.f32.mrf.mxu0
        %v4123 = vadd.f32 %v3397, %v4122
        %v4124 = vpop.f32.mrf.mxu0
        %v4125 = vadd.f32 %v3401, %v4124
        %4126 = vmatprep.mubr.bf16.mxu0 %v3253
        %4127 = vmatmul.mubr.bf16.gmra.mxu0 %v3252
        %v4128 = vpop.f32.mrf.mxu0
        %v4129 = vadd.f32 %v3397, %v4128
        %v4130 = vpop.f32.mrf.mxu0
        %v4131 = vadd.f32 %v3401, %v4130
        %v4132 = vpop.f32.mrf.mxu0
        %v4133 = vadd.f32 %v3397, %v4132
        %v4134 = vpop.f32.mrf.mxu0
        %v4135 = vadd.f32 %v3401, %v4134
        %4136 = vmatprep.mubr.bf16.mxu0 %v3255
        %4137 = vmatmul.mubr.bf16.gmra.mxu0 %v3254
        %v4138 = vpop.f32.mrf.mxu0
        %v4139 = vadd.f32 %v3397, %v4138
        %v4140 = vpop.f32.mrf.mxu0
        %v4141 = vadd.f32 %v3401, %v4140
        %v4142 = vpop.f32.mrf.mxu0
        %v4143 = vadd.f32 %v3397, %v4142
        %v4144 = vpop.f32.mrf.mxu0
        %v4145 = vadd.f32 %v3401, %v4144
        %4146 = vmatprep.mubr.bf16.mxu0 %v3257
        %4147 = vmatmul.mubr.bf16.gmra.mxu0 %v3256
        %v4148 = vpop.f32.mrf.mxu0
        %v4149 = vadd.f32 %v3397, %v4148
        %v4150 = vpop.f32.mrf.mxu0
        %v4151 = vadd.f32 %v3401, %v4150
        %v4152 = vpop.f32.mrf.mxu0
        %v4153 = vadd.f32 %v3397, %v4152
        %v4154 = vpop.f32.mrf.mxu0
        %v4155 = vadd.f32 %v3401, %v4154
        %4156 = vmatprep.mubr.bf16.mxu0 %v3259
        %4157 = vmatmul.mubr.bf16.gmra.mxu0 %v3258
        %v4158 = vpop.f32.mrf.mxu0
        %v4159 = vadd.f32 %v3397, %v4158
        %v4160 = vpop.f32.mrf.mxu0
        %v4161 = vadd.f32 %v3401, %v4160
        %v4162 = vpop.f32.mrf.mxu0
        %v4163 = vadd.f32 %v3397, %v4162
        %v4164 = vpop.f32.mrf.mxu0
        %v4165 = vadd.f32 %v3401, %v4164
        %4166 = vmatprep.mubr.bf16.mxu0 %v3261
        %4167 = vmatmul.mubr.bf16.gmra.mxu0 %v3260
        %v4168 = vpop.f32.mrf.mxu0
        %v4169 = vadd.f32 %v3397, %v4168
        %v4170 = vpop.f32.mrf.mxu0
        %v4171 = vadd.f32 %v3401, %v4170
        %v4172 = vpop.f32.mrf.mxu0
        %v4173 = vadd.f32 %v3397, %v4172
        %v4174 = vpop.f32.mrf.mxu0
        %v4175 = vadd.f32 %v3401, %v4174
        %4176 = vmatprep.mubr.bf16.mxu0 %v3263
        %4177 = vmatmul.mubr.bf16.gmra.mxu0 %v3262
        %v4178 = vpop.f32.mrf.mxu0
        %v4179 = vadd.f32 %v3397, %v4178
        %v4180 = vpop.f32.mrf.mxu0
        %v4181 = vadd.f32 %v3401, %v4180
        %v4182 = vpop.f32.mrf.mxu0
        %v4183 = vadd.f32 %v3397, %v4182
        %v4184 = vpop.f32.mrf.mxu0
        %v4185 = vadd.f32 %v3401, %v4184
        %4186 = vdwg.mxu0
        %4187 = vmatprep.subr.bf16.mxu0 %v3877
        %4188 = vmatpush1.bf16.msra.mxu0 %v3876
        %4189 = vmatprep.subr.bf16.mxu0 %v3869
        %4190 = vmatpush1.bf16.msra.mxu0 %v3868
        %4191 = vmatprep.subr.bf16.mxu0 %v3861
        %4192 = vmatpush1.bf16.msra.mxu0 %v3860
        %4193 = vmatprep.subr.bf16.mxu0 %v3853
        %4194 = vmatpush1.bf16.msra.mxu0 %v3852
        %4195 = vmatprep.subr.bf16.mxu0 %v3845
        %4196 = vmatpush1.bf16.msra.mxu0 %v3844
        %4197 = vmatprep.subr.bf16.mxu0 %v3837
        %4198 = vmatpush1.bf16.msra.mxu0 %v3836
        %4199 = vmatprep.subr.bf16.mxu0 %v3829
        %4200 = vmatpush1.bf16.msra.mxu0 %v3828
        %4201 = vmatprep.subr.bf16.mxu0 %v3821
        %4202 = vmatpush1.bf16.msra.mxu0 %v3820
        %4203 = vmatprep.subr.bf16.mxu0 %v3941
        %4204 = vmatpush2.bf16.msra.mxu0 %v3940
        %4205 = vmatprep.subr.bf16.mxu0 %v3933
        %4206 = vmatpush2.bf16.msra.mxu0 %v3932
        %4207 = vmatprep.subr.bf16.mxu0 %v3925
        %4208 = vmatpush2.bf16.msra.mxu0 %v3924
        %4209 = vmatprep.subr.bf16.mxu0 %v3917
        %4210 = vmatpush2.bf16.msra.mxu0 %v3916
        %4211 = vmatprep.subr.bf16.mxu0 %v3909
        %4212 = vmatpush2.bf16.msra.mxu0 %v3908
        %4213 = vmatprep.subr.bf16.mxu0 %v3901
        %4214 = vmatpush2.bf16.msra.mxu0 %v3900
        %4215 = vmatprep.subr.bf16.mxu0 %v3893
        %4216 = vmatpush2.bf16.msra.mxu0 %v3892
        %4217 = vmatprep.subr.bf16.mxu0 %v3885
        %4218 = vmatpush2.bf16.msra.mxu0 %v3884
        %4219 = vmatprep.mubr.bf16.mxu0 %v3249
        %4220 = vmatmul.mubr.bf16.gmra.mxu0 %v3248
        %v4221 = vpop.f32.mrf.mxu0
        %v4222 = vadd.f32 %v3405, %v4221
        %v4223 = vpop.f32.mrf.mxu0
        %v4224 = vadd.f32 %v3409, %v4223
        %v4225 = vpop.f32.mrf.mxu0
        %v4226 = vadd.f32 %v3405, %v4225
        %v4227 = vpop.f32.mrf.mxu0
        %v4228 = vadd.f32 %v3409, %v4227
        %4229 = vmatprep.mubr.bf16.mxu0 %v3251
        %4230 = vmatmul.mubr.bf16.gmra.mxu0 %v3250
        %v4231 = vpop.f32.mrf.mxu0
        %v4232 = vadd.f32 %v3405, %v4231
        %v4233 = vpop.f32.mrf.mxu0
        %v4234 = vadd.f32 %v3409, %v4233
        %v4235 = vpop.f32.mrf.mxu0
        %v4236 = vadd.f32 %v3405, %v4235
        %v4237 = vpop.f32.mrf.mxu0
        %v4238 = vadd.f32 %v3409, %v4237
        %4239 = vmatprep.mubr.bf16.mxu0 %v3253
        %4240 = vmatmul.mubr.bf16.gmra.mxu0 %v3252
        %v4241 = vpop.f32.mrf.mxu0
        %v4242 = vadd.f32 %v3405, %v4241
        %v4243 = vpop.f32.mrf.mxu0
        %v4244 = vadd.f32 %v3409, %v4243
        %v4245 = vpop.f32.mrf.mxu0
        %v4246 = vadd.f32 %v3405, %v4245
        %v4247 = vpop.f32.mrf.mxu0
        %v4248 = vadd.f32 %v3409, %v4247
        %4249 = vmatprep.mubr.bf16.mxu0 %v3255
        %4250 = vmatmul.mubr.bf16.gmra.mxu0 %v3254
        %v4251 = vpop.f32.mrf.mxu0
        %v4252 = vadd.f32 %v3405, %v4251
        %v4253 = vpop.f32.mrf.mxu0
        %v4254 = vadd.f32 %v3409, %v4253
        %v4255 = vpop.f32.mrf.mxu0
        %v4256 = vadd.f32 %v3405, %v4255
        %v4257 = vpop.f32.mrf.mxu0
        %v4258 = vadd.f32 %v3409, %v4257
        %4259 = vmatprep.mubr.bf16.mxu0 %v3257
        %4260 = vmatmul.mubr.bf16.gmra.mxu0 %v3256
        %v4261 = vpop.f32.mrf.mxu0
        %v4262 = vadd.f32 %v3405, %v4261
        %v4263 = vpop.f32.mrf.mxu0
        %v4264 = vadd.f32 %v3409, %v4263
        %v4265 = vpop.f32.mrf.mxu0
        %v4266 = vadd.f32 %v3405, %v4265
        %v4267 = vpop.f32.mrf.mxu0
        %v4268 = vadd.f32 %v3409, %v4267
        %4269 = vmatprep.mubr.bf16.mxu0 %v3259
        %4270 = vmatmul.mubr.bf16.gmra.mxu0 %v3258
        %v4271 = vpop.f32.mrf.mxu0
        %v4272 = vadd.f32 %v3405, %v4271
        %v4273 = vpop.f32.mrf.mxu0
        %v4274 = vadd.f32 %v3409, %v4273
        %v4275 = vpop.f32.mrf.mxu0
        %v4276 = vadd.f32 %v3405, %v4275
        %v4277 = vpop.f32.mrf.mxu0
        %v4278 = vadd.f32 %v3409, %v4277
        %4279 = vmatprep.mubr.bf16.mxu0 %v3261
        %4280 = vmatmul.mubr.bf16.gmra.mxu0 %v3260
        %v4281 = vpop.f32.mrf.mxu0
        %v4282 = vadd.f32 %v3405, %v4281
        %v4283 = vpop.f32.mrf.mxu0
        %v4284 = vadd.f32 %v3409, %v4283
        %v4285 = vpop.f32.mrf.mxu0
        %v4286 = vadd.f32 %v3405, %v4285
        %v4287 = vpop.f32.mrf.mxu0
        %v4288 = vadd.f32 %v3409, %v4287
        %4289 = vmatprep.mubr.bf16.mxu0 %v3263
        %4290 = vmatmul.mubr.bf16.gmra.mxu0 %v3262
        %v4291 = vpop.f32.mrf.mxu0
        %v4292 = vadd.f32 %v3405, %v4291
        %v4293 = vpop.f32.mrf.mxu0
        %v4294 = vadd.f32 %v3409, %v4293
        %v4295 = vpop.f32.mrf.mxu0
        %v4296 = vadd.f32 %v3405, %v4295
        %v4297 = vpop.f32.mrf.mxu0
        %v4298 = vadd.f32 %v3409, %v4297
        %4299 = vdwg.mxu0
        %4300 = vmatprep.subr.bf16.mxu0 %v3879
        %4301 = vmatpush1.bf16.msra.mxu0 %v3878
        %4302 = vmatprep.subr.bf16.mxu0 %v3871
        %4303 = vmatpush1.bf16.msra.mxu0 %v3870
        %4304 = vmatprep.subr.bf16.mxu0 %v3863
        %4305 = vmatpush1.bf16.msra.mxu0 %v3862
        %4306 = vmatprep.subr.bf16.mxu0 %v3855
        %4307 = vmatpush1.bf16.msra.mxu0 %v3854
        %4308 = vmatprep.subr.bf16.mxu0 %v3847
        %4309 = vmatpush1.bf16.msra.mxu0 %v3846
        %4310 = vmatprep.subr.bf16.mxu0 %v3839
        %4311 = vmatpush1.bf16.msra.mxu0 %v3838
        %4312 = vmatprep.subr.bf16.mxu0 %v3831
        %4313 = vmatpush1.bf16.msra.mxu0 %v3830
        %4314 = vmatprep.subr.bf16.mxu0 %v3823
        %4315 = vmatpush1.bf16.msra.mxu0 %v3822
        %4316 = vmatprep.subr.bf16.mxu0 %v3943
        %4317 = vmatpush2.bf16.msra.mxu0 %v3942
        %4318 = vmatprep.subr.bf16.mxu0 %v3935
        %4319 = vmatpush2.bf16.msra.mxu0 %v3934
        %4320 = vmatprep.subr.bf16.mxu0 %v3927
        %4321 = vmatpush2.bf16.msra.mxu0 %v3926
        %4322 = vmatprep.subr.bf16.mxu0 %v3919
        %4323 = vmatpush2.bf16.msra.mxu0 %v3918
        %4324 = vmatprep.subr.bf16.mxu0 %v3911
        %4325 = vmatpush2.bf16.msra.mxu0 %v3910
        %4326 = vmatprep.subr.bf16.mxu0 %v3903
        %4327 = vmatpush2.bf16.msra.mxu0 %v3902
        %4328 = vmatprep.subr.bf16.mxu0 %v3895
        %4329 = vmatpush2.bf16.msra.mxu0 %v3894
        %4330 = vmatprep.subr.bf16.mxu0 %v3887
        %4331 = vmatpush2.bf16.msra.mxu0 %v3886
        %4332 = vmatprep.mubr.bf16.mxu0 %v3249
        %4333 = vmatmul.mubr.bf16.gmra.mxu0 %v3248
        %v4334 = vpop.f32.mrf.mxu0
        %v4335 = vadd.f32 %v3413, %v4334
        %v4336 = vpop.f32.mrf.mxu0
        %v4337 = vadd.f32 %v3417, %v4336
        %v4338 = vpop.f32.mrf.mxu0
        %v4339 = vadd.f32 %v3413, %v4338
        %v4340 = vpop.f32.mrf.mxu0
        %v4341 = vadd.f32 %v3417, %v4340
        %4342 = vmatprep.mubr.bf16.mxu0 %v3251
        %4343 = vmatmul.mubr.bf16.gmra.mxu0 %v3250
        %v4344 = vpop.f32.mrf.mxu0
        %v4345 = vadd.f32 %v3413, %v4344
        %v4346 = vpop.f32.mrf.mxu0
        %v4347 = vadd.f32 %v3417, %v4346
        %v4348 = vpop.f32.mrf.mxu0
        %v4349 = vadd.f32 %v3413, %v4348
        %v4350 = vpop.f32.mrf.mxu0
        %v4351 = vadd.f32 %v3417, %v4350
        %4352 = vmatprep.mubr.bf16.mxu0 %v3253
        %4353 = vmatmul.mubr.bf16.gmra.mxu0 %v3252
        %v4354 = vpop.f32.mrf.mxu0
        %v4355 = vadd.f32 %v3413, %v4354
        %v4356 = vpop.f32.mrf.mxu0
        %v4357 = vadd.f32 %v3417, %v4356
        %v4358 = vpop.f32.mrf.mxu0
        %v4359 = vadd.f32 %v3413, %v4358
        %v4360 = vpop.f32.mrf.mxu0
        %v4361 = vadd.f32 %v3417, %v4360
        %4362 = vmatprep.mubr.bf16.mxu0 %v3255
        %4363 = vmatmul.mubr.bf16.gmra.mxu0 %v3254
        %v4364 = vpop.f32.mrf.mxu0
        %v4365 = vadd.f32 %v3413, %v4364
        %v4366 = vpop.f32.mrf.mxu0
        %v4367 = vadd.f32 %v3417, %v4366
        %v4368 = vpop.f32.mrf.mxu0
        %v4369 = vadd.f32 %v3413, %v4368
        %v4370 = vpop.f32.mrf.mxu0
        %v4371 = vadd.f32 %v3417, %v4370
        %4372 = vmatprep.mubr.bf16.mxu0 %v3257
        %4373 = vmatmul.mubr.bf16.gmra.mxu0 %v3256
        %v4374 = vpop.f32.mrf.mxu0
        %v4375 = vadd.f32 %v3413, %v4374
        %v4376 = vpop.f32.mrf.mxu0
        %v4377 = vadd.f32 %v3417, %v4376
        %v4378 = vpop.f32.mrf.mxu0
        %v4379 = vadd.f32 %v3413, %v4378
        %v4380 = vpop.f32.mrf.mxu0
        %v4381 = vadd.f32 %v3417, %v4380
        %4382 = vmatprep.mubr.bf16.mxu0 %v3259
        %4383 = vmatmul.mubr.bf16.gmra.mxu0 %v3258
        %v4384 = vpop.f32.mrf.mxu0
        %v4385 = vadd.f32 %v3413, %v4384
        %v4386 = vpop.f32.mrf.mxu0
        %v4387 = vadd.f32 %v3417, %v4386
        %v4388 = vpop.f32.mrf.mxu0
        %v4389 = vadd.f32 %v3413, %v4388
        %v4390 = vpop.f32.mrf.mxu0
        %v4391 = vadd.f32 %v3417, %v4390
        %4392 = vmatprep.mubr.bf16.mxu0 %v3261
        %4393 = vmatmul.mubr.bf16.gmra.mxu0 %v3260
        %v4394 = vpop.f32.mrf.mxu0
        %v4395 = vadd.f32 %v3413, %v4394
        %v4396 = vpop.f32.mrf.mxu0
        %v4397 = vadd.f32 %v3417, %v4396
        %v4398 = vpop.f32.mrf.mxu0
        %v4399 = vadd.f32 %v3413, %v4398
        %v4400 = vpop.f32.mrf.mxu0
        %v4401 = vadd.f32 %v3417, %v4400
        %4402 = vmatprep.mubr.bf16.mxu0 %v3263
        %4403 = vmatmul.mubr.bf16.gmra.mxu0 %v3262
        %v4404 = vpop.f32.mrf.mxu0
        %v4405 = vadd.f32 %v3413, %v4404
        %v4406 = vpop.f32.mrf.mxu0
        %v4407 = vadd.f32 %v3417, %v4406
        %v4408 = vpop.f32.mrf.mxu0
        %v4409 = vadd.f32 %v3413, %v4408
        %v4410 = vpop.f32.mrf.mxu0
        %v4411 = vadd.f32 %v3417, %v4410
        %4412 = vdwg.mxu0
        %4413 = vmatprep.subr.bf16.mxu0 %v3881
        %4414 = vmatpush1.bf16.msra.mxu0 %v3880
        %4415 = vmatprep.subr.bf16.mxu0 %v3873
        %4416 = vmatpush1.bf16.msra.mxu0 %v3872
        %4417 = vmatprep.subr.bf16.mxu0 %v3865
        %4418 = vmatpush1.bf16.msra.mxu0 %v3864
        %4419 = vmatprep.subr.bf16.mxu0 %v3857
        %4420 = vmatpush1.bf16.msra.mxu0 %v3856
        %4421 = vmatprep.subr.bf16.mxu0 %v3849
        %4422 = vmatpush1.bf16.msra.mxu0 %v3848
        %4423 = vmatprep.subr.bf16.mxu0 %v3841
        %4424 = vmatpush1.bf16.msra.mxu0 %v3840
        %4425 = vmatprep.subr.bf16.mxu0 %v3833
        %4426 = vmatpush1.bf16.msra.mxu0 %v3832
        %4427 = vmatprep.subr.bf16.mxu0 %v3825
        %4428 = vmatpush1.bf16.msra.mxu0 %v3824
        %4429 = vmatprep.subr.bf16.mxu0 %v3945
        %4430 = vmatpush2.bf16.msra.mxu0 %v3944
        %4431 = vmatprep.subr.bf16.mxu0 %v3937
        %4432 = vmatpush2.bf16.msra.mxu0 %v3936
        %4433 = vmatprep.subr.bf16.mxu0 %v3929
        %4434 = vmatpush2.bf16.msra.mxu0 %v3928
        %4435 = vmatprep.subr.bf16.mxu0 %v3921
        %4436 = vmatpush2.bf16.msra.mxu0 %v3920
        %4437 = vmatprep.subr.bf16.mxu0 %v3913
        %4438 = vmatpush2.bf16.msra.mxu0 %v3912
        %4439 = vmatprep.subr.bf16.mxu0 %v3905
        %4440 = vmatpush2.bf16.msra.mxu0 %v3904
        %4441 = vmatprep.subr.bf16.mxu0 %v3897
        %4442 = vmatpush2.bf16.msra.mxu0 %v3896
        %4443 = vmatprep.subr.bf16.mxu0 %v3889
        %4444 = vmatpush2.bf16.msra.mxu0 %v3888
        %4445 = vmatprep.mubr.bf16.mxu0 %v3249
        %4446 = vmatmul.mubr.bf16.gmra.mxu0 %v3248
        %v4447 = vpop.f32.mrf.mxu0
        %v4448 = vadd.f32 %v3421, %v4447
        %v4449 = vpop.f32.mrf.mxu0
        %v4450 = vadd.f32 %v3425, %v4449
        %v4451 = vpop.f32.mrf.mxu0
        %v4452 = vadd.f32 %v3421, %v4451
        %v4453 = vpop.f32.mrf.mxu0
        %v4454 = vadd.f32 %v3425, %v4453
        %4455 = vmatprep.mubr.bf16.mxu0 %v3251
        %4456 = vmatmul.mubr.bf16.gmra.mxu0 %v3250
        %v4457 = vpop.f32.mrf.mxu0
        %v4458 = vadd.f32 %v3421, %v4457
        %v4459 = vpop.f32.mrf.mxu0
        %v4460 = vadd.f32 %v3425, %v4459
        %v4461 = vpop.f32.mrf.mxu0
        %v4462 = vadd.f32 %v3421, %v4461
        %v4463 = vpop.f32.mrf.mxu0
        %v4464 = vadd.f32 %v3425, %v4463
        %4465 = vmatprep.mubr.bf16.mxu0 %v3253
        %4466 = vmatmul.mubr.bf16.gmra.mxu0 %v3252
        %v4467 = vpop.f32.mrf.mxu0
        %v4468 = vadd.f32 %v3421, %v4467
        %v4469 = vpop.f32.mrf.mxu0
        %v4470 = vadd.f32 %v3425, %v4469
        %v4471 = vpop.f32.mrf.mxu0
        %v4472 = vadd.f32 %v3421, %v4471
        %v4473 = vpop.f32.mrf.mxu0
        %v4474 = vadd.f32 %v3425, %v4473
        %4475 = vmatprep.mubr.bf16.mxu0 %v3255
        %4476 = vmatmul.mubr.bf16.gmra.mxu0 %v3254
        %v4477 = vpop.f32.mrf.mxu0
        %v4478 = vadd.f32 %v3421, %v4477
        %v4479 = vpop.f32.mrf.mxu0
        %v4480 = vadd.f32 %v3425, %v4479
        %v4481 = vpop.f32.mrf.mxu0
        %v4482 = vadd.f32 %v3421, %v4481
        %v4483 = vpop.f32.mrf.mxu0
        %v4484 = vadd.f32 %v3425, %v4483
        %4485 = vmatprep.mubr.bf16.mxu0 %v3257
        %4486 = vmatmul.mubr.bf16.gmra.mxu0 %v3256
        %v4487 = vpop.f32.mrf.mxu0
        %v4488 = vadd.f32 %v3421, %v4487
        %v4489 = vpop.f32.mrf.mxu0
        %v4490 = vadd.f32 %v3425, %v4489
        %v4491 = vpop.f32.mrf.mxu0
        %v4492 = vadd.f32 %v3421, %v4491
        %v4493 = vpop.f32.mrf.mxu0
        %v4494 = vadd.f32 %v3425, %v4493
        %4495 = vmatprep.mubr.bf16.mxu0 %v3259
        %4496 = vmatmul.mubr.bf16.gmra.mxu0 %v3258
        %v4497 = vpop.f32.mrf.mxu0
        %v4498 = vadd.f32 %v3421, %v4497
        %v4499 = vpop.f32.mrf.mxu0
        %v4500 = vadd.f32 %v3425, %v4499
        %v4501 = vpop.f32.mrf.mxu0
        %v4502 = vadd.f32 %v3421, %v4501
        %v4503 = vpop.f32.mrf.mxu0
        %v4504 = vadd.f32 %v3425, %v4503
        %4505 = vmatprep.mubr.bf16.mxu0 %v3261
        %4506 = vmatmul.mubr.bf16.gmra.mxu0 %v3260
        %v4507 = vpop.f32.mrf.mxu0
        %v4508 = vadd.f32 %v3421, %v4507
        %v4509 = vpop.f32.mrf.mxu0
        %v4510 = vadd.f32 %v3425, %v4509
        %v4511 = vpop.f32.mrf.mxu0
        %v4512 = vadd.f32 %v3421, %v4511
        %v4513 = vpop.f32.mrf.mxu0
        %v4514 = vadd.f32 %v3425, %v4513
        %4515 = vmatprep.mubr.bf16.mxu0 %v3263
        %4516 = vmatmul.mubr.bf16.gmra.mxu0 %v3262
        %v4517 = vpop.f32.mrf.mxu0
        %v4518 = vadd.f32 %v3421, %v4517
        %v4519 = vpop.f32.mrf.mxu0
        %v4520 = vadd.f32 %v3425, %v4519
        %v4521 = vpop.f32.mrf.mxu0
        %v4522 = vadd.f32 %v3421, %v4521
        %v4523 = vpop.f32.mrf.mxu0
        %v4524 = vadd.f32 %v3425, %v4523
        %4525 = vdwg.mxu0
        %v4526 = vmul.f32 %v4109, 0.5
        %v4527 = vmul.f32 %v4111, 0.5
        %v4528 = vmul.f32 %v4222, 0.5
        %v4529 = vmul.f32 %v4224, 0.5
        %v4530 = vmul.f32 %v4335, 0.5
        %v4531 = vmul.f32 %v4337, 0.5
        %v4532 = vmul.f32 %v4448, 0.5
        %v4533 = vmul.f32 %v4450, 0.5
        %v4534 = vmul.f32 %v4113, 0.5
        %v4535 = vmul.f32 %v4115, 0.5
        %v4536 = vmul.f32 %v4226, 0.5
        %v4537 = vmul.f32 %v4228, 0.5
        %v4538 = vmul.f32 %v4339, 0.5
        %v4539 = vmul.f32 %v4341, 0.5
        %v4540 = vmul.f32 %v4452, 0.5
        %v4541 = vmul.f32 %v4454, 0.5
        %v4542 = vmul.f32 %v4119, 0.5
        %v4543 = vmul.f32 %v4121, 0.5
        %v4544 = vmul.f32 %v4232, 0.5
        %v4545 = vmul.f32 %v4234, 0.5
        %v4546 = vmul.f32 %v4345, 0.5
        %v4547 = vmul.f32 %v4347, 0.5
        %v4548 = vmul.f32 %v4458, 0.5
        %v4549 = vmul.f32 %v4460, 0.5
        %v4550 = vmul.f32 %v4123, 0.5
        %v4551 = vmul.f32 %v4125, 0.5
        %v4552 = vmul.f32 %v4236, 0.5
        %v4553 = vmul.f32 %v4238, 0.5
        %v4554 = vmul.f32 %v4349, 0.5
        %v4555 = vmul.f32 %v4351, 0.5
        %v4556 = vmul.f32 %v4462, 0.5
        %v4557 = vmul.f32 %v4464, 0.5
        %v4558 = vmul.f32 %v4129, 0.5
        %v4559 = vmul.f32 %v4131, 0.5
        %v4560 = vmul.f32 %v4242, 0.5
        %v4561 = vmul.f32 %v4244, 0.5
        %v4562 = vmul.f32 %v4355, 0.5
        %v4563 = vmul.f32 %v4357, 0.5
        %v4564 = vmul.f32 %v4468, 0.5
        %v4565 = vmul.f32 %v4470, 0.5
        %v4566 = vmul.f32 %v4133, 0.5
        %v4567 = vmul.f32 %v4135, 0.5
        %v4568 = vmul.f32 %v4246, 0.5
        %v4569 = vmul.f32 %v4248, 0.5
        %v4570 = vmul.f32 %v4359, 0.5
        %v4571 = vmul.f32 %v4361, 0.5
        %v4572 = vmul.f32 %v4472, 0.5
        %v4573 = vmul.f32 %v4474, 0.5
        %v4574 = vmul.f32 %v4139, 0.5
        %v4575 = vmul.f32 %v4141, 0.5
        %v4576 = vmul.f32 %v4252, 0.5
        %v4577 = vmul.f32 %v4254, 0.5
        %v4578 = vmul.f32 %v4365, 0.5
        %v4579 = vmul.f32 %v4367, 0.5
        %v4580 = vmul.f32 %v4478, 0.5
        %v4581 = vmul.f32 %v4480, 0.5
        %v4582 = vmul.f32 %v4143, 0.5
        %v4583 = vmul.f32 %v4145, 0.5
        %v4584 = vmul.f32 %v4256, 0.5
        %v4585 = vmul.f32 %v4258, 0.5
        %v4586 = vmul.f32 %v4369, 0.5
        %v4587 = vmul.f32 %v4371, 0.5
        %v4588 = vmul.f32 %v4482, 0.5
        %v4589 = vmul.f32 %v4484, 0.5
        %v4590 = vmul.f32 %v4149, 0.5
        %v4591 = vmul.f32 %v4151, 0.5
        %v4592 = vmul.f32 %v4262, 0.5
        %v4593 = vmul.f32 %v4264, 0.5
        %v4594 = vmul.f32 %v4375, 0.5
        %v4595 = vmul.f32 %v4377, 0.5
        %v4596 = vmul.f32 %v4488, 0.5
        %v4597 = vmul.f32 %v4490, 0.5
        %v4598 = vmul.f32 %v4153, 0.5
        %v4599 = vmul.f32 %v4155, 0.5
        %v4600 = vmul.f32 %v4266, 0.5
        %v4601 = vmul.f32 %v4268, 0.5
        %v4602 = vmul.f32 %v4379, 0.5
        %v4603 = vmul.f32 %v4381, 0.5
        %v4604 = vmul.f32 %v4492, 0.5
        %v4605 = vmul.f32 %v4494, 0.5
        %v4606 = vmul.f32 %v4159, 0.5
        %v4607 = vmul.f32 %v4161, 0.5
        %v4608 = vmul.f32 %v4272, 0.5
        %v4609 = vmul.f32 %v4274, 0.5
        %v4610 = vmul.f32 %v4385, 0.5
        %v4611 = vmul.f32 %v4387, 0.5
        %v4612 = vmul.f32 %v4498, 0.5
        %v4613 = vmul.f32 %v4500, 0.5
        %v4614 = vmul.f32 %v4163, 0.5
        %v4615 = vmul.f32 %v4165, 0.5
        %v4616 = vmul.f32 %v4276, 0.5
        %v4617 = vmul.f32 %v4278, 0.5
        %v4618 = vmul.f32 %v4389, 0.5
        %v4619 = vmul.f32 %v4391, 0.5
        %v4620 = vmul.f32 %v4502, 0.5
        %v4621 = vmul.f32 %v4504, 0.5
        %v4622 = vmul.f32 %v4169, 0.5
        %v4623 = vmul.f32 %v4171, 0.5
        %v4624 = vmul.f32 %v4282, 0.5
        %v4625 = vmul.f32 %v4284, 0.5
        %v4626 = vmul.f32 %v4395, 0.5
        %v4627 = vmul.f32 %v4397, 0.5
        %v4628 = vmul.f32 %v4508, 0.5
        %v4629 = vmul.f32 %v4510, 0.5
        %v4630 = vmul.f32 %v4173, 0.5
        %v4631 = vmul.f32 %v4175, 0.5
        %v4632 = vmul.f32 %v4286, 0.5
        %v4633 = vmul.f32 %v4288, 0.5
        %v4634 = vmul.f32 %v4399, 0.5
        %v4635 = vmul.f32 %v4401, 0.5
        %v4636 = vmul.f32 %v4512, 0.5
        %v4637 = vmul.f32 %v4514, 0.5
        %v4638 = vmul.f32 %v4179, 0.5
        %v4639 = vmul.f32 %v4181, 0.5
        %v4640 = vmul.f32 %v4292, 0.5
        %v4641 = vmul.f32 %v4294, 0.5
        %v4642 = vmul.f32 %v4405, 0.5
        %v4643 = vmul.f32 %v4407, 0.5
        %v4644 = vmul.f32 %v4518, 0.5
        %v4645 = vmul.f32 %v4520, 0.5
        %v4646 = vmul.f32 %v4183, 0.5
        %v4647 = vmul.f32 %v4185, 0.5
        %v4648 = vmul.f32 %v4296, 0.5
        %v4649 = vmul.f32 %v4298, 0.5
        %v4650 = vmul.f32 %v4409, 0.5
        %v4651 = vmul.f32 %v4411, 0.5
        %v4652 = vmul.f32 %v4522, 0.5
        %v4653 = vmul.f32 %v4524, 0.5
        %v4654 = vmul.f32 %v4109, 0.044715
        %v4655 = vmul.f32 %v4111, 0.044715
        %v4656 = vmul.f32 %v4222, 0.044715
        %v4657 = vmul.f32 %v4224, 0.044715
        %v4658 = vmul.f32 %v4335, 0.044715
        %v4659 = vmul.f32 %v4337, 0.044715
        %v4660 = vmul.f32 %v4448, 0.044715
        %v4661 = vmul.f32 %v4450, 0.044715
        %v4662 = vmul.f32 %v4113, 0.044715
        %v4663 = vmul.f32 %v4115, 0.044715
        %v4664 = vmul.f32 %v4226, 0.044715
        %v4665 = vmul.f32 %v4228, 0.044715
        %v4666 = vmul.f32 %v4339, 0.044715
        %v4667 = vmul.f32 %v4341, 0.044715
        %v4668 = vmul.f32 %v4452, 0.044715
        %v4669 = vmul.f32 %v4454, 0.044715
        %v4670 = vmul.f32 %v4119, 0.044715
        %v4671 = vmul.f32 %v4121, 0.044715
        %v4672 = vmul.f32 %v4232, 0.044715
        %v4673 = vmul.f32 %v4234, 0.044715
        %v4674 = vmul.f32 %v4345, 0.044715
        %v4675 = vmul.f32 %v4347, 0.044715
        %v4676 = vmul.f32 %v4458, 0.044715
        %v4677 = vmul.f32 %v4460, 0.044715
        %v4678 = vmul.f32 %v4123, 0.044715
        %v4679 = vmul.f32 %v4125, 0.044715
        %v4680 = vmul.f32 %v4236, 0.044715
        %v4681 = vmul.f32 %v4238, 0.044715
        %v4682 = vmul.f32 %v4349, 0.044715
        %v4683 = vmul.f32 %v4351, 0.044715
        %v4684 = vmul.f32 %v4462, 0.044715
        %v4685 = vmul.f32 %v4464, 0.044715
        %v4686 = vmul.f32 %v4129, 0.044715
        %v4687 = vmul.f32 %v4131, 0.044715
        %v4688 = vmul.f32 %v4242, 0.044715
        %v4689 = vmul.f32 %v4244, 0.044715
        %v4690 = vmul.f32 %v4355, 0.044715
        %v4691 = vmul.f32 %v4357, 0.044715
        %v4692 = vmul.f32 %v4468, 0.044715
        %v4693 = vmul.f32 %v4470, 0.044715
        %v4694 = vmul.f32 %v4133, 0.044715
        %v4695 = vmul.f32 %v4135, 0.044715
        %v4696 = vmul.f32 %v4246, 0.044715
        %v4697 = vmul.f32 %v4248, 0.044715
        %v4698 = vmul.f32 %v4359, 0.044715
        %v4699 = vmul.f32 %v4361, 0.044715
        %v4700 = vmul.f32 %v4472, 0.044715
        %v4701 = vmul.f32 %v4474, 0.044715
        %v4702 = vmul.f32 %v4139, 0.044715
        %v4703 = vmul.f32 %v4141, 0.044715
        %v4704 = vmul.f32 %v4252, 0.044715
        %v4705 = vmul.f32 %v4254, 0.044715
        %v4706 = vmul.f32 %v4365, 0.044715
        %v4707 = vmul.f32 %v4367, 0.044715
        %v4708 = vmul.f32 %v4478, 0.044715
        %v4709 = vmul.f32 %v4480, 0.044715
        %v4710 = vmul.f32 %v4143, 0.044715
        %v4711 = vmul.f32 %v4145, 0.044715
        %v4712 = vmul.f32 %v4256, 0.044715
        %v4713 = vmul.f32 %v4258, 0.044715
        %v4714 = vmul.f32 %v4369, 0.044715
        %v4715 = vmul.f32 %v4371, 0.044715
        %v4716 = vmul.f32 %v4482, 0.044715
        %v4717 = vmul.f32 %v4484, 0.044715
        %v4718 = vmul.f32 %v4149, 0.044715
        %v4719 = vmul.f32 %v4151, 0.044715
        %v4720 = vmul.f32 %v4262, 0.044715
        %v4721 = vmul.f32 %v4264, 0.044715
        %v4722 = vmul.f32 %v4375, 0.044715
        %v4723 = vmul.f32 %v4377, 0.044715
        %v4724 = vmul.f32 %v4488, 0.044715
        %v4725 = vmul.f32 %v4490, 0.044715
        %v4726 = vmul.f32 %v4153, 0.044715
        %v4727 = vmul.f32 %v4155, 0.044715
        %v4728 = vmul.f32 %v4266, 0.044715
        %v4729 = vmul.f32 %v4268, 0.044715
        %v4730 = vmul.f32 %v4379, 0.044715
        %v4731 = vmul.f32 %v4381, 0.044715
        %v4732 = vmul.f32 %v4492, 0.044715
        %v4733 = vmul.f32 %v4494, 0.044715
        %v4734 = vmul.f32 %v4159, 0.044715
        %v4735 = vmul.f32 %v4161, 0.044715
        %v4736 = vmul.f32 %v4272, 0.044715
        %v4737 = vmul.f32 %v4274, 0.044715
        %v4738 = vmul.f32 %v4385, 0.044715
        %v4739 = vmul.f32 %v4387, 0.044715
        %v4740 = vmul.f32 %v4498, 0.044715
        %v4741 = vmul.f32 %v4500, 0.044715
        %v4742 = vmul.f32 %v4163, 0.044715
        %v4743 = vmul.f32 %v4165, 0.044715
        %v4744 = vmul.f32 %v4276, 0.044715
        %v4745 = vmul.f32 %v4278, 0.044715
        %v4746 = vmul.f32 %v4389, 0.044715
        %v4747 = vmul.f32 %v4391, 0.044715
        %v4748 = vmul.f32 %v4502, 0.044715
        %v4749 = vmul.f32 %v4504, 0.044715
        %v4750 = vmul.f32 %v4169, 0.044715
        %v4751 = vmul.f32 %v4171, 0.044715
        %v4752 = vmul.f32 %v4282, 0.044715
        %v4753 = vmul.f32 %v4284, 0.044715
        %v4754 = vmul.f32 %v4395, 0.044715
        %v4755 = vmul.f32 %v4397, 0.044715
        %v4756 = vmul.f32 %v4508, 0.044715
        %v4757 = vmul.f32 %v4510, 0.044715
        %v4758 = vmul.f32 %v4173, 0.044715
        %v4759 = vmul.f32 %v4175, 0.044715
        %v4760 = vmul.f32 %v4286, 0.044715
        %v4761 = vmul.f32 %v4288, 0.044715
        %v4762 = vmul.f32 %v4399, 0.044715
        %v4763 = vmul.f32 %v4401, 0.044715
        %v4764 = vmul.f32 %v4512, 0.044715
        %v4765 = vmul.f32 %v4514, 0.044715
        %v4766 = vmul.f32 %v4179, 0.044715
        %v4767 = vmul.f32 %v4181, 0.044715
        %v4768 = vmul.f32 %v4292, 0.044715
        %v4769 = vmul.f32 %v4294, 0.044715
        %v4770 = vmul.f32 %v4405, 0.044715
        %v4771 = vmul.f32 %v4407, 0.044715
        %v4772 = vmul.f32 %v4518, 0.044715
        %v4773 = vmul.f32 %v4520, 0.044715
        %v4774 = vmul.f32 %v4183, 0.044715
        %v4775 = vmul.f32 %v4185, 0.044715
        %v4776 = vmul.f32 %v4296, 0.044715
        %v4777 = vmul.f32 %v4298, 0.044715
        %v4778 = vmul.f32 %v4409, 0.044715
        %v4779 = vmul.f32 %v4411, 0.044715
        %v4780 = vmul.f32 %v4522, 0.044715
        %v4781 = vmul.f32 %v4524, 0.044715
        %v4782 = vmul.f32 %v4654, %v4109
        %v4783 = vmul.f32 %v4655, %v4111
        %v4784 = vmul.f32 %v4656, %v4222
        %v4785 = vmul.f32 %v4657, %v4224
        %v4786 = vmul.f32 %v4658, %v4335
        %v4787 = vmul.f32 %v4659, %v4337
        %v4788 = vmul.f32 %v4660, %v4448
        %v4789 = vmul.f32 %v4661, %v4450
        %v4790 = vmul.f32 %v4662, %v4113
        %v4791 = vmul.f32 %v4663, %v4115
        %v4792 = vmul.f32 %v4664, %v4226
        %v4793 = vmul.f32 %v4665, %v4228
        %v4794 = vmul.f32 %v4666, %v4339
        %v4795 = vmul.f32 %v4667, %v4341
        %v4796 = vmul.f32 %v4668, %v4452
        %v4797 = vmul.f32 %v4669, %v4454
        %v4798 = vmul.f32 %v4670, %v4119
        %v4799 = vmul.f32 %v4671, %v4121
        %v4800 = vmul.f32 %v4672, %v4232
        %v4801 = vmul.f32 %v4673, %v4234
        %v4802 = vmul.f32 %v4674, %v4345
        %v4803 = vmul.f32 %v4675, %v4347
        %v4804 = vmul.f32 %v4676, %v4458
        %v4805 = vmul.f32 %v4677, %v4460
        %v4806 = vmul.f32 %v4678, %v4123
        %v4807 = vmul.f32 %v4679, %v4125
        %v4808 = vmul.f32 %v4680, %v4236
        %v4809 = vmul.f32 %v4681, %v4238
        %v4810 = vmul.f32 %v4682, %v4349
        %v4811 = vmul.f32 %v4683, %v4351
        %v4812 = vmul.f32 %v4684, %v4462
        %v4813 = vmul.f32 %v4685, %v4464
        %v4814 = vmul.f32 %v4686, %v4129
        %v4815 = vmul.f32 %v4687, %v4131
        %v4816 = vmul.f32 %v4688, %v4242
        %v4817 = vmul.f32 %v4689, %v4244
        %v4818 = vmul.f32 %v4690, %v4355
        %v4819 = vmul.f32 %v4691, %v4357
        %v4820 = vmul.f32 %v4692, %v4468
        %v4821 = vmul.f32 %v4693, %v4470
        %v4822 = vmul.f32 %v4694, %v4133
        %v4823 = vmul.f32 %v4695, %v4135
        %v4824 = vmul.f32 %v4696, %v4246
        %v4825 = vmul.f32 %v4697, %v4248
        %v4826 = vmul.f32 %v4698, %v4359
        %v4827 = vmul.f32 %v4699, %v4361
        %v4828 = vmul.f32 %v4700, %v4472
        %v4829 = vmul.f32 %v4701, %v4474
        %v4830 = vmul.f32 %v4702, %v4139
        %v4831 = vmul.f32 %v4703, %v4141
        %v4832 = vmul.f32 %v4704, %v4252
        %v4833 = vmul.f32 %v4705, %v4254
        %v4834 = vmul.f32 %v4706, %v4365
        %v4835 = vmul.f32 %v4707, %v4367
        %v4836 = vmul.f32 %v4708, %v4478
        %v4837 = vmul.f32 %v4709, %v4480
        %v4838 = vmul.f32 %v4710, %v4143
        %v4839 = vmul.f32 %v4711, %v4145
        %v4840 = vmul.f32 %v4712, %v4256
        %v4841 = vmul.f32 %v4713, %v4258
        %v4842 = vmul.f32 %v4714, %v4369
        %v4843 = vmul.f32 %v4715, %v4371
        %v4844 = vmul.f32 %v4716, %v4482
        %v4845 = vmul.f32 %v4717, %v4484
        %v4846 = vmul.f32 %v4718, %v4149
        %v4847 = vmul.f32 %v4719, %v4151
        %v4848 = vmul.f32 %v4720, %v4262
        %v4849 = vmul.f32 %v4721, %v4264
        %v4850 = vmul.f32 %v4722, %v4375
        %v4851 = vmul.f32 %v4723, %v4377
        %v4852 = vmul.f32 %v4724, %v4488
        %v4853 = vmul.f32 %v4725, %v4490
        %v4854 = vmul.f32 %v4726, %v4153
        %v4855 = vmul.f32 %v4727, %v4155
        %v4856 = vmul.f32 %v4728, %v4266
        %v4857 = vmul.f32 %v4729, %v4268
        %v4858 = vmul.f32 %v4730, %v4379
        %v4859 = vmul.f32 %v4731, %v4381
        %v4860 = vmul.f32 %v4732, %v4492
        %v4861 = vmul.f32 %v4733, %v4494
        %v4862 = vmul.f32 %v4734, %v4159
        %v4863 = vmul.f32 %v4735, %v4161
        %v4864 = vmul.f32 %v4736, %v4272
        %v4865 = vmul.f32 %v4737, %v4274
        %v4866 = vmul.f32 %v4738, %v4385
        %v4867 = vmul.f32 %v4739, %v4387
        %v4868 = vmul.f32 %v4740, %v4498
        %v4869 = vmul.f32 %v4741, %v4500
        %v4870 = vmul.f32 %v4742, %v4163
        %v4871 = vmul.f32 %v4743, %v4165
        %v4872 = vmul.f32 %v4744, %v4276
        %v4873 = vmul.f32 %v4745, %v4278
        %v4874 = vmul.f32 %v4746, %v4389
        %v4875 = vmul.f32 %v4747, %v4391
        %v4876 = vmul.f32 %v4748, %v4502
        %v4877 = vmul.f32 %v4749, %v4504
        %v4878 = vmul.f32 %v4750, %v4169
        %v4879 = vmul.f32 %v4751, %v4171
        %v4880 = vmul.f32 %v4752, %v4282
        %v4881 = vmul.f32 %v4753, %v4284
        %v4882 = vmul.f32 %v4754, %v4395
        %v4883 = vmul.f32 %v4755, %v4397
        %v4884 = vmul.f32 %v4756, %v4508
        %v4885 = vmul.f32 %v4757, %v4510
        %v4886 = vmul.f32 %v4758, %v4173
        %v4887 = vmul.f32 %v4759, %v4175
        %v4888 = vmul.f32 %v4760, %v4286
        %v4889 = vmul.f32 %v4761, %v4288
        %v4890 = vmul.f32 %v4762, %v4399
        %v4891 = vmul.f32 %v4763, %v4401
        %v4892 = vmul.f32 %v4764, %v4512
        %v4893 = vmul.f32 %v4765, %v4514
        %v4894 = vmul.f32 %v4766, %v4179
        %v4895 = vmul.f32 %v4767, %v4181
        %v4896 = vmul.f32 %v4768, %v4292
        %v4897 = vmul.f32 %v4769, %v4294
        %v4898 = vmul.f32 %v4770, %v4405
        %v4899 = vmul.f32 %v4771, %v4407
        %v4900 = vmul.f32 %v4772, %v4518
        %v4901 = vmul.f32 %v4773, %v4520
        %v4902 = vmul.f32 %v4774, %v4183
        %v4903 = vmul.f32 %v4775, %v4185
        %v4904 = vmul.f32 %v4776, %v4296
        %v4905 = vmul.f32 %v4777, %v4298
        %v4906 = vmul.f32 %v4778, %v4409
        %v4907 = vmul.f32 %v4779, %v4411
        %v4908 = vmul.f32 %v4780, %v4522
        %v4909 = vmul.f32 %v4781, %v4524
        %v4910 = vmul.f32 %v4782, %v4109
        %v4911 = vmul.f32 %v4783, %v4111
        %v4912 = vmul.f32 %v4784, %v4222
        %v4913 = vmul.f32 %v4785, %v4224
        %v4914 = vmul.f32 %v4786, %v4335
        %v4915 = vmul.f32 %v4787, %v4337
        %v4916 = vmul.f32 %v4788, %v4448
        %v4917 = vmul.f32 %v4789, %v4450
        %v4918 = vmul.f32 %v4790, %v4113
        %v4919 = vmul.f32 %v4791, %v4115
        %v4920 = vmul.f32 %v4792, %v4226
        %v4921 = vmul.f32 %v4793, %v4228
        %v4922 = vmul.f32 %v4794, %v4339
        %v4923 = vmul.f32 %v4795, %v4341
        %v4924 = vmul.f32 %v4796, %v4452
        %v4925 = vmul.f32 %v4797, %v4454
        %v4926 = vmul.f32 %v4798, %v4119
        %v4927 = vmul.f32 %v4799, %v4121
        %v4928 = vmul.f32 %v4800, %v4232
        %v4929 = vmul.f32 %v4801, %v4234
        %v4930 = vmul.f32 %v4802, %v4345
        %v4931 = vmul.f32 %v4803, %v4347
        %v4932 = vmul.f32 %v4804, %v4458
        %v4933 = vmul.f32 %v4805, %v4460
        %v4934 = vmul.f32 %v4806, %v4123
        %v4935 = vmul.f32 %v4807, %v4125
        %v4936 = vmul.f32 %v4808, %v4236
        %v4937 = vmul.f32 %v4809, %v4238
        %v4938 = vmul.f32 %v4810, %v4349
        %v4939 = vmul.f32 %v4811, %v4351
        %v4940 = vmul.f32 %v4812, %v4462
        %v4941 = vmul.f32 %v4813, %v4464
        %v4942 = vmul.f32 %v4814, %v4129
        %v4943 = vmul.f32 %v4815, %v4131
        %v4944 = vmul.f32 %v4816, %v4242
        %v4945 = vmul.f32 %v4817, %v4244
        %v4946 = vmul.f32 %v4818, %v4355
        %v4947 = vmul.f32 %v4819, %v4357
        %v4948 = vmul.f32 %v4820, %v4468
        %v4949 = vmul.f32 %v4821, %v4470
        %v4950 = vmul.f32 %v4822, %v4133
        %v4951 = vmul.f32 %v4823, %v4135
        %v4952 = vmul.f32 %v4824, %v4246
        %v4953 = vmul.f32 %v4825, %v4248
        %v4954 = vmul.f32 %v4826, %v4359
        %v4955 = vmul.f32 %v4827, %v4361
        %v4956 = vmul.f32 %v4828, %v4472
        %v4957 = vmul.f32 %v4829, %v4474
        %v4958 = vmul.f32 %v4830, %v4139
        %v4959 = vmul.f32 %v4831, %v4141
        %v4960 = vmul.f32 %v4832, %v4252
        %v4961 = vmul.f32 %v4833, %v4254
        %v4962 = vmul.f32 %v4834, %v4365
        %v4963 = vmul.f32 %v4835, %v4367
        %v4964 = vmul.f32 %v4836, %v4478
        %v4965 = vmul.f32 %v4837, %v4480
        %v4966 = vmul.f32 %v4838, %v4143
        %v4967 = vmul.f32 %v4839, %v4145
        %v4968 = vmul.f32 %v4840, %v4256
        %v4969 = vmul.f32 %v4841, %v4258
        %v4970 = vmul.f32 %v4842, %v4369
        %v4971 = vmul.f32 %v4843, %v4371
        %v4972 = vmul.f32 %v4844, %v4482
        %v4973 = vmul.f32 %v4845, %v4484
        %v4974 = vmul.f32 %v4846, %v4149
        %v4975 = vmul.f32 %v4847, %v4151
        %v4976 = vmul.f32 %v4848, %v4262
        %v4977 = vmul.f32 %v4849, %v4264
        %v4978 = vmul.f32 %v4850, %v4375
        %v4979 = vmul.f32 %v4851, %v4377
        %v4980 = vmul.f32 %v4852, %v4488
        %v4981 = vmul.f32 %v4853, %v4490
        %v4982 = vmul.f32 %v4854, %v4153
        %v4983 = vmul.f32 %v4855, %v4155
        %v4984 = vmul.f32 %v4856, %v4266
        %v4985 = vmul.f32 %v4857, %v4268
        %v4986 = vmul.f32 %v4858, %v4379
        %v4987 = vmul.f32 %v4859, %v4381
        %v4988 = vmul.f32 %v4860, %v4492
        %v4989 = vmul.f32 %v4861, %v4494
        %v4990 = vmul.f32 %v4862, %v4159
        %v4991 = vmul.f32 %v4863, %v4161
        %v4992 = vmul.f32 %v4864, %v4272
        %v4993 = vmul.f32 %v4865, %v4274
        %v4994 = vmul.f32 %v4866, %v4385
        %v4995 = vmul.f32 %v4867, %v4387
        %v4996 = vmul.f32 %v4868, %v4498
        %v4997 = vmul.f32 %v4869, %v4500
        %v4998 = vmul.f32 %v4870, %v4163
        %v4999 = vmul.f32 %v4871, %v4165
        %v5000 = vmul.f32 %v4872, %v4276
        %v5001 = vmul.f32 %v4873, %v4278
        %v5002 = vmul.f32 %v4874, %v4389
        %v5003 = vmul.f32 %v4875, %v4391
        %v5004 = vmul.f32 %v4876, %v4502
        %v5005 = vmul.f32 %v4877, %v4504
        %v5006 = vmul.f32 %v4878, %v4169
        %v5007 = vmul.f32 %v4879, %v4171
        %v5008 = vmul.f32 %v4880, %v4282
        %v5009 = vmul.f32 %v4881, %v4284
        %v5010 = vmul.f32 %v4882, %v4395
        %v5011 = vmul.f32 %v4883, %v4397
        %v5012 = vmul.f32 %v4884, %v4508
        %v5013 = vmul.f32 %v4885, %v4510
        %v5014 = vmul.f32 %v4886, %v4173
        %v5015 = vmul.f32 %v4887, %v4175
        %v5016 = vmul.f32 %v4888, %v4286
        %v5017 = vmul.f32 %v4889, %v4288
        %v5018 = vmul.f32 %v4890, %v4399
        %v5019 = vmul.f32 %v4891, %v4401
        %v5020 = vmul.f32 %v4892, %v4512
        %v5021 = vmul.f32 %v4893, %v4514
        %v5022 = vmul.f32 %v4894, %v4179
        %v5023 = vmul.f32 %v4895, %v4181
        %v5024 = vmul.f32 %v4896, %v4292
        %v5025 = vmul.f32 %v4897, %v4294
        %v5026 = vmul.f32 %v4898, %v4405
        %v5027 = vmul.f32 %v4899, %v4407
        %v5028 = vmul.f32 %v4900, %v4518
        %v5029 = vmul.f32 %v4901, %v4520
        %v5030 = vmul.f32 %v4902, %v4183
        %v5031 = vmul.f32 %v4903, %v4185
        %v5032 = vmul.f32 %v4904, %v4296
        %v5033 = vmul.f32 %v4905, %v4298
        %v5034 = vmul.f32 %v4906, %v4409
        %v5035 = vmul.f32 %v4907, %v4411
        %v5036 = vmul.f32 %v4908, %v4522
        %v5037 = vmul.f32 %v4909, %v4524
        %v5038 = vadd.f32 %v4109, %v4910
        %v5039 = vadd.f32 %v4111, %v4911
        %v5040 = vadd.f32 %v4222, %v4912
        %v5041 = vadd.f32 %v4224, %v4913
        %v5042 = vadd.f32 %v4335, %v4914
        %v5043 = vadd.f32 %v4337, %v4915
        %v5044 = vadd.f32 %v4448, %v4916
        %v5045 = vadd.f32 %v4450, %v4917
        %v5046 = vadd.f32 %v4113, %v4918
        %v5047 = vadd.f32 %v4115, %v4919
        %v5048 = vadd.f32 %v4226, %v4920
        %v5049 = vadd.f32 %v4228, %v4921
        %v5050 = vadd.f32 %v4339, %v4922
        %v5051 = vadd.f32 %v4341, %v4923
        %v5052 = vadd.f32 %v4452, %v4924
        %v5053 = vadd.f32 %v4454, %v4925
        %v5054 = vadd.f32 %v4119, %v4926
        %v5055 = vadd.f32 %v4121, %v4927
        %v5056 = vadd.f32 %v4232, %v4928
        %v5057 = vadd.f32 %v4234, %v4929
        %v5058 = vadd.f32 %v4345, %v4930
        %v5059 = vadd.f32 %v4347, %v4931
        %v5060 = vadd.f32 %v4458, %v4932
        %v5061 = vadd.f32 %v4460, %v4933
        %v5062 = vadd.f32 %v4123, %v4934
        %v5063 = vadd.f32 %v4125, %v4935
        %v5064 = vadd.f32 %v4236, %v4936
        %v5065 = vadd.f32 %v4238, %v4937
        %v5066 = vadd.f32 %v4349, %v4938
        %v5067 = vadd.f32 %v4351, %v4939
        %v5068 = vadd.f32 %v4462, %v4940
        %v5069 = vadd.f32 %v4464, %v4941
        %v5070 = vadd.f32 %v4129, %v4942
        %v5071 = vadd.f32 %v4131, %v4943
        %v5072 = vadd.f32 %v4242, %v4944
        %v5073 = vadd.f32 %v4244, %v4945
        %v5074 = vadd.f32 %v4355, %v4946
        %v5075 = vadd.f32 %v4357, %v4947
        %v5076 = vadd.f32 %v4468, %v4948
        %v5077 = vadd.f32 %v4470, %v4949
        %v5078 = vadd.f32 %v4133, %v4950
        %v5079 = vadd.f32 %v4135, %v4951
        %v5080 = vadd.f32 %v4246, %v4952
        %v5081 = vadd.f32 %v4248, %v4953
        %v5082 = vadd.f32 %v4359, %v4954
        %v5083 = vadd.f32 %v4361, %v4955
        %v5084 = vadd.f32 %v4472, %v4956
        %v5085 = vadd.f32 %v4474, %v4957
        %v5086 = vadd.f32 %v4139, %v4958
        %v5087 = vadd.f32 %v4141, %v4959
        %v5088 = vadd.f32 %v4252, %v4960
        %v5089 = vadd.f32 %v4254, %v4961
        %v5090 = vadd.f32 %v4365, %v4962
        %v5091 = vadd.f32 %v4367, %v4963
        %v5092 = vadd.f32 %v4478, %v4964
        %v5093 = vadd.f32 %v4480, %v4965
        %v5094 = vadd.f32 %v4143, %v4966
        %v5095 = vadd.f32 %v4145, %v4967
        %v5096 = vadd.f32 %v4256, %v4968
        %v5097 = vadd.f32 %v4258, %v4969
        %v5098 = vadd.f32 %v4369, %v4970
        %v5099 = vadd.f32 %v4371, %v4971
        %v5100 = vadd.f32 %v4482, %v4972
        %v5101 = vadd.f32 %v4484, %v4973
        %v5102 = vadd.f32 %v4149, %v4974
        %v5103 = vadd.f32 %v4151, %v4975
        %v5104 = vadd.f32 %v4262, %v4976
        %v5105 = vadd.f32 %v4264, %v4977
        %v5106 = vadd.f32 %v4375, %v4978
        %v5107 = vadd.f32 %v4377, %v4979
        %v5108 = vadd.f32 %v4488, %v4980
        %v5109 = vadd.f32 %v4490, %v4981
        %v5110 = vadd.f32 %v4153, %v4982
        %v5111 = vadd.f32 %v4155, %v4983
        %v5112 = vadd.f32 %v4266, %v4984
        %v5113 = vadd.f32 %v4268, %v4985
        %v5114 = vadd.f32 %v4379, %v4986
        %v5115 = vadd.f32 %v4381, %v4987
        %v5116 = vadd.f32 %v4492, %v4988
        %v5117 = vadd.f32 %v4494, %v4989
        %v5118 = vadd.f32 %v4159, %v4990
        %v5119 = vadd.f32 %v4161, %v4991
        %v5120 = vadd.f32 %v4272, %v4992
        %v5121 = vadd.f32 %v4274, %v4993
        %v5122 = vadd.f32 %v4385, %v4994
        %v5123 = vadd.f32 %v4387, %v4995
        %v5124 = vadd.f32 %v4498, %v4996
        %v5125 = vadd.f32 %v4500, %v4997
        %v5126 = vadd.f32 %v4163, %v4998
        %v5127 = vadd.f32 %v4165, %v4999
        %v5128 = vadd.f32 %v4276, %v5000
        %v5129 = vadd.f32 %v4278, %v5001
        %v5130 = vadd.f32 %v4389, %v5002
        %v5131 = vadd.f32 %v4391, %v5003
        %v5132 = vadd.f32 %v4502, %v5004
        %v5133 = vadd.f32 %v4504, %v5005
        %v5134 = vadd.f32 %v4169, %v5006
        %v5135 = vadd.f32 %v4171, %v5007
        %v5136 = vadd.f32 %v4282, %v5008
        %v5137 = vadd.f32 %v4284, %v5009
        %v5138 = vadd.f32 %v4395, %v5010
        %v5139 = vadd.f32 %v4397, %v5011
        %v5140 = vadd.f32 %v4508, %v5012
        %v5141 = vadd.f32 %v4510, %v5013
        %v5142 = vadd.f32 %v4173, %v5014
        %v5143 = vadd.f32 %v4175, %v5015
        %v5144 = vadd.f32 %v4286, %v5016
        %v5145 = vadd.f32 %v4288, %v5017
        %v5146 = vadd.f32 %v4399, %v5018
        %v5147 = vadd.f32 %v4401, %v5019
        %v5148 = vadd.f32 %v4512, %v5020
        %v5149 = vadd.f32 %v4514, %v5021
        %v5150 = vadd.f32 %v4179, %v5022
        %v5151 = vadd.f32 %v4181, %v5023
        %v5152 = vadd.f32 %v4292, %v5024
        %v5153 = vadd.f32 %v4294, %v5025
        %v5154 = vadd.f32 %v4405, %v5026
        %v5155 = vadd.f32 %v4407, %v5027
        %v5156 = vadd.f32 %v4518, %v5028
        %v5157 = vadd.f32 %v4520, %v5029
        %v5158 = vadd.f32 %v4183, %v5030
        %v5159 = vadd.f32 %v4185, %v5031
        %v5160 = vadd.f32 %v4296, %v5032
        %v5161 = vadd.f32 %v4298, %v5033
        %v5162 = vadd.f32 %v4409, %v5034
        %v5163 = vadd.f32 %v4411, %v5035
        %v5164 = vadd.f32 %v4522, %v5036
        %v5165 = vadd.f32 %v4524, %v5037
        %v5166 = vmul.f32 %v5038, 0.7978846
        %v5167 = vmul.f32 %v5039, 0.7978846
        %v5168 = vmul.f32 %v5040, 0.7978846
        %v5169 = vmul.f32 %v5041, 0.7978846
        %v5170 = vmul.f32 %v5042, 0.7978846
        %v5171 = vmul.f32 %v5043, 0.7978846
        %v5172 = vmul.f32 %v5044, 0.7978846
        %v5173 = vmul.f32 %v5045, 0.7978846
        %v5174 = vmul.f32 %v5046, 0.7978846
        %v5175 = vmul.f32 %v5047, 0.7978846
        %v5176 = vmul.f32 %v5048, 0.7978846
        %v5177 = vmul.f32 %v5049, 0.7978846
        %v5178 = vmul.f32 %v5050, 0.7978846
        %v5179 = vmul.f32 %v5051, 0.7978846
        %v5180 = vmul.f32 %v5052, 0.7978846
        %v5181 = vmul.f32 %v5053, 0.7978846
        %v5182 = vmul.f32 %v5054, 0.7978846
        %v5183 = vmul.f32 %v5055, 0.7978846
        %v5184 = vmul.f32 %v5056, 0.7978846
        %v5185 = vmul.f32 %v5057, 0.7978846
        %v5186 = vmul.f32 %v5058, 0.7978846
        %v5187 = vmul.f32 %v5059, 0.7978846
        %v5188 = vmul.f32 %v5060, 0.7978846
        %v5189 = vmul.f32 %v5061, 0.7978846
        %v5190 = vmul.f32 %v5062, 0.7978846
        %v5191 = vmul.f32 %v5063, 0.7978846
        %v5192 = vmul.f32 %v5064, 0.7978846
        %v5193 = vmul.f32 %v5065, 0.7978846
        %v5194 = vmul.f32 %v5066, 0.7978846
        %v5195 = vmul.f32 %v5067, 0.7978846
        %v5196 = vmul.f32 %v5068, 0.7978846
        %v5197 = vmul.f32 %v5069, 0.7978846
        %v5198 = vmul.f32 %v5070, 0.7978846
        %v5199 = vmul.f32 %v5071, 0.7978846
        %v5200 = vmul.f32 %v5072, 0.7978846
        %v5201 = vmul.f32 %v5073, 0.7978846
        %v5202 = vmul.f32 %v5074, 0.7978846
        %v5203 = vmul.f32 %v5075, 0.7978846
        %v5204 = vmul.f32 %v5076, 0.7978846
        %v5205 = vmul.f32 %v5077, 0.7978846
        %v5206 = vmul.f32 %v5078, 0.7978846
        %v5207 = vmul.f32 %v5079, 0.7978846
        %v5208 = vmul.f32 %v5080, 0.7978846
        %v5209 = vmul.f32 %v5081, 0.7978846
        %v5210 = vmul.f32 %v5082, 0.7978846
        %v5211 = vmul.f32 %v5083, 0.7978846
        %v5212 = vmul.f32 %v5084, 0.7978846
        %v5213 = vmul.f32 %v5085, 0.7978846
        %v5214 = vmul.f32 %v5086, 0.7978846
        %v5215 = vmul.f32 %v5087, 0.7978846
        %v5216 = vmul.f32 %v5088, 0.7978846
        %v5217 = vmul.f32 %v5089, 0.7978846
        %v5218 = vmul.f32 %v5090, 0.7978846
        %v5219 = vmul.f32 %v5091, 0.7978846
        %v5220 = vmul.f32 %v5092, 0.7978846
        %v5221 = vmul.f32 %v5093, 0.7978846
        %v5222 = vmul.f32 %v5094, 0.7978846
        %v5223 = vmul.f32 %v5095, 0.7978846
        %v5224 = vmul.f32 %v5096, 0.7978846
        %v5225 = vmul.f32 %v5097, 0.7978846
        %v5226 = vmul.f32 %v5098, 0.7978846
        %v5227 = vmul.f32 %v5099, 0.7978846
        %v5228 = vmul.f32 %v5100, 0.7978846
        %v5229 = vmul.f32 %v5101, 0.7978846
        %v5230 = vmul.f32 %v5102, 0.7978846
        %v5231 = vmul.f32 %v5103, 0.7978846
        %v5232 = vmul.f32 %v5104, 0.7978846
        %v5233 = vmul.f32 %v5105, 0.7978846
        %v5234 = vmul.f32 %v5106, 0.7978846
        %v5235 = vmul.f32 %v5107, 0.7978846
        %v5236 = vmul.f32 %v5108, 0.7978846
        %v5237 = vmul.f32 %v5109, 0.7978846
        %v5238 = vmul.f32 %v5110, 0.7978846
        %v5239 = vmul.f32 %v5111, 0.7978846
        %v5240 = vmul.f32 %v5112, 0.7978846
        %v5241 = vmul.f32 %v5113, 0.7978846
        %v5242 = vmul.f32 %v5114, 0.7978846
        %v5243 = vmul.f32 %v5115, 0.7978846
        %v5244 = vmul.f32 %v5116, 0.7978846
        %v5245 = vmul.f32 %v5117, 0.7978846
        %v5246 = vmul.f32 %v5118, 0.7978846
        %v5247 = vmul.f32 %v5119, 0.7978846
        %v5248 = vmul.f32 %v5120, 0.7978846
        %v5249 = vmul.f32 %v5121, 0.7978846
        %v5250 = vmul.f32 %v5122, 0.7978846
        %v5251 = vmul.f32 %v5123, 0.7978846
        %v5252 = vmul.f32 %v5124, 0.7978846
        %v5253 = vmul.f32 %v5125, 0.7978846
        %v5254 = vmul.f32 %v5126, 0.7978846
        %v5255 = vmul.f32 %v5127, 0.7978846
        %v5256 = vmul.f32 %v5128, 0.7978846
        %v5257 = vmul.f32 %v5129, 0.7978846
        %v5258 = vmul.f32 %v5130, 0.7978846
        %v5259 = vmul.f32 %v5131, 0.7978846
        %v5260 = vmul.f32 %v5132, 0.7978846
        %v5261 = vmul.f32 %v5133, 0.7978846
        %v5262 = vmul.f32 %v5134, 0.7978846
        %v5263 = vmul.f32 %v5135, 0.7978846
        %v5264 = vmul.f32 %v5136, 0.7978846
        %v5265 = vmul.f32 %v5137, 0.7978846
        %v5266 = vmul.f32 %v5138, 0.7978846
        %v5267 = vmul.f32 %v5139, 0.7978846
        %v5268 = vmul.f32 %v5140, 0.7978846
        %v5269 = vmul.f32 %v5141, 0.7978846
        %v5270 = vmul.f32 %v5142, 0.7978846
        %v5271 = vmul.f32 %v5143, 0.7978846
        %v5272 = vmul.f32 %v5144, 0.7978846
        %v5273 = vmul.f32 %v5145, 0.7978846
        %v5274 = vmul.f32 %v5146, 0.7978846
        %v5275 = vmul.f32 %v5147, 0.7978846
        %v5276 = vmul.f32 %v5148, 0.7978846
        %v5277 = vmul.f32 %v5149, 0.7978846
        %v5278 = vmul.f32 %v5150, 0.7978846
        %v5279 = vmul.f32 %v5151, 0.7978846
        %v5280 = vmul.f32 %v5152, 0.7978846
        %v5281 = vmul.f32 %v5153, 0.7978846
        %v5282 = vmul.f32 %v5154, 0.7978846
        %v5283 = vmul.f32 %v5155, 0.7978846
        %v5284 = vmul.f32 %v5156, 0.7978846
        %v5285 = vmul.f32 %v5157, 0.7978846
        %v5286 = vmul.f32 %v5158, 0.7978846
        %v5287 = vmul.f32 %v5159, 0.7978846
        %v5288 = vmul.f32 %v5160, 0.7978846
        %v5289 = vmul.f32 %v5161, 0.7978846
        %v5290 = vmul.f32 %v5162, 0.7978846
        %v5291 = vmul.f32 %v5163, 0.7978846
        %v5292 = vmul.f32 %v5164, 0.7978846
        %v5293 = vmul.f32 %v5165, 0.7978846
        %v5294 = vtanh.pop %v5166
        %v5295 = vtanh.pop %v5167
        %v5296 = vtanh.pop %v5168
        %v5297 = vtanh.pop %v5169
        %v5298 = vtanh.pop %v5170
        %v5299 = vtanh.pop %v5171
        %v5300 = vtanh.pop %v5172
        %v5301 = vtanh.pop %v5173
        %v5302 = vtanh.pop %v5174
        %v5303 = vtanh.pop %v5175
        %v5304 = vtanh.pop %v5176
        %v5305 = vtanh.pop %v5177
        %v5306 = vtanh.pop %v5178
        %v5307 = vtanh.pop %v5179
        %v5308 = vtanh.pop %v5180
        %v5309 = vtanh.pop %v5181
        %v5310 = vtanh.pop %v5182
        %v5311 = vtanh.pop %v5183
        %v5312 = vtanh.pop %v5184
        %v5313 = vtanh.pop %v5185
        %v5314 = vtanh.pop %v5186
        %v5315 = vtanh.pop %v5187
        %v5316 = vtanh.pop %v5188
        %v5317 = vtanh.pop %v5189
        %v5318 = vtanh.pop %v5190
        %v5319 = vtanh.pop %v5191
        %v5320 = vtanh.pop %v5192
        %v5321 = vtanh.pop %v5193
        %v5322 = vtanh.pop %v5194
        %v5323 = vtanh.pop %v5195
        %v5324 = vtanh.pop %v5196
        %v5325 = vtanh.pop %v5197
        %v5326 = vtanh.pop %v5198
        %v5327 = vtanh.pop %v5199
        %v5328 = vtanh.pop %v5200
        %v5329 = vtanh.pop %v5201
        %v5330 = vtanh.pop %v5202
        %v5331 = vtanh.pop %v5203
        %v5332 = vtanh.pop %v5204
        %v5333 = vtanh.pop %v5205
        %v5334 = vtanh.pop %v5206
        %v5335 = vtanh.pop %v5207
        %v5336 = vtanh.pop %v5208
        %v5337 = vtanh.pop %v5209
        %v5338 = vtanh.pop %v5210
        %v5339 = vtanh.pop %v5211
        %v5340 = vtanh.pop %v5212
        %v5341 = vtanh.pop %v5213
        %v5342 = vtanh.pop %v5214
        %v5343 = vtanh.pop %v5215
        %v5344 = vtanh.pop %v5216
        %v5345 = vtanh.pop %v5217
        %v5346 = vtanh.pop %v5218
        %v5347 = vtanh.pop %v5219
        %v5348 = vtanh.pop %v5220
        %v5349 = vtanh.pop %v5221
        %v5350 = vtanh.pop %v5222
        %v5351 = vtanh.pop %v5223
        %v5352 = vtanh.pop %v5224
        %v5353 = vtanh.pop %v5225
        %v5354 = vtanh.pop %v5226
        %v5355 = vtanh.pop %v5227
        %v5356 = vtanh.pop %v5228
        %v5357 = vtanh.pop %v5229
        %v5358 = vtanh.pop %v5230
        %v5359 = vtanh.pop %v5231
        %v5360 = vtanh.pop %v5232
        %v5361 = vtanh.pop %v5233
        %v5362 = vtanh.pop %v5234
        %v5363 = vtanh.pop %v5235
        %v5364 = vtanh.pop %v5236
        %v5365 = vtanh.pop %v5237
        %v5366 = vtanh.pop %v5238
        %v5367 = vtanh.pop %v5239
        %v5368 = vtanh.pop %v5240
        %v5369 = vtanh.pop %v5241
        %v5370 = vtanh.pop %v5242
        %v5371 = vtanh.pop %v5243
        %v5372 = vtanh.pop %v5244
        %v5373 = vtanh.pop %v5245
        %v5374 = vtanh.pop %v5246
        %v5375 = vtanh.pop %v5247
        %v5376 = vtanh.pop %v5248
        %v5377 = vtanh.pop %v5249
        %v5378 = vtanh.pop %v5250
        %v5379 = vtanh.pop %v5251
        %v5380 = vtanh.pop %v5252
        %v5381 = vtanh.pop %v5253
        %v5382 = vtanh.pop %v5254
        %v5383 = vtanh.pop %v5255
        %v5384 = vtanh.pop %v5256
        %v5385 = vtanh.pop %v5257
        %v5386 = vtanh.pop %v5258
        %v5387 = vtanh.pop %v5259
        %v5388 = vtanh.pop %v5260
        %v5389 = vtanh.pop %v5261
        %v5390 = vtanh.pop %v5262
        %v5391 = vtanh.pop %v5263
        %v5392 = vtanh.pop %v5264
        %v5393 = vtanh.pop %v5265
        %v5394 = vtanh.pop %v5266
        %v5395 = vtanh.pop %v5267
        %v5396 = vtanh.pop %v5268
        %v5397 = vtanh.pop %v5269
        %v5398 = vtanh.pop %v5270
        %v5399 = vtanh.pop %v5271
        %v5400 = vtanh.pop %v5272
        %v5401 = vtanh.pop %v5273
        %v5402 = vtanh.pop %v5274
        %v5403 = vtanh.pop %v5275
        %v5404 = vtanh.pop %v5276
        %v5405 = vtanh.pop %v5277
        %v5406 = vtanh.pop %v5278
        %v5407 = vtanh.pop %v5279
        %v5408 = vtanh.pop %v5280
        %v5409 = vtanh.pop %v5281
        %v5410 = vtanh.pop %v5282
        %v5411 = vtanh.pop %v5283
        %v5412 = vtanh.pop %v5284
        %v5413 = vtanh.pop %v5285
        %v5414 = vtanh.pop %v5286
        %v5415 = vtanh.pop %v5287
        %v5416 = vtanh.pop %v5288
        %v5417 = vtanh.pop %v5289
        %v5418 = vtanh.pop %v5290
        %v5419 = vtanh.pop %v5291
        %v5420 = vtanh.pop %v5292
        %v5421 = vtanh.pop %v5293
        %v5422 = vadd.f32 %v5294, 1.0
        %v5423 = vadd.f32 %v5295, 1.0
        %v5424 = vadd.f32 %v5296, 1.0
        %v5425 = vadd.f32 %v5297, 1.0
        %v5426 = vadd.f32 %v5298, 1.0
        %v5427 = vadd.f32 %v5299, 1.0
        %v5428 = vadd.f32 %v5300, 1.0
        %v5429 = vadd.f32 %v5301, 1.0
        %v5430 = vadd.f32 %v5302, 1.0
        %v5431 = vadd.f32 %v5303, 1.0
        %v5432 = vadd.f32 %v5304, 1.0
        %v5433 = vadd.f32 %v5305, 1.0
        %v5434 = vadd.f32 %v5306, 1.0
        %v5435 = vadd.f32 %v5307, 1.0
        %v5436 = vadd.f32 %v5308, 1.0
        %v5437 = vadd.f32 %v5309, 1.0
        %v5438 = vadd.f32 %v5310, 1.0
        %v5439 = vadd.f32 %v5311, 1.0
        %v5440 = vadd.f32 %v5312, 1.0
        %v5441 = vadd.f32 %v5313, 1.0
        %v5442 = vadd.f32 %v5314, 1.0
        %v5443 = vadd.f32 %v5315, 1.0
        %v5444 = vadd.f32 %v5316, 1.0
        %v5445 = vadd.f32 %v5317, 1.0
        %v5446 = vadd.f32 %v5318, 1.0
        %v5447 = vadd.f32 %v5319, 1.0
        %v5448 = vadd.f32 %v5320, 1.0
        %v5449 = vadd.f32 %v5321, 1.0
        %v5450 = vadd.f32 %v5322, 1.0
        %v5451 = vadd.f32 %v5323, 1.0
        %v5452 = vadd.f32 %v5324, 1.0
        %v5453 = vadd.f32 %v5325, 1.0
        %v5454 = vadd.f32 %v5326, 1.0
        %v5455 = vadd.f32 %v5327, 1.0
        %v5456 = vadd.f32 %v5328, 1.0
        %v5457 = vadd.f32 %v5329, 1.0
        %v5458 = vadd.f32 %v5330, 1.0
        %v5459 = vadd.f32 %v5331, 1.0
        %v5460 = vadd.f32 %v5332, 1.0
        %v5461 = vadd.f32 %v5333, 1.0
        %v5462 = vadd.f32 %v5334, 1.0
        %v5463 = vadd.f32 %v5335, 1.0
        %v5464 = vadd.f32 %v5336, 1.0
        %v5465 = vadd.f32 %v5337, 1.0
        %v5466 = vadd.f32 %v5338, 1.0
        %v5467 = vadd.f32 %v5339, 1.0
        %v5468 = vadd.f32 %v5340, 1.0
        %v5469 = vadd.f32 %v5341, 1.0
        %v5470 = vadd.f32 %v5342, 1.0
        %v5471 = vadd.f32 %v5343, 1.0
        %v5472 = vadd.f32 %v5344, 1.0
        %v5473 = vadd.f32 %v5345, 1.0
        %v5474 = vadd.f32 %v5346, 1.0
        %v5475 = vadd.f32 %v5347, 1.0
        %v5476 = vadd.f32 %v5348, 1.0
        %v5477 = vadd.f32 %v5349, 1.0
        %v5478 = vadd.f32 %v5350, 1.0
        %v5479 = vadd.f32 %v5351, 1.0
        %v5480 = vadd.f32 %v5352, 1.0
        %v5481 = vadd.f32 %v5353, 1.0
        %v5482 = vadd.f32 %v5354, 1.0
        %v5483 = vadd.f32 %v5355, 1.0
        %v5484 = vadd.f32 %v5356, 1.0
        %v5485 = vadd.f32 %v5357, 1.0
        %v5486 = vadd.f32 %v5358, 1.0
        %v5487 = vadd.f32 %v5359, 1.0
        %v5488 = vadd.f32 %v5360, 1.0
        %v5489 = vadd.f32 %v5361, 1.0
        %v5490 = vadd.f32 %v5362, 1.0
        %v5491 = vadd.f32 %v5363, 1.0
        %v5492 = vadd.f32 %v5364, 1.0
        %v5493 = vadd.f32 %v5365, 1.0
        %v5494 = vadd.f32 %v5366, 1.0
        %v5495 = vadd.f32 %v5367, 1.0
        %v5496 = vadd.f32 %v5368, 1.0
        %v5497 = vadd.f32 %v5369, 1.0
        %v5498 = vadd.f32 %v5370, 1.0
        %v5499 = vadd.f32 %v5371, 1.0
        %v5500 = vadd.f32 %v5372, 1.0
        %v5501 = vadd.f32 %v5373, 1.0
        %v5502 = vadd.f32 %v5374, 1.0
        %v5503 = vadd.f32 %v5375, 1.0
        %v5504 = vadd.f32 %v5376, 1.0
        %v5505 = vadd.f32 %v5377, 1.0
        %v5506 = vadd.f32 %v5378, 1.0
        %v5507 = vadd.f32 %v5379, 1.0
        %v5508 = vadd.f32 %v5380, 1.0
        %v5509 = vadd.f32 %v5381, 1.0
        %v5510 = vadd.f32 %v5382, 1.0
        %v5511 = vadd.f32 %v5383, 1.0
        %v5512 = vadd.f32 %v5384, 1.0
        %v5513 = vadd.f32 %v5385, 1.0
        %v5514 = vadd.f32 %v5386, 1.0
        %v5515 = vadd.f32 %v5387, 1.0
        %v5516 = vadd.f32 %v5388, 1.0
        %v5517 = vadd.f32 %v5389, 1.0
        %v5518 = vadd.f32 %v5390, 1.0
        %v5519 = vadd.f32 %v5391, 1.0
        %v5520 = vadd.f32 %v5392, 1.0
        %v5521 = vadd.f32 %v5393, 1.0
        %v5522 = vadd.f32 %v5394, 1.0
        %v5523 = vadd.f32 %v5395, 1.0
        %v5524 = vadd.f32 %v5396, 1.0
        %v5525 = vadd.f32 %v5397, 1.0
        %v5526 = vadd.f32 %v5398, 1.0
        %v5527 = vadd.f32 %v5399, 1.0
        %v5528 = vadd.f32 %v5400, 1.0
        %v5529 = vadd.f32 %v5401, 1.0
        %v5530 = vadd.f32 %v5402, 1.0
        %v5531 = vadd.f32 %v5403, 1.0
        %v5532 = vadd.f32 %v5404, 1.0
        %v5533 = vadd.f32 %v5405, 1.0
        %v5534 = vadd.f32 %v5406, 1.0
        %v5535 = vadd.f32 %v5407, 1.0
        %v5536 = vadd.f32 %v5408, 1.0
        %v5537 = vadd.f32 %v5409, 1.0
        %v5538 = vadd.f32 %v5410, 1.0
        %v5539 = vadd.f32 %v5411, 1.0
        %v5540 = vadd.f32 %v5412, 1.0
        %v5541 = vadd.f32 %v5413, 1.0
        %v5542 = vadd.f32 %v5414, 1.0
        %v5543 = vadd.f32 %v5415, 1.0
        %v5544 = vadd.f32 %v5416, 1.0
        %v5545 = vadd.f32 %v5417, 1.0
        %v5546 = vadd.f32 %v5418, 1.0
        %v5547 = vadd.f32 %v5419, 1.0
        %v5548 = vadd.f32 %v5420, 1.0
        %v5549 = vadd.f32 %v5421, 1.0
        %v5550 = vmul.f32 %v4526, %v5422
        %v5551 = vmul.f32 %v4527, %v5423
        %v5552 = vmul.f32 %v4528, %v5424
        %v5553 = vmul.f32 %v4529, %v5425
        %v5554 = vmul.f32 %v4530, %v5426
        %v5555 = vmul.f32 %v4531, %v5427
        %v5556 = vmul.f32 %v4532, %v5428
        %v5557 = vmul.f32 %v4533, %v5429
        %v5558 = vmul.f32 %v4534, %v5430
        %v5559 = vmul.f32 %v4535, %v5431
        %v5560 = vmul.f32 %v4536, %v5432
        %v5561 = vmul.f32 %v4537, %v5433
        %v5562 = vmul.f32 %v4538, %v5434
        %v5563 = vmul.f32 %v4539, %v5435
        %v5564 = vmul.f32 %v4540, %v5436
        %v5565 = vmul.f32 %v4541, %v5437
        %v5566 = vmul.f32 %v4542, %v5438
        %v5567 = vmul.f32 %v4543, %v5439
        %v5568 = vmul.f32 %v4544, %v5440
        %v5569 = vmul.f32 %v4545, %v5441
        %v5570 = vmul.f32 %v4546, %v5442
        %v5571 = vmul.f32 %v4547, %v5443
        %v5572 = vmul.f32 %v4548, %v5444
        %v5573 = vmul.f32 %v4549, %v5445
        %v5574 = vmul.f32 %v4550, %v5446
        %v5575 = vmul.f32 %v4551, %v5447
        %v5576 = vmul.f32 %v4552, %v5448
        %v5577 = vmul.f32 %v4553, %v5449
        %v5578 = vmul.f32 %v4554, %v5450
        %v5579 = vmul.f32 %v4555, %v5451
        %v5580 = vmul.f32 %v4556, %v5452
        %v5581 = vmul.f32 %v4557, %v5453
        %v5582 = vmul.f32 %v4558, %v5454
        %v5583 = vmul.f32 %v4559, %v5455
        %v5584 = vmul.f32 %v4560, %v5456
        %v5585 = vmul.f32 %v4561, %v5457
        %v5586 = vmul.f32 %v4562, %v5458
        %v5587 = vmul.f32 %v4563, %v5459
        %v5588 = vmul.f32 %v4564, %v5460
        %v5589 = vmul.f32 %v4565, %v5461
        %v5590 = vmul.f32 %v4566, %v5462
        %v5591 = vmul.f32 %v4567, %v5463
        %v5592 = vmul.f32 %v4568, %v5464
        %v5593 = vmul.f32 %v4569, %v5465
        %v5594 = vmul.f32 %v4570, %v5466
        %v5595 = vmul.f32 %v4571, %v5467
        %v5596 = vmul.f32 %v4572, %v5468
        %v5597 = vmul.f32 %v4573, %v5469
        %v5598 = vmul.f32 %v4574, %v5470
        %v5599 = vmul.f32 %v4575, %v5471
        %v5600 = vmul.f32 %v4576, %v5472
        %v5601 = vmul.f32 %v4577, %v5473
        %v5602 = vmul.f32 %v4578, %v5474
        %v5603 = vmul.f32 %v4579, %v5475
        %v5604 = vmul.f32 %v4580, %v5476
        %v5605 = vmul.f32 %v4581, %v5477
        %v5606 = vmul.f32 %v4582, %v5478
        %v5607 = vmul.f32 %v4583, %v5479
        %v5608 = vmul.f32 %v4584, %v5480
        %v5609 = vmul.f32 %v4585, %v5481
        %v5610 = vmul.f32 %v4586, %v5482
        %v5611 = vmul.f32 %v4587, %v5483
        %v5612 = vmul.f32 %v4588, %v5484
        %v5613 = vmul.f32 %v4589, %v5485
        %v5614 = vmul.f32 %v4590, %v5486
        %v5615 = vmul.f32 %v4591, %v5487
        %v5616 = vmul.f32 %v4592, %v5488
        %v5617 = vmul.f32 %v4593, %v5489
        %v5618 = vmul.f32 %v4594, %v5490
        %v5619 = vmul.f32 %v4595, %v5491
        %v5620 = vmul.f32 %v4596, %v5492
        %v5621 = vmul.f32 %v4597, %v5493
        %v5622 = vmul.f32 %v4598, %v5494
        %v5623 = vmul.f32 %v4599, %v5495
        %v5624 = vmul.f32 %v4600, %v5496
        %v5625 = vmul.f32 %v4601, %v5497
        %v5626 = vmul.f32 %v4602, %v5498
        %v5627 = vmul.f32 %v4603, %v5499
        %v5628 = vmul.f32 %v4604, %v5500
        %v5629 = vmul.f32 %v4605, %v5501
        %v5630 = vmul.f32 %v4606, %v5502
        %v5631 = vmul.f32 %v4607, %v5503
        %v5632 = vmul.f32 %v4608, %v5504
        %v5633 = vmul.f32 %v4609, %v5505
        %v5634 = vmul.f32 %v4610, %v5506
        %v5635 = vmul.f32 %v4611, %v5507
        %v5636 = vmul.f32 %v4612, %v5508
        %v5637 = vmul.f32 %v4613, %v5509
        %v5638 = vmul.f32 %v4614, %v5510
        %v5639 = vmul.f32 %v4615, %v5511
        %v5640 = vmul.f32 %v4616, %v5512
        %v5641 = vmul.f32 %v4617, %v5513
        %v5642 = vmul.f32 %v4618, %v5514
        %v5643 = vmul.f32 %v4619, %v5515
        %v5644 = vmul.f32 %v4620, %v5516
        %v5645 = vmul.f32 %v4621, %v5517
        %v5646 = vmul.f32 %v4622, %v5518
        %v5647 = vmul.f32 %v4623, %v5519
        %v5648 = vmul.f32 %v4624, %v5520
        %v5649 = vmul.f32 %v4625, %v5521
        %v5650 = vmul.f32 %v4626, %v5522
        %v5651 = vmul.f32 %v4627, %v5523
        %v5652 = vmul.f32 %v4628, %v5524
        %v5653 = vmul.f32 %v4629, %v5525
        %v5654 = vmul.f32 %v4630, %v5526
        %v5655 = vmul.f32 %v4631, %v5527
        %v5656 = vmul.f32 %v4632, %v5528
        %v5657 = vmul.f32 %v4633, %v5529
        %v5658 = vmul.f32 %v4634, %v5530
        %v5659 = vmul.f32 %v4635, %v5531
        %v5660 = vmul.f32 %v4636, %v5532
        %v5661 = vmul.f32 %v4637, %v5533
        %v5662 = vmul.f32 %v4638, %v5534
        %v5663 = vmul.f32 %v4639, %v5535
        %v5664 = vmul.f32 %v4640, %v5536
        %v5665 = vmul.f32 %v4641, %v5537
        %v5666 = vmul.f32 %v4642, %v5538
        %v5667 = vmul.f32 %v4643, %v5539
        %v5668 = vmul.f32 %v4644, %v5540
        %v5669 = vmul.f32 %v4645, %v5541
        %v5670 = vmul.f32 %v4646, %v5542
        %v5671 = vmul.f32 %v4647, %v5543
        %v5672 = vmul.f32 %v4648, %v5544
        %v5673 = vmul.f32 %v4649, %v5545
        %v5674 = vmul.f32 %v4650, %v5546
        %v5675 = vmul.f32 %v4651, %v5547
        %v5676 = vmul.f32 %v4652, %v5548
        %v5677 = vmul.f32 %v4653, %v5549
        %v5678 = vpack.c.bf16 %v5558, %v5550
        %v5679 = vpack.c.bf16 %v5559, %v5551
        %v5680 = vpack.c.bf16 %v5560, %v5552
        %v5681 = vpack.c.bf16 %v5561, %v5553
        %v5682 = vpack.c.bf16 %v5562, %v5554
        %v5683 = vpack.c.bf16 %v5563, %v5555
        %v5684 = vpack.c.bf16 %v5564, %v5556
        %v5685 = vpack.c.bf16 %v5565, %v5557
        %v5686 = vpack.c.bf16 %v5574, %v5566
        %v5687 = vpack.c.bf16 %v5575, %v5567
        %v5688 = vpack.c.bf16 %v5576, %v5568
        %v5689 = vpack.c.bf16 %v5577, %v5569
        %v5690 = vpack.c.bf16 %v5578, %v5570
        %v5691 = vpack.c.bf16 %v5579, %v5571
        %v5692 = vpack.c.bf16 %v5580, %v5572
        %v5693 = vpack.c.bf16 %v5581, %v5573
        %v5694 = vpack.c.bf16 %v5590, %v5582
        %v5695 = vpack.c.bf16 %v5591, %v5583
        %v5696 = vpack.c.bf16 %v5592, %v5584
        %v5697 = vpack.c.bf16 %v5593, %v5585
        %v5698 = vpack.c.bf16 %v5594, %v5586
        %v5699 = vpack.c.bf16 %v5595, %v5587
        %v5700 = vpack.c.bf16 %v5596, %v5588
        %v5701 = vpack.c.bf16 %v5597, %v5589
        %v5702 = vpack.c.bf16 %v5606, %v5598
        %v5703 = vpack.c.bf16 %v5607, %v5599
        %v5704 = vpack.c.bf16 %v5608, %v5600
        %v5705 = vpack.c.bf16 %v5609, %v5601
        %v5706 = vpack.c.bf16 %v5610, %v5602
        %v5707 = vpack.c.bf16 %v5611, %v5603
        %v5708 = vpack.c.bf16 %v5612, %v5604
        %v5709 = vpack.c.bf16 %v5613, %v5605
        %v5710 = vpack.c.bf16 %v5622, %v5614
        %v5711 = vpack.c.bf16 %v5623, %v5615
        %v5712 = vpack.c.bf16 %v5624, %v5616
        %v5713 = vpack.c.bf16 %v5625, %v5617
        %v5714 = vpack.c.bf16 %v5626, %v5618
        %v5715 = vpack.c.bf16 %v5627, %v5619
        %v5716 = vpack.c.bf16 %v5628, %v5620
        %v5717 = vpack.c.bf16 %v5629, %v5621
        %v5718 = vpack.c.bf16 %v5638, %v5630
        %v5719 = vpack.c.bf16 %v5639, %v5631
        %v5720 = vpack.c.bf16 %v5640, %v5632
        %v5721 = vpack.c.bf16 %v5641, %v5633
        %v5722 = vpack.c.bf16 %v5642, %v5634
        %v5723 = vpack.c.bf16 %v5643, %v5635
        %v5724 = vpack.c.bf16 %v5644, %v5636
        %v5725 = vpack.c.bf16 %v5645, %v5637
        %v5726 = vpack.c.bf16 %v5654, %v5646
        %v5727 = vpack.c.bf16 %v5655, %v5647
        %v5728 = vpack.c.bf16 %v5656, %v5648
        %v5729 = vpack.c.bf16 %v5657, %v5649
        %v5730 = vpack.c.bf16 %v5658, %v5650
        %v5731 = vpack.c.bf16 %v5659, %v5651
        %v5732 = vpack.c.bf16 %v5660, %v5652
        %v5733 = vpack.c.bf16 %v5661, %v5653
        %v5734 = vpack.c.bf16 %v5670, %v5662
        %v5735 = vpack.c.bf16 %v5671, %v5663
        %v5736 = vpack.c.bf16 %v5672, %v5664
        %v5737 = vpack.c.bf16 %v5673, %v5665
        %v5738 = vpack.c.bf16 %v5674, %v5666
        %v5739 = vpack.c.bf16 %v5675, %v5667
        %v5740 = vpack.c.bf16 %v5676, %v5668
        %v5741 = vpack.c.bf16 %v5677, %v5669
        %v5742 = vld [vmem:[%s8] sm:$0xff]
        %v5743 = vld [vmem:[%s8 + $0x8] sm:$0xff]
        %v5744 = vld [vmem:[%s8 + $0x10] sm:$0xff]
        %v5745 = vld [vmem:[%s8 + $0x18] sm:$0xff]
        %v5746 = vld [vmem:[%s8 + $0x20] sm:$0xff]
        %v5747 = vld [vmem:[%s8 + $0x28] sm:$0xff]
        %v5748 = vld [vmem:[%s8 + $0x30] sm:$0xff]
        %v5749 = vld [vmem:[%s8 + $0x38] sm:$0xff]
        %v5750 = vld [vmem:[%s8 + $0x40] sm:$0xff]
        %v5751 = vld [vmem:[%s8 + $0x48] sm:$0xff]
        %v5752 = vld [vmem:[%s8 + $0x50] sm:$0xff]
        %v5753 = vld [vmem:[%s8 + $0x58] sm:$0xff]
        %v5754 = vld [vmem:[%s8 + $0x60] sm:$0xff]
        %v5755 = vld [vmem:[%s8 + $0x68] sm:$0xff]
        %v5756 = vld [vmem:[%s8 + $0x70] sm:$0xff]
        %v5757 = vld [vmem:[%s8 + $0x78] sm:$0xff]
        %v5758 = vld [vmem:[%s8 + $0x80] sm:$0xff]
        %v5759 = vld [vmem:[%s8 + $0x88] sm:$0xff]
        %v5760 = vld [vmem:[%s8 + $0x90] sm:$0xff]
        %v5761 = vld [vmem:[%s8 + $0x98] sm:$0xff]
        %v5762 = vld [vmem:[%s8 + $0xa0] sm:$0xff]
        %v5763 = vld [vmem:[%s8 + $0xa8] sm:$0xff]
        %v5764 = vld [vmem:[%s8 + $0xb0] sm:$0xff]
        %v5765 = vld [vmem:[%s8 + $0xb8] sm:$0xff]
        %v5766 = vld [vmem:[%s8 + $0xc0] sm:$0xff]
        %v5767 = vld [vmem:[%s8 + $0xc8] sm:$0xff]
        %v5768 = vld [vmem:[%s8 + $0xd0] sm:$0xff]
        %v5769 = vld [vmem:[%s8 + $0xd8] sm:$0xff]
        %v5770 = vld [vmem:[%s8 + $0xe0] sm:$0xff]
        %v5771 = vld [vmem:[%s8 + $0xe8] sm:$0xff]
        %v5772 = vld [vmem:[%s8 + $0xf0] sm:$0xff]
        %v5773 = vld [vmem:[%s8 + $0xf8] sm:$0xff]
        %v5774 = vld [vmem:[%s8 + $0x100] sm:$0xff]
        %v5775 = vld [vmem:[%s8 + $0x108] sm:$0xff]
        %v5776 = vld [vmem:[%s8 + $0x110] sm:$0xff]
        %v5777 = vld [vmem:[%s8 + $0x118] sm:$0xff]
        %v5778 = vld [vmem:[%s8 + $0x120] sm:$0xff]
        %v5779 = vld [vmem:[%s8 + $0x128] sm:$0xff]
        %v5780 = vld [vmem:[%s8 + $0x130] sm:$0xff]
        %v5781 = vld [vmem:[%s8 + $0x138] sm:$0xff]
        %v5782 = vld [vmem:[%s8 + $0x140] sm:$0xff]
        %v5783 = vld [vmem:[%s8 + $0x148] sm:$0xff]
        %v5784 = vld [vmem:[%s8 + $0x150] sm:$0xff]
        %v5785 = vld [vmem:[%s8 + $0x158] sm:$0xff]
        %v5786 = vld [vmem:[%s8 + $0x160] sm:$0xff]
        %v5787 = vld [vmem:[%s8 + $0x168] sm:$0xff]
        %v5788 = vld [vmem:[%s8 + $0x170] sm:$0xff]
        %v5789 = vld [vmem:[%s8 + $0x178] sm:$0xff]
        %v5790 = vld [vmem:[%s8 + $0x180] sm:$0xff]
        %v5791 = vld [vmem:[%s8 + $0x188] sm:$0xff]
        %v5792 = vld [vmem:[%s8 + $0x190] sm:$0xff]
        %v5793 = vld [vmem:[%s8 + $0x198] sm:$0xff]
        %v5794 = vld [vmem:[%s8 + $0x1a0] sm:$0xff]
        %v5795 = vld [vmem:[%s8 + $0x1a8] sm:$0xff]
        %v5796 = vld [vmem:[%s8 + $0x1b0] sm:$0xff]
        %v5797 = vld [vmem:[%s8 + $0x1b8] sm:$0xff]
        %v5798 = vld [vmem:[%s8 + $0x1c0] sm:$0xff]
        %v5799 = vld [vmem:[%s8 + $0x1c8] sm:$0xff]
        %v5800 = vld [vmem:[%s8 + $0x1d0] sm:$0xff]
        %v5801 = vld [vmem:[%s8 + $0x1d8] sm:$0xff]
        %v5802 = vld [vmem:[%s8 + $0x1e0] sm:$0xff]
        %v5803 = vld [vmem:[%s8 + $0x1e8] sm:$0xff]
        %v5804 = vld [vmem:[%s8 + $0x1f0] sm:$0xff]
        %v5805 = vld [vmem:[%s8 + $0x1f8] sm:$0xff]
        %v5806 = vld [vmem:[%s8 + $0x200] sm:$0xff]
        %v5807 = vld [vmem:[%s8 + $0x208] sm:$0xff]
        %v5808 = vld [vmem:[%s8 + $0x210] sm:$0xff]
        %v5809 = vld [vmem:[%s8 + $0x218] sm:$0xff]
        %v5810 = vld [vmem:[%s8 + $0x220] sm:$0xff]
        %v5811 = vld [vmem:[%s8 + $0x228] sm:$0xff]
        %v5812 = vld [vmem:[%s8 + $0x230] sm:$0xff]
        %v5813 = vld [vmem:[%s8 + $0x238] sm:$0xff]
        %v5814 = vld [vmem:[%s8 + $0x240] sm:$0xff]
        %v5815 = vld [vmem:[%s8 + $0x248] sm:$0xff]
        %v5816 = vld [vmem:[%s8 + $0x250] sm:$0xff]
        %v5817 = vld [vmem:[%s8 + $0x258] sm:$0xff]
        %v5818 = vld [vmem:[%s8 + $0x260] sm:$0xff]
        %v5819 = vld [vmem:[%s8 + $0x268] sm:$0xff]
        %v5820 = vld [vmem:[%s8 + $0x270] sm:$0xff]
        %v5821 = vld [vmem:[%s8 + $0x278] sm:$0xff]
        %v5822 = vld [vmem:[%s8 + $0x280] sm:$0xff]
        %v5823 = vld [vmem:[%s8 + $0x288] sm:$0xff]
        %v5824 = vld [vmem:[%s8 + $0x290] sm:$0xff]
        %v5825 = vld [vmem:[%s8 + $0x298] sm:$0xff]
        %v5826 = vld [vmem:[%s8 + $0x2a0] sm:$0xff]
        %v5827 = vld [vmem:[%s8 + $0x2a8] sm:$0xff]
        %v5828 = vld [vmem:[%s8 + $0x2b0] sm:$0xff]
        %v5829 = vld [vmem:[%s8 + $0x2b8] sm:$0xff]
        %v5830 = vld [vmem:[%s8 + $0x2c0] sm:$0xff]
        %v5831 = vld [vmem:[%s8 + $0x2c8] sm:$0xff]
        %v5832 = vld [vmem:[%s8 + $0x2d0] sm:$0xff]
        %v5833 = vld [vmem:[%s8 + $0x2d8] sm:$0xff]
        %v5834 = vld [vmem:[%s8 + $0x2e0] sm:$0xff]
        %v5835 = vld [vmem:[%s8 + $0x2e8] sm:$0xff]
        %v5836 = vld [vmem:[%s8 + $0x2f0] sm:$0xff]
        %v5837 = vld [vmem:[%s8 + $0x2f8] sm:$0xff]
        %v5838 = vld [vmem:[%s8 + $0x300] sm:$0xff]
        %v5839 = vld [vmem:[%s8 + $0x308] sm:$0xff]
        %v5840 = vld [vmem:[%s8 + $0x310] sm:$0xff]
        %v5841 = vld [vmem:[%s8 + $0x318] sm:$0xff]
        %v5842 = vld [vmem:[%s8 + $0x320] sm:$0xff]
        %v5843 = vld [vmem:[%s8 + $0x328] sm:$0xff]
        %v5844 = vld [vmem:[%s8 + $0x330] sm:$0xff]
        %v5845 = vld [vmem:[%s8 + $0x338] sm:$0xff]
        %v5846 = vld [vmem:[%s8 + $0x340] sm:$0xff]
        %v5847 = vld [vmem:[%s8 + $0x348] sm:$0xff]
        %v5848 = vld [vmem:[%s8 + $0x350] sm:$0xff]
        %v5849 = vld [vmem:[%s8 + $0x358] sm:$0xff]
        %v5850 = vld [vmem:[%s8 + $0x360] sm:$0xff]
        %v5851 = vld [vmem:[%s8 + $0x368] sm:$0xff]
        %v5852 = vld [vmem:[%s8 + $0x370] sm:$0xff]
        %v5853 = vld [vmem:[%s8 + $0x378] sm:$0xff]
        %v5854 = vld [vmem:[%s8 + $0x380] sm:$0xff]
        %v5855 = vld [vmem:[%s8 + $0x388] sm:$0xff]
        %v5856 = vld [vmem:[%s8 + $0x390] sm:$0xff]
        %v5857 = vld [vmem:[%s8 + $0x398] sm:$0xff]
        %v5858 = vld [vmem:[%s8 + $0x3a0] sm:$0xff]
        %v5859 = vld [vmem:[%s8 + $0x3a8] sm:$0xff]
        %v5860 = vld [vmem:[%s8 + $0x3b0] sm:$0xff]
        %v5861 = vld [vmem:[%s8 + $0x3b8] sm:$0xff]
        %v5862 = vld [vmem:[%s8 + $0x3c0] sm:$0xff]
        %v5863 = vld [vmem:[%s8 + $0x3c8] sm:$0xff]
        %v5864 = vld [vmem:[%s8 + $0x3d0] sm:$0xff]
        %v5865 = vld [vmem:[%s8 + $0x3d8] sm:$0xff]
        %v5866 = vld [vmem:[%s8 + $0x3e0] sm:$0xff]
        %v5867 = vld [vmem:[%s8 + $0x3e8] sm:$0xff]
        %v5868 = vld [vmem:[%s8 + $0x3f0] sm:$0xff]
        %v5869 = vld [vmem:[%s8 + $0x3f8] sm:$0xff]
        %v5870 = vld [vmem:[%s9] sm:$0x3]
        %v5872 = vlaneseq
        %v5873 = vshrl.u32 %v5872, 7
        %v5874 = vsub.s32 0, %v5873
        %v5875 = vrot.slane %v5870, %v5874
        %v5876 = vlaneseq
        %v5877 = vshrl.u32 %v5876, 7
        %v5878 = vsub.s32 1, %v5877
        %v5879 = vrot.slane %v5870, %v5878
        %v6010 = vunpack.c.l.b16 %v5742
        %v6011 = vunpack.c.h.b16 %v5742
        %v6012 = vunpack.c.l.b16 %v5743
        %v6013 = vunpack.c.h.b16 %v5743
        %v6014 = vunpack.c.l.b16 %v5744
        %v6015 = vunpack.c.h.b16 %v5744
        %v6016 = vunpack.c.l.b16 %v5745
        %v6017 = vunpack.c.h.b16 %v5745
        %v6018 = vunpack.c.l.b16 %v5746
        %v6019 = vunpack.c.h.b16 %v5746
        %v6020 = vunpack.c.l.b16 %v5747
        %v6021 = vunpack.c.h.b16 %v5747
        %v6022 = vunpack.c.l.b16 %v5748
        %v6023 = vunpack.c.h.b16 %v5748
        %v6024 = vunpack.c.l.b16 %v5749
        %v6025 = vunpack.c.h.b16 %v5749
        %v6026 = vunpack.c.l.b16 %v5750
        %v6027 = vunpack.c.h.b16 %v5750
        %v6028 = vunpack.c.l.b16 %v5751
        %v6029 = vunpack.c.h.b16 %v5751
        %v6030 = vunpack.c.l.b16 %v5752
        %v6031 = vunpack.c.h.b16 %v5752
        %v6032 = vunpack.c.l.b16 %v5753
        %v6033 = vunpack.c.h.b16 %v5753
        %v6034 = vunpack.c.l.b16 %v5754
        %v6035 = vunpack.c.h.b16 %v5754
        %v6036 = vunpack.c.l.b16 %v5755
        %v6037 = vunpack.c.h.b16 %v5755
        %v6038 = vunpack.c.l.b16 %v5756
        %v6039 = vunpack.c.h.b16 %v5756
        %v6040 = vunpack.c.l.b16 %v5757
        %v6041 = vunpack.c.h.b16 %v5757
        %v6042 = vunpack.c.l.b16 %v5758
        %v6043 = vunpack.c.h.b16 %v5758
        %v6044 = vunpack.c.l.b16 %v5759
        %v6045 = vunpack.c.h.b16 %v5759
        %v6046 = vunpack.c.l.b16 %v5760
        %v6047 = vunpack.c.h.b16 %v5760
        %v6048 = vunpack.c.l.b16 %v5761
        %v6049 = vunpack.c.h.b16 %v5761
        %v6050 = vunpack.c.l.b16 %v5762
        %v6051 = vunpack.c.h.b16 %v5762
        %v6052 = vunpack.c.l.b16 %v5763
        %v6053 = vunpack.c.h.b16 %v5763
        %v6054 = vunpack.c.l.b16 %v5764
        %v6055 = vunpack.c.h.b16 %v5764
        %v6056 = vunpack.c.l.b16 %v5765
        %v6057 = vunpack.c.h.b16 %v5765
        %v6058 = vunpack.c.l.b16 %v5766
        %v6059 = vunpack.c.h.b16 %v5766
        %v6060 = vunpack.c.l.b16 %v5767
        %v6061 = vunpack.c.h.b16 %v5767
        %v6062 = vunpack.c.l.b16 %v5768
        %v6063 = vunpack.c.h.b16 %v5768
        %v6064 = vunpack.c.l.b16 %v5769
        %v6065 = vunpack.c.h.b16 %v5769
        %v6066 = vunpack.c.l.b16 %v5770
        %v6067 = vunpack.c.h.b16 %v5770
        %v6068 = vunpack.c.l.b16 %v5771
        %v6069 = vunpack.c.h.b16 %v5771
        %v6070 = vunpack.c.l.b16 %v5772
        %v6071 = vunpack.c.h.b16 %v5772
        %v6072 = vunpack.c.l.b16 %v5773
        %v6073 = vunpack.c.h.b16 %v5773
        %v6074 = vunpack.c.l.b16 %v5774
        %v6075 = vunpack.c.h.b16 %v5774
        %v6076 = vunpack.c.l.b16 %v5775
        %v6077 = vunpack.c.h.b16 %v5775
        %v6078 = vunpack.c.l.b16 %v5776
        %v6079 = vunpack.c.h.b16 %v5776
        %v6080 = vunpack.c.l.b16 %v5777
        %v6081 = vunpack.c.h.b16 %v5777
        %v6082 = vunpack.c.l.b16 %v5778
        %v6083 = vunpack.c.h.b16 %v5778
        %v6084 = vunpack.c.l.b16 %v5779
        %v6085 = vunpack.c.h.b16 %v5779
        %v6086 = vunpack.c.l.b16 %v5780
        %v6087 = vunpack.c.h.b16 %v5780
        %v6088 = vunpack.c.l.b16 %v5781
        %v6089 = vunpack.c.h.b16 %v5781
        %v6090 = vunpack.c.l.b16 %v5782
        %v6091 = vunpack.c.h.b16 %v5782
        %v6092 = vunpack.c.l.b16 %v5783
        %v6093 = vunpack.c.h.b16 %v5783
        %v6094 = vunpack.c.l.b16 %v5784
        %v6095 = vunpack.c.h.b16 %v5784
        %v6096 = vunpack.c.l.b16 %v5785
        %v6097 = vunpack.c.h.b16 %v5785
        %v6098 = vunpack.c.l.b16 %v5786
        %v6099 = vunpack.c.h.b16 %v5786
        %v6100 = vunpack.c.l.b16 %v5787
        %v6101 = vunpack.c.h.b16 %v5787
        %v6102 = vunpack.c.l.b16 %v5788
        %v6103 = vunpack.c.h.b16 %v5788
        %v6104 = vunpack.c.l.b16 %v5789
        %v6105 = vunpack.c.h.b16 %v5789
        %v6106 = vunpack.c.l.b16 %v5790
        %v6107 = vunpack.c.h.b16 %v5790
        %v6108 = vunpack.c.l.b16 %v5791
        %v6109 = vunpack.c.h.b16 %v5791
        %v6110 = vunpack.c.l.b16 %v5792
        %v6111 = vunpack.c.h.b16 %v5792
        %v6112 = vunpack.c.l.b16 %v5793
        %v6113 = vunpack.c.h.b16 %v5793
        %v6114 = vunpack.c.l.b16 %v5794
        %v6115 = vunpack.c.h.b16 %v5794
        %v6116 = vunpack.c.l.b16 %v5795
        %v6117 = vunpack.c.h.b16 %v5795
        %v6118 = vunpack.c.l.b16 %v5796
        %v6119 = vunpack.c.h.b16 %v5796
        %v6120 = vunpack.c.l.b16 %v5797
        %v6121 = vunpack.c.h.b16 %v5797
        %v6122 = vunpack.c.l.b16 %v5798
        %v6123 = vunpack.c.h.b16 %v5798
        %v6124 = vunpack.c.l.b16 %v5799
        %v6125 = vunpack.c.h.b16 %v5799
        %v6126 = vunpack.c.l.b16 %v5800
        %v6127 = vunpack.c.h.b16 %v5800
        %v6128 = vunpack.c.l.b16 %v5801
        %v6129 = vunpack.c.h.b16 %v5801
        %v6130 = vunpack.c.l.b16 %v5802
        %v6131 = vunpack.c.h.b16 %v5802
        %v6132 = vunpack.c.l.b16 %v5803
        %v6133 = vunpack.c.h.b16 %v5803
        %v6134 = vunpack.c.l.b16 %v5804
        %v6135 = vunpack.c.h.b16 %v5804
        %v6136 = vunpack.c.l.b16 %v5805
        %v6137 = vunpack.c.h.b16 %v5805
        %v6138 = vunpack.c.l.b16 %v5806
        %v6139 = vunpack.c.h.b16 %v5806
        %v6140 = vunpack.c.l.b16 %v5807
        %v6141 = vunpack.c.h.b16 %v5807
        %v6142 = vunpack.c.l.b16 %v5808
        %v6143 = vunpack.c.h.b16 %v5808
        %v6144 = vunpack.c.l.b16 %v5809
        %v6145 = vunpack.c.h.b16 %v5809
        %v6146 = vunpack.c.l.b16 %v5810
        %v6147 = vunpack.c.h.b16 %v5810
        %v6148 = vunpack.c.l.b16 %v5811
        %v6149 = vunpack.c.h.b16 %v5811
        %v6150 = vunpack.c.l.b16 %v5812
        %v6151 = vunpack.c.h.b16 %v5812
        %v6152 = vunpack.c.l.b16 %v5813
        %v6153 = vunpack.c.h.b16 %v5813
        %v6154 = vunpack.c.l.b16 %v5814
        %v6155 = vunpack.c.h.b16 %v5814
        %v6156 = vunpack.c.l.b16 %v5815
        %v6157 = vunpack.c.h.b16 %v5815
        %v6158 = vunpack.c.l.b16 %v5816
        %v6159 = vunpack.c.h.b16 %v5816
        %v6160 = vunpack.c.l.b16 %v5817
        %v6161 = vunpack.c.h.b16 %v5817
        %v6162 = vunpack.c.l.b16 %v5818
        %v6163 = vunpack.c.h.b16 %v5818
        %v6164 = vunpack.c.l.b16 %v5819
        %v6165 = vunpack.c.h.b16 %v5819
        %v6166 = vunpack.c.l.b16 %v5820
        %v6167 = vunpack.c.h.b16 %v5820
        %v6168 = vunpack.c.l.b16 %v5821
        %v6169 = vunpack.c.h.b16 %v5821
        %v6170 = vunpack.c.l.b16 %v5822
        %v6171 = vunpack.c.h.b16 %v5822
        %v6172 = vunpack.c.l.b16 %v5823
        %v6173 = vunpack.c.h.b16 %v5823
        %v6174 = vunpack.c.l.b16 %v5824
        %v6175 = vunpack.c.h.b16 %v5824
        %v6176 = vunpack.c.l.b16 %v5825
        %v6177 = vunpack.c.h.b16 %v5825
        %v6178 = vunpack.c.l.b16 %v5826
        %v6179 = vunpack.c.h.b16 %v5826
        %v6180 = vunpack.c.l.b16 %v5827
        %v6181 = vunpack.c.h.b16 %v5827
        %v6182 = vunpack.c.l.b16 %v5828
        %v6183 = vunpack.c.h.b16 %v5828
        %v6184 = vunpack.c.l.b16 %v5829
        %v6185 = vunpack.c.h.b16 %v5829
        %v6186 = vunpack.c.l.b16 %v5830
        %v6187 = vunpack.c.h.b16 %v5830
        %v6188 = vunpack.c.l.b16 %v5831
        %v6189 = vunpack.c.h.b16 %v5831
        %v6190 = vunpack.c.l.b16 %v5832
        %v6191 = vunpack.c.h.b16 %v5832
        %v6192 = vunpack.c.l.b16 %v5833
        %v6193 = vunpack.c.h.b16 %v5833
        %v6194 = vunpack.c.l.b16 %v5834
        %v6195 = vunpack.c.h.b16 %v5834
        %v6196 = vunpack.c.l.b16 %v5835
        %v6197 = vunpack.c.h.b16 %v5835
        %v6198 = vunpack.c.l.b16 %v5836
        %v6199 = vunpack.c.h.b16 %v5836
        %v6200 = vunpack.c.l.b16 %v5837
        %v6201 = vunpack.c.h.b16 %v5837
        %v6202 = vunpack.c.l.b16 %v5838
        %v6203 = vunpack.c.h.b16 %v5838
        %v6204 = vunpack.c.l.b16 %v5839
        %v6205 = vunpack.c.h.b16 %v5839
        %v6206 = vunpack.c.l.b16 %v5840
        %v6207 = vunpack.c.h.b16 %v5840
        %v6208 = vunpack.c.l.b16 %v5841
        %v6209 = vunpack.c.h.b16 %v5841
        %v6210 = vunpack.c.l.b16 %v5842
        %v6211 = vunpack.c.h.b16 %v5842
        %v6212 = vunpack.c.l.b16 %v5843
        %v6213 = vunpack.c.h.b16 %v5843
        %v6214 = vunpack.c.l.b16 %v5844
        %v6215 = vunpack.c.h.b16 %v5844
        %v6216 = vunpack.c.l.b16 %v5845
        %v6217 = vunpack.c.h.b16 %v5845
        %v6218 = vunpack.c.l.b16 %v5846
        %v6219 = vunpack.c.h.b16 %v5846
        %v6220 = vunpack.c.l.b16 %v5847
        %v6221 = vunpack.c.h.b16 %v5847
        %v6222 = vunpack.c.l.b16 %v5848
        %v6223 = vunpack.c.h.b16 %v5848
        %v6224 = vunpack.c.l.b16 %v5849
        %v6225 = vunpack.c.h.b16 %v5849
        %v6226 = vunpack.c.l.b16 %v5850
        %v6227 = vunpack.c.h.b16 %v5850
        %v6228 = vunpack.c.l.b16 %v5851
        %v6229 = vunpack.c.h.b16 %v5851
        %v6230 = vunpack.c.l.b16 %v5852
        %v6231 = vunpack.c.h.b16 %v5852
        %v6232 = vunpack.c.l.b16 %v5853
        %v6233 = vunpack.c.h.b16 %v5853
        %v6234 = vunpack.c.l.b16 %v5854
        %v6235 = vunpack.c.h.b16 %v5854
        %v6236 = vunpack.c.l.b16 %v5855
        %v6237 = vunpack.c.h.b16 %v5855
        %v6238 = vunpack.c.l.b16 %v5856
        %v6239 = vunpack.c.h.b16 %v5856
        %v6240 = vunpack.c.l.b16 %v5857
        %v6241 = vunpack.c.h.b16 %v5857
        %v6242 = vunpack.c.l.b16 %v5858
        %v6243 = vunpack.c.h.b16 %v5858
        %v6244 = vunpack.c.l.b16 %v5859
        %v6245 = vunpack.c.h.b16 %v5859
        %v6246 = vunpack.c.l.b16 %v5860
        %v6247 = vunpack.c.h.b16 %v5860
        %v6248 = vunpack.c.l.b16 %v5861
        %v6249 = vunpack.c.h.b16 %v5861
        %v6250 = vunpack.c.l.b16 %v5862
        %v6251 = vunpack.c.h.b16 %v5862
        %v6252 = vunpack.c.l.b16 %v5863
        %v6253 = vunpack.c.h.b16 %v5863
        %v6254 = vunpack.c.l.b16 %v5864
        %v6255 = vunpack.c.h.b16 %v5864
        %v6256 = vunpack.c.l.b16 %v5865
        %v6257 = vunpack.c.h.b16 %v5865
        %v6258 = vunpack.c.l.b16 %v5866
        %v6259 = vunpack.c.h.b16 %v5866
        %v6260 = vunpack.c.l.b16 %v5867
        %v6261 = vunpack.c.h.b16 %v5867
        %v6262 = vunpack.c.l.b16 %v5868
        %v6263 = vunpack.c.h.b16 %v5868
        %v6264 = vunpack.c.l.b16 %v5869
        %v6265 = vunpack.c.h.b16 %v5869
        %v6266 = vpack.c.b16 %v6012, %v6010
        %v6267 = vpack.c.b16 %v6013, %v6011
        %v6268 = vpack.c.b16 %v6016, %v6014
        %v6269 = vpack.c.b16 %v6017, %v6015
        %v6270 = vpack.c.b16 %v6020, %v6018
        %v6271 = vpack.c.b16 %v6021, %v6019
        %v6272 = vpack.c.b16 %v6024, %v6022
        %v6273 = vpack.c.b16 %v6025, %v6023
        %v6274 = vpack.c.b16 %v6028, %v6026
        %v6275 = vpack.c.b16 %v6029, %v6027
        %v6276 = vpack.c.b16 %v6032, %v6030
        %v6277 = vpack.c.b16 %v6033, %v6031
        %v6278 = vpack.c.b16 %v6036, %v6034
        %v6279 = vpack.c.b16 %v6037, %v6035
        %v6280 = vpack.c.b16 %v6040, %v6038
        %v6281 = vpack.c.b16 %v6041, %v6039
        %v6282 = vpack.c.b16 %v6044, %v6042
        %v6283 = vpack.c.b16 %v6045, %v6043
        %v6284 = vpack.c.b16 %v6048, %v6046
        %v6285 = vpack.c.b16 %v6049, %v6047
        %v6286 = vpack.c.b16 %v6052, %v6050
        %v6287 = vpack.c.b16 %v6053, %v6051
        %v6288 = vpack.c.b16 %v6056, %v6054
        %v6289 = vpack.c.b16 %v6057, %v6055
        %v6290 = vpack.c.b16 %v6060, %v6058
        %v6291 = vpack.c.b16 %v6061, %v6059
        %v6292 = vpack.c.b16 %v6064, %v6062
        %v6293 = vpack.c.b16 %v6065, %v6063
        %v6294 = vpack.c.b16 %v6068, %v6066
        %v6295 = vpack.c.b16 %v6069, %v6067
        %v6296 = vpack.c.b16 %v6072, %v6070
        %v6297 = vpack.c.b16 %v6073, %v6071
        %v6298 = vpack.c.b16 %v6076, %v6074
        %v6299 = vpack.c.b16 %v6077, %v6075
        %v6300 = vpack.c.b16 %v6080, %v6078
        %v6301 = vpack.c.b16 %v6081, %v6079
        %v6302 = vpack.c.b16 %v6084, %v6082
        %v6303 = vpack.c.b16 %v6085, %v6083
        %v6304 = vpack.c.b16 %v6088, %v6086
        %v6305 = vpack.c.b16 %v6089, %v6087
        %v6306 = vpack.c.b16 %v6092, %v6090
        %v6307 = vpack.c.b16 %v6093, %v6091
        %v6308 = vpack.c.b16 %v6096, %v6094
        %v6309 = vpack.c.b16 %v6097, %v6095
        %v6310 = vpack.c.b16 %v6100, %v6098
        %v6311 = vpack.c.b16 %v6101, %v6099
        %v6312 = vpack.c.b16 %v6104, %v6102
        %v6313 = vpack.c.b16 %v6105, %v6103
        %v6314 = vpack.c.b16 %v6108, %v6106
        %v6315 = vpack.c.b16 %v6109, %v6107
        %v6316 = vpack.c.b16 %v6112, %v6110
        %v6317 = vpack.c.b16 %v6113, %v6111
        %v6318 = vpack.c.b16 %v6116, %v6114
        %v6319 = vpack.c.b16 %v6117, %v6115
        %v6320 = vpack.c.b16 %v6120, %v6118
        %v6321 = vpack.c.b16 %v6121, %v6119
        %v6322 = vpack.c.b16 %v6124, %v6122
        %v6323 = vpack.c.b16 %v6125, %v6123
        %v6324 = vpack.c.b16 %v6128, %v6126
        %v6325 = vpack.c.b16 %v6129, %v6127
        %v6326 = vpack.c.b16 %v6132, %v6130
        %v6327 = vpack.c.b16 %v6133, %v6131
        %v6328 = vpack.c.b16 %v6136, %v6134
        %v6329 = vpack.c.b16 %v6137, %v6135
        %v6330 = vpack.c.b16 %v6140, %v6138
        %v6331 = vpack.c.b16 %v6141, %v6139
        %v6332 = vpack.c.b16 %v6144, %v6142
        %v6333 = vpack.c.b16 %v6145, %v6143
        %v6334 = vpack.c.b16 %v6148, %v6146
        %v6335 = vpack.c.b16 %v6149, %v6147
        %v6336 = vpack.c.b16 %v6152, %v6150
        %v6337 = vpack.c.b16 %v6153, %v6151
        %v6338 = vpack.c.b16 %v6156, %v6154
        %v6339 = vpack.c.b16 %v6157, %v6155
        %v6340 = vpack.c.b16 %v6160, %v6158
        %v6341 = vpack.c.b16 %v6161, %v6159
        %v6342 = vpack.c.b16 %v6164, %v6162
        %v6343 = vpack.c.b16 %v6165, %v6163
        %v6344 = vpack.c.b16 %v6168, %v6166
        %v6345 = vpack.c.b16 %v6169, %v6167
        %v6346 = vpack.c.b16 %v6172, %v6170
        %v6347 = vpack.c.b16 %v6173, %v6171
        %v6348 = vpack.c.b16 %v6176, %v6174
        %v6349 = vpack.c.b16 %v6177, %v6175
        %v6350 = vpack.c.b16 %v6180, %v6178
        %v6351 = vpack.c.b16 %v6181, %v6179
        %v6352 = vpack.c.b16 %v6184, %v6182
        %v6353 = vpack.c.b16 %v6185, %v6183
        %v6354 = vpack.c.b16 %v6188, %v6186
        %v6355 = vpack.c.b16 %v6189, %v6187
        %v6356 = vpack.c.b16 %v6192, %v6190
        %v6357 = vpack.c.b16 %v6193, %v6191
        %v6358 = vpack.c.b16 %v6196, %v6194
        %v6359 = vpack.c.b16 %v6197, %v6195
        %v6360 = vpack.c.b16 %v6200, %v6198
        %v6361 = vpack.c.b16 %v6201, %v6199
        %v6362 = vpack.c.b16 %v6204, %v6202
        %v6363 = vpack.c.b16 %v6205, %v6203
        %v6364 = vpack.c.b16 %v6208, %v6206
        %v6365 = vpack.c.b16 %v6209, %v6207
        %v6366 = vpack.c.b16 %v6212, %v6210
        %v6367 = vpack.c.b16 %v6213, %v6211
        %v6368 = vpack.c.b16 %v6216, %v6214
        %v6369 = vpack.c.b16 %v6217, %v6215
        %v6370 = vpack.c.b16 %v6220, %v6218
        %v6371 = vpack.c.b16 %v6221, %v6219
        %v6372 = vpack.c.b16 %v6224, %v6222
        %v6373 = vpack.c.b16 %v6225, %v6223
        %v6374 = vpack.c.b16 %v6228, %v6226
        %v6375 = vpack.c.b16 %v6229, %v6227
        %v6376 = vpack.c.b16 %v6232, %v6230
        %v6377 = vpack.c.b16 %v6233, %v6231
        %v6378 = vpack.c.b16 %v6236, %v6234
        %v6379 = vpack.c.b16 %v6237, %v6235
        %v6380 = vpack.c.b16 %v6240, %v6238
        %v6381 = vpack.c.b16 %v6241, %v6239
        %v6382 = vpack.c.b16 %v6244, %v6242
        %v6383 = vpack.c.b16 %v6245, %v6243
        %v6384 = vpack.c.b16 %v6248, %v6246
        %v6385 = vpack.c.b16 %v6249, %v6247
        %v6386 = vpack.c.b16 %v6252, %v6250
        %v6387 = vpack.c.b16 %v6253, %v6251
        %v6388 = vpack.c.b16 %v6256, %v6254
        %v6389 = vpack.c.b16 %v6257, %v6255
        %v6390 = vpack.c.b16 %v6260, %v6258
        %v6391 = vpack.c.b16 %v6261, %v6259
        %v6392 = vpack.c.b16 %v6264, %v6262
        %v6393 = vpack.c.b16 %v6265, %v6263
        %6522 = vmatprep.subr.bf16.mxu0 %v6281
        %6523 = vmatpush1.bf16.msra.mxu0 %v6280
        %6524 = vmatprep.subr.bf16.mxu0 %v6279
        %6525 = vmatpush1.bf16.msra.mxu0 %v6278
        %6526 = vmatprep.subr.bf16.mxu0 %v6277
        %6527 = vmatpush1.bf16.msra.mxu0 %v6276
        %6528 = vmatprep.subr.bf16.mxu0 %v6275
        %6529 = vmatpush1.bf16.msra.mxu0 %v6274
        %6530 = vmatprep.subr.bf16.mxu0 %v6273
        %6531 = vmatpush1.bf16.msra.mxu0 %v6272
        %6532 = vmatprep.subr.bf16.mxu0 %v6271
        %6533 = vmatpush1.bf16.msra.mxu0 %v6270
        %6534 = vmatprep.subr.bf16.mxu0 %v6269
        %6535 = vmatpush1.bf16.msra.mxu0 %v6268
        %6536 = vmatprep.subr.bf16.mxu0 %v6267
        %6537 = vmatpush1.bf16.msra.mxu0 %v6266
        %6538 = vmatprep.subr.bf16.mxu0 %v6297
        %6539 = vmatpush2.bf16.msra.mxu0 %v6296
        %6540 = vmatprep.subr.bf16.mxu0 %v6295
        %6541 = vmatpush2.bf16.msra.mxu0 %v6294
        %6542 = vmatprep.subr.bf16.mxu0 %v6293
        %6543 = vmatpush2.bf16.msra.mxu0 %v6292
        %6544 = vmatprep.subr.bf16.mxu0 %v6291
        %6545 = vmatpush2.bf16.msra.mxu0 %v6290
        %6546 = vmatprep.subr.bf16.mxu0 %v6289
        %6547 = vmatpush2.bf16.msra.mxu0 %v6288
        %6548 = vmatprep.subr.bf16.mxu0 %v6287
        %6549 = vmatpush2.bf16.msra.mxu0 %v6286
        %6550 = vmatprep.subr.bf16.mxu0 %v6285
        %6551 = vmatpush2.bf16.msra.mxu0 %v6284
        %6552 = vmatprep.subr.bf16.mxu0 %v6283
        %6553 = vmatpush2.bf16.msra.mxu0 %v6282
        %6554 = vmatprep.mubr.bf16.mxu0 %v5679
        %6555 = vmatmul.mubr.bf16.gmra.mxu0 %v5678
        %v6556 = vpop.f32.mrf.mxu0
        %v6557 = vadd.f32 %v5875, %v6556
        %v6558 = vpop.f32.mrf.mxu0
        %v6559 = vadd.f32 %v5879, %v6558
        %v6560 = vpop.f32.mrf.mxu0
        %v6561 = vadd.f32 %v5875, %v6560
        %v6562 = vpop.f32.mrf.mxu0
        %v6563 = vadd.f32 %v5879, %v6562
        %6564 = vmatprep.mubr.bf16.mxu0 %v5687
        %6565 = vmatmul.mubr.bf16.gmra.mxu0 %v5686
        %v6566 = vpop.f32.mrf.mxu0
        %v6567 = vadd.f32 %v5875, %v6566
        %v6568 = vpop.f32.mrf.mxu0
        %v6569 = vadd.f32 %v5879, %v6568
        %v6570 = vpop.f32.mrf.mxu0
        %v6571 = vadd.f32 %v5875, %v6570
        %v6572 = vpop.f32.mrf.mxu0
        %v6573 = vadd.f32 %v5879, %v6572
        %6574 = vmatprep.mubr.bf16.mxu0 %v5695
        %6575 = vmatmul.mubr.bf16.gmra.mxu0 %v5694
        %v6576 = vpop.f32.mrf.mxu0
        %v6577 = vadd.f32 %v5875, %v6576
        %v6578 = vpop.f32.mrf.mxu0
        %v6579 = vadd.f32 %v5879, %v6578
        %v6580 = vpop.f32.mrf.mxu0
        %v6581 = vadd.f32 %v5875, %v6580
        %v6582 = vpop.f32.mrf.mxu0
        %v6583 = vadd.f32 %v5879, %v6582
        %6584 = vmatprep.mubr.bf16.mxu0 %v5703
        %6585 = vmatmul.mubr.bf16.gmra.mxu0 %v5702
        %v6586 = vpop.f32.mrf.mxu0
        %v6587 = vadd.f32 %v5875, %v6586
        %v6588 = vpop.f32.mrf.mxu0
        %v6589 = vadd.f32 %v5879, %v6588
        %v6590 = vpop.f32.mrf.mxu0
        %v6591 = vadd.f32 %v5875, %v6590
        %v6592 = vpop.f32.mrf.mxu0
        %v6593 = vadd.f32 %v5879, %v6592
        %6594 = vmatprep.mubr.bf16.mxu0 %v5711
        %6595 = vmatmul.mubr.bf16.gmra.mxu0 %v5710
        %v6596 = vpop.f32.mrf.mxu0
        %v6597 = vadd.f32 %v5875, %v6596
        %v6598 = vpop.f32.mrf.mxu0
        %v6599 = vadd.f32 %v5879, %v6598
        %v6600 = vpop.f32.mrf.mxu0
        %v6601 = vadd.f32 %v5875, %v6600
        %v6602 = vpop.f32.mrf.mxu0
        %v6603 = vadd.f32 %v5879, %v6602
        %6604 = vmatprep.mubr.bf16.mxu0 %v5719
        %6605 = vmatmul.mubr.bf16.gmra.mxu0 %v5718
        %v6606 = vpop.f32.mrf.mxu0
        %v6607 = vadd.f32 %v5875, %v6606
        %v6608 = vpop.f32.mrf.mxu0
        %v6609 = vadd.f32 %v5879, %v6608
        %v6610 = vpop.f32.mrf.mxu0
        %v6611 = vadd.f32 %v5875, %v6610
        %v6612 = vpop.f32.mrf.mxu0
        %v6613 = vadd.f32 %v5879, %v6612
        %6614 = vmatprep.mubr.bf16.mxu0 %v5727
        %6615 = vmatmul.mubr.bf16.gmra.mxu0 %v5726
        %v6616 = vpop.f32.mrf.mxu0
        %v6617 = vadd.f32 %v5875, %v6616
        %v6618 = vpop.f32.mrf.mxu0
        %v6619 = vadd.f32 %v5879, %v6618
        %v6620 = vpop.f32.mrf.mxu0
        %v6621 = vadd.f32 %v5875, %v6620
        %v6622 = vpop.f32.mrf.mxu0
        %v6623 = vadd.f32 %v5879, %v6622
        %6624 = vmatprep.mubr.bf16.mxu0 %v5735
        %6625 = vmatmul.mubr.bf16.gmra.mxu0 %v5734
        %v6626 = vpop.f32.mrf.mxu0
        %v6627 = vadd.f32 %v5875, %v6626
        %v6628 = vpop.f32.mrf.mxu0
        %v6629 = vadd.f32 %v5879, %v6628
        %v6630 = vpop.f32.mrf.mxu0
        %v6631 = vadd.f32 %v5875, %v6630
        %v6632 = vpop.f32.mrf.mxu0
        %v6633 = vadd.f32 %v5879, %v6632
        %6634 = vdwg.mxu0
        %6635 = vmatprep.subr.bf16.mxu0 %v6313
        %6636 = vmatpush1.bf16.msra.mxu0 %v6312
        %6637 = vmatprep.subr.bf16.mxu0 %v6311
        %6638 = vmatpush1.bf16.msra.mxu0 %v6310
        %6639 = vmatprep.subr.bf16.mxu0 %v6309
        %6640 = vmatpush1.bf16.msra.mxu0 %v6308
        %6641 = vmatprep.subr.bf16.mxu0 %v6307
        %6642 = vmatpush1.bf16.msra.mxu0 %v6306
        %6643 = vmatprep.subr.bf16.mxu0 %v6305
        %6644 = vmatpush1.bf16.msra.mxu0 %v6304
        %6645 = vmatprep.subr.bf16.mxu0 %v6303
        %6646 = vmatpush1.bf16.msra.mxu0 %v6302
        %6647 = vmatprep.subr.bf16.mxu0 %v6301
        %6648 = vmatpush1.bf16.msra.mxu0 %v6300
        %6649 = vmatprep.subr.bf16.mxu0 %v6299
        %6650 = vmatpush1.bf16.msra.mxu0 %v6298
        %6651 = vmatprep.subr.bf16.mxu0 %v6329
        %6652 = vmatpush2.bf16.msra.mxu0 %v6328
        %6653 = vmatprep.subr.bf16.mxu0 %v6327
        %6654 = vmatpush2.bf16.msra.mxu0 %v6326
        %6655 = vmatprep.subr.bf16.mxu0 %v6325
        %6656 = vmatpush2.bf16.msra.mxu0 %v6324
        %6657 = vmatprep.subr.bf16.mxu0 %v6323
        %6658 = vmatpush2.bf16.msra.mxu0 %v6322
        %6659 = vmatprep.subr.bf16.mxu0 %v6321
        %6660 = vmatpush2.bf16.msra.mxu0 %v6320
        %6661 = vmatprep.subr.bf16.mxu0 %v6319
        %6662 = vmatpush2.bf16.msra.mxu0 %v6318
        %6663 = vmatprep.subr.bf16.mxu0 %v6317
        %6664 = vmatpush2.bf16.msra.mxu0 %v6316
        %6665 = vmatprep.subr.bf16.mxu0 %v6315
        %6666 = vmatpush2.bf16.msra.mxu0 %v6314
        %6667 = vmatprep.mubr.bf16.mxu0 %v5681
        %6668 = vmatmul.mubr.bf16.gmra.mxu0 %v5680
        %v6669 = vpop.f32.mrf.mxu0
        %v6670 = vadd.f32 %v6557, %v6669
        %v6671 = vpop.f32.mrf.mxu0
        %v6672 = vadd.f32 %v6559, %v6671
        %v6673 = vpop.f32.mrf.mxu0
        %v6674 = vadd.f32 %v6561, %v6673
        %v6675 = vpop.f32.mrf.mxu0
        %v6676 = vadd.f32 %v6563, %v6675
        %6677 = vmatprep.mubr.bf16.mxu0 %v5689
        %6678 = vmatmul.mubr.bf16.gmra.mxu0 %v5688
        %v6679 = vpop.f32.mrf.mxu0
        %v6680 = vadd.f32 %v6567, %v6679
        %v6681 = vpop.f32.mrf.mxu0
        %v6682 = vadd.f32 %v6569, %v6681
        %v6683 = vpop.f32.mrf.mxu0
        %v6684 = vadd.f32 %v6571, %v6683
        %v6685 = vpop.f32.mrf.mxu0
        %v6686 = vadd.f32 %v6573, %v6685
        %6687 = vmatprep.mubr.bf16.mxu0 %v5697
        %6688 = vmatmul.mubr.bf16.gmra.mxu0 %v5696
        %v6689 = vpop.f32.mrf.mxu0
        %v6690 = vadd.f32 %v6577, %v6689
        %v6691 = vpop.f32.mrf.mxu0
        %v6692 = vadd.f32 %v6579, %v6691
        %v6693 = vpop.f32.mrf.mxu0
        %v6694 = vadd.f32 %v6581, %v6693
        %v6695 = vpop.f32.mrf.mxu0
        %v6696 = vadd.f32 %v6583, %v6695
        %6697 = vmatprep.mubr.bf16.mxu0 %v5705
        %6698 = vmatmul.mubr.bf16.gmra.mxu0 %v5704
        %v6699 = vpop.f32.mrf.mxu0
        %v6700 = vadd.f32 %v6587, %v6699
        %v6701 = vpop.f32.mrf.mxu0
        %v6702 = vadd.f32 %v6589, %v6701
        %v6703 = vpop.f32.mrf.mxu0
        %v6704 = vadd.f32 %v6591, %v6703
        %v6705 = vpop.f32.mrf.mxu0
        %v6706 = vadd.f32 %v6593, %v6705
        %6707 = vmatprep.mubr.bf16.mxu0 %v5713
        %6708 = vmatmul.mubr.bf16.gmra.mxu0 %v5712
        %v6709 = vpop.f32.mrf.mxu0
        %v6710 = vadd.f32 %v6597, %v6709
        %v6711 = vpop.f32.mrf.mxu0
        %v6712 = vadd.f32 %v6599, %v6711
        %v6713 = vpop.f32.mrf.mxu0
        %v6714 = vadd.f32 %v6601, %v6713
        %v6715 = vpop.f32.mrf.mxu0
        %v6716 = vadd.f32 %v6603, %v6715
        %6717 = vmatprep.mubr.bf16.mxu0 %v5721
        %6718 = vmatmul.mubr.bf16.gmra.mxu0 %v5720
        %v6719 = vpop.f32.mrf.mxu0
        %v6720 = vadd.f32 %v6607, %v6719
        %v6721 = vpop.f32.mrf.mxu0
        %v6722 = vadd.f32 %v6609, %v6721
        %v6723 = vpop.f32.mrf.mxu0
        %v6724 = vadd.f32 %v6611, %v6723
        %v6725 = vpop.f32.mrf.mxu0
        %v6726 = vadd.f32 %v6613, %v6725
        %6727 = vmatprep.mubr.bf16.mxu0 %v5729
        %6728 = vmatmul.mubr.bf16.gmra.mxu0 %v5728
        %v6729 = vpop.f32.mrf.mxu0
        %v6730 = vadd.f32 %v6617, %v6729
        %v6731 = vpop.f32.mrf.mxu0
        %v6732 = vadd.f32 %v6619, %v6731
        %v6733 = vpop.f32.mrf.mxu0
        %v6734 = vadd.f32 %v6621, %v6733
        %v6735 = vpop.f32.mrf.mxu0
        %v6736 = vadd.f32 %v6623, %v6735
        %6737 = vmatprep.mubr.bf16.mxu0 %v5737
        %6738 = vmatmul.mubr.bf16.gmra.mxu0 %v5736
        %v6739 = vpop.f32.mrf.mxu0
        %v6740 = vadd.f32 %v6627, %v6739
        %v6741 = vpop.f32.mrf.mxu0
        %v6742 = vadd.f32 %v6629, %v6741
        %v6743 = vpop.f32.mrf.mxu0
        %v6744 = vadd.f32 %v6631, %v6743
        %v6745 = vpop.f32.mrf.mxu0
        %v6746 = vadd.f32 %v6633, %v6745
        %6747 = vdwg.mxu0
        %6748 = vmatprep.subr.bf16.mxu0 %v6345
        %6749 = vmatpush1.bf16.msra.mxu0 %v6344
        %6750 = vmatprep.subr.bf16.mxu0 %v6343
        %6751 = vmatpush1.bf16.msra.mxu0 %v6342
        %6752 = vmatprep.subr.bf16.mxu0 %v6341
        %6753 = vmatpush1.bf16.msra.mxu0 %v6340
        %6754 = vmatprep.subr.bf16.mxu0 %v6339
        %6755 = vmatpush1.bf16.msra.mxu0 %v6338
        %6756 = vmatprep.subr.bf16.mxu0 %v6337
        %6757 = vmatpush1.bf16.msra.mxu0 %v6336
        %6758 = vmatprep.subr.bf16.mxu0 %v6335
        %6759 = vmatpush1.bf16.msra.mxu0 %v6334
        %6760 = vmatprep.subr.bf16.mxu0 %v6333
        %6761 = vmatpush1.bf16.msra.mxu0 %v6332
        %6762 = vmatprep.subr.bf16.mxu0 %v6331
        %6763 = vmatpush1.bf16.msra.mxu0 %v6330
        %6764 = vmatprep.subr.bf16.mxu0 %v6361
        %6765 = vmatpush2.bf16.msra.mxu0 %v6360
        %6766 = vmatprep.subr.bf16.mxu0 %v6359
        %6767 = vmatpush2.bf16.msra.mxu0 %v6358
        %6768 = vmatprep.subr.bf16.mxu0 %v6357
        %6769 = vmatpush2.bf16.msra.mxu0 %v6356
        %6770 = vmatprep.subr.bf16.mxu0 %v6355
        %6771 = vmatpush2.bf16.msra.mxu0 %v6354
        %6772 = vmatprep.subr.bf16.mxu0 %v6353
        %6773 = vmatpush2.bf16.msra.mxu0 %v6352
        %6774 = vmatprep.subr.bf16.mxu0 %v6351
        %6775 = vmatpush2.bf16.msra.mxu0 %v6350
        %6776 = vmatprep.subr.bf16.mxu0 %v6349
        %6777 = vmatpush2.bf16.msra.mxu0 %v6348
        %6778 = vmatprep.subr.bf16.mxu0 %v6347
        %6779 = vmatpush2.bf16.msra.mxu0 %v6346
        %6780 = vmatprep.mubr.bf16.mxu0 %v5683
        %6781 = vmatmul.mubr.bf16.gmra.mxu0 %v5682
        %v6782 = vpop.f32.mrf.mxu0
        %v6783 = vadd.f32 %v6670, %v6782
        %v6784 = vpop.f32.mrf.mxu0
        %v6785 = vadd.f32 %v6672, %v6784
        %v6786 = vpop.f32.mrf.mxu0
        %v6787 = vadd.f32 %v6674, %v6786
        %v6788 = vpop.f32.mrf.mxu0
        %v6789 = vadd.f32 %v6676, %v6788
        %6790 = vmatprep.mubr.bf16.mxu0 %v5691
        %6791 = vmatmul.mubr.bf16.gmra.mxu0 %v5690
        %v6792 = vpop.f32.mrf.mxu0
        %v6793 = vadd.f32 %v6680, %v6792
        %v6794 = vpop.f32.mrf.mxu0
        %v6795 = vadd.f32 %v6682, %v6794
        %v6796 = vpop.f32.mrf.mxu0
        %v6797 = vadd.f32 %v6684, %v6796
        %v6798 = vpop.f32.mrf.mxu0
        %v6799 = vadd.f32 %v6686, %v6798
        %6800 = vmatprep.mubr.bf16.mxu0 %v5699
        %6801 = vmatmul.mubr.bf16.gmra.mxu0 %v5698
        %v6802 = vpop.f32.mrf.mxu0
        %v6803 = vadd.f32 %v6690, %v6802
        %v6804 = vpop.f32.mrf.mxu0
        %v6805 = vadd.f32 %v6692, %v6804
        %v6806 = vpop.f32.mrf.mxu0
        %v6807 = vadd.f32 %v6694, %v6806
        %v6808 = vpop.f32.mrf.mxu0
        %v6809 = vadd.f32 %v6696, %v6808
        %6810 = vmatprep.mubr.bf16.mxu0 %v5707
        %6811 = vmatmul.mubr.bf16.gmra.mxu0 %v5706
        %v6812 = vpop.f32.mrf.mxu0
        %v6813 = vadd.f32 %v6700, %v6812
        %v6814 = vpop.f32.mrf.mxu0
        %v6815 = vadd.f32 %v6702, %v6814
        %v6816 = vpop.f32.mrf.mxu0
        %v6817 = vadd.f32 %v6704, %v6816
        %v6818 = vpop.f32.mrf.mxu0
        %v6819 = vadd.f32 %v6706, %v6818
        %6820 = vmatprep.mubr.bf16.mxu0 %v5715
        %6821 = vmatmul.mubr.bf16.gmra.mxu0 %v5714
        %v6822 = vpop.f32.mrf.mxu0
        %v6823 = vadd.f32 %v6710, %v6822
        %v6824 = vpop.f32.mrf.mxu0
        %v6825 = vadd.f32 %v6712, %v6824
        %v6826 = vpop.f32.mrf.mxu0
        %v6827 = vadd.f32 %v6714, %v6826
        %v6828 = vpop.f32.mrf.mxu0
        %v6829 = vadd.f32 %v6716, %v6828
        %6830 = vmatprep.mubr.bf16.mxu0 %v5723
        %6831 = vmatmul.mubr.bf16.gmra.mxu0 %v5722
        %v6832 = vpop.f32.mrf.mxu0
        %v6833 = vadd.f32 %v6720, %v6832
        %v6834 = vpop.f32.mrf.mxu0
        %v6835 = vadd.f32 %v6722, %v6834
        %v6836 = vpop.f32.mrf.mxu0
        %v6837 = vadd.f32 %v6724, %v6836
        %v6838 = vpop.f32.mrf.mxu0
        %v6839 = vadd.f32 %v6726, %v6838
        %6840 = vmatprep.mubr.bf16.mxu0 %v5731
        %6841 = vmatmul.mubr.bf16.gmra.mxu0 %v5730
        %v6842 = vpop.f32.mrf.mxu0
        %v6843 = vadd.f32 %v6730, %v6842
        %v6844 = vpop.f32.mrf.mxu0
        %v6845 = vadd.f32 %v6732, %v6844
        %v6846 = vpop.f32.mrf.mxu0
        %v6847 = vadd.f32 %v6734, %v6846
        %v6848 = vpop.f32.mrf.mxu0
        %v6849 = vadd.f32 %v6736, %v6848
        %6850 = vmatprep.mubr.bf16.mxu0 %v5739
        %6851 = vmatmul.mubr.bf16.gmra.mxu0 %v5738
        %v6852 = vpop.f32.mrf.mxu0
        %v6853 = vadd.f32 %v6740, %v6852
        %v6854 = vpop.f32.mrf.mxu0
        %v6855 = vadd.f32 %v6742, %v6854
        %v6856 = vpop.f32.mrf.mxu0
        %v6857 = vadd.f32 %v6744, %v6856
        %v6858 = vpop.f32.mrf.mxu0
        %v6859 = vadd.f32 %v6746, %v6858
        %6860 = vdwg.mxu0
        %6861 = vmatprep.subr.bf16.mxu0 %v6377
        %6862 = vmatpush1.bf16.msra.mxu0 %v6376
        %6863 = vmatprep.subr.bf16.mxu0 %v6375
        %6864 = vmatpush1.bf16.msra.mxu0 %v6374
        %6865 = vmatprep.subr.bf16.mxu0 %v6373
        %6866 = vmatpush1.bf16.msra.mxu0 %v6372
        %6867 = vmatprep.subr.bf16.mxu0 %v6371
        %6868 = vmatpush1.bf16.msra.mxu0 %v6370
        %6869 = vmatprep.subr.bf16.mxu0 %v6369
        %6870 = vmatpush1.bf16.msra.mxu0 %v6368
        %6871 = vmatprep.subr.bf16.mxu0 %v6367
        %6872 = vmatpush1.bf16.msra.mxu0 %v6366
        %6873 = vmatprep.subr.bf16.mxu0 %v6365
        %6874 = vmatpush1.bf16.msra.mxu0 %v6364
        %6875 = vmatprep.subr.bf16.mxu0 %v6363
        %6876 = vmatpush1.bf16.msra.mxu0 %v6362
        %6877 = vmatprep.subr.bf16.mxu0 %v6393
        %6878 = vmatpush2.bf16.msra.mxu0 %v6392
        %6879 = vmatprep.subr.bf16.mxu0 %v6391
        %6880 = vmatpush2.bf16.msra.mxu0 %v6390
        %6881 = vmatprep.subr.bf16.mxu0 %v6389
        %6882 = vmatpush2.bf16.msra.mxu0 %v6388
        %6883 = vmatprep.subr.bf16.mxu0 %v6387
        %6884 = vmatpush2.bf16.msra.mxu0 %v6386
        %6885 = vmatprep.subr.bf16.mxu0 %v6385
        %6886 = vmatpush2.bf16.msra.mxu0 %v6384
        %6887 = vmatprep.subr.bf16.mxu0 %v6383
        %6888 = vmatpush2.bf16.msra.mxu0 %v6382
        %6889 = vmatprep.subr.bf16.mxu0 %v6381
        %6890 = vmatpush2.bf16.msra.mxu0 %v6380
        %6891 = vmatprep.subr.bf16.mxu0 %v6379
        %6892 = vmatpush2.bf16.msra.mxu0 %v6378
        %6893 = vmatprep.mubr.bf16.mxu0 %v5685
        %6894 = vmatmul.mubr.bf16.gmra.mxu0 %v5684
        %v6895 = vpop.f32.mrf.mxu0
        %v6896 = vadd.f32 %v6783, %v6895
        %v6897 = vpop.f32.mrf.mxu0
        %v6898 = vadd.f32 %v6785, %v6897
        %v6899 = vpop.f32.mrf.mxu0
        %v6900 = vadd.f32 %v6787, %v6899
        %v6901 = vpop.f32.mrf.mxu0
        %v6902 = vadd.f32 %v6789, %v6901
        %6903 = vmatprep.mubr.bf16.mxu0 %v5693
        %6904 = vmatmul.mubr.bf16.gmra.mxu0 %v5692
        %v6905 = vpop.f32.mrf.mxu0
        %v6906 = vadd.f32 %v6793, %v6905
        %v6907 = vpop.f32.mrf.mxu0
        %v6908 = vadd.f32 %v6795, %v6907
        %v6909 = vpop.f32.mrf.mxu0
        %v6910 = vadd.f32 %v6797, %v6909
        %v6911 = vpop.f32.mrf.mxu0
        %v6912 = vadd.f32 %v6799, %v6911
        %6913 = vmatprep.mubr.bf16.mxu0 %v5701
        %6914 = vmatmul.mubr.bf16.gmra.mxu0 %v5700
        %v6915 = vpop.f32.mrf.mxu0
        %v6916 = vadd.f32 %v6803, %v6915
        %v6917 = vpop.f32.mrf.mxu0
        %v6918 = vadd.f32 %v6805, %v6917
        %v6919 = vpop.f32.mrf.mxu0
        %v6920 = vadd.f32 %v6807, %v6919
        %v6921 = vpop.f32.mrf.mxu0
        %v6922 = vadd.f32 %v6809, %v6921
        %6923 = vmatprep.mubr.bf16.mxu0 %v5709
        %6924 = vmatmul.mubr.bf16.gmra.mxu0 %v5708
        %v6925 = vpop.f32.mrf.mxu0
        %v6926 = vadd.f32 %v6813, %v6925
        %v6927 = vpop.f32.mrf.mxu0
        %v6928 = vadd.f32 %v6815, %v6927
        %v6929 = vpop.f32.mrf.mxu0
        %v6930 = vadd.f32 %v6817, %v6929
        %v6931 = vpop.f32.mrf.mxu0
        %v6932 = vadd.f32 %v6819, %v6931
        %6933 = vmatprep.mubr.bf16.mxu0 %v5717
        %6934 = vmatmul.mubr.bf16.gmra.mxu0 %v5716
        %v6935 = vpop.f32.mrf.mxu0
        %v6936 = vadd.f32 %v6823, %v6935
        %v6937 = vpop.f32.mrf.mxu0
        %v6938 = vadd.f32 %v6825, %v6937
        %v6939 = vpop.f32.mrf.mxu0
        %v6940 = vadd.f32 %v6827, %v6939
        %v6941 = vpop.f32.mrf.mxu0
        %v6942 = vadd.f32 %v6829, %v6941
        %6943 = vmatprep.mubr.bf16.mxu0 %v5725
        %6944 = vmatmul.mubr.bf16.gmra.mxu0 %v5724
        %v6945 = vpop.f32.mrf.mxu0
        %v6946 = vadd.f32 %v6833, %v6945
        %v6947 = vpop.f32.mrf.mxu0
        %v6948 = vadd.f32 %v6835, %v6947
        %v6949 = vpop.f32.mrf.mxu0
        %v6950 = vadd.f32 %v6837, %v6949
        %v6951 = vpop.f32.mrf.mxu0
        %v6952 = vadd.f32 %v6839, %v6951
        %6953 = vmatprep.mubr.bf16.mxu0 %v5733
        %6954 = vmatmul.mubr.bf16.gmra.mxu0 %v5732
        %v6955 = vpop.f32.mrf.mxu0
        %v6956 = vadd.f32 %v6843, %v6955
        %v6957 = vpop.f32.mrf.mxu0
        %v6958 = vadd.f32 %v6845, %v6957
        %v6959 = vpop.f32.mrf.mxu0
        %v6960 = vadd.f32 %v6847, %v6959
        %v6961 = vpop.f32.mrf.mxu0
        %v6962 = vadd.f32 %v6849, %v6961
        %6963 = vmatprep.mubr.bf16.mxu0 %v5741
        %6964 = vmatmul.mubr.bf16.gmra.mxu0 %v5740
        %v6965 = vpop.f32.mrf.mxu0
        %v6966 = vadd.f32 %v6853, %v6965
        %v6967 = vpop.f32.mrf.mxu0
        %v6968 = vadd.f32 %v6855, %v6967
        %v6969 = vpop.f32.mrf.mxu0
        %v6970 = vadd.f32 %v6857, %v6969
        %v6971 = vpop.f32.mrf.mxu0
        %v6972 = vadd.f32 %v6859, %v6971
        %6973 = vdwg.mxu0
        %v6974 = vlaneseq
        %v6975 = vshrl.u32 %v6974, 7
        %v6976 = vsub.s32 5, %v6975
        %v6977 = vrot.slane %v431, %v6976
        %v6978 = vlaneseq
        %v6979 = vshrl.u32 %v6978, 7
        %v6980 = vsub.s32 5, %v6979
        %v6981 = vrot.slane %v432, %v6980
        %v6982 = vmul.f32 %v6977, %v6896
        %v6983 = vmul.f32 %v6981, %v6898
        %v6984 = vmul.f32 %v6977, %v6900
        %v6985 = vmul.f32 %v6981, %v6902
        %v6986 = vmul.f32 %v6977, %v6906
        %v6987 = vmul.f32 %v6981, %v6908
        %v6988 = vmul.f32 %v6977, %v6910
        %v6989 = vmul.f32 %v6981, %v6912
        %v6990 = vmul.f32 %v6977, %v6916
        %v6991 = vmul.f32 %v6981, %v6918
        %v6992 = vmul.f32 %v6977, %v6920
        %v6993 = vmul.f32 %v6981, %v6922
        %v6994 = vmul.f32 %v6977, %v6926
        %v6995 = vmul.f32 %v6981, %v6928
        %v6996 = vmul.f32 %v6977, %v6930
        %v6997 = vmul.f32 %v6981, %v6932
        %v6998 = vmul.f32 %v6977, %v6936
        %v6999 = vmul.f32 %v6981, %v6938
        %v7000 = vmul.f32 %v6977, %v6940
        %v7001 = vmul.f32 %v6981, %v6942
        %v7002 = vmul.f32 %v6977, %v6946
        %v7003 = vmul.f32 %v6981, %v6948
        %v7004 = vmul.f32 %v6977, %v6950
        %v7005 = vmul.f32 %v6981, %v6952
        %v7006 = vmul.f32 %v6977, %v6956
        %v7007 = vmul.f32 %v6981, %v6958
        %v7008 = vmul.f32 %v6977, %v6960
        %v7009 = vmul.f32 %v6981, %v6962
        %v7010 = vmul.f32 %v6977, %v6966
        %v7011 = vmul.f32 %v6981, %v6968
        %v7012 = vmul.f32 %v6977, %v6970
        %v7013 = vmul.f32 %v6981, %v6972
        %v7014 = vadd.f32 %v2880, %v6982
        %v7015 = vadd.f32 %v2881, %v6983
        %v7016 = vadd.f32 %v2882, %v6984
        %v7017 = vadd.f32 %v2883, %v6985
        %v7018 = vadd.f32 %v2884, %v6986
        %v7019 = vadd.f32 %v2885, %v6987
        %v7020 = vadd.f32 %v2886, %v6988
        %v7021 = vadd.f32 %v2887, %v6989
        %v7022 = vadd.f32 %v2888, %v6990
        %v7023 = vadd.f32 %v2889, %v6991
        %v7024 = vadd.f32 %v2890, %v6992
        %v7025 = vadd.f32 %v2891, %v6993
        %v7026 = vadd.f32 %v2892, %v6994
        %v7027 = vadd.f32 %v2893, %v6995
        %v7028 = vadd.f32 %v2894, %v6996
        %v7029 = vadd.f32 %v2895, %v6997
        %v7030 = vadd.f32 %v2896, %v6998
        %v7031 = vadd.f32 %v2897, %v6999
        %v7032 = vadd.f32 %v2898, %v7000
        %v7033 = vadd.f32 %v2899, %v7001
        %v7034 = vadd.f32 %v2900, %v7002
        %v7035 = vadd.f32 %v2901, %v7003
        %v7036 = vadd.f32 %v2902, %v7004
        %v7037 = vadd.f32 %v2903, %v7005
        %v7038 = vadd.f32 %v2904, %v7006
        %v7039 = vadd.f32 %v2905, %v7007
        %v7040 = vadd.f32 %v2906, %v7008
        %v7041 = vadd.f32 %v2907, %v7009
        %v7042 = vadd.f32 %v2908, %v7010
        %v7043 = vadd.f32 %v2909, %v7011
        %v7044 = vadd.f32 %v2910, %v7012
        %v7045 = vadd.f32 %v2911, %v7013
        %7046 = vst [vmem:[%s392] sm:$0xff] %v7014
        %7047 = vst [vmem:[%s392 + $0x8] sm:$0xff] %v7015
        %7048 = vst [vmem:[%s392 + $0x10] sm:$0xff] %v7016
        %7049 = vst [vmem:[%s392 + $0x18] sm:$0xff] %v7017
        %7050 = vst [vmem:[%s392 + $0x20] sm:$0xff] %v7018
        %7051 = vst [vmem:[%s392 + $0x28] sm:$0xff] %v7019
        %7052 = vst [vmem:[%s392 + $0x30] sm:$0xff] %v7020
        %7053 = vst [vmem:[%s392 + $0x38] sm:$0xff] %v7021
        %7054 = vst [vmem:[%s392 + $0x40] sm:$0xff] %v7022
        %7055 = vst [vmem:[%s392 + $0x48] sm:$0xff] %v7023
        %7056 = vst [vmem:[%s392 + $0x50] sm:$0xff] %v7024
        %7057 = vst [vmem:[%s392 + $0x58] sm:$0xff] %v7025
        %7058 = vst [vmem:[%s392 + $0x60] sm:$0xff] %v7026
        %7059 = vst [vmem:[%s392 + $0x68] sm:$0xff] %v7027
        %7060 = vst [vmem:[%s392 + $0x70] sm:$0xff] %v7028
        %7061 = vst [vmem:[%s392 + $0x78] sm:$0xff] %v7029
        %7062 = vst [vmem:[%s392 + $0x80] sm:$0xff] %v7030
        %7063 = vst [vmem:[%s392 + $0x88] sm:$0xff] %v7031
        %7064 = vst [vmem:[%s392 + $0x90] sm:$0xff] %v7032
        %7065 = vst [vmem:[%s392 + $0x98] sm:$0xff] %v7033
        %7066 = vst [vmem:[%s392 + $0xa0] sm:$0xff] %v7034
        %7067 = vst [vmem:[%s392 + $0xa8] sm:$0xff] %v7035
        %7068 = vst [vmem:[%s392 + $0xb0] sm:$0xff] %v7036
        %7069 = vst [vmem:[%s392 + $0xb8] sm:$0xff] %v7037
        %7070 = vst [vmem:[%s392 + $0xc0] sm:$0xff] %v7038
        %7071 = vst [vmem:[%s392 + $0xc8] sm:$0xff] %v7039
        %7072 = vst [vmem:[%s392 + $0xd0] sm:$0xff] %v7040
        %7073 = vst [vmem:[%s392 + $0xd8] sm:$0xff] %v7041
        %7074 = vst [vmem:[%s392 + $0xe0] sm:$0xff] %v7042
        %7075 = vst [vmem:[%s392 + $0xe8] sm:$0xff] %v7043
        %7076 = vst [vmem:[%s392 + $0xf0] sm:$0xff] %v7044
        %7077 = vst [vmem:[%s392 + $0xf8] sm:$0xff] %v7045
        %s7078 = sand.u32 %s255, 1
        %s7079 = scalar_lea.sflag [#allocation4], %s7078
        %s7080 = sand.u32 %s255, 1
        %s7081 = smul.addr %s7080, 256
        %s7082 = scalar_lea.vmem [#allocation5], %s7081
        // Predicated region
        $region65: #{block_forward.1} parent=59 // pred_check
          %p7083 = pneg %p265
        $region66: #{block_forward.1} parent=59 // pred_check_branch
          %7085 = sbr.rel (%p7083) target = $region68
        $region67: #{block_forward.1} parent=59 // pred_region
          %s7087 = ssub.s32 4096, 4096
          %7088 = vsyncadd %s7079, %s7087
          %s7089 = smul.addr %s27, 32
          %s7090 = smul.addr %s7089, 128
          %s7091 = scalar_lea.hbm %s10, %s7090
          %s7092 = sshll.u32 %s7082, 4
          %s7093 = int_to_ptr.vmem [resolvable:$true] %s7092
          %7098 = dma.vmem_to_hbm [thread:$0]  %s7093, 4096, %s7091, %s7079, 256, 256, 16
        $region68: #{block_forward.1} parent=59 // pred_fallthru
          _
      $region60: #{block_forward.1} parent=5 // pred_fallthru
        _
      %p7099 = scmp.le.s32.totalorder 2, %s22
      // Predicated region
      $region69: #{block_forward.1} parent=5 // pred_check
        %p7100 = pneg %p7099
      $region70: #{block_forward.1} parent=5 // pred_check_branch
        %7102 = sbr.rel (%p7100) target = $region72
      $region71: #{block_forward.1} parent=5 // pred_region
        %s7103 = ssub.s32 %s22, 2
        // Predicated region
        $region73: #{block_forward.1} parent=71 // pred_check
          %p7104 = pneg %p271
        $region74: #{block_forward.1} parent=71 // pred_check_branch
          %7106 = sbr.rel (%p7104) target = $region76
        $region75: #{block_forward.1} parent=71 // pred_region
          %s7107 = sand.u32 %s256, 1
          %s7108 = scalar_lea.sflag [#allocation4], %s7107
          %s7109 = sand.u32 %s256, 1
          %s7110 = smul.addr %s7109, 256
          %s7111 = scalar_lea.vmem [#allocation5], %s7110
          %7112 = dma.done %s7108, 4096
        $region76: #{block_forward.1} parent=71 // pred_fallthru
          _
      $region72: #{block_forward.1} parent=5 // pred_fallthru
        _
    $region6: #{block_forward.1} parent=1 // loop_footer
      %s26 = sadd.s32 1, %s22
    $region7: #{block_forward.1} parent=1 // loop_footer_branch
      %21 = sbr.rel target = $region3
    $region8: #{block_forward.1} parent=1 // loop_exit
      _
    %7113 = vsyncpa [#allocation3], 1
    %s7114 = scalar_lea.sflag [#allocation3], 1
    %7115 = vsyncpa %s7114, 1
    %7116 = vsyncpa [#allocation4], 1
    %s7117 = scalar_lea.sflag [#allocation4], 1
    %7118 = vsyncpa %s7117, 1

</llo_original>
